<compile_context>
chip_gen: v7x
topology: tpu7x:2x2x1
jax: 0.10.0
libtpu: 0.0.40
codegen_flags: <defaults>
</compile_context>

<pallas_src>
import functools
import math

import numpy as np
import jax
import jax.numpy as jnp
from jax.experimental import pallas as pl
from jax.experimental.pallas import tpu as pltpu  # noqa: F401  (TPU backend)


# ----------------------------- small config ---------------------------------
class C:
    WORD_EMBED_SIZE = 32
    HIDDEN_SIZE = 32
    MULTI_HEAD = 4
    FF_SIZE = 64
    LAYER = 2
    DROPOUT_R = 0.1          # eval mode -> dropout is identity
    FRCN_FEAT_SIZE = 64
    USE_GLOVE = False
    USE_BBOX_FEAT = False    # adapter uses only frcn_feat


TOKEN_SIZE = 20
ANSWER_SIZE = 10
TOKEN_TO_IX = {"PAD": 0, "CLS": 1, "IMG": 2}

_LAYER_PARAM_KEYS = ("wqkv", "bqkv", "wo", "bo", "ln1g", "ln1b",
                     "w1", "b1", "w2", "b2", "ln2g", "ln2b")


# ------------------------------ shared helpers --------------------------------
def _ln_rows(x, g, b, eps):
    """openvqa LayerNorm: unbiased std (ddof=1), eps added to std. x:(R,D) g,b:(1,D)."""
    mean = jnp.mean(x, axis=-1, keepdims=True)
    var = jnp.sum((x - mean) ** 2, axis=-1, keepdims=True) / (x.shape[-1] - 1)
    return g * (x - mean) / (jnp.sqrt(var) + eps) + b


def _head_block_mask(nh, L):
    """(nh*L, nh*L) additive mask: 0 inside a head block, -1e30 across heads."""
    blk = np.arange(nh * L) // L
    return jnp.asarray(
        np.where(blk[:, None] == blk[None, :], 0.0, -1e30).astype(np.float32))


# ------------------------- the single fused kernel ----------------------------
def _fused_net_kernel(*refs, T, B, N, nh, nl, eps, cls_ix, img_ix):
    (ids_ref, frcn_ref, tmask_ref, imask_ref, blkt_ref, blki_ref,
     emb_ref, wihf_ref, wihb_ref, whh_ref, bf_ref, bb_ref,
     pjw_ref, pjb_ref, tkw_ref, tkb_ref, frw_ref, frb_ref) = refs[0:18]
    t_bb = refs[18:30]
    i_bb = refs[30:42]
    (tpw_ref, tpb_ref, ipw_ref, ipb_ref, dw_ref, db_ref,
     lng_ref, lnb_ref, cw_ref, cb_ref) = refs[42:52]
    logit_ref, tattn_ref, iattn_ref = refs[52], refs[53], refs[54]

    f32 = jnp.float32
    V, _E = emb_ref.shape
    H = wihf_ref.shape[1] // 4
    D = pjw_ref.shape[1]
    Lt, Li = 1 + T, 1 + N
    dh = D // nh
    scale = 1.0 / math.sqrt(dh)

    def mm(a, w, b=None):
        # matmul with operands cast to the (bf16) weight dtype, f32 accumulation
        out = jnp.dot(a.astype(w.dtype), w, preferred_element_type=f32)
        return out if b is None else out + b

    # ---- 1) embedding gather as one-hot matmul (exact, f32) ------------------
    ids = ids_ref[...]                                              # (T*B, 1) int32
    col = jax.lax.broadcasted_iota(jnp.int32, (T * B, V), 1)
    onehot = (ids == col).astype(f32)                               # (T*B, V)
    emb_tab = emb_ref[...]                                          # (V, E) f32
    x_tm = jnp.dot(onehot, emb_tab, preferred_element_type=f32)     # (T*B, E) time-major

    # ---- 2) bidirectional LSTM (merged recurrence) + lstm_proj ---------------
    gxf = mm(x_tm, wihf_ref[...], bf_ref[...])                      # (T*B, 4H)
    gxb = mm(x_tm, wihb_ref[...], bb_ref[...])                      # (T*B, 4H)
    whh = whh_ref[...]                                              # (2H, 8H) block-diag bf16

    def cell(g, c):
        ig = jax.nn.sigmoid(g[:, 0:H])
        fg = jax.nn.sigmoid(g[:, H:2 * H])
        gg = jnp.tanh(g[:, 2 * H:3 * H])
        og = jax.nn.sigmoid(g[:, 3 * H:4 * H])
        c = fg * c + ig * gg
        return og * jnp.tanh(c), c

    cf = jnp.zeros((B, H), f32)
    cb = jnp.zeros((B, H), f32)
    hf = [None] * T
    hb = [None] * T
    h2 = None
    for s in range(T):                                              # static unroll (T small)
        if s == 0:
            gf = gxf[0:B, :]
            gb = gxb[(T - 1) * B:T * B, :]
        else:
            hh = mm(h2, whh)                                        # one fused (B,2H)@(2H,8H)
            gf = gxf[s * B:(s + 1) * B, :] + hh[:, :4 * H]
            gb = gxb[(T - 1 - s) * B:(T - s) * B, :] + hh[:, 4 * H:]
        hft, cf = cell(gf, cf)                                      # forward time s
        hbt, cb = cell(gb, cb)                                      # backward time T-1-s
        hf[s] = hft
        hb[T - 1 - s] = hbt
        h2 = jnp.concatenate([hft, hbt], axis=1)                    # (B, 2H)

    hcat = jnp.concatenate(
        [jnp.concatenate([hf[t], hb[t]], axis=1) for t in range(T)], axis=0)   # (T*B, 2H)
    text_body = mm(hcat, pjw_ref[...], pjb_ref[...])                # (T*B, D), time-major

    # ---- 3) CLS/IMG token projection + image adapter -------------------------
    tok_emb = jnp.concatenate([emb_tab[cls_ix:cls_ix + 1, :],
                               emb_tab[img_ix:img_ix + 1, :]], axis=0)          # (2, E)
    tokp = mm(tok_emb, tkw_ref[...], tkb_ref[...])                  # (2, D)
    cls_row = tokp[0:1, :]
    imgtok_row = tokp[1:2, :]
    imgp = mm(frcn_ref[...], frw_ref[...], frb_ref[...])            # (B*N, D)

    # ---- 4) masks (make_mask semantics: abs-sum == 0) -------------------------
    cls_add = jnp.where(jnp.sum(jnp.abs(cls_row), axis=-1, keepdims=True) == 0.0,
                        -1e9, 0.0)                                  # (1, 1)
    imgtok_add = jnp.where(jnp.sum(jnp.abs(imgtok_row), axis=-1, keepdims=True) == 0.0,
                           -1e9, 0.0)                               # (1, 1)
    tmask = tmask_ref[...]                                          # (B, T) additive
    imask = imask_ref[...]                                          # (B, N) additive
    t_mrows = [jnp.concatenate([cls_add, tmask[b:b + 1, :]], axis=1) for b in range(B)]
    i_mrows = [jnp.concatenate([imgtok_add, imask[b:b + 1, :]], axis=1) for b in range(B)]

    # ---- 5) assemble batch-stacked (B*L, D) slabs -----------------------------
    text_parts, img_parts = [], []
    for b in range(B):
        text_parts.append(cls_row)
        text_parts += [text_body[t * B + b:t * B + b + 1, :] for t in range(T)]
        img_parts.append(imgtok_row)
        img_parts.append(imgp[b * N:(b + 1) * N, :])
    x_text = jnp.concatenate(text_parts, axis=0)                    # (B*Lt, D)
    x_img = jnp.concatenate(img_parts, axis=0)                      # (B*Li, D)

    # ---- 6) fused BERT stacks (all layers, heads stacked) ---------------------
    def bert_stack(x, mrows, blk, prefs, attn_ref, L):
        (wqkv_r, bqkv_r, wo_r, bo_r, g1_r, be1_r,
         w1_r, b1_r, w2_r, b2_r, g2_r, be2_r) = prefs
        kmask = [jnp.concatenate([mrows[b]] * nh, axis=1) for b in range(B)]   # (1, nh*L)
        for l in range(nl):
            qkv = mm(x, wqkv_r[l], bqkv_r[l])                       # (B*L, 3D)
            ctx_parts = []
            for b in range(B):
                qkv_b = qkv[b * L:(b + 1) * L, :]
                qs = jnp.concatenate([qkv_b[:, h * dh:(h + 1) * dh]
                                      for h in range(nh)], axis=0)              # (nh*L, dh)
                ks = jnp.concatenate([qkv_b[:, D + h * dh:D + (h + 1) * dh]
                                      for h in range(nh)], axis=0)
                vs = jnp.concatenate([qkv_b[:, 2 * D + h * dh:2 * D + (h + 1) * dh]
                                      for h in range(nh)], axis=0)
                s = jnp.dot(qs, ks.T, preferred_element_type=f32) * scale
                s = s + blk + kmask[b]                              # head-block + key-pad masks
                s = s - jnp.max(s, axis=-1, keepdims=True)
                e = jnp.exp(s)
                p = e / jnp.sum(e, axis=-1, keepdims=True)          # (nh*L, nh*L)
                # attention probabilities of query row 0 of each head
                attn_ref[b, l, :, :] = jnp.concatenate(
                    [p[h * L:h * L + 1, h * L:(h + 1) * L] for h in range(nh)], axis=0)
                ctxs = jnp.dot(p, vs, preferred_element_type=f32)   # (nh*L, dh)
                ctx_parts.append(jnp.concatenate(
                    [ctxs[h * L:(h + 1) * L, :] for h in range(nh)], axis=1))   # (L, D)
            ctx = jnp.concatenate(ctx_parts, axis=0)                # (B*L, D)
            att = mm(ctx, wo_r[l], bo_r[l])
            x = _ln_rows(x + att, g1_r[l], be1_r[l], eps)
            hid = jnp.maximum(mm(x, w1_r[l], b1_r[l]), 0.0)
            ff = mm(hid, w2_r[l], b2_r[l])
            x = _ln_rows(x + ff, g2_r[l], be2_r[l], eps)
        return x

    xt = bert_stack(x_text, t_mrows, blkt_ref[...], t_bb, tattn_ref, Lt)
    xi = bert_stack(x_img, i_mrows, blki_ref[...], i_bb, iattn_ref, Li)

    # ---- 7) poolers + dense + tanh + LayerNorm + classifier -------------------
    lang0 = jnp.concatenate([xt[b * Lt:b * Lt + 1, :] for b in range(B)], axis=0)   # (B, D)
    img0 = jnp.concatenate([xi[b * Li:b * Li + 1, :] for b in range(B)], axis=0)    # (B, D)
    tp = jnp.tanh(mm(lang0, tpw_ref[...], tpb_ref[...]))
    ip = jnp.tanh(mm(img0, ipw_ref[...], ipb_ref[...]))
    pooled = tp * ip                                                # dropout: identity (eval)
    pooled = jnp.tanh(mm(pooled, dw_ref[...], db_ref[...]))
    pooled = _ln_rows(pooled, lng_ref[...], lnb_ref[...], eps)
    logit_ref[...] = mm(pooled, cw_ref[...], cb_ref[...]).astype(logit_ref.dtype)


# --------------------------------- forward ------------------------------------
def net_forward(params, frcn_feat, grid_feat, bbox_feat, ques_ix):
    # grid_feat / bbox_feat unused (USE_BBOX_FEAT=False, standard vqa adapter).
    B, T = ques_ix.shape
    N = frcn_feat.shape[1]
    nh, nl = C.MULTI_HEAD, C.LAYER
    Lt, Li = 1 + T, 1 + N

    # tiny input prep (fused by XLA); everything else happens in the one kernel.
    ids_tm = jnp.transpose(ques_ix.astype(jnp.int32), (1, 0)).reshape(T * B, 1)
    frcn_flat = frcn_feat.reshape(B * N, frcn_feat.shape[-1]).astype(jnp.float32)
    tmask_body = (ques_ix == 0).astype(jnp.float32) * (-1e9)                    # (B, T)
    imask_body = (jnp.sum(jnp.abs(frcn_feat), axis=-1) == 0).astype(jnp.float32) * (-1e9)
    blk_t = _head_block_mask(nh, Lt)                                            # constants
    blk_i = _head_block_mask(nh, Li)

    bb = params["backbone"]
    args = [ids_tm, frcn_flat, tmask_body, imask_body, blk_t, blk_i,
            params["embedding"],
            params["lstm"]["wih_f"], params["lstm"]["wih_b"], params["lstm"]["whh"],
            params["lstm"]["b_f"], params["lstm"]["b_b"],
            params["lstm_proj_w"], params["lstm_proj_b"],
            params["token_proj_w"], params["token_proj_b"],
            params["frcn_w"], params["frcn_b"]]
    args += [bb["text"][k] for k in _LAYER_PARAM_KEYS]
    args += [bb["img"][k] for k in _LAYER_PARAM_KEYS]
    args += [params["text_pooler"]["w"], params["text_pooler"]["b"],
             params["img_pooler"]["w"], params["img_pooler"]["b"],
             params["dense_w"], params["dense_b"],
             params["ln_g"], params["ln_b"],
             params["cls_w"], params["cls_b"]]

    out_shapes = [jax.ShapeDtypeStruct((B, ANSWER_SIZE), jnp.float32),
                  jax.ShapeDtypeStruct((B, nl, nh, Lt), jnp.float32),
                  jax.ShapeDtypeStruct((B, nl, nh, Li), jnp.float32)]

    logits, txt_map, img_map = pl.pallas_call(
        functools.partial(_fused_net_kernel, T=T, B=B, N=N, nh=nh, nl=nl,
                          eps=1e-6, cls_ix=TOKEN_TO_IX["CLS"],
                          img_ix=TOKEN_TO_IX["IMG"]),
        out_shape=out_shapes,
    )(*args)
    return logits, img_map, txt_map


# ------------------------------ parameter init --------------------------------
def init_params(key):
    keys = iter(jax.random.split(key, 128))

    def nrm(shape, scale=0.02, dtype=jnp.float32):
        return (jax.random.normal(next(keys), shape, jnp.float32) * scale).astype(dtype)

    BF = jnp.bfloat16
    D = C.HIDDEN_SIZE
    E = C.WORD_EMBED_SIZE
    F = C.FF_SIZE
    H = C.HIDDEN_SIZE
    NL = C.LAYER

    def stacked_layers():
        return dict(
            wqkv=nrm((NL, D, 3 * D), dtype=BF), bqkv=jnp.zeros((NL, 1, 3 * D), jnp.float32),
            wo=nrm((NL, D, D), dtype=BF), bo=jnp.zeros((NL, 1, D), jnp.float32),
            ln1g=jnp.ones((NL, 1, D), jnp.float32), ln1b=jnp.zeros((NL, 1, D), jnp.float32),
            w1=nrm((NL, D, F), dtype=BF), b1=jnp.zeros((NL, 1, F), jnp.float32),
            w2=nrm((NL, F, D), dtype=BF), b2=jnp.zeros((NL, 1, D), jnp.float32),
            ln2g=jnp.ones((NL, 1, D), jnp.float32), ln2b=jnp.zeros((NL, 1, D), jnp.float32))

    # block-diagonal hidden-to-hidden weight: [[whh_f, 0], [0, whh_b]]
    whh_f = nrm((H, 4 * H), 0.1)
    whh_b = nrm((H, 4 * H), 0.1)
    z = jnp.zeros((H, 4 * H), jnp.float32)
    whh = jnp.concatenate([jnp.concatenate([whh_f, z], axis=1),
                           jnp.concatenate([z, whh_b], axis=1)], axis=0).astype(BF)

    return dict(
        embedding=nrm((TOKEN_SIZE, E), 1.0),
        # single pre-summed LSTM bias per direction (= b_ih + b_hh of nn.LSTM)
        lstm=dict(wih_f=nrm((E, 4 * H), 0.1, BF), wih_b=nrm((E, 4 * H), 0.1, BF),
                  whh=whh,
                  b_f=jnp.zeros((1, 4 * H), jnp.float32),
                  b_b=jnp.zeros((1, 4 * H), jnp.float32)),
        lstm_proj_w=nrm((2 * H, D), dtype=BF), lstm_proj_b=jnp.zeros((1, D), jnp.float32),
        token_proj_w=nrm((E, D), dtype=BF), token_proj_b=jnp.zeros((1, D), jnp.float32),
        frcn_w=nrm((C.FRCN_FEAT_SIZE, D), dtype=BF), frcn_b=jnp.zeros((1, D), jnp.float32),
        backbone=dict(text=stacked_layers(), img=stacked_layers()),
        text_pooler=dict(w=nrm((D, D), dtype=BF), b=jnp.zeros((1, D), jnp.float32)),
        img_pooler=dict(w=nrm((D, D), dtype=BF), b=jnp.zeros((1, D), jnp.float32)),
        dense_w=nrm((D, D), dtype=BF), dense_b=jnp.zeros((1, D), jnp.float32),
        ln_g=jnp.ones((1, D), jnp.float32), ln_b=jnp.zeros((1, D), jnp.float32),
        cls_w=nrm((D, ANSWER_SIZE), dtype=BF), cls_b=jnp.zeros((1, ANSWER_SIZE), jnp.float32),
    )


# ---------------------------------- main --------------------------------------
if __name__ == "__main__":
    key = jax.random.PRNGKey(0)
    kp, kq, kf, kb = jax.random.split(key, 4)
    params = init_params(kp)

    B, T, NOBJ = 2, 8, 8
    ques_ix = jax.random.randint(kq, (B, T), 1, TOKEN_SIZE).astype(jnp.int32)
    ques_ix = ques_ix.at[:, 6:].set(0)                       # padded tokens
    frcn_feat = jax.random.normal(kf, (B, NOBJ, C.FRCN_FEAT_SIZE), jnp.float32)
    frcn_feat = frcn_feat.at[1, 6:].set(0.0)                 # padded image regions
    bbox_feat = jax.random.normal(kb, (B, NOBJ, 5), jnp.float32)  # unused (USE_BBOX_FEAT=False)
    grid_feat = jnp.zeros((B, 1, 1), jnp.float32)            # unused by adapter

    fwd = jax.jit(net_forward)
    out, img_map, txt_map = fwd(params, frcn_feat, grid_feat, bbox_feat, ques_ix)
    jax.block_until_ready((out, img_map, txt_map))

    assert out.shape == (B, ANSWER_SIZE)
    assert txt_map.shape == (B, C.LAYER, C.MULTI_HEAD, 1 + T)
    assert img_map.shape == (B, C.LAYER, C.MULTI_HEAD, 1 + NOBJ)
    assert bool(jnp.all(jnp.isfinite(out)))
    assert bool(jnp.all(jnp.isfinite(txt_map))) and bool(jnp.all(jnp.isfinite(img_map)))
    print("KERNEL_OK")
</pallas_src>

<mosaic_0001>
module attributes {stable_mosaic.version = 11 : i64} {
  func.func @_fused_net_kernel(%arg0: memref<16x1xi32, #tpu.memory_space<vmem>>, %arg1: memref<16x64xf32, #tpu.memory_space<vmem>>, %arg2: memref<2x8xf32, #tpu.memory_space<vmem>>, %arg3: memref<2x8xf32, #tpu.memory_space<vmem>>, %arg4: memref<36x36xf32, #tpu.memory_space<vmem>>, %arg5: memref<36x36xf32, #tpu.memory_space<vmem>>, %arg6: memref<20x32xf32, #tpu.memory_space<vmem>>, %arg7: memref<32x128xbf16, #tpu.memory_space<vmem>>, %arg8: memref<32x128xbf16, #tpu.memory_space<vmem>>, %arg9: memref<64x256xbf16, #tpu.memory_space<vmem>>, %arg10: memref<1x128xf32, #tpu.memory_space<vmem>>, %arg11: memref<1x128xf32, #tpu.memory_space<vmem>>, %arg12: memref<64x32xbf16, #tpu.memory_space<vmem>>, %arg13: memref<1x32xf32, #tpu.memory_space<vmem>>, %arg14: memref<32x32xbf16, #tpu.memory_space<vmem>>, %arg15: memref<1x32xf32, #tpu.memory_space<vmem>>, %arg16: memref<64x32xbf16, #tpu.memory_space<vmem>>, %arg17: memref<1x32xf32, #tpu.memory_space<vmem>>, %arg18: memref<2x32x96xbf16, #tpu.memory_space<vmem>>, %arg19: memref<2x1x96xf32, #tpu.memory_space<vmem>>, %arg20: memref<2x32x32xbf16, #tpu.memory_space<vmem>>, %arg21: memref<2x1x32xf32, #tpu.memory_space<vmem>>, %arg22: memref<2x1x32xf32, #tpu.memory_space<vmem>>, %arg23: memref<2x1x32xf32, #tpu.memory_space<vmem>>, %arg24: memref<2x32x64xbf16, #tpu.memory_space<vmem>>, %arg25: memref<2x1x64xf32, #tpu.memory_space<vmem>>, %arg26: memref<2x64x32xbf16, #tpu.memory_space<vmem>>, %arg27: memref<2x1x32xf32, #tpu.memory_space<vmem>>, %arg28: memref<2x1x32xf32, #tpu.memory_space<vmem>>, %arg29: memref<2x1x32xf32, #tpu.memory_space<vmem>>, %arg30: memref<2x32x96xbf16, #tpu.memory_space<vmem>>, %arg31: memref<2x1x96xf32, #tpu.memory_space<vmem>>, %arg32: memref<2x32x32xbf16, #tpu.memory_space<vmem>>, %arg33: memref<2x1x32xf32, #tpu.memory_space<vmem>>, %arg34: memref<2x1x32xf32, #tpu.memory_space<vmem>>, %arg35: memref<2x1x32xf32, #tpu.memory_space<vmem>>, %arg36: memref<2x32x64xbf16, #tpu.memory_space<vmem>>, %arg37: memref<2x1x64xf32, #tpu.memory_space<vmem>>, %arg38: memref<2x64x32xbf16, #tpu.memory_space<vmem>>, %arg39: memref<2x1x32xf32, #tpu.memory_space<vmem>>, %arg40: memref<2x1x32xf32, #tpu.memory_space<vmem>>, %arg41: memref<2x1x32xf32, #tpu.memory_space<vmem>>, %arg42: memref<32x32xbf16, #tpu.memory_space<vmem>>, %arg43: memref<1x32xf32, #tpu.memory_space<vmem>>, %arg44: memref<32x32xbf16, #tpu.memory_space<vmem>>, %arg45: memref<1x32xf32, #tpu.memory_space<vmem>>, %arg46: memref<32x32xbf16, #tpu.memory_space<vmem>>, %arg47: memref<1x32xf32, #tpu.memory_space<vmem>>, %arg48: memref<1x32xf32, #tpu.memory_space<vmem>>, %arg49: memref<1x32xf32, #tpu.memory_space<vmem>>, %arg50: memref<32x10xbf16, #tpu.memory_space<vmem>>, %arg51: memref<1x10xf32, #tpu.memory_space<vmem>>, %arg52: memref<2x10xf32, #tpu.memory_space<vmem>>, %arg53: memref<2x2x4x9xf32, #tpu.memory_space<vmem>>, %arg54: memref<2x2x4x9xf32, #tpu.memory_space<vmem>>) attributes {dimension_semantics = [], scalar_prefetch = 0 : i64, scratch_operands = 0 : i64, tpu.core_type = #tpu.core_type<tc>} {
    %c0 = arith.constant 0 : index
    %c0_0 = arith.constant 0 : index
    %0 = vector.load %arg0[%c0, %c0_0] : memref<16x1xi32, #tpu.memory_space<vmem>>, vector<16x1xi32>
    %1 = tpu.iota {dimensions = array<i32: 1>} : vector<16x20xi32>
    %2 = vector.broadcast %0 : vector<16x1xi32> to vector<16x20xi32>
    %3 = arith.cmpi eq, %2, %1 : vector<16x20xi32>
    %4 = arith.extui %3 : vector<16x20xi1> to vector<16x20xi32>
    %5 = arith.sitofp %4 : vector<16x20xi32> to vector<16x20xf32>
    %c0_1 = arith.constant 0 : index
    %c0_2 = arith.constant 0 : index
    %6 = vector.load %arg6[%c0_1, %c0_2] : memref<20x32xf32, #tpu.memory_space<vmem>>, vector<20x32xf32>
    %cst = arith.constant dense<0.000000e+00> : vector<16x32xf32>
    %7 = tpu.matmul %5, %6, %cst {dimension_numbers = #tpu.dot_dimension_numbers<[1], [0], [0], [1], [0, 0, 1, 1], [], []>} : vector<16x20xf32>, vector<20x32xf32>, vector<16x32xf32> -> vector<16x32xf32>
    %c0_3 = arith.constant 0 : index
    %c0_4 = arith.constant 0 : index
    %8 = vector.load %arg7[%c0_3, %c0_4] : memref<32x128xbf16, #tpu.memory_space<vmem>>, vector<32x128xbf16>
    %c0_5 = arith.constant 0 : index
    %c0_6 = arith.constant 0 : index
    %9 = vector.load %arg10[%c0_5, %c0_6] : memref<1x128xf32, #tpu.memory_space<vmem>>, vector<1x128xf32>
    %10 = arith.truncf %7 : vector<16x32xf32> to vector<16x32xbf16>
    %cst_7 = arith.constant dense<0.000000e+00> : vector<16x128xf32>
    %11 = tpu.matmul %10, %8, %cst_7 {dimension_numbers = #tpu.dot_dimension_numbers<[1], [0], [0], [1], [0, 0, 1, 1], [], []>} : vector<16x32xbf16>, vector<32x128xbf16>, vector<16x128xf32> -> vector<16x128xf32>
    %12 = vector.broadcast %9 : vector<1x128xf32> to vector<16x128xf32>
    %13 = arith.addf %11, %12 : vector<16x128xf32>
    %c0_8 = arith.constant 0 : index
    %c0_9 = arith.constant 0 : index
    %14 = vector.load %arg8[%c0_8, %c0_9] : memref<32x128xbf16, #tpu.memory_space<vmem>>, vector<32x128xbf16>
    %c0_10 = arith.constant 0 : index
    %c0_11 = arith.constant 0 : index
    %15 = vector.load %arg11[%c0_10, %c0_11] : memref<1x128xf32, #tpu.memory_space<vmem>>, vector<1x128xf32>
    %16 = arith.truncf %7 : vector<16x32xf32> to vector<16x32xbf16>
    %cst_12 = arith.constant dense<0.000000e+00> : vector<16x128xf32>
    %17 = tpu.matmul %16, %14, %cst_12 {dimension_numbers = #tpu.dot_dimension_numbers<[1], [0], [0], [1], [0, 0, 1, 1], [], []>} : vector<16x32xbf16>, vector<32x128xbf16>, vector<16x128xf32> -> vector<16x128xf32>
    %18 = vector.broadcast %15 : vector<1x128xf32> to vector<16x128xf32>
    %19 = arith.addf %17, %18 : vector<16x128xf32>
    %c0_13 = arith.constant 0 : index
    %c0_14 = arith.constant 0 : index
    %20 = vector.load %arg9[%c0_13, %c0_14] : memref<64x256xbf16, #tpu.memory_space<vmem>>, vector<64x256xbf16>
    %cst_15 = arith.constant 0.000000e+00 : f32
    %21 = vector.broadcast %cst_15 : f32 to vector<2x32xf32>
    %cst_16 = arith.constant 0.000000e+00 : f32
    %22 = vector.broadcast %cst_16 : f32 to vector<2x32xf32>
    %23 = vector.extract_strided_slice %13 {offsets = [0, 0], sizes = [2, 128], strides = [1, 1]} : vector<16x128xf32> to vector<2x128xf32>
    %24 = vector.extract_strided_slice %19 {offsets = [14, 0], sizes = [2, 128], strides = [1, 1]} : vector<16x128xf32> to vector<2x128xf32>
    %25 = vector.extract_strided_slice %23 {offsets = [0, 0], sizes = [2, 32], strides = [1, 1]} : vector<2x128xf32> to vector<2x32xf32>
    %26 = arith.negf %25 : vector<2x32xf32>
    %27 = math.exp %26 : vector<2x32xf32>
    %cst_17 = arith.constant 1.000000e+00 : f32
    %28 = vector.broadcast %cst_17 : f32 to vector<2x32xf32>
    %29 = arith.addf %28, %27 : vector<2x32xf32>
    %30 = arith.divf %28, %29 : vector<2x32xf32>
    %31 = vector.extract_strided_slice %23 {offsets = [0, 32], sizes = [2, 32], strides = [1, 1]} : vector<2x128xf32> to vector<2x32xf32>
    %32 = arith.negf %31 : vector<2x32xf32>
    %33 = math.exp %32 : vector<2x32xf32>
    %cst_18 = arith.constant 1.000000e+00 : f32
    %34 = vector.broadcast %cst_18 : f32 to vector<2x32xf32>
    %35 = arith.addf %34, %33 : vector<2x32xf32>
    %36 = arith.divf %34, %35 : vector<2x32xf32>
    %37 = vector.extract_strided_slice %23 {offsets = [0, 64], sizes = [2, 32], strides = [1, 1]} : vector<2x128xf32> to vector<2x32xf32>
    %38 = math.tanh %37 : vector<2x32xf32>
    %39 = vector.extract_strided_slice %23 {offsets = [0, 96], sizes = [2, 32], strides = [1, 1]} : vector<2x128xf32> to vector<2x32xf32>
    %40 = arith.negf %39 : vector<2x32xf32>
    %41 = math.exp %40 : vector<2x32xf32>
    %cst_19 = arith.constant 1.000000e+00 : f32
    %42 = vector.broadcast %cst_19 : f32 to vector<2x32xf32>
    %43 = arith.addf %42, %41 : vector<2x32xf32>
    %44 = arith.divf %42, %43 : vector<2x32xf32>
    %45 = arith.mulf %36, %21 : vector<2x32xf32>
    %46 = arith.mulf %30, %38 : vector<2x32xf32>
    %47 = arith.addf %45, %46 : vector<2x32xf32>
    %48 = math.tanh %47 : vector<2x32xf32>
    %49 = arith.mulf %44, %48 : vector<2x32xf32>
    %50 = vector.extract_strided_slice %24 {offsets = [0, 0], sizes = [2, 32], strides = [1, 1]} : vector<2x128xf32> to vector<2x32xf32>
    %51 = arith.negf %50 : vector<2x32xf32>
    %52 = math.exp %51 : vector<2x32xf32>
    %cst_20 = arith.constant 1.000000e+00 : f32
    %53 = vector.broadcast %cst_20 : f32 to vector<2x32xf32>
    %54 = arith.addf %53, %52 : vector<2x32xf32>
    %55 = arith.divf %53, %54 : vector<2x32xf32>
    %56 = vector.extract_strided_slice %24 {offsets = [0, 32], sizes = [2, 32], strides = [1, 1]} : vector<2x128xf32> to vector<2x32xf32>
    %57 = arith.negf %56 : vector<2x32xf32>
    %58 = math.exp %57 : vector<2x32xf32>
    %cst_21 = arith.constant 1.000000e+00 : f32
    %59 = vector.broadcast %cst_21 : f32 to vector<2x32xf32>
    %60 = arith.addf %59, %58 : vector<2x32xf32>
    %61 = arith.divf %59, %60 : vector<2x32xf32>
    %62 = vector.extract_strided_slice %24 {offsets = [0, 64], sizes = [2, 32], strides = [1, 1]} : vector<2x128xf32> to vector<2x32xf32>
    %63 = math.tanh %62 : vector<2x32xf32>
    %64 = vector.extract_strided_slice %24 {offsets = [0, 96], sizes = [2, 32], strides = [1, 1]} : vector<2x128xf32> to vector<2x32xf32>
    %65 = arith.negf %64 : vector<2x32xf32>
    %66 = math.exp %65 : vector<2x32xf32>
    %cst_22 = arith.constant 1.000000e+00 : f32
    %67 = vector.broadcast %cst_22 : f32 to vector<2x32xf32>
    %68 = arith.addf %67, %66 : vector<2x32xf32>
    %69 = arith.divf %67, %68 : vector<2x32xf32>
    %70 = arith.mulf %61, %22 : vector<2x32xf32>
    %71 = arith.mulf %55, %63 : vector<2x32xf32>
    %72 = arith.addf %70, %71 : vector<2x32xf32>
    %73 = math.tanh %72 : vector<2x32xf32>
    %74 = arith.mulf %69, %73 : vector<2x32xf32>
    %75 = tpu.concatenate %49, %74 in 1 : vector<2x32xf32>, vector<2x32xf32> -> vector<2x64xf32>
    %76 = arith.truncf %75 : vector<2x64xf32> to vector<2x64xbf16>
    %cst_23 = arith.constant dense<0.000000e+00> : vector<2x256xf32>
    %77 = tpu.matmul %76, %20, %cst_23 {dimension_numbers = #tpu.dot_dimension_numbers<[1], [0], [0], [1], [0, 0, 1, 1], [], []>} : vector<2x64xbf16>, vector<64x256xbf16>, vector<2x256xf32> -> vector<2x256xf32>
    %78 = vector.extract_strided_slice %13 {offsets = [2, 0], sizes = [2, 128], strides = [1, 1]} : vector<16x128xf32> to vector<2x128xf32>
    %79 = vector.extract_strided_slice %77 {offsets = [0, 0], sizes = [2, 128], strides = [1, 1]} : vector<2x256xf32> to vector<2x128xf32>
    %80 = arith.addf %78, %79 : vector<2x128xf32>
    %81 = vector.extract_strided_slice %19 {offsets = [12, 0], sizes = [2, 128], strides = [1, 1]} : vector<16x128xf32> to vector<2x128xf32>
    %82 = vector.extract_strided_slice %77 {offsets = [0, 128], sizes = [2, 128], strides = [1, 1]} : vector<2x256xf32> to vector<2x128xf32>
    %83 = arith.addf %81, %82 : vector<2x128xf32>
    %84 = vector.extract_strided_slice %80 {offsets = [0, 0], sizes = [2, 32], strides = [1, 1]} : vector<2x128xf32> to vector<2x32xf32>
    %85 = arith.negf %84 : vector<2x32xf32>
    %86 = math.exp %85 : vector<2x32xf32>
    %cst_24 = arith.constant 1.000000e+00 : f32
    %87 = vector.broadcast %cst_24 : f32 to vector<2x32xf32>
    %88 = arith.addf %87, %86 : vector<2x32xf32>
    %89 = arith.divf %87, %88 : vector<2x32xf32>
    %90 = vector.extract_strided_slice %80 {offsets = [0, 32], sizes = [2, 32], strides = [1, 1]} : vector<2x128xf32> to vector<2x32xf32>
    %91 = arith.negf %90 : vector<2x32xf32>
    %92 = math.exp %91 : vector<2x32xf32>
    %cst_25 = arith.constant 1.000000e+00 : f32
    %93 = vector.broadcast %cst_25 : f32 to vector<2x32xf32>
    %94 = arith.addf %93, %92 : vector<2x32xf32>
    %95 = arith.divf %93, %94 : vector<2x32xf32>
    %96 = vector.extract_strided_slice %80 {offsets = [0, 64], sizes = [2, 32], strides = [1, 1]} : vector<2x128xf32> to vector<2x32xf32>
    %97 = math.tanh %96 : vector<2x32xf32>
    %98 = vector.extract_strided_slice %80 {offsets = [0, 96], sizes = [2, 32], strides = [1, 1]} : vector<2x128xf32> to vector<2x32xf32>
    %99 = arith.negf %98 : vector<2x32xf32>
    %100 = math.exp %99 : vector<2x32xf32>
    %cst_26 = arith.constant 1.000000e+00 : f32
    %101 = vector.broadcast %cst_26 : f32 to vector<2x32xf32>
    %102 = arith.addf %101, %100 : vector<2x32xf32>
    %103 = arith.divf %101, %102 : vector<2x32xf32>
    %104 = arith.mulf %95, %47 : vector<2x32xf32>
    %105 = arith.mulf %89, %97 : vector<2x32xf32>
    %106 = arith.addf %104, %105 : vector<2x32xf32>
    %107 = math.tanh %106 : vector<2x32xf32>
    %108 = arith.mulf %103, %107 : vector<2x32xf32>
    %109 = vector.extract_strided_slice %83 {offsets = [0, 0], sizes = [2, 32], strides = [1, 1]} : vector<2x128xf32> to vector<2x32xf32>
    %110 = arith.negf %109 : vector<2x32xf32>
    %111 = math.exp %110 : vector<2x32xf32>
    %cst_27 = arith.constant 1.000000e+00 : f32
    %112 = vector.broadcast %cst_27 : f32 to vector<2x32xf32>
    %113 = arith.addf %112, %111 : vector<2x32xf32>
    %114 = arith.divf %112, %113 : vector<2x32xf32>
    %115 = vector.extract_strided_slice %83 {offsets = [0, 32], sizes = [2, 32], strides = [1, 1]} : vector<2x128xf32> to vector<2x32xf32>
    %116 = arith.negf %115 : vector<2x32xf32>
    %117 = math.exp %116 : vector<2x32xf32>
    %cst_28 = arith.constant 1.000000e+00 : f32
    %118 = vector.broadcast %cst_28 : f32 to vector<2x32xf32>
    %119 = arith.addf %118, %117 : vector<2x32xf32>
    %120 = arith.divf %118, %119 : vector<2x32xf32>
    %121 = vector.extract_strided_slice %83 {offsets = [0, 64], sizes = [2, 32], strides = [1, 1]} : vector<2x128xf32> to vector<2x32xf32>
    %122 = math.tanh %121 : vector<2x32xf32>
    %123 = vector.extract_strided_slice %83 {offsets = [0, 96], sizes = [2, 32], strides = [1, 1]} : vector<2x128xf32> to vector<2x32xf32>
    %124 = arith.negf %123 : vector<2x32xf32>
    %125 = math.exp %124 : vector<2x32xf32>
    %cst_29 = arith.constant 1.000000e+00 : f32
    %126 = vector.broadcast %cst_29 : f32 to vector<2x32xf32>
    %127 = arith.addf %126, %125 : vector<2x32xf32>
    %128 = arith.divf %126, %127 : vector<2x32xf32>
    %129 = arith.mulf %120, %72 : vector<2x32xf32>
    %130 = arith.mulf %114, %122 : vector<2x32xf32>
    %131 = arith.addf %129, %130 : vector<2x32xf32>
    %132 = math.tanh %131 : vector<2x32xf32>
    %133 = arith.mulf %128, %132 : vector<2x32xf32>
    %134 = tpu.concatenate %108, %133 in 1 : vector<2x32xf32>, vector<2x32xf32> -> vector<2x64xf32>
    %135 = arith.truncf %134 : vector<2x64xf32> to vector<2x64xbf16>
    %cst_30 = arith.constant dense<0.000000e+00> : vector<2x256xf32>
    %136 = tpu.matmul %135, %20, %cst_30 {dimension_numbers = #tpu.dot_dimension_numbers<[1], [0], [0], [1], [0, 0, 1, 1], [], []>} : vector<2x64xbf16>, vector<64x256xbf16>, vector<2x256xf32> -> vector<2x256xf32>
    %137 = vector.extract_strided_slice %13 {offsets = [4, 0], sizes = [2, 128], strides = [1, 1]} : vector<16x128xf32> to vector<2x128xf32>
    %138 = vector.extract_strided_slice %136 {offsets = [0, 0], sizes = [2, 128], strides = [1, 1]} : vector<2x256xf32> to vector<2x128xf32>
    %139 = arith.addf %137, %138 : vector<2x128xf32>
    %140 = vector.extract_strided_slice %19 {offsets = [10, 0], sizes = [2, 128], strides = [1, 1]} : vector<16x128xf32> to vector<2x128xf32>
    %141 = vector.extract_strided_slice %136 {offsets = [0, 128], sizes = [2, 128], strides = [1, 1]} : vector<2x256xf32> to vector<2x128xf32>
    %142 = arith.addf %140, %141 : vector<2x128xf32>
    %143 = vector.extract_strided_slice %139 {offsets = [0, 0], sizes = [2, 32], strides = [1, 1]} : vector<2x128xf32> to vector<2x32xf32>
    %144 = arith.negf %143 : vector<2x32xf32>
    %145 = math.exp %144 : vector<2x32xf32>
    %cst_31 = arith.constant 1.000000e+00 : f32
    %146 = vector.broadcast %cst_31 : f32 to vector<2x32xf32>
    %147 = arith.addf %146, %145 : vector<2x32xf32>
    %148 = arith.divf %146, %147 : vector<2x32xf32>
    %149 = vector.extract_strided_slice %139 {offsets = [0, 32], sizes = [2, 32], strides = [1, 1]} : vector<2x128xf32> to vector<2x32xf32>
    %150 = arith.negf %149 : vector<2x32xf32>
    %151 = math.exp %150 : vector<2x32xf32>
    %cst_32 = arith.constant 1.000000e+00 : f32
    %152 = vector.broadcast %cst_32 : f32 to vector<2x32xf32>
    %153 = arith.addf %152, %151 : vector<2x32xf32>
    %154 = arith.divf %152, %153 : vector<2x32xf32>
    %155 = vector.extract_strided_slice %139 {offsets = [0, 64], sizes = [2, 32], strides = [1, 1]} : vector<2x128xf32> to vector<2x32xf32>
    %156 = math.tanh %155 : vector<2x32xf32>
    %157 = vector.extract_strided_slice %139 {offsets = [0, 96], sizes = [2, 32], strides = [1, 1]} : vector<2x128xf32> to vector<2x32xf32>
    %158 = arith.negf %157 : vector<2x32xf32>
    %159 = math.exp %158 : vector<2x32xf32>
    %cst_33 = arith.constant 1.000000e+00 : f32
    %160 = vector.broadcast %cst_33 : f32 to vector<2x32xf32>
    %161 = arith.addf %160, %159 : vector<2x32xf32>
    %162 = arith.divf %160, %161 : vector<2x32xf32>
    %163 = arith.mulf %154, %106 : vector<2x32xf32>
    %164 = arith.mulf %148, %156 : vector<2x32xf32>
    %165 = arith.addf %163, %164 : vector<2x32xf32>
    %166 = math.tanh %165 : vector<2x32xf32>
    %167 = arith.mulf %162, %166 : vector<2x32xf32>
    %168 = vector.extract_strided_slice %142 {offsets = [0, 0], sizes = [2, 32], strides = [1, 1]} : vector<2x128xf32> to vector<2x32xf32>
    %169 = arith.negf %168 : vector<2x32xf32>
    %170 = math.exp %169 : vector<2x32xf32>
    %cst_34 = arith.constant 1.000000e+00 : f32
    %171 = vector.broadcast %cst_34 : f32 to vector<2x32xf32>
    %172 = arith.addf %171, %170 : vector<2x32xf32>
    %173 = arith.divf %171, %172 : vector<2x32xf32>
    %174 = vector.extract_strided_slice %142 {offsets = [0, 32], sizes = [2, 32], strides = [1, 1]} : vector<2x128xf32> to vector<2x32xf32>
    %175 = arith.negf %174 : vector<2x32xf32>
    %176 = math.exp %175 : vector<2x32xf32>
    %cst_35 = arith.constant 1.000000e+00 : f32
    %177 = vector.broadcast %cst_35 : f32 to vector<2x32xf32>
    %178 = arith.addf %177, %176 : vector<2x32xf32>
    %179 = arith.divf %177, %178 : vector<2x32xf32>
    %180 = vector.extract_strided_slice %142 {offsets = [0, 64], sizes = [2, 32], strides = [1, 1]} : vector<2x128xf32> to vector<2x32xf32>
    %181 = math.tanh %180 : vector<2x32xf32>
    %182 = vector.extract_strided_slice %142 {offsets = [0, 96], sizes = [2, 32], strides = [1, 1]} : vector<2x128xf32> to vector<2x32xf32>
    %183 = arith.negf %182 : vector<2x32xf32>
    %184 = math.exp %183 : vector<2x32xf32>
    %cst_36 = arith.constant 1.000000e+00 : f32
    %185 = vector.broadcast %cst_36 : f32 to vector<2x32xf32>
    %186 = arith.addf %185, %184 : vector<2x32xf32>
    %187 = arith.divf %185, %186 : vector<2x32xf32>
    %188 = arith.mulf %179, %131 : vector<2x32xf32>
    %189 = arith.mulf %173, %181 : vector<2x32xf32>
    %190 = arith.addf %188, %189 : vector<2x32xf32>
    %191 = math.tanh %190 : vector<2x32xf32>
    %192 = arith.mulf %187, %191 : vector<2x32xf32>
    %193 = tpu.concatenate %167, %192 in 1 : vector<2x32xf32>, vector<2x32xf32> -> vector<2x64xf32>
    %194 = arith.truncf %193 : vector<2x64xf32> to vector<2x64xbf16>
    %cst_37 = arith.constant dense<0.000000e+00> : vector<2x256xf32>
    %195 = tpu.matmul %194, %20, %cst_37 {dimension_numbers = #tpu.dot_dimension_numbers<[1], [0], [0], [1], [0, 0, 1, 1], [], []>} : vector<2x64xbf16>, vector<64x256xbf16>, vector<2x256xf32> -> vector<2x256xf32>
    %196 = vector.extract_strided_slice %13 {offsets = [6, 0], sizes = [2, 128], strides = [1, 1]} : vector<16x128xf32> to vector<2x128xf32>
    %197 = vector.extract_strided_slice %195 {offsets = [0, 0], sizes = [2, 128], strides = [1, 1]} : vector<2x256xf32> to vector<2x128xf32>
    %198 = arith.addf %196, %197 : vector<2x128xf32>
    %199 = vector.extract_strided_slice %19 {offsets = [8, 0], sizes = [2, 128], strides = [1, 1]} : vector<16x128xf32> to vector<2x128xf32>
    %200 = vector.extract_strided_slice %195 {offsets = [0, 128], sizes = [2, 128], strides = [1, 1]} : vector<2x256xf32> to vector<2x128xf32>
    %201 = arith.addf %199, %200 : vector<2x128xf32>
    %202 = vector.extract_strided_slice %198 {offsets = [0, 0], sizes = [2, 32], strides = [1, 1]} : vector<2x128xf32> to vector<2x32xf32>
    %203 = arith.negf %202 : vector<2x32xf32>
    %204 = math.exp %203 : vector<2x32xf32>
    %cst_38 = arith.constant 1.000000e+00 : f32
    %205 = vector.broadcast %cst_38 : f32 to vector<2x32xf32>
    %206 = arith.addf %205, %204 : vector<2x32xf32>
    %207 = arith.divf %205, %206 : vector<2x32xf32>
    %208 = vector.extract_strided_slice %198 {offsets = [0, 32], sizes = [2, 32], strides = [1, 1]} : vector<2x128xf32> to vector<2x32xf32>
    %209 = arith.negf %208 : vector<2x32xf32>
    %210 = math.exp %209 : vector<2x32xf32>
    %cst_39 = arith.constant 1.000000e+00 : f32
    %211 = vector.broadcast %cst_39 : f32 to vector<2x32xf32>
    %212 = arith.addf %211, %210 : vector<2x32xf32>
    %213 = arith.divf %211, %212 : vector<2x32xf32>
    %214 = vector.extract_strided_slice %198 {offsets = [0, 64], sizes = [2, 32], strides = [1, 1]} : vector<2x128xf32> to vector<2x32xf32>
    %215 = math.tanh %214 : vector<2x32xf32>
    %216 = vector.extract_strided_slice %198 {offsets = [0, 96], sizes = [2, 32], strides = [1, 1]} : vector<2x128xf32> to vector<2x32xf32>
    %217 = arith.negf %216 : vector<2x32xf32>
    %218 = math.exp %217 : vector<2x32xf32>
    %cst_40 = arith.constant 1.000000e+00 : f32
    %219 = vector.broadcast %cst_40 : f32 to vector<2x32xf32>
    %220 = arith.addf %219, %218 : vector<2x32xf32>
    %221 = arith.divf %219, %220 : vector<2x32xf32>
    %222 = arith.mulf %213, %165 : vector<2x32xf32>
    %223 = arith.mulf %207, %215 : vector<2x32xf32>
    %224 = arith.addf %222, %223 : vector<2x32xf32>
    %225 = math.tanh %224 : vector<2x32xf32>
    %226 = arith.mulf %221, %225 : vector<2x32xf32>
    %227 = vector.extract_strided_slice %201 {offsets = [0, 0], sizes = [2, 32], strides = [1, 1]} : vector<2x128xf32> to vector<2x32xf32>
    %228 = arith.negf %227 : vector<2x32xf32>
    %229 = math.exp %228 : vector<2x32xf32>
    %cst_41 = arith.constant 1.000000e+00 : f32
    %230 = vector.broadcast %cst_41 : f32 to vector<2x32xf32>
    %231 = arith.addf %230, %229 : vector<2x32xf32>
    %232 = arith.divf %230, %231 : vector<2x32xf32>
    %233 = vector.extract_strided_slice %201 {offsets = [0, 32], sizes = [2, 32], strides = [1, 1]} : vector<2x128xf32> to vector<2x32xf32>
    %234 = arith.negf %233 : vector<2x32xf32>
    %235 = math.exp %234 : vector<2x32xf32>
    %cst_42 = arith.constant 1.000000e+00 : f32
    %236 = vector.broadcast %cst_42 : f32 to vector<2x32xf32>
    %237 = arith.addf %236, %235 : vector<2x32xf32>
    %238 = arith.divf %236, %237 : vector<2x32xf32>
    %239 = vector.extract_strided_slice %201 {offsets = [0, 64], sizes = [2, 32], strides = [1, 1]} : vector<2x128xf32> to vector<2x32xf32>
    %240 = math.tanh %239 : vector<2x32xf32>
    %241 = vector.extract_strided_slice %201 {offsets = [0, 96], sizes = [2, 32], strides = [1, 1]} : vector<2x128xf32> to vector<2x32xf32>
    %242 = arith.negf %241 : vector<2x32xf32>
    %243 = math.exp %242 : vector<2x32xf32>
    %cst_43 = arith.constant 1.000000e+00 : f32
    %244 = vector.broadcast %cst_43 : f32 to vector<2x32xf32>
    %245 = arith.addf %244, %243 : vector<2x32xf32>
    %246 = arith.divf %244, %245 : vector<2x32xf32>
    %247 = arith.mulf %238, %190 : vector<2x32xf32>
    %248 = arith.mulf %232, %240 : vector<2x32xf32>
    %249 = arith.addf %247, %248 : vector<2x32xf32>
    %250 = math.tanh %249 : vector<2x32xf32>
    %251 = arith.mulf %246, %250 : vector<2x32xf32>
    %252 = tpu.concatenate %226, %251 in 1 : vector<2x32xf32>, vector<2x32xf32> -> vector<2x64xf32>
    %253 = arith.truncf %252 : vector<2x64xf32> to vector<2x64xbf16>
    %cst_44 = arith.constant dense<0.000000e+00> : vector<2x256xf32>
    %254 = tpu.matmul %253, %20, %cst_44 {dimension_numbers = #tpu.dot_dimension_numbers<[1], [0], [0], [1], [0, 0, 1, 1], [], []>} : vector<2x64xbf16>, vector<64x256xbf16>, vector<2x256xf32> -> vector<2x256xf32>
    %255 = vector.extract_strided_slice %13 {offsets = [8, 0], sizes = [2, 128], strides = [1, 1]} : vector<16x128xf32> to vector<2x128xf32>
    %256 = vector.extract_strided_slice %254 {offsets = [0, 0], sizes = [2, 128], strides = [1, 1]} : vector<2x256xf32> to vector<2x128xf32>
    %257 = arith.addf %255, %256 : vector<2x128xf32>
    %258 = vector.extract_strided_slice %19 {offsets = [6, 0], sizes = [2, 128], strides = [1, 1]} : vector<16x128xf32> to vector<2x128xf32>
    %259 = vector.extract_strided_slice %254 {offsets = [0, 128], sizes = [2, 128], strides = [1, 1]} : vector<2x256xf32> to vector<2x128xf32>
    %260 = arith.addf %258, %259 : vector<2x128xf32>
    %261 = vector.extract_strided_slice %257 {offsets = [0, 0], sizes = [2, 32], strides = [1, 1]} : vector<2x128xf32> to vector<2x32xf32>
    %262 = arith.negf %261 : vector<2x32xf32>
    %263 = math.exp %262 : vector<2x32xf32>
    %cst_45 = arith.constant 1.000000e+00 : f32
    %264 = vector.broadcast %cst_45 : f32 to vector<2x32xf32>
    %265 = arith.addf %264, %263 : vector<2x32xf32>
    %266 = arith.divf %264, %265 : vector<2x32xf32>
    %267 = vector.extract_strided_slice %257 {offsets = [0, 32], sizes = [2, 32], strides = [1, 1]} : vector<2x128xf32> to vector<2x32xf32>
    %268 = arith.negf %267 : vector<2x32xf32>
    %269 = math.exp %268 : vector<2x32xf32>
    %cst_46 = arith.constant 1.000000e+00 : f32
    %270 = vector.broadcast %cst_46 : f32 to vector<2x32xf32>
    %271 = arith.addf %270, %269 : vector<2x32xf32>
    %272 = arith.divf %270, %271 : vector<2x32xf32>
    %273 = vector.extract_strided_slice %257 {offsets = [0, 64], sizes = [2, 32], strides = [1, 1]} : vector<2x128xf32> to vector<2x32xf32>
    %274 = math.tanh %273 : vector<2x32xf32>
    %275 = vector.extract_strided_slice %257 {offsets = [0, 96], sizes = [2, 32], strides = [1, 1]} : vector<2x128xf32> to vector<2x32xf32>
    %276 = arith.negf %275 : vector<2x32xf32>
    %277 = math.exp %276 : vector<2x32xf32>
    %cst_47 = arith.constant 1.000000e+00 : f32
    %278 = vector.broadcast %cst_47 : f32 to vector<2x32xf32>
    %279 = arith.addf %278, %277 : vector<2x32xf32>
    %280 = arith.divf %278, %279 : vector<2x32xf32>
    %281 = arith.mulf %272, %224 : vector<2x32xf32>
    %282 = arith.mulf %266, %274 : vector<2x32xf32>
    %283 = arith.addf %281, %282 : vector<2x32xf32>
    %284 = math.tanh %283 : vector<2x32xf32>
    %285 = arith.mulf %280, %284 : vector<2x32xf32>
    %286 = vector.extract_strided_slice %260 {offsets = [0, 0], sizes = [2, 32], strides = [1, 1]} : vector<2x128xf32> to vector<2x32xf32>
    %287 = arith.negf %286 : vector<2x32xf32>
    %288 = math.exp %287 : vector<2x32xf32>
    %cst_48 = arith.constant 1.000000e+00 : f32
    %289 = vector.broadcast %cst_48 : f32 to vector<2x32xf32>
    %290 = arith.addf %289, %288 : vector<2x32xf32>
    %291 = arith.divf %289, %290 : vector<2x32xf32>
    %292 = vector.extract_strided_slice %260 {offsets = [0, 32], sizes = [2, 32], strides = [1, 1]} : vector<2x128xf32> to vector<2x32xf32>
    %293 = arith.negf %292 : vector<2x32xf32>
    %294 = math.exp %293 : vector<2x32xf32>
    %cst_49 = arith.constant 1.000000e+00 : f32
    %295 = vector.broadcast %cst_49 : f32 to vector<2x32xf32>
    %296 = arith.addf %295, %294 : vector<2x32xf32>
    %297 = arith.divf %295, %296 : vector<2x32xf32>
    %298 = vector.extract_strided_slice %260 {offsets = [0, 64], sizes = [2, 32], strides = [1, 1]} : vector<2x128xf32> to vector<2x32xf32>
    %299 = math.tanh %298 : vector<2x32xf32>
    %300 = vector.extract_strided_slice %260 {offsets = [0, 96], sizes = [2, 32], strides = [1, 1]} : vector<2x128xf32> to vector<2x32xf32>
    %301 = arith.negf %300 : vector<2x32xf32>
    %302 = math.exp %301 : vector<2x32xf32>
    %cst_50 = arith.constant 1.000000e+00 : f32
    %303 = vector.broadcast %cst_50 : f32 to vector<2x32xf32>
    %304 = arith.addf %303, %302 : vector<2x32xf32>
    %305 = arith.divf %303, %304 : vector<2x32xf32>
    %306 = arith.mulf %297, %249 : vector<2x32xf32>
    %307 = arith.mulf %291, %299 : vector<2x32xf32>
    %308 = arith.addf %306, %307 : vector<2x32xf32>
    %309 = math.tanh %308 : vector<2x32xf32>
    %310 = arith.mulf %305, %309 : vector<2x32xf32>
    %311 = tpu.concatenate %285, %310 in 1 : vector<2x32xf32>, vector<2x32xf32> -> vector<2x64xf32>
    %312 = arith.truncf %311 : vector<2x64xf32> to vector<2x64xbf16>
    %cst_51 = arith.constant dense<0.000000e+00> : vector<2x256xf32>
    %313 = tpu.matmul %312, %20, %cst_51 {dimension_numbers = #tpu.dot_dimension_numbers<[1], [0], [0], [1], [0, 0, 1, 1], [], []>} : vector<2x64xbf16>, vector<64x256xbf16>, vector<2x256xf32> -> vector<2x256xf32>
    %314 = vector.extract_strided_slice %13 {offsets = [10, 0], sizes = [2, 128], strides = [1, 1]} : vector<16x128xf32> to vector<2x128xf32>
    %315 = vector.extract_strided_slice %313 {offsets = [0, 0], sizes = [2, 128], strides = [1, 1]} : vector<2x256xf32> to vector<2x128xf32>
    %316 = arith.addf %314, %315 : vector<2x128xf32>
    %317 = vector.extract_strided_slice %19 {offsets = [4, 0], sizes = [2, 128], strides = [1, 1]} : vector<16x128xf32> to vector<2x128xf32>
    %318 = vector.extract_strided_slice %313 {offsets = [0, 128], sizes = [2, 128], strides = [1, 1]} : vector<2x256xf32> to vector<2x128xf32>
    %319 = arith.addf %317, %318 : vector<2x128xf32>
    %320 = vector.extract_strided_slice %316 {offsets = [0, 0], sizes = [2, 32], strides = [1, 1]} : vector<2x128xf32> to vector<2x32xf32>
    %321 = arith.negf %320 : vector<2x32xf32>
    %322 = math.exp %321 : vector<2x32xf32>
    %cst_52 = arith.constant 1.000000e+00 : f32
    %323 = vector.broadcast %cst_52 : f32 to vector<2x32xf32>
    %324 = arith.addf %323, %322 : vector<2x32xf32>
    %325 = arith.divf %323, %324 : vector<2x32xf32>
    %326 = vector.extract_strided_slice %316 {offsets = [0, 32], sizes = [2, 32], strides = [1, 1]} : vector<2x128xf32> to vector<2x32xf32>
    %327 = arith.negf %326 : vector<2x32xf32>
    %328 = math.exp %327 : vector<2x32xf32>
    %cst_53 = arith.constant 1.000000e+00 : f32
    %329 = vector.broadcast %cst_53 : f32 to vector<2x32xf32>
    %330 = arith.addf %329, %328 : vector<2x32xf32>
    %331 = arith.divf %329, %330 : vector<2x32xf32>
    %332 = vector.extract_strided_slice %316 {offsets = [0, 64], sizes = [2, 32], strides = [1, 1]} : vector<2x128xf32> to vector<2x32xf32>
    %333 = math.tanh %332 : vector<2x32xf32>
    %334 = vector.extract_strided_slice %316 {offsets = [0, 96], sizes = [2, 32], strides = [1, 1]} : vector<2x128xf32> to vector<2x32xf32>
    %335 = arith.negf %334 : vector<2x32xf32>
    %336 = math.exp %335 : vector<2x32xf32>
    %cst_54 = arith.constant 1.000000e+00 : f32
    %337 = vector.broadcast %cst_54 : f32 to vector<2x32xf32>
    %338 = arith.addf %337, %336 : vector<2x32xf32>
    %339 = arith.divf %337, %338 : vector<2x32xf32>
    %340 = arith.mulf %331, %283 : vector<2x32xf32>
    %341 = arith.mulf %325, %333 : vector<2x32xf32>
    %342 = arith.addf %340, %341 : vector<2x32xf32>
    %343 = math.tanh %342 : vector<2x32xf32>
    %344 = arith.mulf %339, %343 : vector<2x32xf32>
    %345 = vector.extract_strided_slice %319 {offsets = [0, 0], sizes = [2, 32], strides = [1, 1]} : vector<2x128xf32> to vector<2x32xf32>
    %346 = arith.negf %345 : vector<2x32xf32>
    %347 = math.exp %346 : vector<2x32xf32>
    %cst_55 = arith.constant 1.000000e+00 : f32
    %348 = vector.broadcast %cst_55 : f32 to vector<2x32xf32>
    %349 = arith.addf %348, %347 : vector<2x32xf32>
    %350 = arith.divf %348, %349 : vector<2x32xf32>
    %351 = vector.extract_strided_slice %319 {offsets = [0, 32], sizes = [2, 32], strides = [1, 1]} : vector<2x128xf32> to vector<2x32xf32>
    %352 = arith.negf %351 : vector<2x32xf32>
    %353 = math.exp %352 : vector<2x32xf32>
    %cst_56 = arith.constant 1.000000e+00 : f32
    %354 = vector.broadcast %cst_56 : f32 to vector<2x32xf32>
    %355 = arith.addf %354, %353 : vector<2x32xf32>
    %356 = arith.divf %354, %355 : vector<2x32xf32>
    %357 = vector.extract_strided_slice %319 {offsets = [0, 64], sizes = [2, 32], strides = [1, 1]} : vector<2x128xf32> to vector<2x32xf32>
    %358 = math.tanh %357 : vector<2x32xf32>
    %359 = vector.extract_strided_slice %319 {offsets = [0, 96], sizes = [2, 32], strides = [1, 1]} : vector<2x128xf32> to vector<2x32xf32>
    %360 = arith.negf %359 : vector<2x32xf32>
    %361 = math.exp %360 : vector<2x32xf32>
    %cst_57 = arith.constant 1.000000e+00 : f32
    %362 = vector.broadcast %cst_57 : f32 to vector<2x32xf32>
    %363 = arith.addf %362, %361 : vector<2x32xf32>
    %364 = arith.divf %362, %363 : vector<2x32xf32>
    %365 = arith.mulf %356, %308 : vector<2x32xf32>
    %366 = arith.mulf %350, %358 : vector<2x32xf32>
    %367 = arith.addf %365, %366 : vector<2x32xf32>
    %368 = math.tanh %367 : vector<2x32xf32>
    %369 = arith.mulf %364, %368 : vector<2x32xf32>
    %370 = tpu.concatenate %344, %369 in 1 : vector<2x32xf32>, vector<2x32xf32> -> vector<2x64xf32>
    %371 = arith.truncf %370 : vector<2x64xf32> to vector<2x64xbf16>
    %cst_58 = arith.constant dense<0.000000e+00> : vector<2x256xf32>
    %372 = tpu.matmul %371, %20, %cst_58 {dimension_numbers = #tpu.dot_dimension_numbers<[1], [0], [0], [1], [0, 0, 1, 1], [], []>} : vector<2x64xbf16>, vector<64x256xbf16>, vector<2x256xf32> -> vector<2x256xf32>
    %373 = vector.extract_strided_slice %13 {offsets = [12, 0], sizes = [2, 128], strides = [1, 1]} : vector<16x128xf32> to vector<2x128xf32>
    %374 = vector.extract_strided_slice %372 {offsets = [0, 0], sizes = [2, 128], strides = [1, 1]} : vector<2x256xf32> to vector<2x128xf32>
    %375 = arith.addf %373, %374 : vector<2x128xf32>
    %376 = vector.extract_strided_slice %19 {offsets = [2, 0], sizes = [2, 128], strides = [1, 1]} : vector<16x128xf32> to vector<2x128xf32>
    %377 = vector.extract_strided_slice %372 {offsets = [0, 128], sizes = [2, 128], strides = [1, 1]} : vector<2x256xf32> to vector<2x128xf32>
    %378 = arith.addf %376, %377 : vector<2x128xf32>
    %379 = vector.extract_strided_slice %375 {offsets = [0, 0], sizes = [2, 32], strides = [1, 1]} : vector<2x128xf32> to vector<2x32xf32>
    %380 = arith.negf %379 : vector<2x32xf32>
    %381 = math.exp %380 : vector<2x32xf32>
    %cst_59 = arith.constant 1.000000e+00 : f32
    %382 = vector.broadcast %cst_59 : f32 to vector<2x32xf32>
    %383 = arith.addf %382, %381 : vector<2x32xf32>
    %384 = arith.divf %382, %383 : vector<2x32xf32>
    %385 = vector.extract_strided_slice %375 {offsets = [0, 32], sizes = [2, 32], strides = [1, 1]} : vector<2x128xf32> to vector<2x32xf32>
    %386 = arith.negf %385 : vector<2x32xf32>
    %387 = math.exp %386 : vector<2x32xf32>
    %cst_60 = arith.constant 1.000000e+00 : f32
    %388 = vector.broadcast %cst_60 : f32 to vector<2x32xf32>
    %389 = arith.addf %388, %387 : vector<2x32xf32>
    %390 = arith.divf %388, %389 : vector<2x32xf32>
    %391 = vector.extract_strided_slice %375 {offsets = [0, 64], sizes = [2, 32], strides = [1, 1]} : vector<2x128xf32> to vector<2x32xf32>
    %392 = math.tanh %391 : vector<2x32xf32>
    %393 = vector.extract_strided_slice %375 {offsets = [0, 96], sizes = [2, 32], strides = [1, 1]} : vector<2x128xf32> to vector<2x32xf32>
    %394 = arith.negf %393 : vector<2x32xf32>
    %395 = math.exp %394 : vector<2x32xf32>
    %cst_61 = arith.constant 1.000000e+00 : f32
    %396 = vector.broadcast %cst_61 : f32 to vector<2x32xf32>
    %397 = arith.addf %396, %395 : vector<2x32xf32>
    %398 = arith.divf %396, %397 : vector<2x32xf32>
    %399 = arith.mulf %390, %342 : vector<2x32xf32>
    %400 = arith.mulf %384, %392 : vector<2x32xf32>
    %401 = arith.addf %399, %400 : vector<2x32xf32>
    %402 = math.tanh %401 : vector<2x32xf32>
    %403 = arith.mulf %398, %402 : vector<2x32xf32>
    %404 = vector.extract_strided_slice %378 {offsets = [0, 0], sizes = [2, 32], strides = [1, 1]} : vector<2x128xf32> to vector<2x32xf32>
    %405 = arith.negf %404 : vector<2x32xf32>
    %406 = math.exp %405 : vector<2x32xf32>
    %cst_62 = arith.constant 1.000000e+00 : f32
    %407 = vector.broadcast %cst_62 : f32 to vector<2x32xf32>
    %408 = arith.addf %407, %406 : vector<2x32xf32>
    %409 = arith.divf %407, %408 : vector<2x32xf32>
    %410 = vector.extract_strided_slice %378 {offsets = [0, 32], sizes = [2, 32], strides = [1, 1]} : vector<2x128xf32> to vector<2x32xf32>
    %411 = arith.negf %410 : vector<2x32xf32>
    %412 = math.exp %411 : vector<2x32xf32>
    %cst_63 = arith.constant 1.000000e+00 : f32
    %413 = vector.broadcast %cst_63 : f32 to vector<2x32xf32>
    %414 = arith.addf %413, %412 : vector<2x32xf32>
    %415 = arith.divf %413, %414 : vector<2x32xf32>
    %416 = vector.extract_strided_slice %378 {offsets = [0, 64], sizes = [2, 32], strides = [1, 1]} : vector<2x128xf32> to vector<2x32xf32>
    %417 = math.tanh %416 : vector<2x32xf32>
    %418 = vector.extract_strided_slice %378 {offsets = [0, 96], sizes = [2, 32], strides = [1, 1]} : vector<2x128xf32> to vector<2x32xf32>
    %419 = arith.negf %418 : vector<2x32xf32>
    %420 = math.exp %419 : vector<2x32xf32>
    %cst_64 = arith.constant 1.000000e+00 : f32
    %421 = vector.broadcast %cst_64 : f32 to vector<2x32xf32>
    %422 = arith.addf %421, %420 : vector<2x32xf32>
    %423 = arith.divf %421, %422 : vector<2x32xf32>
    %424 = arith.mulf %415, %367 : vector<2x32xf32>
    %425 = arith.mulf %409, %417 : vector<2x32xf32>
    %426 = arith.addf %424, %425 : vector<2x32xf32>
    %427 = math.tanh %426 : vector<2x32xf32>
    %428 = arith.mulf %423, %427 : vector<2x32xf32>
    %429 = tpu.concatenate %403, %428 in 1 : vector<2x32xf32>, vector<2x32xf32> -> vector<2x64xf32>
    %430 = arith.truncf %429 : vector<2x64xf32> to vector<2x64xbf16>
    %cst_65 = arith.constant dense<0.000000e+00> : vector<2x256xf32>
    %431 = tpu.matmul %430, %20, %cst_65 {dimension_numbers = #tpu.dot_dimension_numbers<[1], [0], [0], [1], [0, 0, 1, 1], [], []>} : vector<2x64xbf16>, vector<64x256xbf16>, vector<2x256xf32> -> vector<2x256xf32>
    %432 = vector.extract_strided_slice %13 {offsets = [14, 0], sizes = [2, 128], strides = [1, 1]} : vector<16x128xf32> to vector<2x128xf32>
    %433 = vector.extract_strided_slice %431 {offsets = [0, 0], sizes = [2, 128], strides = [1, 1]} : vector<2x256xf32> to vector<2x128xf32>
    %434 = arith.addf %432, %433 : vector<2x128xf32>
    %435 = vector.extract_strided_slice %19 {offsets = [0, 0], sizes = [2, 128], strides = [1, 1]} : vector<16x128xf32> to vector<2x128xf32>
    %436 = vector.extract_strided_slice %431 {offsets = [0, 128], sizes = [2, 128], strides = [1, 1]} : vector<2x256xf32> to vector<2x128xf32>
    %437 = arith.addf %435, %436 : vector<2x128xf32>
    %438 = vector.extract_strided_slice %434 {offsets = [0, 0], sizes = [2, 32], strides = [1, 1]} : vector<2x128xf32> to vector<2x32xf32>
    %439 = arith.negf %438 : vector<2x32xf32>
    %440 = math.exp %439 : vector<2x32xf32>
    %cst_66 = arith.constant 1.000000e+00 : f32
    %441 = vector.broadcast %cst_66 : f32 to vector<2x32xf32>
    %442 = arith.addf %441, %440 : vector<2x32xf32>
    %443 = arith.divf %441, %442 : vector<2x32xf32>
    %444 = vector.extract_strided_slice %434 {offsets = [0, 32], sizes = [2, 32], strides = [1, 1]} : vector<2x128xf32> to vector<2x32xf32>
    %445 = arith.negf %444 : vector<2x32xf32>
    %446 = math.exp %445 : vector<2x32xf32>
    %cst_67 = arith.constant 1.000000e+00 : f32
    %447 = vector.broadcast %cst_67 : f32 to vector<2x32xf32>
    %448 = arith.addf %447, %446 : vector<2x32xf32>
    %449 = arith.divf %447, %448 : vector<2x32xf32>
    %450 = vector.extract_strided_slice %434 {offsets = [0, 64], sizes = [2, 32], strides = [1, 1]} : vector<2x128xf32> to vector<2x32xf32>
    %451 = math.tanh %450 : vector<2x32xf32>
    %452 = vector.extract_strided_slice %434 {offsets = [0, 96], sizes = [2, 32], strides = [1, 1]} : vector<2x128xf32> to vector<2x32xf32>
    %453 = arith.negf %452 : vector<2x32xf32>
    %454 = math.exp %453 : vector<2x32xf32>
    %cst_68 = arith.constant 1.000000e+00 : f32
    %455 = vector.broadcast %cst_68 : f32 to vector<2x32xf32>
    %456 = arith.addf %455, %454 : vector<2x32xf32>
    %457 = arith.divf %455, %456 : vector<2x32xf32>
    %458 = arith.mulf %449, %401 : vector<2x32xf32>
    %459 = arith.mulf %443, %451 : vector<2x32xf32>
    %460 = arith.addf %458, %459 : vector<2x32xf32>
    %461 = math.tanh %460 : vector<2x32xf32>
    %462 = arith.mulf %457, %461 : vector<2x32xf32>
    %463 = vector.extract_strided_slice %437 {offsets = [0, 0], sizes = [2, 32], strides = [1, 1]} : vector<2x128xf32> to vector<2x32xf32>
    %464 = arith.negf %463 : vector<2x32xf32>
    %465 = math.exp %464 : vector<2x32xf32>
    %cst_69 = arith.constant 1.000000e+00 : f32
    %466 = vector.broadcast %cst_69 : f32 to vector<2x32xf32>
    %467 = arith.addf %466, %465 : vector<2x32xf32>
    %468 = arith.divf %466, %467 : vector<2x32xf32>
    %469 = vector.extract_strided_slice %437 {offsets = [0, 32], sizes = [2, 32], strides = [1, 1]} : vector<2x128xf32> to vector<2x32xf32>
    %470 = arith.negf %469 : vector<2x32xf32>
    %471 = math.exp %470 : vector<2x32xf32>
    %cst_70 = arith.constant 1.000000e+00 : f32
    %472 = vector.broadcast %cst_70 : f32 to vector<2x32xf32>
    %473 = arith.addf %472, %471 : vector<2x32xf32>
    %474 = arith.divf %472, %473 : vector<2x32xf32>
    %475 = vector.extract_strided_slice %437 {offsets = [0, 64], sizes = [2, 32], strides = [1, 1]} : vector<2x128xf32> to vector<2x32xf32>
    %476 = math.tanh %475 : vector<2x32xf32>
    %477 = vector.extract_strided_slice %437 {offsets = [0, 96], sizes = [2, 32], strides = [1, 1]} : vector<2x128xf32> to vector<2x32xf32>
    %478 = arith.negf %477 : vector<2x32xf32>
    %479 = math.exp %478 : vector<2x32xf32>
    %cst_71 = arith.constant 1.000000e+00 : f32
    %480 = vector.broadcast %cst_71 : f32 to vector<2x32xf32>
    %481 = arith.addf %480, %479 : vector<2x32xf32>
    %482 = arith.divf %480, %481 : vector<2x32xf32>
    %483 = arith.mulf %474, %426 : vector<2x32xf32>
    %484 = arith.mulf %468, %476 : vector<2x32xf32>
    %485 = arith.addf %483, %484 : vector<2x32xf32>
    %486 = math.tanh %485 : vector<2x32xf32>
    %487 = arith.mulf %482, %486 : vector<2x32xf32>
    %488 = tpu.concatenate %49, %487 in 1 : vector<2x32xf32>, vector<2x32xf32> -> vector<2x64xf32>
    %489 = tpu.concatenate %108, %428 in 1 : vector<2x32xf32>, vector<2x32xf32> -> vector<2x64xf32>
    %490 = tpu.concatenate %167, %369 in 1 : vector<2x32xf32>, vector<2x32xf32> -> vector<2x64xf32>
    %491 = tpu.concatenate %226, %310 in 1 : vector<2x32xf32>, vector<2x32xf32> -> vector<2x64xf32>
    %492 = tpu.concatenate %285, %251 in 1 : vector<2x32xf32>, vector<2x32xf32> -> vector<2x64xf32>
    %493 = tpu.concatenate %344, %192 in 1 : vector<2x32xf32>, vector<2x32xf32> -> vector<2x64xf32>
    %494 = tpu.concatenate %403, %133 in 1 : vector<2x32xf32>, vector<2x32xf32> -> vector<2x64xf32>
    %495 = tpu.concatenate %462, %74 in 1 : vector<2x32xf32>, vector<2x32xf32> -> vector<2x64xf32>
    %496 = tpu.concatenate %488, %489, %490, %491, %492, %493, %494, %495 in 0 : vector<2x64xf32>, vector<2x64xf32>, vector<2x64xf32>, vector<2x64xf32>, vector<2x64xf32>, vector<2x64xf32>, vector<2x64xf32>, vector<2x64xf32> -> vector<16x64xf32>
    %c0_72 = arith.constant 0 : index
    %c0_73 = arith.constant 0 : index
    %497 = vector.load %arg12[%c0_72, %c0_73] : memref<64x32xbf16, #tpu.memory_space<vmem>>, vector<64x32xbf16>
    %c0_74 = arith.constant 0 : index
    %c0_75 = arith.constant 0 : index
    %498 = vector.load %arg13[%c0_74, %c0_75] : memref<1x32xf32, #tpu.memory_space<vmem>>, vector<1x32xf32>
    %499 = arith.truncf %496 : vector<16x64xf32> to vector<16x64xbf16>
    %cst_76 = arith.constant dense<0.000000e+00> : vector<16x32xf32>
    %500 = tpu.matmul %499, %497, %cst_76 {dimension_numbers = #tpu.dot_dimension_numbers<[1], [0], [0], [1], [0, 0, 1, 1], [], []>} : vector<16x64xbf16>, vector<64x32xbf16>, vector<16x32xf32> -> vector<16x32xf32>
    %501 = vector.broadcast %498 : vector<1x32xf32> to vector<16x32xf32>
    %502 = arith.addf %500, %501 : vector<16x32xf32>
    %503 = vector.extract_strided_slice %6 {offsets = [1, 0], sizes = [1, 32], strides = [1, 1]} : vector<20x32xf32> to vector<1x32xf32>
    %504 = vector.extract_strided_slice %6 {offsets = [2, 0], sizes = [1, 32], strides = [1, 1]} : vector<20x32xf32> to vector<1x32xf32>
    %505 = tpu.concatenate %503, %504 in 0 : vector<1x32xf32>, vector<1x32xf32> -> vector<2x32xf32>
    %c0_77 = arith.constant 0 : index
    %c0_78 = arith.constant 0 : index
    %506 = vector.load %arg14[%c0_77, %c0_78] : memref<32x32xbf16, #tpu.memory_space<vmem>>, vector<32x32xbf16>
    %c0_79 = arith.constant 0 : index
    %c0_80 = arith.constant 0 : index
    %507 = vector.load %arg15[%c0_79, %c0_80] : memref<1x32xf32, #tpu.memory_space<vmem>>, vector<1x32xf32>
    %508 = arith.truncf %505 : vector<2x32xf32> to vector<2x32xbf16>
    %cst_81 = arith.constant dense<0.000000e+00> : vector<2x32xf32>
    %509 = tpu.matmul %508, %506, %cst_81 {dimension_numbers = #tpu.dot_dimension_numbers<[1], [0], [0], [1], [0, 0, 1, 1], [], []>} : vector<2x32xbf16>, vector<32x32xbf16>, vector<2x32xf32> -> vector<2x32xf32>
    %510 = vector.broadcast %507 : vector<1x32xf32> to vector<2x32xf32>
    %511 = arith.addf %509, %510 : vector<2x32xf32>
    %512 = vector.extract_strided_slice %511 {offsets = [0, 0], sizes = [1, 32], strides = [1, 1]} : vector<2x32xf32> to vector<1x32xf32>
    %513 = vector.extract_strided_slice %511 {offsets = [1, 0], sizes = [1, 32], strides = [1, 1]} : vector<2x32xf32> to vector<1x32xf32>
    %c0_82 = arith.constant 0 : index
    %c0_83 = arith.constant 0 : index
    %514 = vector.load %arg1[%c0_82, %c0_83] : memref<16x64xf32, #tpu.memory_space<vmem>>, vector<16x64xf32>
    %c0_84 = arith.constant 0 : index
    %c0_85 = arith.constant 0 : index
    %515 = vector.load %arg16[%c0_84, %c0_85] : memref<64x32xbf16, #tpu.memory_space<vmem>>, vector<64x32xbf16>
    %c0_86 = arith.constant 0 : index
    %c0_87 = arith.constant 0 : index
    %516 = vector.load %arg17[%c0_86, %c0_87] : memref<1x32xf32, #tpu.memory_space<vmem>>, vector<1x32xf32>
    %517 = arith.truncf %514 : vector<16x64xf32> to vector<16x64xbf16>
    %cst_88 = arith.constant dense<0.000000e+00> : vector<16x32xf32>
    %518 = tpu.matmul %517, %515, %cst_88 {dimension_numbers = #tpu.dot_dimension_numbers<[1], [0], [0], [1], [0, 0, 1, 1], [], []>} : vector<16x64xbf16>, vector<64x32xbf16>, vector<16x32xf32> -> vector<16x32xf32>
    %519 = vector.broadcast %516 : vector<1x32xf32> to vector<16x32xf32>
    %520 = arith.addf %518, %519 : vector<16x32xf32>
    %521 = math.absf %512 : vector<1x32xf32>
    %cst_89 = arith.constant dense<0.000000e+00> : vector<1xf32>
    %522 = vector.multi_reduction <add>, %521, %cst_89 [1] : vector<1x32xf32> to vector<1xf32>
    %523 = vector.shape_cast %522 : vector<1xf32> to vector<1x1xf32>
    %cst_90 = arith.constant 0.000000e+00 : f32
    %524 = vector.broadcast %cst_90 : f32 to vector<1x1xf32>
    %525 = arith.cmpf oeq, %523, %524 : vector<1x1xf32>
    %cst_91 = arith.constant -1.000000e+09 : f32
    %cst_92 = arith.constant 0.000000e+00 : f32
    %526 = vector.broadcast %cst_91 : f32 to vector<1x1xf32>
    %527 = vector.broadcast %cst_92 : f32 to vector<1x1xf32>
    %528 = arith.select %525, %526, %527 : vector<1x1xi1>, vector<1x1xf32>
    %529 = math.absf %513 : vector<1x32xf32>
    %cst_93 = arith.constant dense<0.000000e+00> : vector<1xf32>
    %530 = vector.multi_reduction <add>, %529, %cst_93 [1] : vector<1x32xf32> to vector<1xf32>
    %531 = vector.shape_cast %530 : vector<1xf32> to vector<1x1xf32>
    %cst_94 = arith.constant 0.000000e+00 : f32
    %532 = vector.broadcast %cst_94 : f32 to vector<1x1xf32>
    %533 = arith.cmpf oeq, %531, %532 : vector<1x1xf32>
    %cst_95 = arith.constant -1.000000e+09 : f32
    %cst_96 = arith.constant 0.000000e+00 : f32
    %534 = vector.broadcast %cst_95 : f32 to vector<1x1xf32>
    %535 = vector.broadcast %cst_96 : f32 to vector<1x1xf32>
    %536 = arith.select %533, %534, %535 : vector<1x1xi1>, vector<1x1xf32>
    %c0_97 = arith.constant 0 : index
    %c0_98 = arith.constant 0 : index
    %537 = vector.load %arg2[%c0_97, %c0_98] : memref<2x8xf32, #tpu.memory_space<vmem>>, vector<2x8xf32>
    %c0_99 = arith.constant 0 : index
    %c0_100 = arith.constant 0 : index
    %538 = vector.load %arg3[%c0_99, %c0_100] : memref<2x8xf32, #tpu.memory_space<vmem>>, vector<2x8xf32>
    %539 = vector.extract_strided_slice %537 {offsets = [0, 0], sizes = [1, 8], strides = [1, 1]} : vector<2x8xf32> to vector<1x8xf32>
    %540 = tpu.concatenate %528, %539 in 1 : vector<1x1xf32>, vector<1x8xf32> -> vector<1x9xf32>
    %541 = vector.extract_strided_slice %537 {offsets = [1, 0], sizes = [1, 8], strides = [1, 1]} : vector<2x8xf32> to vector<1x8xf32>
    %542 = tpu.concatenate %528, %541 in 1 : vector<1x1xf32>, vector<1x8xf32> -> vector<1x9xf32>
    %543 = vector.extract_strided_slice %538 {offsets = [0, 0], sizes = [1, 8], strides = [1, 1]} : vector<2x8xf32> to vector<1x8xf32>
    %544 = tpu.concatenate %536, %543 in 1 : vector<1x1xf32>, vector<1x8xf32> -> vector<1x9xf32>
    %545 = vector.extract_strided_slice %538 {offsets = [1, 0], sizes = [1, 8], strides = [1, 1]} : vector<2x8xf32> to vector<1x8xf32>
    %546 = tpu.concatenate %536, %545 in 1 : vector<1x1xf32>, vector<1x8xf32> -> vector<1x9xf32>
    %547 = vector.extract_strided_slice %502 {offsets = [0, 0], sizes = [1, 32], strides = [1, 1]} : vector<16x32xf32> to vector<1x32xf32>
    %548 = vector.extract_strided_slice %502 {offsets = [2, 0], sizes = [1, 32], strides = [1, 1]} : vector<16x32xf32> to vector<1x32xf32>
    %549 = vector.extract_strided_slice %502 {offsets = [4, 0], sizes = [1, 32], strides = [1, 1]} : vector<16x32xf32> to vector<1x32xf32>
    %550 = vector.extract_strided_slice %502 {offsets = [6, 0], sizes = [1, 32], strides = [1, 1]} : vector<16x32xf32> to vector<1x32xf32>
    %551 = vector.extract_strided_slice %502 {offsets = [8, 0], sizes = [1, 32], strides = [1, 1]} : vector<16x32xf32> to vector<1x32xf32>
    %552 = vector.extract_strided_slice %502 {offsets = [10, 0], sizes = [1, 32], strides = [1, 1]} : vector<16x32xf32> to vector<1x32xf32>
    %553 = vector.extract_strided_slice %502 {offsets = [12, 0], sizes = [1, 32], strides = [1, 1]} : vector<16x32xf32> to vector<1x32xf32>
    %554 = vector.extract_strided_slice %502 {offsets = [14, 0], sizes = [1, 32], strides = [1, 1]} : vector<16x32xf32> to vector<1x32xf32>
    %555 = vector.extract_strided_slice %520 {offsets = [0, 0], sizes = [8, 32], strides = [1, 1]} : vector<16x32xf32> to vector<8x32xf32>
    %556 = vector.extract_strided_slice %502 {offsets = [1, 0], sizes = [1, 32], strides = [1, 1]} : vector<16x32xf32> to vector<1x32xf32>
    %557 = vector.extract_strided_slice %502 {offsets = [3, 0], sizes = [1, 32], strides = [1, 1]} : vector<16x32xf32> to vector<1x32xf32>
    %558 = vector.extract_strided_slice %502 {offsets = [5, 0], sizes = [1, 32], strides = [1, 1]} : vector<16x32xf32> to vector<1x32xf32>
    %559 = vector.extract_strided_slice %502 {offsets = [7, 0], sizes = [1, 32], strides = [1, 1]} : vector<16x32xf32> to vector<1x32xf32>
    %560 = vector.extract_strided_slice %502 {offsets = [9, 0], sizes = [1, 32], strides = [1, 1]} : vector<16x32xf32> to vector<1x32xf32>
    %561 = vector.extract_strided_slice %502 {offsets = [11, 0], sizes = [1, 32], strides = [1, 1]} : vector<16x32xf32> to vector<1x32xf32>
    %562 = vector.extract_strided_slice %502 {offsets = [13, 0], sizes = [1, 32], strides = [1, 1]} : vector<16x32xf32> to vector<1x32xf32>
    %563 = vector.extract_strided_slice %502 {offsets = [15, 0], sizes = [1, 32], strides = [1, 1]} : vector<16x32xf32> to vector<1x32xf32>
    %564 = vector.extract_strided_slice %520 {offsets = [8, 0], sizes = [8, 32], strides = [1, 1]} : vector<16x32xf32> to vector<8x32xf32>
    %565 = tpu.concatenate %512, %547, %548, %549, %550, %551, %552, %553, %554, %512, %556, %557, %558, %559, %560, %561 in 0 : vector<1x32xf32>, vector<1x32xf32>, vector<1x32xf32>, vector<1x32xf32>, vector<1x32xf32>, vector<1x32xf32>, vector<1x32xf32>, vector<1x32xf32>, vector<1x32xf32>, vector<1x32xf32>, vector<1x32xf32>, vector<1x32xf32>, vector<1x32xf32>, vector<1x32xf32>, vector<1x32xf32>, vector<1x32xf32> -> vector<16x32xf32>
    %566 = tpu.concatenate %562, %563 in 0 : vector<1x32xf32>, vector<1x32xf32> -> vector<2x32xf32>
    %567 = tpu.concatenate %565, %566 in 0 : vector<16x32xf32>, vector<2x32xf32> -> vector<18x32xf32>
    %568 = tpu.concatenate %513, %555, %513, %564 in 0 : vector<1x32xf32>, vector<8x32xf32>, vector<1x32xf32>, vector<8x32xf32> -> vector<18x32xf32>
    %c0_101 = arith.constant 0 : index
    %c0_102 = arith.constant 0 : index
    %569 = vector.load %arg4[%c0_101, %c0_102] : memref<36x36xf32, #tpu.memory_space<vmem>>, vector<36x36xf32>
    %570 = tpu.concatenate %540, %540, %540, %540 in 1 : vector<1x9xf32>, vector<1x9xf32>, vector<1x9xf32>, vector<1x9xf32> -> vector<1x36xf32>
    %571 = tpu.concatenate %542, %542, %542, %542 in 1 : vector<1x9xf32>, vector<1x9xf32>, vector<1x9xf32>, vector<1x9xf32> -> vector<1x36xf32>
    %c0_103 = arith.constant 0 : index
    %c0_104 = arith.constant 0 : index
    %c0_105 = arith.constant 0 : index
    %572 = vector.load %arg18[%c0_103, %c0_104, %c0_105] : memref<2x32x96xbf16, #tpu.memory_space<vmem>>, vector<1x32x96xbf16>
    %573 = vector.shape_cast %572 : vector<1x32x96xbf16> to vector<32x96xbf16>
    %c0_106 = arith.constant 0 : index
    %c0_107 = arith.constant 0 : index
    %c0_108 = arith.constant 0 : index
    %574 = vector.load %arg19[%c0_106, %c0_107, %c0_108] : memref<2x1x96xf32, #tpu.memory_space<vmem>>, vector<1x1x96xf32>
    %575 = vector.shape_cast %574 : vector<1x1x96xf32> to vector<1x96xf32>
    %576 = arith.truncf %567 : vector<18x32xf32> to vector<18x32xbf16>
    %cst_109 = arith.constant dense<0.000000e+00> : vector<18x96xf32>
    %577 = tpu.matmul %576, %573, %cst_109 {dimension_numbers = #tpu.dot_dimension_numbers<[1], [0], [0], [1], [0, 0, 1, 1], [], []>} : vector<18x32xbf16>, vector<32x96xbf16>, vector<18x96xf32> -> vector<18x96xf32>
    %578 = vector.broadcast %575 : vector<1x96xf32> to vector<18x96xf32>
    %579 = arith.addf %577, %578 : vector<18x96xf32>
    %580 = vector.extract_strided_slice %579 {offsets = [0, 0], sizes = [9, 96], strides = [1, 1]} : vector<18x96xf32> to vector<9x96xf32>
    %581 = vector.extract_strided_slice %580 {offsets = [0, 0], sizes = [9, 8], strides = [1, 1]} : vector<9x96xf32> to vector<9x8xf32>
    %582 = vector.extract_strided_slice %580 {offsets = [0, 8], sizes = [9, 8], strides = [1, 1]} : vector<9x96xf32> to vector<9x8xf32>
    %583 = vector.extract_strided_slice %580 {offsets = [0, 16], sizes = [9, 8], strides = [1, 1]} : vector<9x96xf32> to vector<9x8xf32>
    %584 = vector.extract_strided_slice %580 {offsets = [0, 24], sizes = [9, 8], strides = [1, 1]} : vector<9x96xf32> to vector<9x8xf32>
    %585 = tpu.concatenate %581, %582, %583, %584 in 0 : vector<9x8xf32>, vector<9x8xf32>, vector<9x8xf32>, vector<9x8xf32> -> vector<36x8xf32>
    %586 = vector.extract_strided_slice %580 {offsets = [0, 32], sizes = [9, 8], strides = [1, 1]} : vector<9x96xf32> to vector<9x8xf32>
    %587 = vector.extract_strided_slice %580 {offsets = [0, 40], sizes = [9, 8], strides = [1, 1]} : vector<9x96xf32> to vector<9x8xf32>
    %588 = vector.extract_strided_slice %580 {offsets = [0, 48], sizes = [9, 8], strides = [1, 1]} : vector<9x96xf32> to vector<9x8xf32>
    %589 = vector.extract_strided_slice %580 {offsets = [0, 56], sizes = [9, 8], strides = [1, 1]} : vector<9x96xf32> to vector<9x8xf32>
    %590 = tpu.concatenate %586, %587, %588, %589 in 0 : vector<9x8xf32>, vector<9x8xf32>, vector<9x8xf32>, vector<9x8xf32> -> vector<36x8xf32>
    %591 = vector.extract_strided_slice %580 {offsets = [0, 64], sizes = [9, 8], strides = [1, 1]} : vector<9x96xf32> to vector<9x8xf32>
    %592 = vector.extract_strided_slice %580 {offsets = [0, 72], sizes = [9, 8], strides = [1, 1]} : vector<9x96xf32> to vector<9x8xf32>
    %593 = vector.extract_strided_slice %580 {offsets = [0, 80], sizes = [9, 8], strides = [1, 1]} : vector<9x96xf32> to vector<9x8xf32>
    %594 = vector.extract_strided_slice %580 {offsets = [0, 88], sizes = [9, 8], strides = [1, 1]} : vector<9x96xf32> to vector<9x8xf32>
    %595 = tpu.concatenate %591, %592, %593, %594 in 0 : vector<9x8xf32>, vector<9x8xf32>, vector<9x8xf32>, vector<9x8xf32> -> vector<36x8xf32>
    %596 = tpu.transpose %590, [1, 0] : vector<36x8xf32> -> vector<8x36xf32>
    %cst_110 = arith.constant dense<0.000000e+00> : vector<36x36xf32>
    %597 = tpu.matmul %585, %596, %cst_110 {dimension_numbers = #tpu.dot_dimension_numbers<[1], [0], [0], [1], [0, 0, 1, 1], [], []>} : vector<36x8xf32>, vector<8x36xf32>, vector<36x36xf32> -> vector<36x36xf32>
    %cst_111 = arith.constant 0.353553385 : f32
    %598 = vector.broadcast %cst_111 : f32 to vector<36x36xf32>
    %599 = arith.mulf %597, %598 : vector<36x36xf32>
    %600 = arith.addf %599, %569 : vector<36x36xf32>
    %601 = vector.broadcast %570 : vector<1x36xf32> to vector<36x36xf32>
    %602 = arith.addf %600, %601 : vector<36x36xf32>
    %cst_112 = arith.constant dense<0xFF800000> : vector<36xf32>
    %603 = vector.multi_reduction <maximumf>, %602, %cst_112 [1] : vector<36x36xf32> to vector<36xf32>
    %604 = vector.shape_cast %603 : vector<36xf32> to vector<36x1xf32>
    %605 = vector.broadcast %604 : vector<36x1xf32> to vector<36x36xf32>
    %606 = arith.subf %602, %605 : vector<36x36xf32>
    %607 = math.exp %606 : vector<36x36xf32>
    %cst_113 = arith.constant dense<0.000000e+00> : vector<36xf32>
    %608 = vector.multi_reduction <add>, %607, %cst_113 [1] : vector<36x36xf32> to vector<36xf32>
    %609 = vector.shape_cast %608 : vector<36xf32> to vector<36x1xf32>
    %610 = vector.broadcast %609 : vector<36x1xf32> to vector<36x36xf32>
    %611 = arith.divf %607, %610 : vector<36x36xf32>
    %612 = vector.extract_strided_slice %611 {offsets = [0, 0], sizes = [1, 9], strides = [1, 1]} : vector<36x36xf32> to vector<1x9xf32>
    %613 = vector.extract_strided_slice %611 {offsets = [9, 9], sizes = [1, 9], strides = [1, 1]} : vector<36x36xf32> to vector<1x9xf32>
    %614 = vector.extract_strided_slice %611 {offsets = [18, 18], sizes = [1, 9], strides = [1, 1]} : vector<36x36xf32> to vector<1x9xf32>
    %615 = vector.extract_strided_slice %611 {offsets = [27, 27], sizes = [1, 9], strides = [1, 1]} : vector<36x36xf32> to vector<1x9xf32>
    %616 = tpu.concatenate %612, %613, %614, %615 in 0 : vector<1x9xf32>, vector<1x9xf32>, vector<1x9xf32>, vector<1x9xf32> -> vector<4x9xf32>
    %c0_114 = arith.constant 0 : index
    %c0_115 = arith.constant 0 : index
    %c0_116 = arith.constant 0 : index
    %c0_117 = arith.constant 0 : index
    %617 = vector.load %arg53[%c0_114, %c0_115, %c0_116, %c0_117] : memref<2x2x4x9xf32, #tpu.memory_space<vmem>>, vector<1x1x4x9xf32>
    %618 = vector.shape_cast %617 : vector<1x1x4x9xf32> to vector<4x9xf32>
    %619 = vector.shape_cast %616 : vector<4x9xf32> to vector<1x1x4x9xf32>
    tpu.vector_store %arg53[%c0_114, %c0_115, %c0_116, %c0_117], %619 {strides = array<i32>} : memref<2x2x4x9xf32, #tpu.memory_space<vmem>>, vector<1x1x4x9xf32>,
    %cst_118 = arith.constant dense<0.000000e+00> : vector<36x8xf32>
    %620 = tpu.matmul %611, %595, %cst_118 {dimension_numbers = #tpu.dot_dimension_numbers<[1], [0], [0], [1], [0, 0, 1, 1], [], []>} : vector<36x36xf32>, vector<36x8xf32>, vector<36x8xf32> -> vector<36x8xf32>
    %621 = vector.extract_strided_slice %620 {offsets = [0, 0], sizes = [9, 8], strides = [1, 1]} : vector<36x8xf32> to vector<9x8xf32>
    %622 = vector.extract_strided_slice %620 {offsets = [9, 0], sizes = [9, 8], strides = [1, 1]} : vector<36x8xf32> to vector<9x8xf32>
    %623 = vector.extract_strided_slice %620 {offsets = [18, 0], sizes = [9, 8], strides = [1, 1]} : vector<36x8xf32> to vector<9x8xf32>
    %624 = vector.extract_strided_slice %620 {offsets = [27, 0], sizes = [9, 8], strides = [1, 1]} : vector<36x8xf32> to vector<9x8xf32>
    %625 = tpu.concatenate %621, %622, %623, %624 in 1 : vector<9x8xf32>, vector<9x8xf32>, vector<9x8xf32>, vector<9x8xf32> -> vector<9x32xf32>
    %626 = vector.extract_strided_slice %579 {offsets = [9, 0], sizes = [9, 96], strides = [1, 1]} : vector<18x96xf32> to vector<9x96xf32>
    %627 = vector.extract_strided_slice %626 {offsets = [0, 0], sizes = [9, 8], strides = [1, 1]} : vector<9x96xf32> to vector<9x8xf32>
    %628 = vector.extract_strided_slice %626 {offsets = [0, 8], sizes = [9, 8], strides = [1, 1]} : vector<9x96xf32> to vector<9x8xf32>
    %629 = vector.extract_strided_slice %626 {offsets = [0, 16], sizes = [9, 8], strides = [1, 1]} : vector<9x96xf32> to vector<9x8xf32>
    %630 = vector.extract_strided_slice %626 {offsets = [0, 24], sizes = [9, 8], strides = [1, 1]} : vector<9x96xf32> to vector<9x8xf32>
    %631 = tpu.concatenate %627, %628, %629, %630 in 0 : vector<9x8xf32>, vector<9x8xf32>, vector<9x8xf32>, vector<9x8xf32> -> vector<36x8xf32>
    %632 = vector.extract_strided_slice %626 {offsets = [0, 32], sizes = [9, 8], strides = [1, 1]} : vector<9x96xf32> to vector<9x8xf32>
    %633 = vector.extract_strided_slice %626 {offsets = [0, 40], sizes = [9, 8], strides = [1, 1]} : vector<9x96xf32> to vector<9x8xf32>
    %634 = vector.extract_strided_slice %626 {offsets = [0, 48], sizes = [9, 8], strides = [1, 1]} : vector<9x96xf32> to vector<9x8xf32>
    %635 = vector.extract_strided_slice %626 {offsets = [0, 56], sizes = [9, 8], strides = [1, 1]} : vector<9x96xf32> to vector<9x8xf32>
    %636 = tpu.concatenate %632, %633, %634, %635 in 0 : vector<9x8xf32>, vector<9x8xf32>, vector<9x8xf32>, vector<9x8xf32> -> vector<36x8xf32>
    %637 = vector.extract_strided_slice %626 {offsets = [0, 64], sizes = [9, 8], strides = [1, 1]} : vector<9x96xf32> to vector<9x8xf32>
    %638 = vector.extract_strided_slice %626 {offsets = [0, 72], sizes = [9, 8], strides = [1, 1]} : vector<9x96xf32> to vector<9x8xf32>
    %639 = vector.extract_strided_slice %626 {offsets = [0, 80], sizes = [9, 8], strides = [1, 1]} : vector<9x96xf32> to vector<9x8xf32>
    %640 = vector.extract_strided_slice %626 {offsets = [0, 88], sizes = [9, 8], strides = [1, 1]} : vector<9x96xf32> to vector<9x8xf32>
    %641 = tpu.concatenate %637, %638, %639, %640 in 0 : vector<9x8xf32>, vector<9x8xf32>, vector<9x8xf32>, vector<9x8xf32> -> vector<36x8xf32>
    %642 = tpu.transpose %636, [1, 0] : vector<36x8xf32> -> vector<8x36xf32>
    %cst_119 = arith.constant dense<0.000000e+00> : vector<36x36xf32>
    %643 = tpu.matmul %631, %642, %cst_119 {dimension_numbers = #tpu.dot_dimension_numbers<[1], [0], [0], [1], [0, 0, 1, 1], [], []>} : vector<36x8xf32>, vector<8x36xf32>, vector<36x36xf32> -> vector<36x36xf32>
    %cst_120 = arith.constant 0.353553385 : f32
    %644 = vector.broadcast %cst_120 : f32 to vector<36x36xf32>
    %645 = arith.mulf %643, %644 : vector<36x36xf32>
    %646 = arith.addf %645, %569 : vector<36x36xf32>
    %647 = vector.broadcast %571 : vector<1x36xf32> to vector<36x36xf32>
    %648 = arith.addf %646, %647 : vector<36x36xf32>
    %cst_121 = arith.constant dense<0xFF800000> : vector<36xf32>
    %649 = vector.multi_reduction <maximumf>, %648, %cst_121 [1] : vector<36x36xf32> to vector<36xf32>
    %650 = vector.shape_cast %649 : vector<36xf32> to vector<36x1xf32>
    %651 = vector.broadcast %650 : vector<36x1xf32> to vector<36x36xf32>
    %652 = arith.subf %648, %651 : vector<36x36xf32>
    %653 = math.exp %652 : vector<36x36xf32>
    %cst_122 = arith.constant dense<0.000000e+00> : vector<36xf32>
    %654 = vector.multi_reduction <add>, %653, %cst_122 [1] : vector<36x36xf32> to vector<36xf32>
    %655 = vector.shape_cast %654 : vector<36xf32> to vector<36x1xf32>
    %656 = vector.broadcast %655 : vector<36x1xf32> to vector<36x36xf32>
    %657 = arith.divf %653, %656 : vector<36x36xf32>
    %658 = vector.extract_strided_slice %657 {offsets = [0, 0], sizes = [1, 9], strides = [1, 1]} : vector<36x36xf32> to vector<1x9xf32>
    %659 = vector.extract_strided_slice %657 {offsets = [9, 9], sizes = [1, 9], strides = [1, 1]} : vector<36x36xf32> to vector<1x9xf32>
    %660 = vector.extract_strided_slice %657 {offsets = [18, 18], sizes = [1, 9], strides = [1, 1]} : vector<36x36xf32> to vector<1x9xf32>
    %661 = vector.extract_strided_slice %657 {offsets = [27, 27], sizes = [1, 9], strides = [1, 1]} : vector<36x36xf32> to vector<1x9xf32>
    %662 = tpu.concatenate %658, %659, %660, %661 in 0 : vector<1x9xf32>, vector<1x9xf32>, vector<1x9xf32>, vector<1x9xf32> -> vector<4x9xf32>
    %c1 = arith.constant 1 : index
    %c0_123 = arith.constant 0 : index
    %c0_124 = arith.constant 0 : index
    %c0_125 = arith.constant 0 : index
    %663 = vector.load %arg53[%c1, %c0_123, %c0_124, %c0_125] : memref<2x2x4x9xf32, #tpu.memory_space<vmem>>, vector<1x1x4x9xf32>
    %664 = vector.shape_cast %663 : vector<1x1x4x9xf32> to vector<4x9xf32>
    %665 = vector.shape_cast %662 : vector<4x9xf32> to vector<1x1x4x9xf32>
    tpu.vector_store %arg53[%c1, %c0_123, %c0_124, %c0_125], %665 {strides = array<i32>} : memref<2x2x4x9xf32, #tpu.memory_space<vmem>>, vector<1x1x4x9xf32>,
    %cst_126 = arith.constant dense<0.000000e+00> : vector<36x8xf32>
    %666 = tpu.matmul %657, %641, %cst_126 {dimension_numbers = #tpu.dot_dimension_numbers<[1], [0], [0], [1], [0, 0, 1, 1], [], []>} : vector<36x36xf32>, vector<36x8xf32>, vector<36x8xf32> -> vector<36x8xf32>
    %667 = vector.extract_strided_slice %666 {offsets = [0, 0], sizes = [9, 8], strides = [1, 1]} : vector<36x8xf32> to vector<9x8xf32>
    %668 = vector.extract_strided_slice %666 {offsets = [9, 0], sizes = [9, 8], strides = [1, 1]} : vector<36x8xf32> to vector<9x8xf32>
    %669 = vector.extract_strided_slice %666 {offsets = [18, 0], sizes = [9, 8], strides = [1, 1]} : vector<36x8xf32> to vector<9x8xf32>
    %670 = vector.extract_strided_slice %666 {offsets = [27, 0], sizes = [9, 8], strides = [1, 1]} : vector<36x8xf32> to vector<9x8xf32>
    %671 = tpu.concatenate %667, %668, %669, %670 in 1 : vector<9x8xf32>, vector<9x8xf32>, vector<9x8xf32>, vector<9x8xf32> -> vector<9x32xf32>
    %672 = tpu.concatenate %625, %671 in 0 : vector<9x32xf32>, vector<9x32xf32> -> vector<18x32xf32>
    %c0_127 = arith.constant 0 : index
    %c0_128 = arith.constant 0 : index
    %c0_129 = arith.constant 0 : index
    %673 = vector.load %arg20[%c0_127, %c0_128, %c0_129] : memref<2x32x32xbf16, #tpu.memory_space<vmem>>, vector<1x32x32xbf16>
    %674 = vector.shape_cast %673 : vector<1x32x32xbf16> to vector<32x32xbf16>
    %c0_130 = arith.constant 0 : index
    %c0_131 = arith.constant 0 : index
    %c0_132 = arith.constant 0 : index
    %675 = vector.load %arg21[%c0_130, %c0_131, %c0_132] : memref<2x1x32xf32, #tpu.memory_space<vmem>>, vector<1x1x32xf32>
    %676 = vector.shape_cast %675 : vector<1x1x32xf32> to vector<1x32xf32>
    %677 = arith.truncf %672 : vector<18x32xf32> to vector<18x32xbf16>
    %cst_133 = arith.constant dense<0.000000e+00> : vector<18x32xf32>
    %678 = tpu.matmul %677, %674, %cst_133 {dimension_numbers = #tpu.dot_dimension_numbers<[1], [0], [0], [1], [0, 0, 1, 1], [], []>} : vector<18x32xbf16>, vector<32x32xbf16>, vector<18x32xf32> -> vector<18x32xf32>
    %679 = vector.broadcast %676 : vector<1x32xf32> to vector<18x32xf32>
    %680 = arith.addf %678, %679 : vector<18x32xf32>
    %681 = arith.addf %567, %680 : vector<18x32xf32>
    %c0_134 = arith.constant 0 : index
    %c0_135 = arith.constant 0 : index
    %c0_136 = arith.constant 0 : index
    %682 = vector.load %arg22[%c0_134, %c0_135, %c0_136] : memref<2x1x32xf32, #tpu.memory_space<vmem>>, vector<1x1x32xf32>
    %683 = vector.shape_cast %682 : vector<1x1x32xf32> to vector<1x32xf32>
    %c0_137 = arith.constant 0 : index
    %c0_138 = arith.constant 0 : index
    %c0_139 = arith.constant 0 : index
    %684 = vector.load %arg23[%c0_137, %c0_138, %c0_139] : memref<2x1x32xf32, #tpu.memory_space<vmem>>, vector<1x1x32xf32>
    %685 = vector.shape_cast %684 : vector<1x1x32xf32> to vector<1x32xf32>
    %cst_140 = arith.constant dense<0.000000e+00> : vector<18xf32>
    %686 = vector.multi_reduction <add>, %681, %cst_140 [1] : vector<18x32xf32> to vector<18xf32>
    %687 = vector.shape_cast %686 : vector<18xf32> to vector<18x1xf32>
    %cst_141 = arith.constant 3.200000e+01 : f32
    %688 = vector.broadcast %cst_141 : f32 to vector<18x1xf32>
    %689 = arith.divf %687, %688 : vector<18x1xf32>
    %690 = vector.broadcast %689 : vector<18x1xf32> to vector<18x32xf32>
    %691 = arith.subf %681, %690 : vector<18x32xf32>
    %692 = arith.mulf %691, %691 : vector<18x32xf32>
    %cst_142 = arith.constant dense<0.000000e+00> : vector<18xf32>
    %693 = vector.multi_reduction <add>, %692, %cst_142 [1] : vector<18x32xf32> to vector<18xf32>
    %694 = vector.shape_cast %693 : vector<18xf32> to vector<18x1xf32>
    %cst_143 = arith.constant 3.100000e+01 : f32
    %695 = vector.broadcast %cst_143 : f32 to vector<18x1xf32>
    %696 = arith.divf %694, %695 : vector<18x1xf32>
    %697 = vector.broadcast %689 : vector<18x1xf32> to vector<18x32xf32>
    %698 = arith.subf %681, %697 : vector<18x32xf32>
    %699 = vector.broadcast %683 : vector<1x32xf32> to vector<18x32xf32>
    %700 = arith.mulf %699, %698 : vector<18x32xf32>
    %701 = math.sqrt %696 : vector<18x1xf32>
    %cst_144 = arith.constant 9.99999997E-7 : f32
    %702 = vector.broadcast %cst_144 : f32 to vector<18x1xf32>
    %703 = arith.addf %701, %702 : vector<18x1xf32>
    %704 = vector.broadcast %703 : vector<18x1xf32> to vector<18x32xf32>
    %705 = arith.divf %700, %704 : vector<18x32xf32>
    %706 = vector.broadcast %685 : vector<1x32xf32> to vector<18x32xf32>
    %707 = arith.addf %705, %706 : vector<18x32xf32>
    %c0_145 = arith.constant 0 : index
    %c0_146 = arith.constant 0 : index
    %c0_147 = arith.constant 0 : index
    %708 = vector.load %arg24[%c0_145, %c0_146, %c0_147] : memref<2x32x64xbf16, #tpu.memory_space<vmem>>, vector<1x32x64xbf16>
    %709 = vector.shape_cast %708 : vector<1x32x64xbf16> to vector<32x64xbf16>
    %c0_148 = arith.constant 0 : index
    %c0_149 = arith.constant 0 : index
    %c0_150 = arith.constant 0 : index
    %710 = vector.load %arg25[%c0_148, %c0_149, %c0_150] : memref<2x1x64xf32, #tpu.memory_space<vmem>>, vector<1x1x64xf32>
    %711 = vector.shape_cast %710 : vector<1x1x64xf32> to vector<1x64xf32>
    %712 = arith.truncf %707 : vector<18x32xf32> to vector<18x32xbf16>
    %cst_151 = arith.constant dense<0.000000e+00> : vector<18x64xf32>
    %713 = tpu.matmul %712, %709, %cst_151 {dimension_numbers = #tpu.dot_dimension_numbers<[1], [0], [0], [1], [0, 0, 1, 1], [], []>} : vector<18x32xbf16>, vector<32x64xbf16>, vector<18x64xf32> -> vector<18x64xf32>
    %714 = vector.broadcast %711 : vector<1x64xf32> to vector<18x64xf32>
    %715 = arith.addf %713, %714 : vector<18x64xf32>
    %cst_152 = arith.constant 0.000000e+00 : f32
    %716 = vector.broadcast %cst_152 : f32 to vector<18x64xf32>
    %717 = arith.maximumf %715, %716 : vector<18x64xf32>
    %c0_153 = arith.constant 0 : index
    %c0_154 = arith.constant 0 : index
    %c0_155 = arith.constant 0 : index
    %718 = vector.load %arg26[%c0_153, %c0_154, %c0_155] : memref<2x64x32xbf16, #tpu.memory_space<vmem>>, vector<1x64x32xbf16>
    %719 = vector.shape_cast %718 : vector<1x64x32xbf16> to vector<64x32xbf16>
    %c0_156 = arith.constant 0 : index
    %c0_157 = arith.constant 0 : index
    %c0_158 = arith.constant 0 : index
    %720 = vector.load %arg27[%c0_156, %c0_157, %c0_158] : memref<2x1x32xf32, #tpu.memory_space<vmem>>, vector<1x1x32xf32>
    %721 = vector.shape_cast %720 : vector<1x1x32xf32> to vector<1x32xf32>
    %722 = arith.truncf %717 : vector<18x64xf32> to vector<18x64xbf16>
    %cst_159 = arith.constant dense<0.000000e+00> : vector<18x32xf32>
    %723 = tpu.matmul %722, %719, %cst_159 {dimension_numbers = #tpu.dot_dimension_numbers<[1], [0], [0], [1], [0, 0, 1, 1], [], []>} : vector<18x64xbf16>, vector<64x32xbf16>, vector<18x32xf32> -> vector<18x32xf32>
    %724 = vector.broadcast %721 : vector<1x32xf32> to vector<18x32xf32>
    %725 = arith.addf %723, %724 : vector<18x32xf32>
    %726 = arith.addf %707, %725 : vector<18x32xf32>
    %c0_160 = arith.constant 0 : index
    %c0_161 = arith.constant 0 : index
    %c0_162 = arith.constant 0 : index
    %727 = vector.load %arg28[%c0_160, %c0_161, %c0_162] : memref<2x1x32xf32, #tpu.memory_space<vmem>>, vector<1x1x32xf32>
    %728 = vector.shape_cast %727 : vector<1x1x32xf32> to vector<1x32xf32>
    %c0_163 = arith.constant 0 : index
    %c0_164 = arith.constant 0 : index
    %c0_165 = arith.constant 0 : index
    %729 = vector.load %arg29[%c0_163, %c0_164, %c0_165] : memref<2x1x32xf32, #tpu.memory_space<vmem>>, vector<1x1x32xf32>
    %730 = vector.shape_cast %729 : vector<1x1x32xf32> to vector<1x32xf32>
    %cst_166 = arith.constant dense<0.000000e+00> : vector<18xf32>
    %731 = vector.multi_reduction <add>, %726, %cst_166 [1] : vector<18x32xf32> to vector<18xf32>
    %732 = vector.shape_cast %731 : vector<18xf32> to vector<18x1xf32>
    %cst_167 = arith.constant 3.200000e+01 : f32
    %733 = vector.broadcast %cst_167 : f32 to vector<18x1xf32>
    %734 = arith.divf %732, %733 : vector<18x1xf32>
    %735 = vector.broadcast %734 : vector<18x1xf32> to vector<18x32xf32>
    %736 = arith.subf %726, %735 : vector<18x32xf32>
    %737 = arith.mulf %736, %736 : vector<18x32xf32>
    %cst_168 = arith.constant dense<0.000000e+00> : vector<18xf32>
    %738 = vector.multi_reduction <add>, %737, %cst_168 [1] : vector<18x32xf32> to vector<18xf32>
    %739 = vector.shape_cast %738 : vector<18xf32> to vector<18x1xf32>
    %cst_169 = arith.constant 3.100000e+01 : f32
    %740 = vector.broadcast %cst_169 : f32 to vector<18x1xf32>
    %741 = arith.divf %739, %740 : vector<18x1xf32>
    %742 = vector.broadcast %734 : vector<18x1xf32> to vector<18x32xf32>
    %743 = arith.subf %726, %742 : vector<18x32xf32>
    %744 = vector.broadcast %728 : vector<1x32xf32> to vector<18x32xf32>
    %745 = arith.mulf %744, %743 : vector<18x32xf32>
    %746 = math.sqrt %741 : vector<18x1xf32>
    %cst_170 = arith.constant 9.99999997E-7 : f32
    %747 = vector.broadcast %cst_170 : f32 to vector<18x1xf32>
    %748 = arith.addf %746, %747 : vector<18x1xf32>
    %749 = vector.broadcast %748 : vector<18x1xf32> to vector<18x32xf32>
    %750 = arith.divf %745, %749 : vector<18x32xf32>
    %751 = vector.broadcast %730 : vector<1x32xf32> to vector<18x32xf32>
    %752 = arith.addf %750, %751 : vector<18x32xf32>
    %c1_171 = arith.constant 1 : index
    %c0_172 = arith.constant 0 : index
    %c0_173 = arith.constant 0 : index
    %753 = vector.load %arg18[%c1_171, %c0_172, %c0_173] : memref<2x32x96xbf16, #tpu.memory_space<vmem>>, vector<1x32x96xbf16>
    %754 = vector.shape_cast %753 : vector<1x32x96xbf16> to vector<32x96xbf16>
    %c1_174 = arith.constant 1 : index
    %c0_175 = arith.constant 0 : index
    %c0_176 = arith.constant 0 : index
    %755 = vector.load %arg19[%c1_174, %c0_175, %c0_176] : memref<2x1x96xf32, #tpu.memory_space<vmem>>, vector<1x1x96xf32>
    %756 = vector.shape_cast %755 : vector<1x1x96xf32> to vector<1x96xf32>
    %757 = arith.truncf %752 : vector<18x32xf32> to vector<18x32xbf16>
    %cst_177 = arith.constant dense<0.000000e+00> : vector<18x96xf32>
    %758 = tpu.matmul %757, %754, %cst_177 {dimension_numbers = #tpu.dot_dimension_numbers<[1], [0], [0], [1], [0, 0, 1, 1], [], []>} : vector<18x32xbf16>, vector<32x96xbf16>, vector<18x96xf32> -> vector<18x96xf32>
    %759 = vector.broadcast %756 : vector<1x96xf32> to vector<18x96xf32>
    %760 = arith.addf %758, %759 : vector<18x96xf32>
    %761 = vector.extract_strided_slice %760 {offsets = [0, 0], sizes = [9, 96], strides = [1, 1]} : vector<18x96xf32> to vector<9x96xf32>
    %762 = vector.extract_strided_slice %761 {offsets = [0, 0], sizes = [9, 8], strides = [1, 1]} : vector<9x96xf32> to vector<9x8xf32>
    %763 = vector.extract_strided_slice %761 {offsets = [0, 8], sizes = [9, 8], strides = [1, 1]} : vector<9x96xf32> to vector<9x8xf32>
    %764 = vector.extract_strided_slice %761 {offsets = [0, 16], sizes = [9, 8], strides = [1, 1]} : vector<9x96xf32> to vector<9x8xf32>
    %765 = vector.extract_strided_slice %761 {offsets = [0, 24], sizes = [9, 8], strides = [1, 1]} : vector<9x96xf32> to vector<9x8xf32>
    %766 = tpu.concatenate %762, %763, %764, %765 in 0 : vector<9x8xf32>, vector<9x8xf32>, vector<9x8xf32>, vector<9x8xf32> -> vector<36x8xf32>
    %767 = vector.extract_strided_slice %761 {offsets = [0, 32], sizes = [9, 8], strides = [1, 1]} : vector<9x96xf32> to vector<9x8xf32>
    %768 = vector.extract_strided_slice %761 {offsets = [0, 40], sizes = [9, 8], strides = [1, 1]} : vector<9x96xf32> to vector<9x8xf32>
    %769 = vector.extract_strided_slice %761 {offsets = [0, 48], sizes = [9, 8], strides = [1, 1]} : vector<9x96xf32> to vector<9x8xf32>
    %770 = vector.extract_strided_slice %761 {offsets = [0, 56], sizes = [9, 8], strides = [1, 1]} : vector<9x96xf32> to vector<9x8xf32>
    %771 = tpu.concatenate %767, %768, %769, %770 in 0 : vector<9x8xf32>, vector<9x8xf32>, vector<9x8xf32>, vector<9x8xf32> -> vector<36x8xf32>
    %772 = vector.extract_strided_slice %761 {offsets = [0, 64], sizes = [9, 8], strides = [1, 1]} : vector<9x96xf32> to vector<9x8xf32>
    %773 = vector.extract_strided_slice %761 {offsets = [0, 72], sizes = [9, 8], strides = [1, 1]} : vector<9x96xf32> to vector<9x8xf32>
    %774 = vector.extract_strided_slice %761 {offsets = [0, 80], sizes = [9, 8], strides = [1, 1]} : vector<9x96xf32> to vector<9x8xf32>
    %775 = vector.extract_strided_slice %761 {offsets = [0, 88], sizes = [9, 8], strides = [1, 1]} : vector<9x96xf32> to vector<9x8xf32>
    %776 = tpu.concatenate %772, %773, %774, %775 in 0 : vector<9x8xf32>, vector<9x8xf32>, vector<9x8xf32>, vector<9x8xf32> -> vector<36x8xf32>
    %777 = tpu.transpose %771, [1, 0] : vector<36x8xf32> -> vector<8x36xf32>
    %cst_178 = arith.constant dense<0.000000e+00> : vector<36x36xf32>
    %778 = tpu.matmul %766, %777, %cst_178 {dimension_numbers = #tpu.dot_dimension_numbers<[1], [0], [0], [1], [0, 0, 1, 1], [], []>} : vector<36x8xf32>, vector<8x36xf32>, vector<36x36xf32> -> vector<36x36xf32>
    %cst_179 = arith.constant 0.353553385 : f32
    %779 = vector.broadcast %cst_179 : f32 to vector<36x36xf32>
    %780 = arith.mulf %778, %779 : vector<36x36xf32>
    %781 = arith.addf %780, %569 : vector<36x36xf32>
    %782 = vector.broadcast %570 : vector<1x36xf32> to vector<36x36xf32>
    %783 = arith.addf %781, %782 : vector<36x36xf32>
    %cst_180 = arith.constant dense<0xFF800000> : vector<36xf32>
    %784 = vector.multi_reduction <maximumf>, %783, %cst_180 [1] : vector<36x36xf32> to vector<36xf32>
    %785 = vector.shape_cast %784 : vector<36xf32> to vector<36x1xf32>
    %786 = vector.broadcast %785 : vector<36x1xf32> to vector<36x36xf32>
    %787 = arith.subf %783, %786 : vector<36x36xf32>
    %788 = math.exp %787 : vector<36x36xf32>
    %cst_181 = arith.constant dense<0.000000e+00> : vector<36xf32>
    %789 = vector.multi_reduction <add>, %788, %cst_181 [1] : vector<36x36xf32> to vector<36xf32>
    %790 = vector.shape_cast %789 : vector<36xf32> to vector<36x1xf32>
    %791 = vector.broadcast %790 : vector<36x1xf32> to vector<36x36xf32>
    %792 = arith.divf %788, %791 : vector<36x36xf32>
    %793 = vector.extract_strided_slice %792 {offsets = [0, 0], sizes = [1, 9], strides = [1, 1]} : vector<36x36xf32> to vector<1x9xf32>
    %794 = vector.extract_strided_slice %792 {offsets = [9, 9], sizes = [1, 9], strides = [1, 1]} : vector<36x36xf32> to vector<1x9xf32>
    %795 = vector.extract_strided_slice %792 {offsets = [18, 18], sizes = [1, 9], strides = [1, 1]} : vector<36x36xf32> to vector<1x9xf32>
    %796 = vector.extract_strided_slice %792 {offsets = [27, 27], sizes = [1, 9], strides = [1, 1]} : vector<36x36xf32> to vector<1x9xf32>
    %797 = tpu.concatenate %793, %794, %795, %796 in 0 : vector<1x9xf32>, vector<1x9xf32>, vector<1x9xf32>, vector<1x9xf32> -> vector<4x9xf32>
    %c0_182 = arith.constant 0 : index
    %c1_183 = arith.constant 1 : index
    %c0_184 = arith.constant 0 : index
    %c0_185 = arith.constant 0 : index
    %798 = vector.load %arg53[%c0_182, %c1_183, %c0_184, %c0_185] : memref<2x2x4x9xf32, #tpu.memory_space<vmem>>, vector<1x1x4x9xf32>
    %799 = vector.shape_cast %798 : vector<1x1x4x9xf32> to vector<4x9xf32>
    %800 = vector.shape_cast %797 : vector<4x9xf32> to vector<1x1x4x9xf32>
    tpu.vector_store %arg53[%c0_182, %c1_183, %c0_184, %c0_185], %800 {strides = array<i32>} : memref<2x2x4x9xf32, #tpu.memory_space<vmem>>, vector<1x1x4x9xf32>,
    %cst_186 = arith.constant dense<0.000000e+00> : vector<36x8xf32>
    %801 = tpu.matmul %792, %776, %cst_186 {dimension_numbers = #tpu.dot_dimension_numbers<[1], [0], [0], [1], [0, 0, 1, 1], [], []>} : vector<36x36xf32>, vector<36x8xf32>, vector<36x8xf32> -> vector<36x8xf32>
    %802 = vector.extract_strided_slice %801 {offsets = [0, 0], sizes = [9, 8], strides = [1, 1]} : vector<36x8xf32> to vector<9x8xf32>
    %803 = vector.extract_strided_slice %801 {offsets = [9, 0], sizes = [9, 8], strides = [1, 1]} : vector<36x8xf32> to vector<9x8xf32>
    %804 = vector.extract_strided_slice %801 {offsets = [18, 0], sizes = [9, 8], strides = [1, 1]} : vector<36x8xf32> to vector<9x8xf32>
    %805 = vector.extract_strided_slice %801 {offsets = [27, 0], sizes = [9, 8], strides = [1, 1]} : vector<36x8xf32> to vector<9x8xf32>
    %806 = tpu.concatenate %802, %803, %804, %805 in 1 : vector<9x8xf32>, vector<9x8xf32>, vector<9x8xf32>, vector<9x8xf32> -> vector<9x32xf32>
    %807 = vector.extract_strided_slice %760 {offsets = [9, 0], sizes = [9, 96], strides = [1, 1]} : vector<18x96xf32> to vector<9x96xf32>
    %808 = vector.extract_strided_slice %807 {offsets = [0, 0], sizes = [9, 8], strides = [1, 1]} : vector<9x96xf32> to vector<9x8xf32>
    %809 = vector.extract_strided_slice %807 {offsets = [0, 8], sizes = [9, 8], strides = [1, 1]} : vector<9x96xf32> to vector<9x8xf32>
    %810 = vector.extract_strided_slice %807 {offsets = [0, 16], sizes = [9, 8], strides = [1, 1]} : vector<9x96xf32> to vector<9x8xf32>
    %811 = vector.extract_strided_slice %807 {offsets = [0, 24], sizes = [9, 8], strides = [1, 1]} : vector<9x96xf32> to vector<9x8xf32>
    %812 = tpu.concatenate %808, %809, %810, %811 in 0 : vector<9x8xf32>, vector<9x8xf32>, vector<9x8xf32>, vector<9x8xf32> -> vector<36x8xf32>
    %813 = vector.extract_strided_slice %807 {offsets = [0, 32], sizes = [9, 8], strides = [1, 1]} : vector<9x96xf32> to vector<9x8xf32>
    %814 = vector.extract_strided_slice %807 {offsets = [0, 40], sizes = [9, 8], strides = [1, 1]} : vector<9x96xf32> to vector<9x8xf32>
    %815 = vector.extract_strided_slice %807 {offsets = [0, 48], sizes = [9, 8], strides = [1, 1]} : vector<9x96xf32> to vector<9x8xf32>
    %816 = vector.extract_strided_slice %807 {offsets = [0, 56], sizes = [9, 8], strides = [1, 1]} : vector<9x96xf32> to vector<9x8xf32>
    %817 = tpu.concatenate %813, %814, %815, %816 in 0 : vector<9x8xf32>, vector<9x8xf32>, vector<9x8xf32>, vector<9x8xf32> -> vector<36x8xf32>
    %818 = vector.extract_strided_slice %807 {offsets = [0, 64], sizes = [9, 8], strides = [1, 1]} : vector<9x96xf32> to vector<9x8xf32>
    %819 = vector.extract_strided_slice %807 {offsets = [0, 72], sizes = [9, 8], strides = [1, 1]} : vector<9x96xf32> to vector<9x8xf32>
    %820 = vector.extract_strided_slice %807 {offsets = [0, 80], sizes = [9, 8], strides = [1, 1]} : vector<9x96xf32> to vector<9x8xf32>
    %821 = vector.extract_strided_slice %807 {offsets = [0, 88], sizes = [9, 8], strides = [1, 1]} : vector<9x96xf32> to vector<9x8xf32>
    %822 = tpu.concatenate %818, %819, %820, %821 in 0 : vector<9x8xf32>, vector<9x8xf32>, vector<9x8xf32>, vector<9x8xf32> -> vector<36x8xf32>
    %823 = tpu.transpose %817, [1, 0] : vector<36x8xf32> -> vector<8x36xf32>
    %cst_187 = arith.constant dense<0.000000e+00> : vector<36x36xf32>
    %824 = tpu.matmul %812, %823, %cst_187 {dimension_numbers = #tpu.dot_dimension_numbers<[1], [0], [0], [1], [0, 0, 1, 1], [], []>} : vector<36x8xf32>, vector<8x36xf32>, vector<36x36xf32> -> vector<36x36xf32>
    %cst_188 = arith.constant 0.353553385 : f32
    %825 = vector.broadcast %cst_188 : f32 to vector<36x36xf32>
    %826 = arith.mulf %824, %825 : vector<36x36xf32>
    %827 = arith.addf %826, %569 : vector<36x36xf32>
    %828 = vector.broadcast %571 : vector<1x36xf32> to vector<36x36xf32>
    %829 = arith.addf %827, %828 : vector<36x36xf32>
    %cst_189 = arith.constant dense<0xFF800000> : vector<36xf32>
    %830 = vector.multi_reduction <maximumf>, %829, %cst_189 [1] : vector<36x36xf32> to vector<36xf32>
    %831 = vector.shape_cast %830 : vector<36xf32> to vector<36x1xf32>
    %832 = vector.broadcast %831 : vector<36x1xf32> to vector<36x36xf32>
    %833 = arith.subf %829, %832 : vector<36x36xf32>
    %834 = math.exp %833 : vector<36x36xf32>
    %cst_190 = arith.constant dense<0.000000e+00> : vector<36xf32>
    %835 = vector.multi_reduction <add>, %834, %cst_190 [1] : vector<36x36xf32> to vector<36xf32>
    %836 = vector.shape_cast %835 : vector<36xf32> to vector<36x1xf32>
    %837 = vector.broadcast %836 : vector<36x1xf32> to vector<36x36xf32>
    %838 = arith.divf %834, %837 : vector<36x36xf32>
    %839 = vector.extract_strided_slice %838 {offsets = [0, 0], sizes = [1, 9], strides = [1, 1]} : vector<36x36xf32> to vector<1x9xf32>
    %840 = vector.extract_strided_slice %838 {offsets = [9, 9], sizes = [1, 9], strides = [1, 1]} : vector<36x36xf32> to vector<1x9xf32>
    %841 = vector.extract_strided_slice %838 {offsets = [18, 18], sizes = [1, 9], strides = [1, 1]} : vector<36x36xf32> to vector<1x9xf32>
    %842 = vector.extract_strided_slice %838 {offsets = [27, 27], sizes = [1, 9], strides = [1, 1]} : vector<36x36xf32> to vector<1x9xf32>
    %843 = tpu.concatenate %839, %840, %841, %842 in 0 : vector<1x9xf32>, vector<1x9xf32>, vector<1x9xf32>, vector<1x9xf32> -> vector<4x9xf32>
    %c1_191 = arith.constant 1 : index
    %c1_192 = arith.constant 1 : index
    %c0_193 = arith.constant 0 : index
    %c0_194 = arith.constant 0 : index
    %844 = vector.load %arg53[%c1_191, %c1_192, %c0_193, %c0_194] : memref<2x2x4x9xf32, #tpu.memory_space<vmem>>, vector<1x1x4x9xf32>
    %845 = vector.shape_cast %844 : vector<1x1x4x9xf32> to vector<4x9xf32>
    %846 = vector.shape_cast %843 : vector<4x9xf32> to vector<1x1x4x9xf32>
    tpu.vector_store %arg53[%c1_191, %c1_192, %c0_193, %c0_194], %846 {strides = array<i32>} : memref<2x2x4x9xf32, #tpu.memory_space<vmem>>, vector<1x1x4x9xf32>,
    %cst_195 = arith.constant dense<0.000000e+00> : vector<36x8xf32>
    %847 = tpu.matmul %838, %822, %cst_195 {dimension_numbers = #tpu.dot_dimension_numbers<[1], [0], [0], [1], [0, 0, 1, 1], [], []>} : vector<36x36xf32>, vector<36x8xf32>, vector<36x8xf32> -> vector<36x8xf32>
    %848 = vector.extract_strided_slice %847 {offsets = [0, 0], sizes = [9, 8], strides = [1, 1]} : vector<36x8xf32> to vector<9x8xf32>
    %849 = vector.extract_strided_slice %847 {offsets = [9, 0], sizes = [9, 8], strides = [1, 1]} : vector<36x8xf32> to vector<9x8xf32>
    %850 = vector.extract_strided_slice %847 {offsets = [18, 0], sizes = [9, 8], strides = [1, 1]} : vector<36x8xf32> to vector<9x8xf32>
    %851 = vector.extract_strided_slice %847 {offsets = [27, 0], sizes = [9, 8], strides = [1, 1]} : vector<36x8xf32> to vector<9x8xf32>
    %852 = tpu.concatenate %848, %849, %850, %851 in 1 : vector<9x8xf32>, vector<9x8xf32>, vector<9x8xf32>, vector<9x8xf32> -> vector<9x32xf32>
    %853 = tpu.concatenate %806, %852 in 0 : vector<9x32xf32>, vector<9x32xf32> -> vector<18x32xf32>
    %c1_196 = arith.constant 1 : index
    %c0_197 = arith.constant 0 : index
    %c0_198 = arith.constant 0 : index
    %854 = vector.load %arg20[%c1_196, %c0_197, %c0_198] : memref<2x32x32xbf16, #tpu.memory_space<vmem>>, vector<1x32x32xbf16>
    %855 = vector.shape_cast %854 : vector<1x32x32xbf16> to vector<32x32xbf16>
    %c1_199 = arith.constant 1 : index
    %c0_200 = arith.constant 0 : index
    %c0_201 = arith.constant 0 : index
    %856 = vector.load %arg21[%c1_199, %c0_200, %c0_201] : memref<2x1x32xf32, #tpu.memory_space<vmem>>, vector<1x1x32xf32>
    %857 = vector.shape_cast %856 : vector<1x1x32xf32> to vector<1x32xf32>
    %858 = arith.truncf %853 : vector<18x32xf32> to vector<18x32xbf16>
    %cst_202 = arith.constant dense<0.000000e+00> : vector<18x32xf32>
    %859 = tpu.matmul %858, %855, %cst_202 {dimension_numbers = #tpu.dot_dimension_numbers<[1], [0], [0], [1], [0, 0, 1, 1], [], []>} : vector<18x32xbf16>, vector<32x32xbf16>, vector<18x32xf32> -> vector<18x32xf32>
    %860 = vector.broadcast %857 : vector<1x32xf32> to vector<18x32xf32>
    %861 = arith.addf %859, %860 : vector<18x32xf32>
    %862 = arith.addf %752, %861 : vector<18x32xf32>
    %c1_203 = arith.constant 1 : index
    %c0_204 = arith.constant 0 : index
    %c0_205 = arith.constant 0 : index
    %863 = vector.load %arg22[%c1_203, %c0_204, %c0_205] : memref<2x1x32xf32, #tpu.memory_space<vmem>>, vector<1x1x32xf32>
    %864 = vector.shape_cast %863 : vector<1x1x32xf32> to vector<1x32xf32>
    %c1_206 = arith.constant 1 : index
    %c0_207 = arith.constant 0 : index
    %c0_208 = arith.constant 0 : index
    %865 = vector.load %arg23[%c1_206, %c0_207, %c0_208] : memref<2x1x32xf32, #tpu.memory_space<vmem>>, vector<1x1x32xf32>
    %866 = vector.shape_cast %865 : vector<1x1x32xf32> to vector<1x32xf32>
    %cst_209 = arith.constant dense<0.000000e+00> : vector<18xf32>
    %867 = vector.multi_reduction <add>, %862, %cst_209 [1] : vector<18x32xf32> to vector<18xf32>
    %868 = vector.shape_cast %867 : vector<18xf32> to vector<18x1xf32>
    %cst_210 = arith.constant 3.200000e+01 : f32
    %869 = vector.broadcast %cst_210 : f32 to vector<18x1xf32>
    %870 = arith.divf %868, %869 : vector<18x1xf32>
    %871 = vector.broadcast %870 : vector<18x1xf32> to vector<18x32xf32>
    %872 = arith.subf %862, %871 : vector<18x32xf32>
    %873 = arith.mulf %872, %872 : vector<18x32xf32>
    %cst_211 = arith.constant dense<0.000000e+00> : vector<18xf32>
    %874 = vector.multi_reduction <add>, %873, %cst_211 [1] : vector<18x32xf32> to vector<18xf32>
    %875 = vector.shape_cast %874 : vector<18xf32> to vector<18x1xf32>
    %cst_212 = arith.constant 3.100000e+01 : f32
    %876 = vector.broadcast %cst_212 : f32 to vector<18x1xf32>
    %877 = arith.divf %875, %876 : vector<18x1xf32>
    %878 = vector.broadcast %870 : vector<18x1xf32> to vector<18x32xf32>
    %879 = arith.subf %862, %878 : vector<18x32xf32>
    %880 = vector.broadcast %864 : vector<1x32xf32> to vector<18x32xf32>
    %881 = arith.mulf %880, %879 : vector<18x32xf32>
    %882 = math.sqrt %877 : vector<18x1xf32>
    %cst_213 = arith.constant 9.99999997E-7 : f32
    %883 = vector.broadcast %cst_213 : f32 to vector<18x1xf32>
    %884 = arith.addf %882, %883 : vector<18x1xf32>
    %885 = vector.broadcast %884 : vector<18x1xf32> to vector<18x32xf32>
    %886 = arith.divf %881, %885 : vector<18x32xf32>
    %887 = vector.broadcast %866 : vector<1x32xf32> to vector<18x32xf32>
    %888 = arith.addf %886, %887 : vector<18x32xf32>
    %c1_214 = arith.constant 1 : index
    %c0_215 = arith.constant 0 : index
    %c0_216 = arith.constant 0 : index
    %889 = vector.load %arg24[%c1_214, %c0_215, %c0_216] : memref<2x32x64xbf16, #tpu.memory_space<vmem>>, vector<1x32x64xbf16>
    %890 = vector.shape_cast %889 : vector<1x32x64xbf16> to vector<32x64xbf16>
    %c1_217 = arith.constant 1 : index
    %c0_218 = arith.constant 0 : index
    %c0_219 = arith.constant 0 : index
    %891 = vector.load %arg25[%c1_217, %c0_218, %c0_219] : memref<2x1x64xf32, #tpu.memory_space<vmem>>, vector<1x1x64xf32>
    %892 = vector.shape_cast %891 : vector<1x1x64xf32> to vector<1x64xf32>
    %893 = arith.truncf %888 : vector<18x32xf32> to vector<18x32xbf16>
    %cst_220 = arith.constant dense<0.000000e+00> : vector<18x64xf32>
    %894 = tpu.matmul %893, %890, %cst_220 {dimension_numbers = #tpu.dot_dimension_numbers<[1], [0], [0], [1], [0, 0, 1, 1], [], []>} : vector<18x32xbf16>, vector<32x64xbf16>, vector<18x64xf32> -> vector<18x64xf32>
    %895 = vector.broadcast %892 : vector<1x64xf32> to vector<18x64xf32>
    %896 = arith.addf %894, %895 : vector<18x64xf32>
    %cst_221 = arith.constant 0.000000e+00 : f32
    %897 = vector.broadcast %cst_221 : f32 to vector<18x64xf32>
    %898 = arith.maximumf %896, %897 : vector<18x64xf32>
    %c1_222 = arith.constant 1 : index
    %c0_223 = arith.constant 0 : index
    %c0_224 = arith.constant 0 : index
    %899 = vector.load %arg26[%c1_222, %c0_223, %c0_224] : memref<2x64x32xbf16, #tpu.memory_space<vmem>>, vector<1x64x32xbf16>
    %900 = vector.shape_cast %899 : vector<1x64x32xbf16> to vector<64x32xbf16>
    %c1_225 = arith.constant 1 : index
    %c0_226 = arith.constant 0 : index
    %c0_227 = arith.constant 0 : index
    %901 = vector.load %arg27[%c1_225, %c0_226, %c0_227] : memref<2x1x32xf32, #tpu.memory_space<vmem>>, vector<1x1x32xf32>
    %902 = vector.shape_cast %901 : vector<1x1x32xf32> to vector<1x32xf32>
    %903 = arith.truncf %898 : vector<18x64xf32> to vector<18x64xbf16>
    %cst_228 = arith.constant dense<0.000000e+00> : vector<18x32xf32>
    %904 = tpu.matmul %903, %900, %cst_228 {dimension_numbers = #tpu.dot_dimension_numbers<[1], [0], [0], [1], [0, 0, 1, 1], [], []>} : vector<18x64xbf16>, vector<64x32xbf16>, vector<18x32xf32> -> vector<18x32xf32>
    %905 = vector.broadcast %902 : vector<1x32xf32> to vector<18x32xf32>
    %906 = arith.addf %904, %905 : vector<18x32xf32>
    %907 = arith.addf %888, %906 : vector<18x32xf32>
    %c1_229 = arith.constant 1 : index
    %c0_230 = arith.constant 0 : index
    %c0_231 = arith.constant 0 : index
    %908 = vector.load %arg28[%c1_229, %c0_230, %c0_231] : memref<2x1x32xf32, #tpu.memory_space<vmem>>, vector<1x1x32xf32>
    %909 = vector.shape_cast %908 : vector<1x1x32xf32> to vector<1x32xf32>
    %c1_232 = arith.constant 1 : index
    %c0_233 = arith.constant 0 : index
    %c0_234 = arith.constant 0 : index
    %910 = vector.load %arg29[%c1_232, %c0_233, %c0_234] : memref<2x1x32xf32, #tpu.memory_space<vmem>>, vector<1x1x32xf32>
    %911 = vector.shape_cast %910 : vector<1x1x32xf32> to vector<1x32xf32>
    %cst_235 = arith.constant dense<0.000000e+00> : vector<18xf32>
    %912 = vector.multi_reduction <add>, %907, %cst_235 [1] : vector<18x32xf32> to vector<18xf32>
    %913 = vector.shape_cast %912 : vector<18xf32> to vector<18x1xf32>
    %cst_236 = arith.constant 3.200000e+01 : f32
    %914 = vector.broadcast %cst_236 : f32 to vector<18x1xf32>
    %915 = arith.divf %913, %914 : vector<18x1xf32>
    %916 = vector.broadcast %915 : vector<18x1xf32> to vector<18x32xf32>
    %917 = arith.subf %907, %916 : vector<18x32xf32>
    %918 = arith.mulf %917, %917 : vector<18x32xf32>
    %cst_237 = arith.constant dense<0.000000e+00> : vector<18xf32>
    %919 = vector.multi_reduction <add>, %918, %cst_237 [1] : vector<18x32xf32> to vector<18xf32>
    %920 = vector.shape_cast %919 : vector<18xf32> to vector<18x1xf32>
    %cst_238 = arith.constant 3.100000e+01 : f32
    %921 = vector.broadcast %cst_238 : f32 to vector<18x1xf32>
    %922 = arith.divf %920, %921 : vector<18x1xf32>
    %923 = vector.broadcast %915 : vector<18x1xf32> to vector<18x32xf32>
    %924 = arith.subf %907, %923 : vector<18x32xf32>
    %925 = vector.broadcast %909 : vector<1x32xf32> to vector<18x32xf32>
    %926 = arith.mulf %925, %924 : vector<18x32xf32>
    %927 = math.sqrt %922 : vector<18x1xf32>
    %cst_239 = arith.constant 9.99999997E-7 : f32
    %928 = vector.broadcast %cst_239 : f32 to vector<18x1xf32>
    %929 = arith.addf %927, %928 : vector<18x1xf32>
    %930 = vector.broadcast %929 : vector<18x1xf32> to vector<18x32xf32>
    %931 = arith.divf %926, %930 : vector<18x32xf32>
    %932 = vector.broadcast %911 : vector<1x32xf32> to vector<18x32xf32>
    %933 = arith.addf %931, %932 : vector<18x32xf32>
    %c0_240 = arith.constant 0 : index
    %c0_241 = arith.constant 0 : index
    %934 = vector.load %arg5[%c0_240, %c0_241] : memref<36x36xf32, #tpu.memory_space<vmem>>, vector<36x36xf32>
    %935 = tpu.concatenate %544, %544, %544, %544 in 1 : vector<1x9xf32>, vector<1x9xf32>, vector<1x9xf32>, vector<1x9xf32> -> vector<1x36xf32>
    %936 = tpu.concatenate %546, %546, %546, %546 in 1 : vector<1x9xf32>, vector<1x9xf32>, vector<1x9xf32>, vector<1x9xf32> -> vector<1x36xf32>
    %c0_242 = arith.constant 0 : index
    %c0_243 = arith.constant 0 : index
    %c0_244 = arith.constant 0 : index
    %937 = vector.load %arg30[%c0_242, %c0_243, %c0_244] : memref<2x32x96xbf16, #tpu.memory_space<vmem>>, vector<1x32x96xbf16>
    %938 = vector.shape_cast %937 : vector<1x32x96xbf16> to vector<32x96xbf16>
    %c0_245 = arith.constant 0 : index
    %c0_246 = arith.constant 0 : index
    %c0_247 = arith.constant 0 : index
    %939 = vector.load %arg31[%c0_245, %c0_246, %c0_247] : memref<2x1x96xf32, #tpu.memory_space<vmem>>, vector<1x1x96xf32>
    %940 = vector.shape_cast %939 : vector<1x1x96xf32> to vector<1x96xf32>
    %941 = arith.truncf %568 : vector<18x32xf32> to vector<18x32xbf16>
    %cst_248 = arith.constant dense<0.000000e+00> : vector<18x96xf32>
    %942 = tpu.matmul %941, %938, %cst_248 {dimension_numbers = #tpu.dot_dimension_numbers<[1], [0], [0], [1], [0, 0, 1, 1], [], []>} : vector<18x32xbf16>, vector<32x96xbf16>, vector<18x96xf32> -> vector<18x96xf32>
    %943 = vector.broadcast %940 : vector<1x96xf32> to vector<18x96xf32>
    %944 = arith.addf %942, %943 : vector<18x96xf32>
    %945 = vector.extract_strided_slice %944 {offsets = [0, 0], sizes = [9, 96], strides = [1, 1]} : vector<18x96xf32> to vector<9x96xf32>
    %946 = vector.extract_strided_slice %945 {offsets = [0, 0], sizes = [9, 8], strides = [1, 1]} : vector<9x96xf32> to vector<9x8xf32>
    %947 = vector.extract_strided_slice %945 {offsets = [0, 8], sizes = [9, 8], strides = [1, 1]} : vector<9x96xf32> to vector<9x8xf32>
    %948 = vector.extract_strided_slice %945 {offsets = [0, 16], sizes = [9, 8], strides = [1, 1]} : vector<9x96xf32> to vector<9x8xf32>
    %949 = vector.extract_strided_slice %945 {offsets = [0, 24], sizes = [9, 8], strides = [1, 1]} : vector<9x96xf32> to vector<9x8xf32>
    %950 = tpu.concatenate %946, %947, %948, %949 in 0 : vector<9x8xf32>, vector<9x8xf32>, vector<9x8xf32>, vector<9x8xf32> -> vector<36x8xf32>
    %951 = vector.extract_strided_slice %945 {offsets = [0, 32], sizes = [9, 8], strides = [1, 1]} : vector<9x96xf32> to vector<9x8xf32>
    %952 = vector.extract_strided_slice %945 {offsets = [0, 40], sizes = [9, 8], strides = [1, 1]} : vector<9x96xf32> to vector<9x8xf32>
    %953 = vector.extract_strided_slice %945 {offsets = [0, 48], sizes = [9, 8], strides = [1, 1]} : vector<9x96xf32> to vector<9x8xf32>
    %954 = vector.extract_strided_slice %945 {offsets = [0, 56], sizes = [9, 8], strides = [1, 1]} : vector<9x96xf32> to vector<9x8xf32>
    %955 = tpu.concatenate %951, %952, %953, %954 in 0 : vector<9x8xf32>, vector<9x8xf32>, vector<9x8xf32>, vector<9x8xf32> -> vector<36x8xf32>
    %956 = vector.extract_strided_slice %945 {offsets = [0, 64], sizes = [9, 8], strides = [1, 1]} : vector<9x96xf32> to vector<9x8xf32>
    %957 = vector.extract_strided_slice %945 {offsets = [0, 72], sizes = [9, 8], strides = [1, 1]} : vector<9x96xf32> to vector<9x8xf32>
    %958 = vector.extract_strided_slice %945 {offsets = [0, 80], sizes = [9, 8], strides = [1, 1]} : vector<9x96xf32> to vector<9x8xf32>
    %959 = vector.extract_strided_slice %945 {offsets = [0, 88], sizes = [9, 8], strides = [1, 1]} : vector<9x96xf32> to vector<9x8xf32>
    %960 = tpu.concatenate %956, %957, %958, %959 in 0 : vector<9x8xf32>, vector<9x8xf32>, vector<9x8xf32>, vector<9x8xf32> -> vector<36x8xf32>
    %961 = tpu.transpose %955, [1, 0] : vector<36x8xf32> -> vector<8x36xf32>
    %cst_249 = arith.constant dense<0.000000e+00> : vector<36x36xf32>
    %962 = tpu.matmul %950, %961, %cst_249 {dimension_numbers = #tpu.dot_dimension_numbers<[1], [0], [0], [1], [0, 0, 1, 1], [], []>} : vector<36x8xf32>, vector<8x36xf32>, vector<36x36xf32> -> vector<36x36xf32>
    %cst_250 = arith.constant 0.353553385 : f32
    %963 = vector.broadcast %cst_250 : f32 to vector<36x36xf32>
    %964 = arith.mulf %962, %963 : vector<36x36xf32>
    %965 = arith.addf %964, %934 : vector<36x36xf32>
    %966 = vector.broadcast %935 : vector<1x36xf32> to vector<36x36xf32>
    %967 = arith.addf %965, %966 : vector<36x36xf32>
    %cst_251 = arith.constant dense<0xFF800000> : vector<36xf32>
    %968 = vector.multi_reduction <maximumf>, %967, %cst_251 [1] : vector<36x36xf32> to vector<36xf32>
    %969 = vector.shape_cast %968 : vector<36xf32> to vector<36x1xf32>
    %970 = vector.broadcast %969 : vector<36x1xf32> to vector<36x36xf32>
    %971 = arith.subf %967, %970 : vector<36x36xf32>
    %972 = math.exp %971 : vector<36x36xf32>
    %cst_252 = arith.constant dense<0.000000e+00> : vector<36xf32>
    %973 = vector.multi_reduction <add>, %972, %cst_252 [1] : vector<36x36xf32> to vector<36xf32>
    %974 = vector.shape_cast %973 : vector<36xf32> to vector<36x1xf32>
    %975 = vector.broadcast %974 : vector<36x1xf32> to vector<36x36xf32>
    %976 = arith.divf %972, %975 : vector<36x36xf32>
    %977 = vector.extract_strided_slice %976 {offsets = [0, 0], sizes = [1, 9], strides = [1, 1]} : vector<36x36xf32> to vector<1x9xf32>
    %978 = vector.extract_strided_slice %976 {offsets = [9, 9], sizes = [1, 9], strides = [1, 1]} : vector<36x36xf32> to vector<1x9xf32>
    %979 = vector.extract_strided_slice %976 {offsets = [18, 18], sizes = [1, 9], strides = [1, 1]} : vector<36x36xf32> to vector<1x9xf32>
    %980 = vector.extract_strided_slice %976 {offsets = [27, 27], sizes = [1, 9], strides = [1, 1]} : vector<36x36xf32> to vector<1x9xf32>
    %981 = tpu.concatenate %977, %978, %979, %980 in 0 : vector<1x9xf32>, vector<1x9xf32>, vector<1x9xf32>, vector<1x9xf32> -> vector<4x9xf32>
    %c0_253 = arith.constant 0 : index
    %c0_254 = arith.constant 0 : index
    %c0_255 = arith.constant 0 : index
    %c0_256 = arith.constant 0 : index
    %982 = vector.load %arg54[%c0_253, %c0_254, %c0_255, %c0_256] : memref<2x2x4x9xf32, #tpu.memory_space<vmem>>, vector<1x1x4x9xf32>
    %983 = vector.shape_cast %982 : vector<1x1x4x9xf32> to vector<4x9xf32>
    %984 = vector.shape_cast %981 : vector<4x9xf32> to vector<1x1x4x9xf32>
    tpu.vector_store %arg54[%c0_253, %c0_254, %c0_255, %c0_256], %984 {strides = array<i32>} : memref<2x2x4x9xf32, #tpu.memory_space<vmem>>, vector<1x1x4x9xf32>,
    %cst_257 = arith.constant dense<0.000000e+00> : vector<36x8xf32>
    %985 = tpu.matmul %976, %960, %cst_257 {dimension_numbers = #tpu.dot_dimension_numbers<[1], [0], [0], [1], [0, 0, 1, 1], [], []>} : vector<36x36xf32>, vector<36x8xf32>, vector<36x8xf32> -> vector<36x8xf32>
    %986 = vector.extract_strided_slice %985 {offsets = [0, 0], sizes = [9, 8], strides = [1, 1]} : vector<36x8xf32> to vector<9x8xf32>
    %987 = vector.extract_strided_slice %985 {offsets = [9, 0], sizes = [9, 8], strides = [1, 1]} : vector<36x8xf32> to vector<9x8xf32>
    %988 = vector.extract_strided_slice %985 {offsets = [18, 0], sizes = [9, 8], strides = [1, 1]} : vector<36x8xf32> to vector<9x8xf32>
    %989 = vector.extract_strided_slice %985 {offsets = [27, 0], sizes = [9, 8], strides = [1, 1]} : vector<36x8xf32> to vector<9x8xf32>
    %990 = tpu.concatenate %986, %987, %988, %989 in 1 : vector<9x8xf32>, vector<9x8xf32>, vector<9x8xf32>, vector<9x8xf32> -> vector<9x32xf32>
    %991 = vector.extract_strided_slice %944 {offsets = [9, 0], sizes = [9, 96], strides = [1, 1]} : vector<18x96xf32> to vector<9x96xf32>
    %992 = vector.extract_strided_slice %991 {offsets = [0, 0], sizes = [9, 8], strides = [1, 1]} : vector<9x96xf32> to vector<9x8xf32>
    %993 = vector.extract_strided_slice %991 {offsets = [0, 8], sizes = [9, 8], strides = [1, 1]} : vector<9x96xf32> to vector<9x8xf32>
    %994 = vector.extract_strided_slice %991 {offsets = [0, 16], sizes = [9, 8], strides = [1, 1]} : vector<9x96xf32> to vector<9x8xf32>
    %995 = vector.extract_strided_slice %991 {offsets = [0, 24], sizes = [9, 8], strides = [1, 1]} : vector<9x96xf32> to vector<9x8xf32>
    %996 = tpu.concatenate %992, %993, %994, %995 in 0 : vector<9x8xf32>, vector<9x8xf32>, vector<9x8xf32>, vector<9x8xf32> -> vector<36x8xf32>
    %997 = vector.extract_strided_slice %991 {offsets = [0, 32], sizes = [9, 8], strides = [1, 1]} : vector<9x96xf32> to vector<9x8xf32>
    %998 = vector.extract_strided_slice %991 {offsets = [0, 40], sizes = [9, 8], strides = [1, 1]} : vector<9x96xf32> to vector<9x8xf32>
    %999 = vector.extract_strided_slice %991 {offsets = [0, 48], sizes = [9, 8], strides = [1, 1]} : vector<9x96xf32> to vector<9x8xf32>
    %1000 = vector.extract_strided_slice %991 {offsets = [0, 56], sizes = [9, 8], strides = [1, 1]} : vector<9x96xf32> to vector<9x8xf32>
    %1001 = tpu.concatenate %997, %998, %999, %1000 in 0 : vector<9x8xf32>, vector<9x8xf32>, vector<9x8xf32>, vector<9x8xf32> -> vector<36x8xf32>
    %1002 = vector.extract_strided_slice %991 {offsets = [0, 64], sizes = [9, 8], strides = [1, 1]} : vector<9x96xf32> to vector<9x8xf32>
    %1003 = vector.extract_strided_slice %991 {offsets = [0, 72], sizes = [9, 8], strides = [1, 1]} : vector<9x96xf32> to vector<9x8xf32>
    %1004 = vector.extract_strided_slice %991 {offsets = [0, 80], sizes = [9, 8], strides = [1, 1]} : vector<9x96xf32> to vector<9x8xf32>
    %1005 = vector.extract_strided_slice %991 {offsets = [0, 88], sizes = [9, 8], strides = [1, 1]} : vector<9x96xf32> to vector<9x8xf32>
    %1006 = tpu.concatenate %1002, %1003, %1004, %1005 in 0 : vector<9x8xf32>, vector<9x8xf32>, vector<9x8xf32>, vector<9x8xf32> -> vector<36x8xf32>
    %1007 = tpu.transpose %1001, [1, 0] : vector<36x8xf32> -> vector<8x36xf32>
    %cst_258 = arith.constant dense<0.000000e+00> : vector<36x36xf32>
    %1008 = tpu.matmul %996, %1007, %cst_258 {dimension_numbers = #tpu.dot_dimension_numbers<[1], [0], [0], [1], [0, 0, 1, 1], [], []>} : vector<36x8xf32>, vector<8x36xf32>, vector<36x36xf32> -> vector<36x36xf32>
    %cst_259 = arith.constant 0.353553385 : f32
    %1009 = vector.broadcast %cst_259 : f32 to vector<36x36xf32>
    %1010 = arith.mulf %1008, %1009 : vector<36x36xf32>
    %1011 = arith.addf %1010, %934 : vector<36x36xf32>
    %1012 = vector.broadcast %936 : vector<1x36xf32> to vector<36x36xf32>
    %1013 = arith.addf %1011, %1012 : vector<36x36xf32>
    %cst_260 = arith.constant dense<0xFF800000> : vector<36xf32>
    %1014 = vector.multi_reduction <maximumf>, %1013, %cst_260 [1] : vector<36x36xf32> to vector<36xf32>
    %1015 = vector.shape_cast %1014 : vector<36xf32> to vector<36x1xf32>
    %1016 = vector.broadcast %1015 : vector<36x1xf32> to vector<36x36xf32>
    %1017 = arith.subf %1013, %1016 : vector<36x36xf32>
    %1018 = math.exp %1017 : vector<36x36xf32>
    %cst_261 = arith.constant dense<0.000000e+00> : vector<36xf32>
    %1019 = vector.multi_reduction <add>, %1018, %cst_261 [1] : vector<36x36xf32> to vector<36xf32>
    %1020 = vector.shape_cast %1019 : vector<36xf32> to vector<36x1xf32>
    %1021 = vector.broadcast %1020 : vector<36x1xf32> to vector<36x36xf32>
    %1022 = arith.divf %1018, %1021 : vector<36x36xf32>
    %1023 = vector.extract_strided_slice %1022 {offsets = [0, 0], sizes = [1, 9], strides = [1, 1]} : vector<36x36xf32> to vector<1x9xf32>
    %1024 = vector.extract_strided_slice %1022 {offsets = [9, 9], sizes = [1, 9], strides = [1, 1]} : vector<36x36xf32> to vector<1x9xf32>
    %1025 = vector.extract_strided_slice %1022 {offsets = [18, 18], sizes = [1, 9], strides = [1, 1]} : vector<36x36xf32> to vector<1x9xf32>
    %1026 = vector.extract_strided_slice %1022 {offsets = [27, 27], sizes = [1, 9], strides = [1, 1]} : vector<36x36xf32> to vector<1x9xf32>
    %1027 = tpu.concatenate %1023, %1024, %1025, %1026 in 0 : vector<1x9xf32>, vector<1x9xf32>, vector<1x9xf32>, vector<1x9xf32> -> vector<4x9xf32>
    %c1_262 = arith.constant 1 : index
    %c0_263 = arith.constant 0 : index
    %c0_264 = arith.constant 0 : index
    %c0_265 = arith.constant 0 : index
    %1028 = vector.load %arg54[%c1_262, %c0_263, %c0_264, %c0_265] : memref<2x2x4x9xf32, #tpu.memory_space<vmem>>, vector<1x1x4x9xf32>
    %1029 = vector.shape_cast %1028 : vector<1x1x4x9xf32> to vector<4x9xf32>
    %1030 = vector.shape_cast %1027 : vector<4x9xf32> to vector<1x1x4x9xf32>
    tpu.vector_store %arg54[%c1_262, %c0_263, %c0_264, %c0_265], %1030 {strides = array<i32>} : memref<2x2x4x9xf32, #tpu.memory_space<vmem>>, vector<1x1x4x9xf32>,
    %cst_266 = arith.constant dense<0.000000e+00> : vector<36x8xf32>
    %1031 = tpu.matmul %1022, %1006, %cst_266 {dimension_numbers = #tpu.dot_dimension_numbers<[1], [0], [0], [1], [0, 0, 1, 1], [], []>} : vector<36x36xf32>, vector<36x8xf32>, vector<36x8xf32> -> vector<36x8xf32>
    %1032 = vector.extract_strided_slice %1031 {offsets = [0, 0], sizes = [9, 8], strides = [1, 1]} : vector<36x8xf32> to vector<9x8xf32>
    %1033 = vector.extract_strided_slice %1031 {offsets = [9, 0], sizes = [9, 8], strides = [1, 1]} : vector<36x8xf32> to vector<9x8xf32>
    %1034 = vector.extract_strided_slice %1031 {offsets = [18, 0], sizes = [9, 8], strides = [1, 1]} : vector<36x8xf32> to vector<9x8xf32>
    %1035 = vector.extract_strided_slice %1031 {offsets = [27, 0], sizes = [9, 8], strides = [1, 1]} : vector<36x8xf32> to vector<9x8xf32>
    %1036 = tpu.concatenate %1032, %1033, %1034, %1035 in 1 : vector<9x8xf32>, vector<9x8xf32>, vector<9x8xf32>, vector<9x8xf32> -> vector<9x32xf32>
    %1037 = tpu.concatenate %990, %1036 in 0 : vector<9x32xf32>, vector<9x32xf32> -> vector<18x32xf32>
    %c0_267 = arith.constant 0 : index
    %c0_268 = arith.constant 0 : index
    %c0_269 = arith.constant 0 : index
    %1038 = vector.load %arg32[%c0_267, %c0_268, %c0_269] : memref<2x32x32xbf16, #tpu.memory_space<vmem>>, vector<1x32x32xbf16>
    %1039 = vector.shape_cast %1038 : vector<1x32x32xbf16> to vector<32x32xbf16>
    %c0_270 = arith.constant 0 : index
    %c0_271 = arith.constant 0 : index
    %c0_272 = arith.constant 0 : index
    %1040 = vector.load %arg33[%c0_270, %c0_271, %c0_272] : memref<2x1x32xf32, #tpu.memory_space<vmem>>, vector<1x1x32xf32>
    %1041 = vector.shape_cast %1040 : vector<1x1x32xf32> to vector<1x32xf32>
    %1042 = arith.truncf %1037 : vector<18x32xf32> to vector<18x32xbf16>
    %cst_273 = arith.constant dense<0.000000e+00> : vector<18x32xf32>
    %1043 = tpu.matmul %1042, %1039, %cst_273 {dimension_numbers = #tpu.dot_dimension_numbers<[1], [0], [0], [1], [0, 0, 1, 1], [], []>} : vector<18x32xbf16>, vector<32x32xbf16>, vector<18x32xf32> -> vector<18x32xf32>
    %1044 = vector.broadcast %1041 : vector<1x32xf32> to vector<18x32xf32>
    %1045 = arith.addf %1043, %1044 : vector<18x32xf32>
    %1046 = arith.addf %568, %1045 : vector<18x32xf32>
    %c0_274 = arith.constant 0 : index
    %c0_275 = arith.constant 0 : index
    %c0_276 = arith.constant 0 : index
    %1047 = vector.load %arg34[%c0_274, %c0_275, %c0_276] : memref<2x1x32xf32, #tpu.memory_space<vmem>>, vector<1x1x32xf32>
    %1048 = vector.shape_cast %1047 : vector<1x1x32xf32> to vector<1x32xf32>
    %c0_277 = arith.constant 0 : index
    %c0_278 = arith.constant 0 : index
    %c0_279 = arith.constant 0 : index
    %1049 = vector.load %arg35[%c0_277, %c0_278, %c0_279] : memref<2x1x32xf32, #tpu.memory_space<vmem>>, vector<1x1x32xf32>
    %1050 = vector.shape_cast %1049 : vector<1x1x32xf32> to vector<1x32xf32>
    %cst_280 = arith.constant dense<0.000000e+00> : vector<18xf32>
    %1051 = vector.multi_reduction <add>, %1046, %cst_280 [1] : vector<18x32xf32> to vector<18xf32>
    %1052 = vector.shape_cast %1051 : vector<18xf32> to vector<18x1xf32>
    %cst_281 = arith.constant 3.200000e+01 : f32
    %1053 = vector.broadcast %cst_281 : f32 to vector<18x1xf32>
    %1054 = arith.divf %1052, %1053 : vector<18x1xf32>
    %1055 = vector.broadcast %1054 : vector<18x1xf32> to vector<18x32xf32>
    %1056 = arith.subf %1046, %1055 : vector<18x32xf32>
    %1057 = arith.mulf %1056, %1056 : vector<18x32xf32>
    %cst_282 = arith.constant dense<0.000000e+00> : vector<18xf32>
    %1058 = vector.multi_reduction <add>, %1057, %cst_282 [1] : vector<18x32xf32> to vector<18xf32>
    %1059 = vector.shape_cast %1058 : vector<18xf32> to vector<18x1xf32>
    %cst_283 = arith.constant 3.100000e+01 : f32
    %1060 = vector.broadcast %cst_283 : f32 to vector<18x1xf32>
    %1061 = arith.divf %1059, %1060 : vector<18x1xf32>
    %1062 = vector.broadcast %1054 : vector<18x1xf32> to vector<18x32xf32>
    %1063 = arith.subf %1046, %1062 : vector<18x32xf32>
    %1064 = vector.broadcast %1048 : vector<1x32xf32> to vector<18x32xf32>
    %1065 = arith.mulf %1064, %1063 : vector<18x32xf32>
    %1066 = math.sqrt %1061 : vector<18x1xf32>
    %cst_284 = arith.constant 9.99999997E-7 : f32
    %1067 = vector.broadcast %cst_284 : f32 to vector<18x1xf32>
    %1068 = arith.addf %1066, %1067 : vector<18x1xf32>
    %1069 = vector.broadcast %1068 : vector<18x1xf32> to vector<18x32xf32>
    %1070 = arith.divf %1065, %1069 : vector<18x32xf32>
    %1071 = vector.broadcast %1050 : vector<1x32xf32> to vector<18x32xf32>
    %1072 = arith.addf %1070, %1071 : vector<18x32xf32>
    %c0_285 = arith.constant 0 : index
    %c0_286 = arith.constant 0 : index
    %c0_287 = arith.constant 0 : index
    %1073 = vector.load %arg36[%c0_285, %c0_286, %c0_287] : memref<2x32x64xbf16, #tpu.memory_space<vmem>>, vector<1x32x64xbf16>
    %1074 = vector.shape_cast %1073 : vector<1x32x64xbf16> to vector<32x64xbf16>
    %c0_288 = arith.constant 0 : index
    %c0_289 = arith.constant 0 : index
    %c0_290 = arith.constant 0 : index
    %1075 = vector.load %arg37[%c0_288, %c0_289, %c0_290] : memref<2x1x64xf32, #tpu.memory_space<vmem>>, vector<1x1x64xf32>
    %1076 = vector.shape_cast %1075 : vector<1x1x64xf32> to vector<1x64xf32>
    %1077 = arith.truncf %1072 : vector<18x32xf32> to vector<18x32xbf16>
    %cst_291 = arith.constant dense<0.000000e+00> : vector<18x64xf32>
    %1078 = tpu.matmul %1077, %1074, %cst_291 {dimension_numbers = #tpu.dot_dimension_numbers<[1], [0], [0], [1], [0, 0, 1, 1], [], []>} : vector<18x32xbf16>, vector<32x64xbf16>, vector<18x64xf32> -> vector<18x64xf32>
    %1079 = vector.broadcast %1076 : vector<1x64xf32> to vector<18x64xf32>
    %1080 = arith.addf %1078, %1079 : vector<18x64xf32>
    %cst_292 = arith.constant 0.000000e+00 : f32
    %1081 = vector.broadcast %cst_292 : f32 to vector<18x64xf32>
    %1082 = arith.maximumf %1080, %1081 : vector<18x64xf32>
    %c0_293 = arith.constant 0 : index
    %c0_294 = arith.constant 0 : index
    %c0_295 = arith.constant 0 : index
    %1083 = vector.load %arg38[%c0_293, %c0_294, %c0_295] : memref<2x64x32xbf16, #tpu.memory_space<vmem>>, vector<1x64x32xbf16>
    %1084 = vector.shape_cast %1083 : vector<1x64x32xbf16> to vector<64x32xbf16>
    %c0_296 = arith.constant 0 : index
    %c0_297 = arith.constant 0 : index
    %c0_298 = arith.constant 0 : index
    %1085 = vector.load %arg39[%c0_296, %c0_297, %c0_298] : memref<2x1x32xf32, #tpu.memory_space<vmem>>, vector<1x1x32xf32>
    %1086 = vector.shape_cast %1085 : vector<1x1x32xf32> to vector<1x32xf32>
    %1087 = arith.truncf %1082 : vector<18x64xf32> to vector<18x64xbf16>
    %cst_299 = arith.constant dense<0.000000e+00> : vector<18x32xf32>
    %1088 = tpu.matmul %1087, %1084, %cst_299 {dimension_numbers = #tpu.dot_dimension_numbers<[1], [0], [0], [1], [0, 0, 1, 1], [], []>} : vector<18x64xbf16>, vector<64x32xbf16>, vector<18x32xf32> -> vector<18x32xf32>
    %1089 = vector.broadcast %1086 : vector<1x32xf32> to vector<18x32xf32>
    %1090 = arith.addf %1088, %1089 : vector<18x32xf32>
    %1091 = arith.addf %1072, %1090 : vector<18x32xf32>
    %c0_300 = arith.constant 0 : index
    %c0_301 = arith.constant 0 : index
    %c0_302 = arith.constant 0 : index
    %1092 = vector.load %arg40[%c0_300, %c0_301, %c0_302] : memref<2x1x32xf32, #tpu.memory_space<vmem>>, vector<1x1x32xf32>
    %1093 = vector.shape_cast %1092 : vector<1x1x32xf32> to vector<1x32xf32>
    %c0_303 = arith.constant 0 : index
    %c0_304 = arith.constant 0 : index
    %c0_305 = arith.constant 0 : index
    %1094 = vector.load %arg41[%c0_303, %c0_304, %c0_305] : memref<2x1x32xf32, #tpu.memory_space<vmem>>, vector<1x1x32xf32>
    %1095 = vector.shape_cast %1094 : vector<1x1x32xf32> to vector<1x32xf32>
    %cst_306 = arith.constant dense<0.000000e+00> : vector<18xf32>
    %1096 = vector.multi_reduction <add>, %1091, %cst_306 [1] : vector<18x32xf32> to vector<18xf32>
    %1097 = vector.shape_cast %1096 : vector<18xf32> to vector<18x1xf32>
    %cst_307 = arith.constant 3.200000e+01 : f32
    %1098 = vector.broadcast %cst_307 : f32 to vector<18x1xf32>
    %1099 = arith.divf %1097, %1098 : vector<18x1xf32>
    %1100 = vector.broadcast %1099 : vector<18x1xf32> to vector<18x32xf32>
    %1101 = arith.subf %1091, %1100 : vector<18x32xf32>
    %1102 = arith.mulf %1101, %1101 : vector<18x32xf32>
    %cst_308 = arith.constant dense<0.000000e+00> : vector<18xf32>
    %1103 = vector.multi_reduction <add>, %1102, %cst_308 [1] : vector<18x32xf32> to vector<18xf32>
    %1104 = vector.shape_cast %1103 : vector<18xf32> to vector<18x1xf32>
    %cst_309 = arith.constant 3.100000e+01 : f32
    %1105 = vector.broadcast %cst_309 : f32 to vector<18x1xf32>
    %1106 = arith.divf %1104, %1105 : vector<18x1xf32>
    %1107 = vector.broadcast %1099 : vector<18x1xf32> to vector<18x32xf32>
    %1108 = arith.subf %1091, %1107 : vector<18x32xf32>
    %1109 = vector.broadcast %1093 : vector<1x32xf32> to vector<18x32xf32>
    %1110 = arith.mulf %1109, %1108 : vector<18x32xf32>
    %1111 = math.sqrt %1106 : vector<18x1xf32>
    %cst_310 = arith.constant 9.99999997E-7 : f32
    %1112 = vector.broadcast %cst_310 : f32 to vector<18x1xf32>
    %1113 = arith.addf %1111, %1112 : vector<18x1xf32>
    %1114 = vector.broadcast %1113 : vector<18x1xf32> to vector<18x32xf32>
    %1115 = arith.divf %1110, %1114 : vector<18x32xf32>
    %1116 = vector.broadcast %1095 : vector<1x32xf32> to vector<18x32xf32>
    %1117 = arith.addf %1115, %1116 : vector<18x32xf32>
    %c1_311 = arith.constant 1 : index
    %c0_312 = arith.constant 0 : index
    %c0_313 = arith.constant 0 : index
    %1118 = vector.load %arg30[%c1_311, %c0_312, %c0_313] : memref<2x32x96xbf16, #tpu.memory_space<vmem>>, vector<1x32x96xbf16>
    %1119 = vector.shape_cast %1118 : vector<1x32x96xbf16> to vector<32x96xbf16>
    %c1_314 = arith.constant 1 : index
    %c0_315 = arith.constant 0 : index
    %c0_316 = arith.constant 0 : index
    %1120 = vector.load %arg31[%c1_314, %c0_315, %c0_316] : memref<2x1x96xf32, #tpu.memory_space<vmem>>, vector<1x1x96xf32>
    %1121 = vector.shape_cast %1120 : vector<1x1x96xf32> to vector<1x96xf32>
    %1122 = arith.truncf %1117 : vector<18x32xf32> to vector<18x32xbf16>
    %cst_317 = arith.constant dense<0.000000e+00> : vector<18x96xf32>
    %1123 = tpu.matmul %1122, %1119, %cst_317 {dimension_numbers = #tpu.dot_dimension_numbers<[1], [0], [0], [1], [0, 0, 1, 1], [], []>} : vector<18x32xbf16>, vector<32x96xbf16>, vector<18x96xf32> -> vector<18x96xf32>
    %1124 = vector.broadcast %1121 : vector<1x96xf32> to vector<18x96xf32>
    %1125 = arith.addf %1123, %1124 : vector<18x96xf32>
    %1126 = vector.extract_strided_slice %1125 {offsets = [0, 0], sizes = [9, 96], strides = [1, 1]} : vector<18x96xf32> to vector<9x96xf32>
    %1127 = vector.extract_strided_slice %1126 {offsets = [0, 0], sizes = [9, 8], strides = [1, 1]} : vector<9x96xf32> to vector<9x8xf32>
    %1128 = vector.extract_strided_slice %1126 {offsets = [0, 8], sizes = [9, 8], strides = [1, 1]} : vector<9x96xf32> to vector<9x8xf32>
    %1129 = vector.extract_strided_slice %1126 {offsets = [0, 16], sizes = [9, 8], strides = [1, 1]} : vector<9x96xf32> to vector<9x8xf32>
    %1130 = vector.extract_strided_slice %1126 {offsets = [0, 24], sizes = [9, 8], strides = [1, 1]} : vector<9x96xf32> to vector<9x8xf32>
    %1131 = tpu.concatenate %1127, %1128, %1129, %1130 in 0 : vector<9x8xf32>, vector<9x8xf32>, vector<9x8xf32>, vector<9x8xf32> -> vector<36x8xf32>
    %1132 = vector.extract_strided_slice %1126 {offsets = [0, 32], sizes = [9, 8], strides = [1, 1]} : vector<9x96xf32> to vector<9x8xf32>
    %1133 = vector.extract_strided_slice %1126 {offsets = [0, 40], sizes = [9, 8], strides = [1, 1]} : vector<9x96xf32> to vector<9x8xf32>
    %1134 = vector.extract_strided_slice %1126 {offsets = [0, 48], sizes = [9, 8], strides = [1, 1]} : vector<9x96xf32> to vector<9x8xf32>
    %1135 = vector.extract_strided_slice %1126 {offsets = [0, 56], sizes = [9, 8], strides = [1, 1]} : vector<9x96xf32> to vector<9x8xf32>
    %1136 = tpu.concatenate %1132, %1133, %1134, %1135 in 0 : vector<9x8xf32>, vector<9x8xf32>, vector<9x8xf32>, vector<9x8xf32> -> vector<36x8xf32>
    %1137 = vector.extract_strided_slice %1126 {offsets = [0, 64], sizes = [9, 8], strides = [1, 1]} : vector<9x96xf32> to vector<9x8xf32>
    %1138 = vector.extract_strided_slice %1126 {offsets = [0, 72], sizes = [9, 8], strides = [1, 1]} : vector<9x96xf32> to vector<9x8xf32>
    %1139 = vector.extract_strided_slice %1126 {offsets = [0, 80], sizes = [9, 8], strides = [1, 1]} : vector<9x96xf32> to vector<9x8xf32>
    %1140 = vector.extract_strided_slice %1126 {offsets = [0, 88], sizes = [9, 8], strides = [1, 1]} : vector<9x96xf32> to vector<9x8xf32>
    %1141 = tpu.concatenate %1137, %1138, %1139, %1140 in 0 : vector<9x8xf32>, vector<9x8xf32>, vector<9x8xf32>, vector<9x8xf32> -> vector<36x8xf32>
    %1142 = tpu.transpose %1136, [1, 0] : vector<36x8xf32> -> vector<8x36xf32>
    %cst_318 = arith.constant dense<0.000000e+00> : vector<36x36xf32>
    %1143 = tpu.matmul %1131, %1142, %cst_318 {dimension_numbers = #tpu.dot_dimension_numbers<[1], [0], [0], [1], [0, 0, 1, 1], [], []>} : vector<36x8xf32>, vector<8x36xf32>, vector<36x36xf32> -> vector<36x36xf32>
    %cst_319 = arith.constant 0.353553385 : f32
    %1144 = vector.broadcast %cst_319 : f32 to vector<36x36xf32>
    %1145 = arith.mulf %1143, %1144 : vector<36x36xf32>
    %1146 = arith.addf %1145, %934 : vector<36x36xf32>
    %1147 = vector.broadcast %935 : vector<1x36xf32> to vector<36x36xf32>
    %1148 = arith.addf %1146, %1147 : vector<36x36xf32>
    %cst_320 = arith.constant dense<0xFF800000> : vector<36xf32>
    %1149 = vector.multi_reduction <maximumf>, %1148, %cst_320 [1] : vector<36x36xf32> to vector<36xf32>
    %1150 = vector.shape_cast %1149 : vector<36xf32> to vector<36x1xf32>
    %1151 = vector.broadcast %1150 : vector<36x1xf32> to vector<36x36xf32>
    %1152 = arith.subf %1148, %1151 : vector<36x36xf32>
    %1153 = math.exp %1152 : vector<36x36xf32>
    %cst_321 = arith.constant dense<0.000000e+00> : vector<36xf32>
    %1154 = vector.multi_reduction <add>, %1153, %cst_321 [1] : vector<36x36xf32> to vector<36xf32>
    %1155 = vector.shape_cast %1154 : vector<36xf32> to vector<36x1xf32>
    %1156 = vector.broadcast %1155 : vector<36x1xf32> to vector<36x36xf32>
    %1157 = arith.divf %1153, %1156 : vector<36x36xf32>
    %1158 = vector.extract_strided_slice %1157 {offsets = [0, 0], sizes = [1, 9], strides = [1, 1]} : vector<36x36xf32> to vector<1x9xf32>
    %1159 = vector.extract_strided_slice %1157 {offsets = [9, 9], sizes = [1, 9], strides = [1, 1]} : vector<36x36xf32> to vector<1x9xf32>
    %1160 = vector.extract_strided_slice %1157 {offsets = [18, 18], sizes = [1, 9], strides = [1, 1]} : vector<36x36xf32> to vector<1x9xf32>
    %1161 = vector.extract_strided_slice %1157 {offsets = [27, 27], sizes = [1, 9], strides = [1, 1]} : vector<36x36xf32> to vector<1x9xf32>
    %1162 = tpu.concatenate %1158, %1159, %1160, %1161 in 0 : vector<1x9xf32>, vector<1x9xf32>, vector<1x9xf32>, vector<1x9xf32> -> vector<4x9xf32>
    %c0_322 = arith.constant 0 : index
    %c1_323 = arith.constant 1 : index
    %c0_324 = arith.constant 0 : index
    %c0_325 = arith.constant 0 : index
    %1163 = vector.load %arg54[%c0_322, %c1_323, %c0_324, %c0_325] : memref<2x2x4x9xf32, #tpu.memory_space<vmem>>, vector<1x1x4x9xf32>
    %1164 = vector.shape_cast %1163 : vector<1x1x4x9xf32> to vector<4x9xf32>
    %1165 = vector.shape_cast %1162 : vector<4x9xf32> to vector<1x1x4x9xf32>
    tpu.vector_store %arg54[%c0_322, %c1_323, %c0_324, %c0_325], %1165 {strides = array<i32>} : memref<2x2x4x9xf32, #tpu.memory_space<vmem>>, vector<1x1x4x9xf32>,
    %cst_326 = arith.constant dense<0.000000e+00> : vector<36x8xf32>
    %1166 = tpu.matmul %1157, %1141, %cst_326 {dimension_numbers = #tpu.dot_dimension_numbers<[1], [0], [0], [1], [0, 0, 1, 1], [], []>} : vector<36x36xf32>, vector<36x8xf32>, vector<36x8xf32> -> vector<36x8xf32>
    %1167 = vector.extract_strided_slice %1166 {offsets = [0, 0], sizes = [9, 8], strides = [1, 1]} : vector<36x8xf32> to vector<9x8xf32>
    %1168 = vector.extract_strided_slice %1166 {offsets = [9, 0], sizes = [9, 8], strides = [1, 1]} : vector<36x8xf32> to vector<9x8xf32>
    %1169 = vector.extract_strided_slice %1166 {offsets = [18, 0], sizes = [9, 8], strides = [1, 1]} : vector<36x8xf32> to vector<9x8xf32>
    %1170 = vector.extract_strided_slice %1166 {offsets = [27, 0], sizes = [9, 8], strides = [1, 1]} : vector<36x8xf32> to vector<9x8xf32>
    %1171 = tpu.concatenate %1167, %1168, %1169, %1170 in 1 : vector<9x8xf32>, vector<9x8xf32>, vector<9x8xf32>, vector<9x8xf32> -> vector<9x32xf32>
    %1172 = vector.extract_strided_slice %1125 {offsets = [9, 0], sizes = [9, 96], strides = [1, 1]} : vector<18x96xf32> to vector<9x96xf32>
    %1173 = vector.extract_strided_slice %1172 {offsets = [0, 0], sizes = [9, 8], strides = [1, 1]} : vector<9x96xf32> to vector<9x8xf32>
    %1174 = vector.extract_strided_slice %1172 {offsets = [0, 8], sizes = [9, 8], strides = [1, 1]} : vector<9x96xf32> to vector<9x8xf32>
    %1175 = vector.extract_strided_slice %1172 {offsets = [0, 16], sizes = [9, 8], strides = [1, 1]} : vector<9x96xf32> to vector<9x8xf32>
    %1176 = vector.extract_strided_slice %1172 {offsets = [0, 24], sizes = [9, 8], strides = [1, 1]} : vector<9x96xf32> to vector<9x8xf32>
    %1177 = tpu.concatenate %1173, %1174, %1175, %1176 in 0 : vector<9x8xf32>, vector<9x8xf32>, vector<9x8xf32>, vector<9x8xf32> -> vector<36x8xf32>
    %1178 = vector.extract_strided_slice %1172 {offsets = [0, 32], sizes = [9, 8], strides = [1, 1]} : vector<9x96xf32> to vector<9x8xf32>
    %1179 = vector.extract_strided_slice %1172 {offsets = [0, 40], sizes = [9, 8], strides = [1, 1]} : vector<9x96xf32> to vector<9x8xf32>
    %1180 = vector.extract_strided_slice %1172 {offsets = [0, 48], sizes = [9, 8], strides = [1, 1]} : vector<9x96xf32> to vector<9x8xf32>
    %1181 = vector.extract_strided_slice %1172 {offsets = [0, 56], sizes = [9, 8], strides = [1, 1]} : vector<9x96xf32> to vector<9x8xf32>
    %1182 = tpu.concatenate %1178, %1179, %1180, %1181 in 0 : vector<9x8xf32>, vector<9x8xf32>, vector<9x8xf32>, vector<9x8xf32> -> vector<36x8xf32>
    %1183 = vector.extract_strided_slice %1172 {offsets = [0, 64], sizes = [9, 8], strides = [1, 1]} : vector<9x96xf32> to vector<9x8xf32>
    %1184 = vector.extract_strided_slice %1172 {offsets = [0, 72], sizes = [9, 8], strides = [1, 1]} : vector<9x96xf32> to vector<9x8xf32>
    %1185 = vector.extract_strided_slice %1172 {offsets = [0, 80], sizes = [9, 8], strides = [1, 1]} : vector<9x96xf32> to vector<9x8xf32>
    %1186 = vector.extract_strided_slice %1172 {offsets = [0, 88], sizes = [9, 8], strides = [1, 1]} : vector<9x96xf32> to vector<9x8xf32>
    %1187 = tpu.concatenate %1183, %1184, %1185, %1186 in 0 : vector<9x8xf32>, vector<9x8xf32>, vector<9x8xf32>, vector<9x8xf32> -> vector<36x8xf32>
    %1188 = tpu.transpose %1182, [1, 0] : vector<36x8xf32> -> vector<8x36xf32>
    %cst_327 = arith.constant dense<0.000000e+00> : vector<36x36xf32>
    %1189 = tpu.matmul %1177, %1188, %cst_327 {dimension_numbers = #tpu.dot_dimension_numbers<[1], [0], [0], [1], [0, 0, 1, 1], [], []>} : vector<36x8xf32>, vector<8x36xf32>, vector<36x36xf32> -> vector<36x36xf32>
    %cst_328 = arith.constant 0.353553385 : f32
    %1190 = vector.broadcast %cst_328 : f32 to vector<36x36xf32>
    %1191 = arith.mulf %1189, %1190 : vector<36x36xf32>
    %1192 = arith.addf %1191, %934 : vector<36x36xf32>
    %1193 = vector.broadcast %936 : vector<1x36xf32> to vector<36x36xf32>
    %1194 = arith.addf %1192, %1193 : vector<36x36xf32>
    %cst_329 = arith.constant dense<0xFF800000> : vector<36xf32>
    %1195 = vector.multi_reduction <maximumf>, %1194, %cst_329 [1] : vector<36x36xf32> to vector<36xf32>
    %1196 = vector.shape_cast %1195 : vector<36xf32> to vector<36x1xf32>
    %1197 = vector.broadcast %1196 : vector<36x1xf32> to vector<36x36xf32>
    %1198 = arith.subf %1194, %1197 : vector<36x36xf32>
    %1199 = math.exp %1198 : vector<36x36xf32>
    %cst_330 = arith.constant dense<0.000000e+00> : vector<36xf32>
    %1200 = vector.multi_reduction <add>, %1199, %cst_330 [1] : vector<36x36xf32> to vector<36xf32>
    %1201 = vector.shape_cast %1200 : vector<36xf32> to vector<36x1xf32>
    %1202 = vector.broadcast %1201 : vector<36x1xf32> to vector<36x36xf32>
    %1203 = arith.divf %1199, %1202 : vector<36x36xf32>
    %1204 = vector.extract_strided_slice %1203 {offsets = [0, 0], sizes = [1, 9], strides = [1, 1]} : vector<36x36xf32> to vector<1x9xf32>
    %1205 = vector.extract_strided_slice %1203 {offsets = [9, 9], sizes = [1, 9], strides = [1, 1]} : vector<36x36xf32> to vector<1x9xf32>
    %1206 = vector.extract_strided_slice %1203 {offsets = [18, 18], sizes = [1, 9], strides = [1, 1]} : vector<36x36xf32> to vector<1x9xf32>
    %1207 = vector.extract_strided_slice %1203 {offsets = [27, 27], sizes = [1, 9], strides = [1, 1]} : vector<36x36xf32> to vector<1x9xf32>
    %1208 = tpu.concatenate %1204, %1205, %1206, %1207 in 0 : vector<1x9xf32>, vector<1x9xf32>, vector<1x9xf32>, vector<1x9xf32> -> vector<4x9xf32>
    %c1_331 = arith.constant 1 : index
    %c1_332 = arith.constant 1 : index
    %c0_333 = arith.constant 0 : index
    %c0_334 = arith.constant 0 : index
    %1209 = vector.load %arg54[%c1_331, %c1_332, %c0_333, %c0_334] : memref<2x2x4x9xf32, #tpu.memory_space<vmem>>, vector<1x1x4x9xf32>
    %1210 = vector.shape_cast %1209 : vector<1x1x4x9xf32> to vector<4x9xf32>
    %1211 = vector.shape_cast %1208 : vector<4x9xf32> to vector<1x1x4x9xf32>
    tpu.vector_store %arg54[%c1_331, %c1_332, %c0_333, %c0_334], %1211 {strides = array<i32>} : memref<2x2x4x9xf32, #tpu.memory_space<vmem>>, vector<1x1x4x9xf32>,
    %cst_335 = arith.constant dense<0.000000e+00> : vector<36x8xf32>
    %1212 = tpu.matmul %1203, %1187, %cst_335 {dimension_numbers = #tpu.dot_dimension_numbers<[1], [0], [0], [1], [0, 0, 1, 1], [], []>} : vector<36x36xf32>, vector<36x8xf32>, vector<36x8xf32> -> vector<36x8xf32>
    %1213 = vector.extract_strided_slice %1212 {offsets = [0, 0], sizes = [9, 8], strides = [1, 1]} : vector<36x8xf32> to vector<9x8xf32>
    %1214 = vector.extract_strided_slice %1212 {offsets = [9, 0], sizes = [9, 8], strides = [1, 1]} : vector<36x8xf32> to vector<9x8xf32>
    %1215 = vector.extract_strided_slice %1212 {offsets = [18, 0], sizes = [9, 8], strides = [1, 1]} : vector<36x8xf32> to vector<9x8xf32>
    %1216 = vector.extract_strided_slice %1212 {offsets = [27, 0], sizes = [9, 8], strides = [1, 1]} : vector<36x8xf32> to vector<9x8xf32>
    %1217 = tpu.concatenate %1213, %1214, %1215, %1216 in 1 : vector<9x8xf32>, vector<9x8xf32>, vector<9x8xf32>, vector<9x8xf32> -> vector<9x32xf32>
    %1218 = tpu.concatenate %1171, %1217 in 0 : vector<9x32xf32>, vector<9x32xf32> -> vector<18x32xf32>
    %c1_336 = arith.constant 1 : index
    %c0_337 = arith.constant 0 : index
    %c0_338 = arith.constant 0 : index
    %1219 = vector.load %arg32[%c1_336, %c0_337, %c0_338] : memref<2x32x32xbf16, #tpu.memory_space<vmem>>, vector<1x32x32xbf16>
    %1220 = vector.shape_cast %1219 : vector<1x32x32xbf16> to vector<32x32xbf16>
    %c1_339 = arith.constant 1 : index
    %c0_340 = arith.constant 0 : index
    %c0_341 = arith.constant 0 : index
    %1221 = vector.load %arg33[%c1_339, %c0_340, %c0_341] : memref<2x1x32xf32, #tpu.memory_space<vmem>>, vector<1x1x32xf32>
    %1222 = vector.shape_cast %1221 : vector<1x1x32xf32> to vector<1x32xf32>
    %1223 = arith.truncf %1218 : vector<18x32xf32> to vector<18x32xbf16>
    %cst_342 = arith.constant dense<0.000000e+00> : vector<18x32xf32>
    %1224 = tpu.matmul %1223, %1220, %cst_342 {dimension_numbers = #tpu.dot_dimension_numbers<[1], [0], [0], [1], [0, 0, 1, 1], [], []>} : vector<18x32xbf16>, vector<32x32xbf16>, vector<18x32xf32> -> vector<18x32xf32>
    %1225 = vector.broadcast %1222 : vector<1x32xf32> to vector<18x32xf32>
    %1226 = arith.addf %1224, %1225 : vector<18x32xf32>
    %1227 = arith.addf %1117, %1226 : vector<18x32xf32>
    %c1_343 = arith.constant 1 : index
    %c0_344 = arith.constant 0 : index
    %c0_345 = arith.constant 0 : index
    %1228 = vector.load %arg34[%c1_343, %c0_344, %c0_345] : memref<2x1x32xf32, #tpu.memory_space<vmem>>, vector<1x1x32xf32>
    %1229 = vector.shape_cast %1228 : vector<1x1x32xf32> to vector<1x32xf32>
    %c1_346 = arith.constant 1 : index
    %c0_347 = arith.constant 0 : index
    %c0_348 = arith.constant 0 : index
    %1230 = vector.load %arg35[%c1_346, %c0_347, %c0_348] : memref<2x1x32xf32, #tpu.memory_space<vmem>>, vector<1x1x32xf32>
    %1231 = vector.shape_cast %1230 : vector<1x1x32xf32> to vector<1x32xf32>
    %cst_349 = arith.constant dense<0.000000e+00> : vector<18xf32>
    %1232 = vector.multi_reduction <add>, %1227, %cst_349 [1] : vector<18x32xf32> to vector<18xf32>
    %1233 = vector.shape_cast %1232 : vector<18xf32> to vector<18x1xf32>
    %cst_350 = arith.constant 3.200000e+01 : f32
    %1234 = vector.broadcast %cst_350 : f32 to vector<18x1xf32>
    %1235 = arith.divf %1233, %1234 : vector<18x1xf32>
    %1236 = vector.broadcast %1235 : vector<18x1xf32> to vector<18x32xf32>
    %1237 = arith.subf %1227, %1236 : vector<18x32xf32>
    %1238 = arith.mulf %1237, %1237 : vector<18x32xf32>
    %cst_351 = arith.constant dense<0.000000e+00> : vector<18xf32>
    %1239 = vector.multi_reduction <add>, %1238, %cst_351 [1] : vector<18x32xf32> to vector<18xf32>
    %1240 = vector.shape_cast %1239 : vector<18xf32> to vector<18x1xf32>
    %cst_352 = arith.constant 3.100000e+01 : f32
    %1241 = vector.broadcast %cst_352 : f32 to vector<18x1xf32>
    %1242 = arith.divf %1240, %1241 : vector<18x1xf32>
    %1243 = vector.broadcast %1235 : vector<18x1xf32> to vector<18x32xf32>
    %1244 = arith.subf %1227, %1243 : vector<18x32xf32>
    %1245 = vector.broadcast %1229 : vector<1x32xf32> to vector<18x32xf32>
    %1246 = arith.mulf %1245, %1244 : vector<18x32xf32>
    %1247 = math.sqrt %1242 : vector<18x1xf32>
    %cst_353 = arith.constant 9.99999997E-7 : f32
    %1248 = vector.broadcast %cst_353 : f32 to vector<18x1xf32>
    %1249 = arith.addf %1247, %1248 : vector<18x1xf32>
    %1250 = vector.broadcast %1249 : vector<18x1xf32> to vector<18x32xf32>
    %1251 = arith.divf %1246, %1250 : vector<18x32xf32>
    %1252 = vector.broadcast %1231 : vector<1x32xf32> to vector<18x32xf32>
    %1253 = arith.addf %1251, %1252 : vector<18x32xf32>
    %c1_354 = arith.constant 1 : index
    %c0_355 = arith.constant 0 : index
    %c0_356 = arith.constant 0 : index
    %1254 = vector.load %arg36[%c1_354, %c0_355, %c0_356] : memref<2x32x64xbf16, #tpu.memory_space<vmem>>, vector<1x32x64xbf16>
    %1255 = vector.shape_cast %1254 : vector<1x32x64xbf16> to vector<32x64xbf16>
    %c1_357 = arith.constant 1 : index
    %c0_358 = arith.constant 0 : index
    %c0_359 = arith.constant 0 : index
    %1256 = vector.load %arg37[%c1_357, %c0_358, %c0_359] : memref<2x1x64xf32, #tpu.memory_space<vmem>>, vector<1x1x64xf32>
    %1257 = vector.shape_cast %1256 : vector<1x1x64xf32> to vector<1x64xf32>
    %1258 = arith.truncf %1253 : vector<18x32xf32> to vector<18x32xbf16>
    %cst_360 = arith.constant dense<0.000000e+00> : vector<18x64xf32>
    %1259 = tpu.matmul %1258, %1255, %cst_360 {dimension_numbers = #tpu.dot_dimension_numbers<[1], [0], [0], [1], [0, 0, 1, 1], [], []>} : vector<18x32xbf16>, vector<32x64xbf16>, vector<18x64xf32> -> vector<18x64xf32>
    %1260 = vector.broadcast %1257 : vector<1x64xf32> to vector<18x64xf32>
    %1261 = arith.addf %1259, %1260 : vector<18x64xf32>
    %cst_361 = arith.constant 0.000000e+00 : f32
    %1262 = vector.broadcast %cst_361 : f32 to vector<18x64xf32>
    %1263 = arith.maximumf %1261, %1262 : vector<18x64xf32>
    %c1_362 = arith.constant 1 : index
    %c0_363 = arith.constant 0 : index
    %c0_364 = arith.constant 0 : index
    %1264 = vector.load %arg38[%c1_362, %c0_363, %c0_364] : memref<2x64x32xbf16, #tpu.memory_space<vmem>>, vector<1x64x32xbf16>
    %1265 = vector.shape_cast %1264 : vector<1x64x32xbf16> to vector<64x32xbf16>
    %c1_365 = arith.constant 1 : index
    %c0_366 = arith.constant 0 : index
    %c0_367 = arith.constant 0 : index
    %1266 = vector.load %arg39[%c1_365, %c0_366, %c0_367] : memref<2x1x32xf32, #tpu.memory_space<vmem>>, vector<1x1x32xf32>
    %1267 = vector.shape_cast %1266 : vector<1x1x32xf32> to vector<1x32xf32>
    %1268 = arith.truncf %1263 : vector<18x64xf32> to vector<18x64xbf16>
    %cst_368 = arith.constant dense<0.000000e+00> : vector<18x32xf32>
    %1269 = tpu.matmul %1268, %1265, %cst_368 {dimension_numbers = #tpu.dot_dimension_numbers<[1], [0], [0], [1], [0, 0, 1, 1], [], []>} : vector<18x64xbf16>, vector<64x32xbf16>, vector<18x32xf32> -> vector<18x32xf32>
    %1270 = vector.broadcast %1267 : vector<1x32xf32> to vector<18x32xf32>
    %1271 = arith.addf %1269, %1270 : vector<18x32xf32>
    %1272 = arith.addf %1253, %1271 : vector<18x32xf32>
    %c1_369 = arith.constant 1 : index
    %c0_370 = arith.constant 0 : index
    %c0_371 = arith.constant 0 : index
    %1273 = vector.load %arg40[%c1_369, %c0_370, %c0_371] : memref<2x1x32xf32, #tpu.memory_space<vmem>>, vector<1x1x32xf32>
    %1274 = vector.shape_cast %1273 : vector<1x1x32xf32> to vector<1x32xf32>
    %c1_372 = arith.constant 1 : index
    %c0_373 = arith.constant 0 : index
    %c0_374 = arith.constant 0 : index
    %1275 = vector.load %arg41[%c1_372, %c0_373, %c0_374] : memref<2x1x32xf32, #tpu.memory_space<vmem>>, vector<1x1x32xf32>
    %1276 = vector.shape_cast %1275 : vector<1x1x32xf32> to vector<1x32xf32>
    %cst_375 = arith.constant dense<0.000000e+00> : vector<18xf32>
    %1277 = vector.multi_reduction <add>, %1272, %cst_375 [1] : vector<18x32xf32> to vector<18xf32>
    %1278 = vector.shape_cast %1277 : vector<18xf32> to vector<18x1xf32>
    %cst_376 = arith.constant 3.200000e+01 : f32
    %1279 = vector.broadcast %cst_376 : f32 to vector<18x1xf32>
    %1280 = arith.divf %1278, %1279 : vector<18x1xf32>
    %1281 = vector.broadcast %1280 : vector<18x1xf32> to vector<18x32xf32>
    %1282 = arith.subf %1272, %1281 : vector<18x32xf32>
    %1283 = arith.mulf %1282, %1282 : vector<18x32xf32>
    %cst_377 = arith.constant dense<0.000000e+00> : vector<18xf32>
    %1284 = vector.multi_reduction <add>, %1283, %cst_377 [1] : vector<18x32xf32> to vector<18xf32>
    %1285 = vector.shape_cast %1284 : vector<18xf32> to vector<18x1xf32>
    %cst_378 = arith.constant 3.100000e+01 : f32
    %1286 = vector.broadcast %cst_378 : f32 to vector<18x1xf32>
    %1287 = arith.divf %1285, %1286 : vector<18x1xf32>
    %1288 = vector.broadcast %1280 : vector<18x1xf32> to vector<18x32xf32>
    %1289 = arith.subf %1272, %1288 : vector<18x32xf32>
    %1290 = vector.broadcast %1274 : vector<1x32xf32> to vector<18x32xf32>
    %1291 = arith.mulf %1290, %1289 : vector<18x32xf32>
    %1292 = math.sqrt %1287 : vector<18x1xf32>
    %cst_379 = arith.constant 9.99999997E-7 : f32
    %1293 = vector.broadcast %cst_379 : f32 to vector<18x1xf32>
    %1294 = arith.addf %1292, %1293 : vector<18x1xf32>
    %1295 = vector.broadcast %1294 : vector<18x1xf32> to vector<18x32xf32>
    %1296 = arith.divf %1291, %1295 : vector<18x32xf32>
    %1297 = vector.broadcast %1276 : vector<1x32xf32> to vector<18x32xf32>
    %1298 = arith.addf %1296, %1297 : vector<18x32xf32>
    %1299 = vector.extract_strided_slice %933 {offsets = [0, 0], sizes = [1, 32], strides = [1, 1]} : vector<18x32xf32> to vector<1x32xf32>
    %1300 = vector.extract_strided_slice %933 {offsets = [9, 0], sizes = [1, 32], strides = [1, 1]} : vector<18x32xf32> to vector<1x32xf32>
    %1301 = tpu.concatenate %1299, %1300 in 0 : vector<1x32xf32>, vector<1x32xf32> -> vector<2x32xf32>
    %1302 = vector.extract_strided_slice %1298 {offsets = [0, 0], sizes = [1, 32], strides = [1, 1]} : vector<18x32xf32> to vector<1x32xf32>
    %1303 = vector.extract_strided_slice %1298 {offsets = [9, 0], sizes = [1, 32], strides = [1, 1]} : vector<18x32xf32> to vector<1x32xf32>
    %1304 = tpu.concatenate %1302, %1303 in 0 : vector<1x32xf32>, vector<1x32xf32> -> vector<2x32xf32>
    %c0_380 = arith.constant 0 : index
    %c0_381 = arith.constant 0 : index
    %1305 = vector.load %arg42[%c0_380, %c0_381] : memref<32x32xbf16, #tpu.memory_space<vmem>>, vector<32x32xbf16>
    %c0_382 = arith.constant 0 : index
    %c0_383 = arith.constant 0 : index
    %1306 = vector.load %arg43[%c0_382, %c0_383] : memref<1x32xf32, #tpu.memory_space<vmem>>, vector<1x32xf32>
    %1307 = arith.truncf %1301 : vector<2x32xf32> to vector<2x32xbf16>
    %cst_384 = arith.constant dense<0.000000e+00> : vector<2x32xf32>
    %1308 = tpu.matmul %1307, %1305, %cst_384 {dimension_numbers = #tpu.dot_dimension_numbers<[1], [0], [0], [1], [0, 0, 1, 1], [], []>} : vector<2x32xbf16>, vector<32x32xbf16>, vector<2x32xf32> -> vector<2x32xf32>
    %1309 = vector.broadcast %1306 : vector<1x32xf32> to vector<2x32xf32>
    %1310 = arith.addf %1308, %1309 : vector<2x32xf32>
    %1311 = math.tanh %1310 : vector<2x32xf32>
    %c0_385 = arith.constant 0 : index
    %c0_386 = arith.constant 0 : index
    %1312 = vector.load %arg44[%c0_385, %c0_386] : memref<32x32xbf16, #tpu.memory_space<vmem>>, vector<32x32xbf16>
    %c0_387 = arith.constant 0 : index
    %c0_388 = arith.constant 0 : index
    %1313 = vector.load %arg45[%c0_387, %c0_388] : memref<1x32xf32, #tpu.memory_space<vmem>>, vector<1x32xf32>
    %1314 = arith.truncf %1304 : vector<2x32xf32> to vector<2x32xbf16>
    %cst_389 = arith.constant dense<0.000000e+00> : vector<2x32xf32>
    %1315 = tpu.matmul %1314, %1312, %cst_389 {dimension_numbers = #tpu.dot_dimension_numbers<[1], [0], [0], [1], [0, 0, 1, 1], [], []>} : vector<2x32xbf16>, vector<32x32xbf16>, vector<2x32xf32> -> vector<2x32xf32>
    %1316 = vector.broadcast %1313 : vector<1x32xf32> to vector<2x32xf32>
    %1317 = arith.addf %1315, %1316 : vector<2x32xf32>
    %1318 = math.tanh %1317 : vector<2x32xf32>
    %1319 = arith.mulf %1311, %1318 : vector<2x32xf32>
    %c0_390 = arith.constant 0 : index
    %c0_391 = arith.constant 0 : index
    %1320 = vector.load %arg46[%c0_390, %c0_391] : memref<32x32xbf16, #tpu.memory_space<vmem>>, vector<32x32xbf16>
    %c0_392 = arith.constant 0 : index
    %c0_393 = arith.constant 0 : index
    %1321 = vector.load %arg47[%c0_392, %c0_393] : memref<1x32xf32, #tpu.memory_space<vmem>>, vector<1x32xf32>
    %1322 = arith.truncf %1319 : vector<2x32xf32> to vector<2x32xbf16>
    %cst_394 = arith.constant dense<0.000000e+00> : vector<2x32xf32>
    %1323 = tpu.matmul %1322, %1320, %cst_394 {dimension_numbers = #tpu.dot_dimension_numbers<[1], [0], [0], [1], [0, 0, 1, 1], [], []>} : vector<2x32xbf16>, vector<32x32xbf16>, vector<2x32xf32> -> vector<2x32xf32>
    %1324 = vector.broadcast %1321 : vector<1x32xf32> to vector<2x32xf32>
    %1325 = arith.addf %1323, %1324 : vector<2x32xf32>
    %1326 = math.tanh %1325 : vector<2x32xf32>
    %c0_395 = arith.constant 0 : index
    %c0_396 = arith.constant 0 : index
    %1327 = vector.load %arg48[%c0_395, %c0_396] : memref<1x32xf32, #tpu.memory_space<vmem>>, vector<1x32xf32>
    %c0_397 = arith.constant 0 : index
    %c0_398 = arith.constant 0 : index
    %1328 = vector.load %arg49[%c0_397, %c0_398] : memref<1x32xf32, #tpu.memory_space<vmem>>, vector<1x32xf32>
    %cst_399 = arith.constant dense<0.000000e+00> : vector<2xf32>
    %1329 = vector.multi_reduction <add>, %1326, %cst_399 [1] : vector<2x32xf32> to vector<2xf32>
    %1330 = vector.shape_cast %1329 : vector<2xf32> to vector<2x1xf32>
    %cst_400 = arith.constant 3.200000e+01 : f32
    %1331 = vector.broadcast %cst_400 : f32 to vector<2x1xf32>
    %1332 = arith.divf %1330, %1331 : vector<2x1xf32>
    %1333 = vector.broadcast %1332 : vector<2x1xf32> to vector<2x32xf32>
    %1334 = arith.subf %1326, %1333 : vector<2x32xf32>
    %1335 = arith.mulf %1334, %1334 : vector<2x32xf32>
    %cst_401 = arith.constant dense<0.000000e+00> : vector<2xf32>
    %1336 = vector.multi_reduction <add>, %1335, %cst_401 [1] : vector<2x32xf32> to vector<2xf32>
    %1337 = vector.shape_cast %1336 : vector<2xf32> to vector<2x1xf32>
    %cst_402 = arith.constant 3.100000e+01 : f32
    %1338 = vector.broadcast %cst_402 : f32 to vector<2x1xf32>
    %1339 = arith.divf %1337, %1338 : vector<2x1xf32>
    %1340 = vector.broadcast %1332 : vector<2x1xf32> to vector<2x32xf32>
    %1341 = arith.subf %1326, %1340 : vector<2x32xf32>
    %1342 = vector.broadcast %1327 : vector<1x32xf32> to vector<2x32xf32>
    %1343 = arith.mulf %1342, %1341 : vector<2x32xf32>
    %1344 = math.sqrt %1339 : vector<2x1xf32>
    %cst_403 = arith.constant 9.99999997E-7 : f32
    %1345 = vector.broadcast %cst_403 : f32 to vector<2x1xf32>
    %1346 = arith.addf %1344, %1345 : vector<2x1xf32>
    %1347 = vector.broadcast %1346 : vector<2x1xf32> to vector<2x32xf32>
    %1348 = arith.divf %1343, %1347 : vector<2x32xf32>
    %1349 = vector.broadcast %1328 : vector<1x32xf32> to vector<2x32xf32>
    %1350 = arith.addf %1348, %1349 : vector<2x32xf32>
    %c0_404 = arith.constant 0 : index
    %c0_405 = arith.constant 0 : index
    %1351 = vector.load %arg50[%c0_404, %c0_405] : memref<32x10xbf16, #tpu.memory_space<vmem>>, vector<32x10xbf16>
    %c0_406 = arith.constant 0 : index
    %c0_407 = arith.constant 0 : index
    %1352 = vector.load %arg51[%c0_406, %c0_407] : memref<1x10xf32, #tpu.memory_space<vmem>>, vector<1x10xf32>
    %1353 = arith.truncf %1350 : vector<2x32xf32> to vector<2x32xbf16>
    %cst_408 = arith.constant dense<0.000000e+00> : vector<2x10xf32>
    %1354 = tpu.matmul %1353, %1351, %cst_408 {dimension_numbers = #tpu.dot_dimension_numbers<[1], [0], [0], [1], [0, 0, 1, 1], [], []>} : vector<2x32xbf16>, vector<32x10xbf16>, vector<2x10xf32> -> vector<2x10xf32>
    %1355 = vector.broadcast %1352 : vector<1x10xf32> to vector<2x10xf32>
    %1356 = arith.addf %1354, %1355 : vector<2x10xf32>
    %c0_409 = arith.constant 0 : index
    %c0_410 = arith.constant 0 : index
    %1357 = vector.load %arg52[%c0_409, %c0_410] : memref<2x10xf32, #tpu.memory_space<vmem>>, vector<2x10xf32>
    tpu.vector_store %arg52[%c0_409, %c0_410], %1356 {strides = array<i32>} : memref<2x10xf32, #tpu.memory_space<vmem>>, vector<2x10xf32>,
    return
  }
}

</mosaic_0001>

<llo_original>
// kernel: net_forward.1
$region0: #{net_forward.1}
  #allocation0 [shape = 'u32[]', space=smem, size = 0x4, offset = 0x4, fixed_abs, tag = 'smem constant byte address 0x4 - core index']
  #allocation1 [shape = 'u32[144,128]{1,0:T(1,128)}', space=vmem, size = 0x12000, scoped, tag = 'internal scratch']
  %s0 = inlined_call_operand.smem [shape: u32[55], index: -1, kind: input, shape index: {}]
  %s1 = sld [smem:[%s0]]
  %s2 = scalar_lea.smem %s0, 1
  %s3 = sld [smem:[%s2]]
  %s4 = scalar_lea.smem %s0, 2
  %s5 = sld [smem:[%s4]]
  %s6 = scalar_lea.smem %s0, 3
  %s7 = sld [smem:[%s6]]
  %s8 = scalar_lea.smem %s0, 4
  %s9 = sld [smem:[%s8]]
  %s10 = scalar_lea.smem %s0, 5
  %s11 = sld [smem:[%s10]]
  %s12 = scalar_lea.smem %s0, 6
  %s13 = sld [smem:[%s12]]
  %s14 = scalar_lea.smem %s0, 7
  %s15 = sld [smem:[%s14]]
  %s16 = scalar_lea.smem %s0, 8
  %s17 = sld [smem:[%s16]]
  %s18 = scalar_lea.smem %s0, 9
  %s19 = sld [smem:[%s18]]
  %s20 = scalar_lea.smem %s0, 10
  %s21 = sld [smem:[%s20]]
  %s22 = scalar_lea.smem %s0, 11
  %s23 = sld [smem:[%s22]]
  %s24 = scalar_lea.smem %s0, 12
  %s25 = sld [smem:[%s24]]
  %s26 = scalar_lea.smem %s0, 13
  %s27 = sld [smem:[%s26]]
  %s28 = scalar_lea.smem %s0, 14
  %s29 = sld [smem:[%s28]]
  %s30 = scalar_lea.smem %s0, 15
  %s31 = sld [smem:[%s30]]
  %s32 = scalar_lea.smem %s0, 16
  %s33 = sld [smem:[%s32]]
  %s34 = scalar_lea.smem %s0, 17
  %s35 = sld [smem:[%s34]]
  %s36 = scalar_lea.smem %s0, 18
  %s37 = sld [smem:[%s36]]
  %s38 = scalar_lea.smem %s0, 19
  %s39 = sld [smem:[%s38]]
  %s40 = scalar_lea.smem %s0, 20
  %s41 = sld [smem:[%s40]]
  %s42 = scalar_lea.smem %s0, 21
  %s43 = sld [smem:[%s42]]
  %s44 = scalar_lea.smem %s0, 22
  %s45 = sld [smem:[%s44]]
  %s46 = scalar_lea.smem %s0, 23
  %s47 = sld [smem:[%s46]]
  %s48 = scalar_lea.smem %s0, 24
  %s49 = sld [smem:[%s48]]
  %s50 = scalar_lea.smem %s0, 25
  %s51 = sld [smem:[%s50]]
  %s52 = scalar_lea.smem %s0, 26
  %s53 = sld [smem:[%s52]]
  %s54 = scalar_lea.smem %s0, 27
  %s55 = sld [smem:[%s54]]
  %s56 = scalar_lea.smem %s0, 28
  %s57 = sld [smem:[%s56]]
  %s58 = scalar_lea.smem %s0, 29
  %s59 = sld [smem:[%s58]]
  %s60 = scalar_lea.smem %s0, 30
  %s61 = sld [smem:[%s60]]
  %s62 = scalar_lea.smem %s0, 31
  %s63 = sld [smem:[%s62]]
  %s64 = scalar_lea.smem %s0, 32
  %s65 = sld [smem:[%s64]]
  %s66 = scalar_lea.smem %s0, 33
  %s67 = sld [smem:[%s66]]
  %s68 = scalar_lea.smem %s0, 34
  %s69 = sld [smem:[%s68]]
  %s70 = scalar_lea.smem %s0, 35
  %s71 = sld [smem:[%s70]]
  %s72 = scalar_lea.smem %s0, 36
  %s73 = sld [smem:[%s72]]
  %s74 = scalar_lea.smem %s0, 37
  %s75 = sld [smem:[%s74]]
  %s76 = scalar_lea.smem %s0, 38
  %s77 = sld [smem:[%s76]]
  %s78 = scalar_lea.smem %s0, 39
  %s79 = sld [smem:[%s78]]
  %s80 = scalar_lea.smem %s0, 40
  %s81 = sld [smem:[%s80]]
  %s82 = scalar_lea.smem %s0, 41
  %s83 = sld [smem:[%s82]]
  %s84 = scalar_lea.smem %s0, 42
  %s85 = sld [smem:[%s84]]
  %s86 = scalar_lea.smem %s0, 43
  %s87 = sld [smem:[%s86]]
  %s88 = scalar_lea.smem %s0, 44
  %s89 = sld [smem:[%s88]]
  %s90 = scalar_lea.smem %s0, 45
  %s91 = sld [smem:[%s90]]
  %s92 = scalar_lea.smem %s0, 46
  %s93 = sld [smem:[%s92]]
  %s94 = scalar_lea.smem %s0, 47
  %s95 = sld [smem:[%s94]]
  %s96 = scalar_lea.smem %s0, 48
  %s97 = sld [smem:[%s96]]
  %s98 = scalar_lea.smem %s0, 49
  %s99 = sld [smem:[%s98]]
  %s100 = scalar_lea.smem %s0, 50
  %s101 = sld [smem:[%s100]]
  %s102 = scalar_lea.smem %s0, 51
  %s103 = sld [smem:[%s102]]
  %s104 = scalar_lea.smem %s0, 52
  %s105 = sld [smem:[%s104]]
  %s106 = scalar_lea.smem %s0, 53
  %s107 = sld [smem:[%s106]]
  %s108 = scalar_lea.smem %s0, 54
  %s109 = sld [smem:[%s108]]
  %110 = xla_tuple %s105, %s107, %s109
  %s111 = sld [smem:[#allocation0]]
  $region318: #{net_forward.1} parent=0
    _
  %s113 = ssub.s32 1, %s111
  %s114 = scalar_select 0, %s113, %s111
  $region1: #{net_forward.1} parent=0
    #allocation2 [shape = 'u8[512]{0}', space=vmem, size = 0x400, scoped, tag = 'input window, operand 17, single buffered']
    #allocation3 [shape = 's32[1]{0}', space=sflag, size = 0x4, scoped, tag = 'scoped memory for net_forward.1']
    #allocation4 [shape = 's32[1]{0}', space=sflag, size = 0x4, scoped, tag = 'scoped memory for net_forward.1']
    #allocation5 [shape = 'u8[1024]{0}', space=vmem, size = 0x400, scoped, tag = 'input window, operand 21, single buffered']
    #allocation6 [shape = 's32[1]{0}', space=sflag, size = 0x4, scoped, tag = 'scoped memory for net_forward.1']
    #allocation7 [shape = 'u8[1024]{0}', space=vmem, size = 0x400, scoped, tag = 'input window, operand 22, single buffered']
    #allocation8 [shape = 'u8[1024]{0}', space=vmem, size = 0x400, scoped, tag = 'input window, operand 23, single buffered']
    #allocation9 [shape = 's32[1]{0}', space=sflag, size = 0x4, scoped, tag = 'scoped memory for net_forward.1']
    #allocation10 [shape = 'u8[1024]{0}', space=vmem, size = 0x400, scoped, tag = 'input window, operand 25, single buffered']
    #allocation11 [shape = 'u8[1024]{0}', space=vmem, size = 0x400, scoped, tag = 'input window, operand 27, single buffered']
    #allocation12 [shape = 's32[1]{0}', space=sflag, size = 0x4, scoped, tag = 'scoped memory for net_forward.1']
    #allocation13 [shape = 'u8[1024]{0}', space=vmem, size = 0x400, scoped, tag = 'input window, operand 28, single buffered']
    #allocation14 [shape = 'u8[1024]{0}', space=vmem, size = 0x400, scoped, tag = 'input window, operand 29, single buffered']
    #allocation15 [shape = 's32[1]{0}', space=sflag, size = 0x4, scoped, tag = 'scoped memory for net_forward.1']
    #allocation16 [shape = 'u8[1024]{0}', space=vmem, size = 0x400, scoped, tag = 'input window, operand 31, single buffered']
    #allocation17 [shape = 'u8[1024]{0}', space=vmem, size = 0x400, scoped, tag = 'input window, operand 33, single buffered']
    #allocation18 [shape = 's32[1]{0}', space=sflag, size = 0x4, scoped, tag = 'scoped memory for net_forward.1']
    #allocation19 [shape = 'u8[1024]{0}', space=vmem, size = 0x400, scoped, tag = 'input window, operand 34, single buffered']
    #allocation20 [shape = 'u8[1024]{0}', space=vmem, size = 0x400, scoped, tag = 'input window, operand 35, single buffered']
    #allocation21 [shape = 's32[1]{0}', space=sflag, size = 0x4, scoped, tag = 'scoped memory for net_forward.1']
    #allocation22 [shape = 'u8[1024]{0}', space=vmem, size = 0x400, scoped, tag = 'input window, operand 37, single buffered']
    #allocation23 [shape = 'u8[1024]{0}', space=vmem, size = 0x400, scoped, tag = 'input window, operand 39, single buffered']
    #allocation24 [shape = 's32[1]{0}', space=sflag, size = 0x4, scoped, tag = 'scoped memory for net_forward.1']
    #allocation25 [shape = 'u8[1024]{0}', space=vmem, size = 0x400, scoped, tag = 'input window, operand 40, single buffered']
    #allocation26 [shape = 'u8[1024]{0}', space=vmem, size = 0x400, scoped, tag = 'input window, operand 41, single buffered']
    #allocation27 [shape = 's32[1]{0}', space=sflag, size = 0x4, scoped, tag = 'scoped memory for net_forward.1']
    #allocation28 [shape = 'u8[8192]{0}', space=vmem, size = 0x2000, scoped, tag = 'input window, operand 44, single buffered']
    #allocation29 [shape = 'u8[512]{0}', space=vmem, size = 0x400, scoped, tag = 'input window, operand 45, single buffered']
    #allocation30 [shape = 's32[1]{0}', space=sflag, size = 0x4, scoped, tag = 'scoped memory for net_forward.1']
    #allocation31 [shape = 'u8[8192]{0}', space=vmem, size = 0x2000, scoped, tag = 'input window, operand 46, single buffered']
    #allocation32 [shape = 'u8[512]{0}', space=vmem, size = 0x400, scoped, tag = 'input window, operand 47, single buffered']
    #allocation33 [shape = 's32[1]{0}', space=sflag, size = 0x4, scoped, tag = 'scoped memory for net_forward.1']
    #allocation34 [shape = 'u8[512]{0}', space=vmem, size = 0x400, scoped, tag = 'input window, operand 51, single buffered']
    #allocation35 [shape = 'u8[1024]{0}', space=vmem, size = 0x400, scoped, tag = 'output window, operand 0, single buffered']
    #allocation36 [shape = 'u8[8192]{0}', space=vmem, size = 0x2000, scoped, tag = 'output window, operand 1, single buffered']
    #allocation37 [shape = 's32[1]{0}', space=sflag, size = 0x4, scoped, tag = 'scoped memory for net_forward.1']
    #allocation38 [shape = 'u8[8192]{0}', space=vmem, size = 0x2000, scoped, tag = 'output window, operand 2, single buffered']
    %115 = vsyncpa [#allocation3], 0
    %116 = vsyncpa [#allocation6], 0
    %117 = vsyncpa [#allocation9], 0
    %118 = vsyncpa [#allocation12], 0
    %119 = vsyncpa [#allocation15], 0
    %120 = vsyncpa [#allocation18], 0
    %121 = vsyncpa [#allocation21], 0
    %122 = vsyncpa [#allocation24], 0
    %123 = vsyncpa [#allocation27], 0
    %124 = vsyncpa [#allocation30], 0
    %125 = vsyncpa [#allocation33], 0
    %126 = vsyncpa [#allocation4], 0
    %127 = vsyncpa [#allocation37], 0
    // Predicated region
    $region2: #{net_forward.1} parent=1 // pred_check
      _
    $region3: #{net_forward.1} parent=1 // pred_check_branch
      %129 = sbr.rel (0) target = $region5
    $region4: #{net_forward.1} parent=1 // pred_region
      _
    $region5: #{net_forward.1} parent=1 // pred_fallthru
      _
    // Predicated region
    $region6: #{net_forward.1} parent=1 // pred_check
      _
    $region7: #{net_forward.1} parent=1 // pred_check_branch
      %131 = sbr.rel (0) target = $region9
    $region8: #{net_forward.1} parent=1 // pred_region
      _
    $region9: #{net_forward.1} parent=1 // pred_fallthru
      _
    // Predicated region
    $region10: #{net_forward.1} parent=1 // pred_check
      _
    $region11: #{net_forward.1} parent=1 // pred_check_branch
      %133 = sbr.rel (0) target = $region13
    $region12: #{net_forward.1} parent=1 // pred_region
      _
    $region13: #{net_forward.1} parent=1 // pred_fallthru
      _
    // Predicated region
    $region14: #{net_forward.1} parent=1 // pred_check
      _
    $region15: #{net_forward.1} parent=1 // pred_check_branch
      %135 = sbr.rel (0) target = $region17
    $region16: #{net_forward.1} parent=1 // pred_region
      _
    $region17: #{net_forward.1} parent=1 // pred_fallthru
      _
    // Predicated region
    $region18: #{net_forward.1} parent=1 // pred_check
      _
    $region19: #{net_forward.1} parent=1 // pred_check_branch
      %137 = sbr.rel (0) target = $region21
    $region20: #{net_forward.1} parent=1 // pred_region
      _
    $region21: #{net_forward.1} parent=1 // pred_fallthru
      _
    // Predicated region
    $region22: #{net_forward.1} parent=1 // pred_check
      _
    $region23: #{net_forward.1} parent=1 // pred_check_branch
      %139 = sbr.rel (0) target = $region25
    $region24: #{net_forward.1} parent=1 // pred_region
      _
    $region25: #{net_forward.1} parent=1 // pred_fallthru
      _
    // Predicated region
    $region26: #{net_forward.1} parent=1 // pred_check
      _
    $region27: #{net_forward.1} parent=1 // pred_check_branch
      %141 = sbr.rel (0) target = $region29
    $region28: #{net_forward.1} parent=1 // pred_region
      _
    $region29: #{net_forward.1} parent=1 // pred_fallthru
      _
    // Predicated region
    $region30: #{net_forward.1} parent=1 // pred_check
      _
    $region31: #{net_forward.1} parent=1 // pred_check_branch
      %143 = sbr.rel (0) target = $region33
    $region32: #{net_forward.1} parent=1 // pred_region
      _
    $region33: #{net_forward.1} parent=1 // pred_fallthru
      _
    // Predicated region
    $region34: #{net_forward.1} parent=1 // pred_check
      _
    $region35: #{net_forward.1} parent=1 // pred_check_branch
      %145 = sbr.rel (0) target = $region37
    $region36: #{net_forward.1} parent=1 // pred_region
      _
    $region37: #{net_forward.1} parent=1 // pred_fallthru
      _
    // Predicated region
    $region38: #{net_forward.1} parent=1 // pred_check
      _
    $region39: #{net_forward.1} parent=1 // pred_check_branch
      %147 = sbr.rel (0) target = $region41
    $region40: #{net_forward.1} parent=1 // pred_region
      _
    $region41: #{net_forward.1} parent=1 // pred_fallthru
      _
    // Predicated region
    $region42: #{net_forward.1} parent=1 // pred_check
      _
    $region43: #{net_forward.1} parent=1 // pred_check_branch
      %149 = sbr.rel (0) target = $region45
    $region44: #{net_forward.1} parent=1 // pred_region
      _
    $region45: #{net_forward.1} parent=1 // pred_fallthru
      _
    // Predicated region
    $region46: #{net_forward.1} parent=1 // pred_check
      _
    $region47: #{net_forward.1} parent=1 // pred_check_branch
      %151 = sbr.rel (0) target = $region49
    $region48: #{net_forward.1} parent=1 // pred_region
      _
    $region49: #{net_forward.1} parent=1 // pred_fallthru
      _
    // Predicated region
    $region50: #{net_forward.1} parent=1 // pred_check
      _
    $region51: #{net_forward.1} parent=1 // pred_check_branch
      %153 = sbr.rel (0) target = $region53
    $region52: #{net_forward.1} parent=1 // pred_region
      _
    $region53: #{net_forward.1} parent=1 // pred_fallthru
      _
    // Predicated region
    $region54: #{net_forward.1} parent=1 // pred_check
      _
    $region55: #{net_forward.1} parent=1 // pred_check_branch
      %155 = sbr.rel (0) target = $region57
    $region56: #{net_forward.1} parent=1 // pred_region
      _
    $region57: #{net_forward.1} parent=1 // pred_fallthru
      _
    // Predicated region
    $region58: #{net_forward.1} parent=1 // pred_check
      _
    $region59: #{net_forward.1} parent=1 // pred_check_branch
      %157 = sbr.rel (0) target = $region61
    $region60: #{net_forward.1} parent=1 // pred_region
      _
    $region61: #{net_forward.1} parent=1 // pred_fallthru
      _
    // Predicated region
    $region62: #{net_forward.1} parent=1 // pred_check
      _
    $region63: #{net_forward.1} parent=1 // pred_check_branch
      %159 = sbr.rel (0) target = $region65
    $region64: #{net_forward.1} parent=1 // pred_region
      _
    $region65: #{net_forward.1} parent=1 // pred_fallthru
      _
    // Predicated region
    $region66: #{net_forward.1} parent=1 // pred_check
      _
    $region67: #{net_forward.1} parent=1 // pred_check_branch
      %161 = sbr.rel (0) target = $region69
    $region68: #{net_forward.1} parent=1 // pred_region
      _
    $region69: #{net_forward.1} parent=1 // pred_fallthru
      _
    // Predicated region
    $region70: #{net_forward.1} parent=1 // pred_check
      _
    $region71: #{net_forward.1} parent=1 // pred_check_branch
      %163 = sbr.rel (0) target = $region73
    $region72: #{net_forward.1} parent=1 // pred_region
      %s165 = ssub.s32 16, 16
      %166 = vsyncadd [#allocation3], %s165
      %s168 = sshll.u32 [#allocation2], 4
      %s169 = int_to_ptr.vmem [resolvable:$true] %s168
      %171 = dma.hbm_to_vmem [thread:$0]  %s35, 16, %s169, [#allocation3]
    $region73: #{net_forward.1} parent=1 // pred_fallthru
      _
    // Predicated region
    $region74: #{net_forward.1} parent=1 // pred_check
      _
    $region75: #{net_forward.1} parent=1 // pred_check_branch
      %173 = sbr.rel (0) target = $region77
    $region76: #{net_forward.1} parent=1 // pred_region
      _
    $region77: #{net_forward.1} parent=1 // pred_fallthru
      _
    // Predicated region
    $region78: #{net_forward.1} parent=1 // pred_check
      _
    $region79: #{net_forward.1} parent=1 // pred_check_branch
      %175 = sbr.rel (0) target = $region81
    $region80: #{net_forward.1} parent=1 // pred_region
      _
    $region81: #{net_forward.1} parent=1 // pred_fallthru
      _
    // Predicated region
    $region82: #{net_forward.1} parent=1 // pred_check
      _
    $region83: #{net_forward.1} parent=1 // pred_check_branch
      %177 = sbr.rel (0) target = $region85
    $region84: #{net_forward.1} parent=1 // pred_region
      _
    $region85: #{net_forward.1} parent=1 // pred_fallthru
      _
    // Predicated region
    $region86: #{net_forward.1} parent=1 // pred_check
      _
    $region87: #{net_forward.1} parent=1 // pred_check_branch
      %179 = sbr.rel (0) target = $region89
    $region88: #{net_forward.1} parent=1 // pred_region
      %s181 = ssub.s32 32, 32
      %182 = vsyncadd [#allocation6], %s181
      %s183 = sshll.u32 [#allocation5], 4
      %s184 = int_to_ptr.vmem [resolvable:$true] %s183
      %189 = dma.hbm_to_vmem [thread:$0]  %s43, 32, %s184, [#allocation6], 16, 16, 1
    $region89: #{net_forward.1} parent=1 // pred_fallthru
      _
    // Predicated region
    $region90: #{net_forward.1} parent=1 // pred_check
      _
    $region91: #{net_forward.1} parent=1 // pred_check_branch
      %191 = sbr.rel (0) target = $region93
    $region92: #{net_forward.1} parent=1 // pred_region
      %s193 = ssub.s32 32, 32
      %194 = vsyncadd [#allocation6], %s193
      %s195 = sshll.u32 [#allocation7], 4
      %s196 = int_to_ptr.vmem [resolvable:$true] %s195
      %201 = dma.hbm_to_vmem [thread:$0]  %s45, 32, %s196, [#allocation6], 16, 16, 1
    $region93: #{net_forward.1} parent=1 // pred_fallthru
      _
    // Predicated region
    $region94: #{net_forward.1} parent=1 // pred_check
      _
    $region95: #{net_forward.1} parent=1 // pred_check_branch
      %203 = sbr.rel (0) target = $region97
    $region96: #{net_forward.1} parent=1 // pred_region
      %s205 = ssub.s32 32, 32
      %206 = vsyncadd [#allocation9], %s205
      %s207 = sshll.u32 [#allocation8], 4
      %s208 = int_to_ptr.vmem [resolvable:$true] %s207
      %213 = dma.hbm_to_vmem [thread:$0]  %s47, 32, %s208, [#allocation9], 16, 16, 1
    $region97: #{net_forward.1} parent=1 // pred_fallthru
      _
    // Predicated region
    $region98: #{net_forward.1} parent=1 // pred_check
      _
    $region99: #{net_forward.1} parent=1 // pred_check_branch
      %215 = sbr.rel (0) target = $region101
    $region100: #{net_forward.1} parent=1 // pred_region
      _
    $region101: #{net_forward.1} parent=1 // pred_fallthru
      _
    // Predicated region
    $region102: #{net_forward.1} parent=1 // pred_check
      _
    $region103: #{net_forward.1} parent=1 // pred_check_branch
      %217 = sbr.rel (0) target = $region105
    $region104: #{net_forward.1} parent=1 // pred_region
      %s219 = ssub.s32 32, 32
      %220 = vsyncadd [#allocation9], %s219
      %s221 = sshll.u32 [#allocation10], 4
      %s222 = int_to_ptr.vmem [resolvable:$true] %s221
      %227 = dma.hbm_to_vmem [thread:$0]  %s51, 32, %s222, [#allocation9], 16, 16, 1
    $region105: #{net_forward.1} parent=1 // pred_fallthru
      _
    // Predicated region
    $region106: #{net_forward.1} parent=1 // pred_check
      _
    $region107: #{net_forward.1} parent=1 // pred_check_branch
      %229 = sbr.rel (0) target = $region109
    $region108: #{net_forward.1} parent=1 // pred_region
      _
    $region109: #{net_forward.1} parent=1 // pred_fallthru
      _
    // Predicated region
    $region110: #{net_forward.1} parent=1 // pred_check
      _
    $region111: #{net_forward.1} parent=1 // pred_check_branch
      %231 = sbr.rel (0) target = $region113
    $region112: #{net_forward.1} parent=1 // pred_region
      %s233 = ssub.s32 32, 32
      %234 = vsyncadd [#allocation12], %s233
      %s235 = sshll.u32 [#allocation11], 4
      %s236 = int_to_ptr.vmem [resolvable:$true] %s235
      %241 = dma.hbm_to_vmem [thread:$0]  %s55, 32, %s236, [#allocation12], 16, 16, 1
    $region113: #{net_forward.1} parent=1 // pred_fallthru
      _
    // Predicated region
    $region114: #{net_forward.1} parent=1 // pred_check
      _
    $region115: #{net_forward.1} parent=1 // pred_check_branch
      %243 = sbr.rel (0) target = $region117
    $region116: #{net_forward.1} parent=1 // pred_region
      %s245 = ssub.s32 32, 32
      %246 = vsyncadd [#allocation12], %s245
      %s247 = sshll.u32 [#allocation13], 4
      %s248 = int_to_ptr.vmem [resolvable:$true] %s247
      %253 = dma.hbm_to_vmem [thread:$0]  %s57, 32, %s248, [#allocation12], 16, 16, 1
    $region117: #{net_forward.1} parent=1 // pred_fallthru
      _
    // Predicated region
    $region118: #{net_forward.1} parent=1 // pred_check
      _
    $region119: #{net_forward.1} parent=1 // pred_check_branch
      %255 = sbr.rel (0) target = $region121
    $region120: #{net_forward.1} parent=1 // pred_region
      %s257 = ssub.s32 32, 32
      %258 = vsyncadd [#allocation15], %s257
      %s259 = sshll.u32 [#allocation14], 4
      %s260 = int_to_ptr.vmem [resolvable:$true] %s259
      %265 = dma.hbm_to_vmem [thread:$0]  %s59, 32, %s260, [#allocation15], 16, 16, 1
    $region121: #{net_forward.1} parent=1 // pred_fallthru
      _
    // Predicated region
    $region122: #{net_forward.1} parent=1 // pred_check
      _
    $region123: #{net_forward.1} parent=1 // pred_check_branch
      %267 = sbr.rel (0) target = $region125
    $region124: #{net_forward.1} parent=1 // pred_region
      _
    $region125: #{net_forward.1} parent=1 // pred_fallthru
      _
    // Predicated region
    $region126: #{net_forward.1} parent=1 // pred_check
      _
    $region127: #{net_forward.1} parent=1 // pred_check_branch
      %269 = sbr.rel (0) target = $region129
    $region128: #{net_forward.1} parent=1 // pred_region
      %s271 = ssub.s32 32, 32
      %272 = vsyncadd [#allocation15], %s271
      %s273 = sshll.u32 [#allocation16], 4
      %s274 = int_to_ptr.vmem [resolvable:$true] %s273
      %279 = dma.hbm_to_vmem [thread:$0]  %s63, 32, %s274, [#allocation15], 16, 16, 1
    $region129: #{net_forward.1} parent=1 // pred_fallthru
      _
    // Predicated region
    $region130: #{net_forward.1} parent=1 // pred_check
      _
    $region131: #{net_forward.1} parent=1 // pred_check_branch
      %281 = sbr.rel (0) target = $region133
    $region132: #{net_forward.1} parent=1 // pred_region
      _
    $region133: #{net_forward.1} parent=1 // pred_fallthru
      _
    // Predicated region
    $region134: #{net_forward.1} parent=1 // pred_check
      _
    $region135: #{net_forward.1} parent=1 // pred_check_branch
      %283 = sbr.rel (0) target = $region137
    $region136: #{net_forward.1} parent=1 // pred_region
      %s285 = ssub.s32 32, 32
      %286 = vsyncadd [#allocation18], %s285
      %s287 = sshll.u32 [#allocation17], 4
      %s288 = int_to_ptr.vmem [resolvable:$true] %s287
      %293 = dma.hbm_to_vmem [thread:$0]  %s67, 32, %s288, [#allocation18], 16, 16, 1
    $region137: #{net_forward.1} parent=1 // pred_fallthru
      _
    // Predicated region
    $region138: #{net_forward.1} parent=1 // pred_check
      _
    $region139: #{net_forward.1} parent=1 // pred_check_branch
      %295 = sbr.rel (0) target = $region141
    $region140: #{net_forward.1} parent=1 // pred_region
      %s297 = ssub.s32 32, 32
      %298 = vsyncadd [#allocation18], %s297
      %s299 = sshll.u32 [#allocation19], 4
      %s300 = int_to_ptr.vmem [resolvable:$true] %s299
      %305 = dma.hbm_to_vmem [thread:$0]  %s69, 32, %s300, [#allocation18], 16, 16, 1
    $region141: #{net_forward.1} parent=1 // pred_fallthru
      _
    // Predicated region
    $region142: #{net_forward.1} parent=1 // pred_check
      _
    $region143: #{net_forward.1} parent=1 // pred_check_branch
      %307 = sbr.rel (0) target = $region145
    $region144: #{net_forward.1} parent=1 // pred_region
      %s309 = ssub.s32 32, 32
      %310 = vsyncadd [#allocation21], %s309
      %s311 = sshll.u32 [#allocation20], 4
      %s312 = int_to_ptr.vmem [resolvable:$true] %s311
      %317 = dma.hbm_to_vmem [thread:$0]  %s71, 32, %s312, [#allocation21], 16, 16, 1
    $region145: #{net_forward.1} parent=1 // pred_fallthru
      _
    // Predicated region
    $region146: #{net_forward.1} parent=1 // pred_check
      _
    $region147: #{net_forward.1} parent=1 // pred_check_branch
      %319 = sbr.rel (0) target = $region149
    $region148: #{net_forward.1} parent=1 // pred_region
      _
    $region149: #{net_forward.1} parent=1 // pred_fallthru
      _
    // Predicated region
    $region150: #{net_forward.1} parent=1 // pred_check
      _
    $region151: #{net_forward.1} parent=1 // pred_check_branch
      %321 = sbr.rel (0) target = $region153
    $region152: #{net_forward.1} parent=1 // pred_region
      %s323 = ssub.s32 32, 32
      %324 = vsyncadd [#allocation21], %s323
      %s325 = sshll.u32 [#allocation22], 4
      %s326 = int_to_ptr.vmem [resolvable:$true] %s325
      %331 = dma.hbm_to_vmem [thread:$0]  %s75, 32, %s326, [#allocation21], 16, 16, 1
    $region153: #{net_forward.1} parent=1 // pred_fallthru
      _
    // Predicated region
    $region154: #{net_forward.1} parent=1 // pred_check
      _
    $region155: #{net_forward.1} parent=1 // pred_check_branch
      %333 = sbr.rel (0) target = $region157
    $region156: #{net_forward.1} parent=1 // pred_region
      _
    $region157: #{net_forward.1} parent=1 // pred_fallthru
      _
    // Predicated region
    $region158: #{net_forward.1} parent=1 // pred_check
      _
    $region159: #{net_forward.1} parent=1 // pred_check_branch
      %335 = sbr.rel (0) target = $region161
    $region160: #{net_forward.1} parent=1 // pred_region
      %s337 = ssub.s32 32, 32
      %338 = vsyncadd [#allocation24], %s337
      %s339 = sshll.u32 [#allocation23], 4
      %s340 = int_to_ptr.vmem [resolvable:$true] %s339
      %345 = dma.hbm_to_vmem [thread:$0]  %s79, 32, %s340, [#allocation24], 16, 16, 1
    $region161: #{net_forward.1} parent=1 // pred_fallthru
      _
    // Predicated region
    $region162: #{net_forward.1} parent=1 // pred_check
      _
    $region163: #{net_forward.1} parent=1 // pred_check_branch
      %347 = sbr.rel (0) target = $region165
    $region164: #{net_forward.1} parent=1 // pred_region
      %s349 = ssub.s32 32, 32
      %350 = vsyncadd [#allocation24], %s349
      %s351 = sshll.u32 [#allocation25], 4
      %s352 = int_to_ptr.vmem [resolvable:$true] %s351
      %357 = dma.hbm_to_vmem [thread:$0]  %s81, 32, %s352, [#allocation24], 16, 16, 1
    $region165: #{net_forward.1} parent=1 // pred_fallthru
      _
    // Predicated region
    $region166: #{net_forward.1} parent=1 // pred_check
      _
    $region167: #{net_forward.1} parent=1 // pred_check_branch
      %359 = sbr.rel (0) target = $region169
    $region168: #{net_forward.1} parent=1 // pred_region
      %s361 = ssub.s32 32, 32
      %362 = vsyncadd [#allocation27], %s361
      %s363 = sshll.u32 [#allocation26], 4
      %s364 = int_to_ptr.vmem [resolvable:$true] %s363
      %369 = dma.hbm_to_vmem [thread:$0]  %s83, 32, %s364, [#allocation27], 16, 16, 1
    $region169: #{net_forward.1} parent=1 // pred_fallthru
      _
    // Predicated region
    $region170: #{net_forward.1} parent=1 // pred_check
      _
    $region171: #{net_forward.1} parent=1 // pred_check_branch
      %371 = sbr.rel (0) target = $region173
    $region172: #{net_forward.1} parent=1 // pred_region
      _
    $region173: #{net_forward.1} parent=1 // pred_fallthru
      _
    // Predicated region
    $region174: #{net_forward.1} parent=1 // pred_check
      _
    $region175: #{net_forward.1} parent=1 // pred_check_branch
      %373 = sbr.rel (0) target = $region177
    $region176: #{net_forward.1} parent=1 // pred_region
      _
    $region177: #{net_forward.1} parent=1 // pred_fallthru
      _
    // Predicated region
    $region178: #{net_forward.1} parent=1 // pred_check
      _
    $region179: #{net_forward.1} parent=1 // pred_check_branch
      %375 = sbr.rel (0) target = $region181
    $region180: #{net_forward.1} parent=1 // pred_region
      %s377 = ssub.s32 256, 256
      %378 = vsyncadd [#allocation27], %s377
      %s379 = sshll.u32 [#allocation28], 4
      %s380 = int_to_ptr.vmem [resolvable:$true] %s379
      %385 = dma.hbm_to_vmem [thread:$0]  %s89, 256, %s380, [#allocation27], 64, 64, 4
    $region181: #{net_forward.1} parent=1 // pred_fallthru
      _
    // Predicated region
    $region182: #{net_forward.1} parent=1 // pred_check
      _
    $region183: #{net_forward.1} parent=1 // pred_check_branch
      %387 = sbr.rel (0) target = $region185
    $region184: #{net_forward.1} parent=1 // pred_region
      %s389 = ssub.s32 16, 16
      %390 = vsyncadd [#allocation30], %s389
      %s392 = sshll.u32 [#allocation29], 4
      %s393 = int_to_ptr.vmem [resolvable:$true] %s392
      %395 = dma.hbm_to_vmem [thread:$0]  %s91, 16, %s393, [#allocation30]
    $region185: #{net_forward.1} parent=1 // pred_fallthru
      _
    // Predicated region
    $region186: #{net_forward.1} parent=1 // pred_check
      _
    $region187: #{net_forward.1} parent=1 // pred_check_branch
      %397 = sbr.rel (0) target = $region189
    $region188: #{net_forward.1} parent=1 // pred_region
      %s399 = ssub.s32 256, 256
      %400 = vsyncadd [#allocation30], %s399
      %s401 = sshll.u32 [#allocation31], 4
      %s402 = int_to_ptr.vmem [resolvable:$true] %s401
      %407 = dma.hbm_to_vmem [thread:$0]  %s93, 256, %s402, [#allocation30], 64, 64, 4
    $region189: #{net_forward.1} parent=1 // pred_fallthru
      _
    // Predicated region
    $region190: #{net_forward.1} parent=1 // pred_check
      _
    $region191: #{net_forward.1} parent=1 // pred_check_branch
      %409 = sbr.rel (0) target = $region193
    $region192: #{net_forward.1} parent=1 // pred_region
      %s411 = ssub.s32 16, 16
      %412 = vsyncadd [#allocation33], %s411
      %s414 = sshll.u32 [#allocation32], 4
      %s415 = int_to_ptr.vmem [resolvable:$true] %s414
      %417 = dma.hbm_to_vmem [thread:$0]  %s95, 16, %s415, [#allocation33]
    $region193: #{net_forward.1} parent=1 // pred_fallthru
      _
    // Predicated region
    $region194: #{net_forward.1} parent=1 // pred_check
      _
    $region195: #{net_forward.1} parent=1 // pred_check_branch
      %419 = sbr.rel (0) target = $region197
    $region196: #{net_forward.1} parent=1 // pred_region
      _
    $region197: #{net_forward.1} parent=1 // pred_fallthru
      _
    // Predicated region
    $region198: #{net_forward.1} parent=1 // pred_check
      _
    $region199: #{net_forward.1} parent=1 // pred_check_branch
      %421 = sbr.rel (0) target = $region201
    $region200: #{net_forward.1} parent=1 // pred_region
      _
    $region201: #{net_forward.1} parent=1 // pred_fallthru
      _
    // Predicated region
    $region202: #{net_forward.1} parent=1 // pred_check
      _
    $region203: #{net_forward.1} parent=1 // pred_check_branch
      %423 = sbr.rel (0) target = $region205
    $region204: #{net_forward.1} parent=1 // pred_region
      _
    $region205: #{net_forward.1} parent=1 // pred_fallthru
      _
    // Predicated region
    $region206: #{net_forward.1} parent=1 // pred_check
      _
    $region207: #{net_forward.1} parent=1 // pred_check_branch
      %425 = sbr.rel (0) target = $region209
    $region208: #{net_forward.1} parent=1 // pred_region
      %s427 = ssub.s32 16, 16
      %428 = vsyncadd [#allocation33], %s427
      %s430 = sshll.u32 [#allocation34], 4
      %s431 = int_to_ptr.vmem [resolvable:$true] %s430
      %433 = dma.hbm_to_vmem [thread:$0]  %s103, 16, %s431, [#allocation33]
    $region209: #{net_forward.1} parent=1 // pred_fallthru
      _
    // Predicated region
    $region210: #{net_forward.1} parent=1 // pred_check
      _
    $region211: #{net_forward.1} parent=1 // pred_check_branch
      %435 = sbr.rel (0) target = $region213
    $region212: #{net_forward.1} parent=1 // pred_region
      %436 = dma.done [#allocation3], 16
    $region213: #{net_forward.1} parent=1 // pred_fallthru
      _
    // Predicated region
    $region214: #{net_forward.1} parent=1 // pred_check
      _
    $region215: #{net_forward.1} parent=1 // pred_check_branch
      %438 = sbr.rel (0) target = $region217
    $region216: #{net_forward.1} parent=1 // pred_region
      %439 = dma.done [#allocation6], 32
    $region217: #{net_forward.1} parent=1 // pred_fallthru
      _
    // Predicated region
    $region218: #{net_forward.1} parent=1 // pred_check
      _
    $region219: #{net_forward.1} parent=1 // pred_check_branch
      %441 = sbr.rel (0) target = $region221
    $region220: #{net_forward.1} parent=1 // pred_region
      %442 = dma.done [#allocation6], 32
    $region221: #{net_forward.1} parent=1 // pred_fallthru
      _
    // Predicated region
    $region222: #{net_forward.1} parent=1 // pred_check
      _
    $region223: #{net_forward.1} parent=1 // pred_check_branch
      %444 = sbr.rel (0) target = $region225
    $region224: #{net_forward.1} parent=1 // pred_region
      %445 = dma.done [#allocation9], 32
    $region225: #{net_forward.1} parent=1 // pred_fallthru
      _
    // Predicated region
    $region226: #{net_forward.1} parent=1 // pred_check
      _
    $region227: #{net_forward.1} parent=1 // pred_check_branch
      %447 = sbr.rel (0) target = $region229
    $region228: #{net_forward.1} parent=1 // pred_region
      %448 = dma.done [#allocation9], 32
    $region229: #{net_forward.1} parent=1 // pred_fallthru
      _
    // Predicated region
    $region230: #{net_forward.1} parent=1 // pred_check
      _
    $region231: #{net_forward.1} parent=1 // pred_check_branch
      %450 = sbr.rel (0) target = $region233
    $region232: #{net_forward.1} parent=1 // pred_region
      %451 = dma.done [#allocation12], 32
    $region233: #{net_forward.1} parent=1 // pred_fallthru
      _
    // Predicated region
    $region234: #{net_forward.1} parent=1 // pred_check
      _
    $region235: #{net_forward.1} parent=1 // pred_check_branch
      %453 = sbr.rel (0) target = $region237
    $region236: #{net_forward.1} parent=1 // pred_region
      %454 = dma.done [#allocation12], 32
    $region237: #{net_forward.1} parent=1 // pred_fallthru
      _
    // Predicated region
    $region238: #{net_forward.1} parent=1 // pred_check
      _
    $region239: #{net_forward.1} parent=1 // pred_check_branch
      %456 = sbr.rel (0) target = $region241
    $region240: #{net_forward.1} parent=1 // pred_region
      %457 = dma.done [#allocation15], 32
    $region241: #{net_forward.1} parent=1 // pred_fallthru
      _
    // Predicated region
    $region242: #{net_forward.1} parent=1 // pred_check
      _
    $region243: #{net_forward.1} parent=1 // pred_check_branch
      %459 = sbr.rel (0) target = $region245
    $region244: #{net_forward.1} parent=1 // pred_region
      %460 = dma.done [#allocation15], 32
    $region245: #{net_forward.1} parent=1 // pred_fallthru
      _
    // Predicated region
    $region246: #{net_forward.1} parent=1 // pred_check
      _
    $region247: #{net_forward.1} parent=1 // pred_check_branch
      %462 = sbr.rel (0) target = $region249
    $region248: #{net_forward.1} parent=1 // pred_region
      %463 = dma.done [#allocation18], 32
    $region249: #{net_forward.1} parent=1 // pred_fallthru
      _
    // Predicated region
    $region250: #{net_forward.1} parent=1 // pred_check
      _
    $region251: #{net_forward.1} parent=1 // pred_check_branch
      %465 = sbr.rel (0) target = $region253
    $region252: #{net_forward.1} parent=1 // pred_region
      %466 = dma.done [#allocation18], 32
    $region253: #{net_forward.1} parent=1 // pred_fallthru
      _
    // Predicated region
    $region254: #{net_forward.1} parent=1 // pred_check
      _
    $region255: #{net_forward.1} parent=1 // pred_check_branch
      %468 = sbr.rel (0) target = $region257
    $region256: #{net_forward.1} parent=1 // pred_region
      %469 = dma.done [#allocation21], 32
    $region257: #{net_forward.1} parent=1 // pred_fallthru
      _
    // Predicated region
    $region258: #{net_forward.1} parent=1 // pred_check
      _
    $region259: #{net_forward.1} parent=1 // pred_check_branch
      %471 = sbr.rel (0) target = $region261
    $region260: #{net_forward.1} parent=1 // pred_region
      %472 = dma.done [#allocation21], 32
    $region261: #{net_forward.1} parent=1 // pred_fallthru
      _
    // Predicated region
    $region262: #{net_forward.1} parent=1 // pred_check
      _
    $region263: #{net_forward.1} parent=1 // pred_check_branch
      %474 = sbr.rel (0) target = $region265
    $region264: #{net_forward.1} parent=1 // pred_region
      %475 = dma.done [#allocation24], 32
    $region265: #{net_forward.1} parent=1 // pred_fallthru
      _
    // Predicated region
    $region266: #{net_forward.1} parent=1 // pred_check
      _
    $region267: #{net_forward.1} parent=1 // pred_check_branch
      %477 = sbr.rel (0) target = $region269
    $region268: #{net_forward.1} parent=1 // pred_region
      %478 = dma.done [#allocation24], 32
    $region269: #{net_forward.1} parent=1 // pred_fallthru
      _
    // Predicated region
    $region270: #{net_forward.1} parent=1 // pred_check
      _
    $region271: #{net_forward.1} parent=1 // pred_check_branch
      %480 = sbr.rel (0) target = $region273
    $region272: #{net_forward.1} parent=1 // pred_region
      %481 = dma.done [#allocation27], 32
    $region273: #{net_forward.1} parent=1 // pred_fallthru
      _
    // Predicated region
    $region274: #{net_forward.1} parent=1 // pred_check
      _
    $region275: #{net_forward.1} parent=1 // pred_check_branch
      %483 = sbr.rel (0) target = $region277
    $region276: #{net_forward.1} parent=1 // pred_region
      %484 = dma.done [#allocation27], 256
    $region277: #{net_forward.1} parent=1 // pred_fallthru
      _
    // Predicated region
    $region278: #{net_forward.1} parent=1 // pred_check
      _
    $region279: #{net_forward.1} parent=1 // pred_check_branch
      %486 = sbr.rel (0) target = $region281
    $region280: #{net_forward.1} parent=1 // pred_region
      %487 = dma.done [#allocation30], 16
    $region281: #{net_forward.1} parent=1 // pred_fallthru
      _
    // Predicated region
    $region282: #{net_forward.1} parent=1 // pred_check
      _
    $region283: #{net_forward.1} parent=1 // pred_check_branch
      %489 = sbr.rel (0) target = $region285
    $region284: #{net_forward.1} parent=1 // pred_region
      %490 = dma.done [#allocation30], 256
    $region285: #{net_forward.1} parent=1 // pred_fallthru
      _
    // Predicated region
    $region286: #{net_forward.1} parent=1 // pred_check
      _
    $region287: #{net_forward.1} parent=1 // pred_check_branch
      %492 = sbr.rel (0) target = $region289
    $region288: #{net_forward.1} parent=1 // pred_region
      %493 = dma.done [#allocation33], 16
    $region289: #{net_forward.1} parent=1 // pred_fallthru
      _
    // Predicated region
    $region290: #{net_forward.1} parent=1 // pred_check
      _
    $region291: #{net_forward.1} parent=1 // pred_check_branch
      %495 = sbr.rel (0) target = $region293
    $region292: #{net_forward.1} parent=1 // pred_region
      %496 = dma.done [#allocation33], 16
    $region293: #{net_forward.1} parent=1 // pred_fallthru
      _
    %v498 = vld [vmem:[%s1] sm:$0xff]
    %v499 = vld [vmem:[%s1 + $0x8] sm:$0xff]
    %v500 = vlaneseq
    %v501 = vand.u32 %v500, 127
    %502 = vset.pattern.permute.xlu0 0
    %503 = vperm.xlu0 %502, %v498
    %v504 = vpop.permute.xlu0 %503
    %505 = vset.pattern.permute.xlu0 0
    %506 = vperm.xlu0 %505, %v499
    %v507 = vpop.permute.xlu0 %506
    %vm508 = vcmp.eq.s32.totalorder %v504, %v501
    %vm509 = vcmp.eq.s32.totalorder %v507, %v501
    %v510 = vsel %vm508, 1, 0
    %v511 = vsel %vm509, 1, 0
    %v512 = vcvt.s32.f32 %v510
    %v513 = vcvt.s32.f32 %v511
    %v514 = vld [vmem:[%s13] sm:$0xff]
    %v515 = vld [vmem:[%s13 + $0x8] sm:$0xff]
    %v516 = vld [vmem:[%s13 + $0x10] sm:$0xf]
    %vm517 = vcmask 162816
    %v519 = vsel %vm517, %v512, 0
    %v522 = vsel %vm517, %v513, 0
    %vm524 = vcmask 1043456
    %v526 = vsel %vm524, %v516, 0
    %528 = vmatprep.subr.mxu0 0.0
    %529 = vmatpush1.msra.mxu0 %v514
    %530 = vmatprep.subr.mxu0 0.0
    %531 = vmatpush1.msra.mxu0 %v515
    %532 = vmatprep.subr.mxu0 0.0
    %533 = vmatpush1.msra.mxu0 %v526
    %534 = vmatprep.subr.mxu0 0.0
    %535 = vmatpush1.msra.mxu0 0.0
    %536 = vmatprep.subr.mxu0 0.0
    %537 = vmatpush1.msra.mxu0 0.0
    %538 = vmatprep.subr.mxu0 0.0
    %539 = vmatpush1.msra.mxu0 0.0
    %540 = vmatprep.subr.mxu0 0.0
    %541 = vmatpush1.msra.mxu0 0.0
    %542 = vmatprep.subr.mxu0 0.0
    %543 = vmatpush1.msra.mxu0 0.0
    %544 = vmatprep.subr.mxu0 0.0
    %545 = vmatpush1.msra.mxu0 0.0
    %546 = vmatprep.subr.mxu0 0.0
    %547 = vmatpush1.msra.mxu0 0.0
    %548 = vmatprep.subr.mxu0 0.0
    %549 = vmatpush1.msra.mxu0 0.0
    %550 = vmatprep.subr.mxu0 0.0
    %551 = vmatpush1.msra.mxu0 0.0
    %552 = vmatprep.subr.mxu0 0.0
    %553 = vmatpush1.msra.mxu0 0.0
    %554 = vmatprep.subr.mxu0 0.0
    %555 = vmatpush1.msra.mxu0 0.0
    %556 = vmatprep.subr.mxu0 0.0
    %557 = vmatpush1.msra.mxu0 0.0
    %558 = vmatprep.subr.mxu0 0.0
    %559 = vmatpush1.msra.mxu0 0.0
    %560 = vmatprep.subr.mxu0 0.0
    %561 = vmatpush1.msra.mxu0 0.0
    %562 = vmatprep.subr.mxu0 0.0
    %563 = vmatpush1.msra.mxu0 0.0
    %564 = vmatprep.subr.mxu0 0.0
    %565 = vmatpush1.msra.mxu0 0.0
    %566 = vmatprep.subr.mxu0 0.0
    %567 = vmatpush1.msra.mxu0 0.0
    %568 = vmatprep.subr.mxu0 0.0
    %569 = vmatpush1.msra.mxu0 0.0
    %570 = vmatprep.subr.mxu0 0.0
    %571 = vmatpush1.msra.mxu0 0.0
    %572 = vmatprep.subr.mxu0 0.0
    %573 = vmatpush1.msra.mxu0 0.0
    %574 = vmatprep.subr.mxu0 0.0
    %575 = vmatpush1.msra.mxu0 0.0
    %576 = vmatprep.subr.mxu0 0.0
    %577 = vmatpush1.msra.mxu0 0.0
    %578 = vmatprep.subr.mxu0 0.0
    %579 = vmatpush1.msra.mxu0 0.0
    %580 = vmatprep.subr.mxu0 0.0
    %581 = vmatpush1.msra.mxu0 0.0
    %582 = vmatprep.subr.mxu0 0.0
    %583 = vmatpush1.msra.mxu0 0.0
    %584 = vmatprep.subr.mxu0 0.0
    %585 = vmatpush1.msra.mxu0 0.0
    %586 = vmatprep.subr.mxu0 0.0
    %587 = vmatpush1.msra.mxu0 0.0
    %588 = vmatprep.subr.mxu0 0.0
    %589 = vmatpush1.msra.mxu0 0.0
    %590 = vmatprep.subr.mxu0 0.0
    %591 = vmatpush1.msra.mxu0 0.0
    %592 = vmatprep.mubr.f32.mxu0 0.0
    %593 = vmatmul.mubr.f32.gmra.mrb[0].mxu0 %v519
    %v594 = vpop.f32.mrb[0].mxu0
    %v595 = vadd.f32 0.0, %v594
    %v596 = vpop.f32.mrb[0].mxu0
    %597 = vmatprep.mubr.f32.mxu0 0.0
    %598 = vmatmul.mubr.f32.gmra.mrb[0].mxu0 %v522
    %v599 = vpop.f32.mrb[0].mxu0
    %v600 = vadd.f32 0.0, %v599
    %v601 = vpop.f32.mrb[0].mxu0
    %602 = vdwg.mxu0
    %v603 = vld [vmem:[%s15] sm:$0xf]
    %v604 = vld [vmem:[%s15 + $0x4] sm:$0xf]
    %v605 = vld [vmem:[%s15 + $0x8] sm:$0xf]
    %v606 = vld [vmem:[%s15 + $0xc] sm:$0xf]
    %v607 = vld [vmem:[%s21] sm:$0x1]
    %v608 = vpack.c.bf16 %v600, %v595
    %v610 = vlaneseq
    %v611 = vshrl.u32 %v610, 7
    %v612 = vsub.s32 0, %v611
    %v613 = vrot.slane %v607, %v612
    %v619 = vunpack.c.l.b16 %v603
    %v620 = vunpack.c.l.b16 %v604
    %v621 = vunpack.c.l.b16 %v605
    %v622 = vunpack.c.l.b16 %v606
    %v623 = vpack.c.b16 %v620, %v619
    %v624 = vpack.c.b16 %v622, %v621
    %vm627 = vcmask 261120
    %v629 = vsel %vm627, %v608, 0
    %631 = vmatprep.subr.bf16.mxu0 0
    %632 = vmatpush1.bf16.msra.mxu0 %v623
    %633 = vmatprep.subr.bf16.mxu0 0
    %634 = vmatpush1.bf16.msra.mxu0 %v624
    %635 = vmatprep.subr.bf16.mxu0 0
    %636 = vmatpush1.bf16.msra.mxu0 0
    %637 = vmatprep.subr.bf16.mxu0 0
    %638 = vmatpush1.bf16.msra.mxu0 0
    %639 = vmatprep.subr.bf16.mxu0 0
    %640 = vmatpush1.bf16.msra.mxu0 0
    %641 = vmatprep.subr.bf16.mxu0 0
    %642 = vmatpush1.bf16.msra.mxu0 0
    %643 = vmatprep.subr.bf16.mxu0 0
    %644 = vmatpush1.bf16.msra.mxu0 0
    %645 = vmatprep.subr.bf16.mxu0 0
    %646 = vmatpush1.bf16.msra.mxu0 0
    %647 = vmatprep.subr.bf16.mxu0 0
    %648 = vmatpush1.bf16.msra.mxu0 0
    %649 = vmatprep.subr.bf16.mxu0 0
    %650 = vmatpush1.bf16.msra.mxu0 0
    %651 = vmatprep.subr.bf16.mxu0 0
    %652 = vmatpush1.bf16.msra.mxu0 0
    %653 = vmatprep.subr.bf16.mxu0 0
    %654 = vmatpush1.bf16.msra.mxu0 0
    %655 = vmatprep.subr.bf16.mxu0 0
    %656 = vmatpush1.bf16.msra.mxu0 0
    %657 = vmatprep.subr.bf16.mxu0 0
    %658 = vmatpush1.bf16.msra.mxu0 0
    %659 = vmatprep.subr.bf16.mxu0 0
    %660 = vmatpush1.bf16.msra.mxu0 0
    %661 = vmatprep.subr.bf16.mxu0 0
    %662 = vmatpush1.bf16.msra.mxu0 0
    %663 = vmatprep.mubr.bf16.mxu0 0
    %664 = vmatmul.mubr.bf16.gmra.mrb[0].mxu0 %v629
    %v665 = vpop.f32.mrb[0].mxu0
    %v666 = vadd.f32 %v613, %v665
    %v667 = vpop.f32.mrb[0].mxu0
    %v668 = vpop.f32.mrb[0].mxu0
    %v669 = vadd.f32 %v613, %v668
    %v670 = vpop.f32.mrb[0].mxu0
    %671 = vdwg.mxu0
    %v672 = vld [vmem:[%s17] sm:$0xf]
    %v673 = vld [vmem:[%s17 + $0x4] sm:$0xf]
    %v674 = vld [vmem:[%s17 + $0x8] sm:$0xf]
    %v675 = vld [vmem:[%s17 + $0xc] sm:$0xf]
    %v676 = vld [vmem:[%s23] sm:$0x1]
    %v678 = vlaneseq
    %v679 = vshrl.u32 %v678, 7
    %v680 = vsub.s32 0, %v679
    %v681 = vrot.slane %v676, %v680
    %v687 = vunpack.c.l.b16 %v672
    %v688 = vunpack.c.l.b16 %v673
    %v689 = vunpack.c.l.b16 %v674
    %v690 = vunpack.c.l.b16 %v675
    %v691 = vpack.c.b16 %v688, %v687
    %v692 = vpack.c.b16 %v690, %v689
    %695 = vmatprep.subr.bf16.mxu0 0
    %696 = vmatpush1.bf16.msra.mxu0 %v691
    %697 = vmatprep.subr.bf16.mxu0 0
    %698 = vmatpush1.bf16.msra.mxu0 %v692
    %699 = vmatprep.subr.bf16.mxu0 0
    %700 = vmatpush1.bf16.msra.mxu0 0
    %701 = vmatprep.subr.bf16.mxu0 0
    %702 = vmatpush1.bf16.msra.mxu0 0
    %703 = vmatprep.subr.bf16.mxu0 0
    %704 = vmatpush1.bf16.msra.mxu0 0
    %705 = vmatprep.subr.bf16.mxu0 0
    %706 = vmatpush1.bf16.msra.mxu0 0
    %707 = vmatprep.subr.bf16.mxu0 0
    %708 = vmatpush1.bf16.msra.mxu0 0
    %709 = vmatprep.subr.bf16.mxu0 0
    %710 = vmatpush1.bf16.msra.mxu0 0
    %711 = vmatprep.subr.bf16.mxu0 0
    %712 = vmatpush1.bf16.msra.mxu0 0
    %713 = vmatprep.subr.bf16.mxu0 0
    %714 = vmatpush1.bf16.msra.mxu0 0
    %715 = vmatprep.subr.bf16.mxu0 0
    %716 = vmatpush1.bf16.msra.mxu0 0
    %717 = vmatprep.subr.bf16.mxu0 0
    %718 = vmatpush1.bf16.msra.mxu0 0
    %719 = vmatprep.subr.bf16.mxu0 0
    %720 = vmatpush1.bf16.msra.mxu0 0
    %721 = vmatprep.subr.bf16.mxu0 0
    %722 = vmatpush1.bf16.msra.mxu0 0
    %723 = vmatprep.subr.bf16.mxu0 0
    %724 = vmatpush1.bf16.msra.mxu0 0
    %725 = vmatprep.subr.bf16.mxu0 0
    %726 = vmatpush1.bf16.msra.mxu0 0
    %727 = vmatprep.mubr.bf16.mxu0 0
    %728 = vmatmul.mubr.bf16.gmra.mrb[0].mxu0 %v629
    %v729 = vpop.f32.mrb[0].mxu0
    %v730 = vadd.f32 %v681, %v729
    %v731 = vpop.f32.mrb[0].mxu0
    %v732 = vpop.f32.mrb[0].mxu0
    %v733 = vadd.f32 %v681, %v732
    %v734 = vpop.f32.mrb[0].mxu0
    %735 = vdwg.mxu0
    %v736 = vld [vmem:[%s19] sm:$0xff]
    %v737 = vld [vmem:[%s19 + $0x8] sm:$0xff]
    %v738 = vld [vmem:[%s19 + $0x10] sm:$0xff]
    %v739 = vld [vmem:[%s19 + $0x18] sm:$0xff]
    %v740 = vld [vmem:[%s19 + $0x20] sm:$0xff]
    %v741 = vld [vmem:[%s19 + $0x28] sm:$0xff]
    %v742 = vld [vmem:[%s19 + $0x30] sm:$0xff]
    %v743 = vld [vmem:[%s19 + $0x38] sm:$0xff]
    %v744 = vxor.u32 %v666, 2147483648
    %v745 = vmul.f32 %v744, 1.442695
    %v746 = vpow.pop %v745
    %v747 = vadd.f32 %v746, 1.0
    %v748 = vrcp.pop %v747
    %v749 = vmul.f32 1.0, %v748
    %v750 = vtanh.pop %v666
    %v751 = vmul.f32 %v749, 0.0
    %753 = vrot.lane.b32.xlu0 %v750, 64
    %v754 = vpop.permute.xlu0 %753
    %v756 = vmul.f32 %v749, %v754
    %758 = vrot.lane.b32.xlu0 %v756, 32
    %v759 = vpop.permute.xlu0 %758
    %v761 = vadd.f32 %v751, %v759
    %v762 = vtanh.pop %v761
    %764 = vrot.lane.b32.xlu0 %v762, 64
    %v765 = vpop.permute.xlu0 %764
    %v767 = vmul.f32 %v749, %v765
    %v768 = vxor.u32 %v733, 2147483648
    %v769 = vmul.f32 %v768, 1.442695
    %v770 = vpow.pop %v769
    %v771 = vadd.f32 %v770, 1.0
    %v772 = vrcp.pop %v771
    %v773 = vmul.f32 1.0, %v772
    %v774 = vtanh.pop %v733
    %v775 = vmul.f32 %v773, 0.0
    %777 = vrot.lane.b32.xlu0 %v774, 64
    %v778 = vpop.permute.xlu0 %777
    %v780 = vmul.f32 %v773, %v778
    %782 = vrot.lane.b32.xlu0 %v780, 32
    %v783 = vpop.permute.xlu0 %782
    %v785 = vadd.f32 %v775, %v783
    %v786 = vtanh.pop %v785
    %788 = vrot.lane.b32.xlu0 %v786, 64
    %v789 = vpop.permute.xlu0 %788
    %v791 = vmul.f32 %v773, %v789
    %793 = vrot.lane.b32.xlu0 %v767, 32
    %v794 = vpop.permute.xlu0 %793
    %v797 = vrot.slane %v791, 6
    %798 = vrot.lane.b32.xlu0 %v797, 64
    %v799 = vpop.permute.xlu0 %798
    %v801 = vsel %vm627, %v794, %v799
    %v802 = vpack.c.bf16 %v801, %v801
    %v811 = vunpack.c.l.b16 %v736
    %v812 = vunpack.c.h.b16 %v736
    %v813 = vunpack.c.l.b16 %v737
    %v814 = vunpack.c.h.b16 %v737
    %v815 = vunpack.c.l.b16 %v738
    %v816 = vunpack.c.h.b16 %v738
    %v817 = vunpack.c.l.b16 %v739
    %v818 = vunpack.c.h.b16 %v739
    %v819 = vunpack.c.l.b16 %v740
    %v820 = vunpack.c.h.b16 %v740
    %v821 = vunpack.c.l.b16 %v741
    %v822 = vunpack.c.h.b16 %v741
    %v823 = vunpack.c.l.b16 %v742
    %v824 = vunpack.c.h.b16 %v742
    %v825 = vunpack.c.l.b16 %v743
    %v826 = vunpack.c.h.b16 %v743
    %v827 = vpack.c.b16 %v813, %v811
    %v828 = vpack.c.b16 %v814, %v812
    %v829 = vpack.c.b16 %v817, %v815
    %v830 = vpack.c.b16 %v818, %v816
    %v831 = vpack.c.b16 %v821, %v819
    %v832 = vpack.c.b16 %v822, %v820
    %v833 = vpack.c.b16 %v825, %v823
    %v834 = vpack.c.b16 %v826, %v824
    %vm843 = vcmask 523264
    %v845 = vsel %vm843, %v802, 0
    %847 = vmatprep.subr.bf16.mxu0 %v828
    %848 = vmatpush1.bf16.msra.mxu0 %v827
    %849 = vmatprep.subr.bf16.mxu0 %v830
    %850 = vmatpush1.bf16.msra.mxu0 %v829
    %851 = vmatprep.subr.bf16.mxu0 %v832
    %852 = vmatpush1.bf16.msra.mxu0 %v831
    %853 = vmatprep.subr.bf16.mxu0 %v834
    %854 = vmatpush1.bf16.msra.mxu0 %v833
    %855 = vmatprep.subr.bf16.mxu0 0
    %856 = vmatpush1.bf16.msra.mxu0 0
    %857 = vmatprep.subr.bf16.mxu0 0
    %858 = vmatpush1.bf16.msra.mxu0 0
    %859 = vmatprep.subr.bf16.mxu0 0
    %860 = vmatpush1.bf16.msra.mxu0 0
    %861 = vmatprep.subr.bf16.mxu0 0
    %862 = vmatpush1.bf16.msra.mxu0 0
    %863 = vmatprep.subr.bf16.mxu0 0
    %864 = vmatpush1.bf16.msra.mxu0 0
    %865 = vmatprep.subr.bf16.mxu0 0
    %866 = vmatpush1.bf16.msra.mxu0 0
    %867 = vmatprep.subr.bf16.mxu0 0
    %868 = vmatpush1.bf16.msra.mxu0 0
    %869 = vmatprep.subr.bf16.mxu0 0
    %870 = vmatpush1.bf16.msra.mxu0 0
    %871 = vmatprep.subr.bf16.mxu0 0
    %872 = vmatpush1.bf16.msra.mxu0 0
    %873 = vmatprep.subr.bf16.mxu0 0
    %874 = vmatpush1.bf16.msra.mxu0 0
    %875 = vmatprep.subr.bf16.mxu0 0
    %876 = vmatpush1.bf16.msra.mxu0 0
    %877 = vmatprep.subr.bf16.mxu0 0
    %878 = vmatpush1.bf16.msra.mxu0 0
    %879 = vmatprep.mubr.bf16.mxu0 0
    %880 = vmatmul.mubr.bf16.gmra.mrb[0].mxu0 %v845
    %v881 = vpop.f32.mrb[0].mxu0
    %v882 = vadd.f32 0.0, %v881
    %v883 = vpop.f32.mrb[0].mxu0
    %v884 = vadd.f32 0.0, %v883
    %v885 = vpop.f32.mrb[0].mxu0
    %v886 = vpop.f32.mrb[0].mxu0
    %887 = vdwg.mxu0
    %v889 = vrot.slane %v882, 6
    %v891 = vadd.f32 %v666, %v889
    %v893 = vrot.slane %v884, 4
    %v895 = vadd.f32 %v733, %v893
    %v896 = vxor.u32 %v891, 2147483648
    %v897 = vmul.f32 %v896, 1.442695
    %v898 = vpow.pop %v897
    %v899 = vadd.f32 %v898, 1.0
    %v900 = vrcp.pop %v899
    %v901 = vmul.f32 1.0, %v900
    %v902 = vtanh.pop %v891
    %v904 = vrot.slane %v761, 6
    %v906 = vmul.f32 %v901, %v904
    %908 = vrot.lane.b32.xlu0 %v902, 64
    %v909 = vpop.permute.xlu0 %908
    %v911 = vmul.f32 %v901, %v909
    %913 = vrot.lane.b32.xlu0 %v911, 32
    %v914 = vpop.permute.xlu0 %913
    %v916 = vadd.f32 %v906, %v914
    %v917 = vtanh.pop %v916
    %919 = vrot.lane.b32.xlu0 %v917, 64
    %v920 = vpop.permute.xlu0 %919
    %v922 = vmul.f32 %v901, %v920
    %v923 = vxor.u32 %v895, 2147483648
    %v924 = vmul.f32 %v923, 1.442695
    %v925 = vpow.pop %v924
    %v926 = vadd.f32 %v925, 1.0
    %v927 = vrcp.pop %v926
    %v928 = vmul.f32 1.0, %v927
    %v929 = vtanh.pop %v895
    %v931 = vrot.slane %v785, 2
    %v933 = vmul.f32 %v928, %v931
    %935 = vrot.lane.b32.xlu0 %v929, 64
    %v936 = vpop.permute.xlu0 %935
    %v938 = vmul.f32 %v928, %v936
    %940 = vrot.lane.b32.xlu0 %v938, 32
    %v941 = vpop.permute.xlu0 %940
    %v943 = vadd.f32 %v933, %v941
    %v944 = vtanh.pop %v943
    %946 = vrot.lane.b32.xlu0 %v944, 64
    %v947 = vpop.permute.xlu0 %946
    %v949 = vmul.f32 %v928, %v947
    %951 = vrot.lane.b32.xlu0 %v922, 32
    %v952 = vpop.permute.xlu0 %951
    %v955 = vrot.slane %v949, 2
    %956 = vrot.lane.b32.xlu0 %v955, 64
    %v957 = vpop.permute.xlu0 %956
    %v959 = vsel %vm627, %v952, %v957
    %v960 = vpack.c.bf16 %v959, %v959
    %v962 = vrot.slane %v960, 1
    %v964 = vsel %vm843, %v962, 0
    %966 = vmatprep.subr.bf16.mxu0 %v828
    %967 = vmatpush1.bf16.msra.mxu0 %v827
    %968 = vmatprep.subr.bf16.mxu0 %v830
    %969 = vmatpush1.bf16.msra.mxu0 %v829
    %970 = vmatprep.subr.bf16.mxu0 %v832
    %971 = vmatpush1.bf16.msra.mxu0 %v831
    %972 = vmatprep.subr.bf16.mxu0 %v834
    %973 = vmatpush1.bf16.msra.mxu0 %v833
    %974 = vmatprep.subr.bf16.mxu0 0
    %975 = vmatpush1.bf16.msra.mxu0 0
    %976 = vmatprep.subr.bf16.mxu0 0
    %977 = vmatpush1.bf16.msra.mxu0 0
    %978 = vmatprep.subr.bf16.mxu0 0
    %979 = vmatpush1.bf16.msra.mxu0 0
    %980 = vmatprep.subr.bf16.mxu0 0
    %981 = vmatpush1.bf16.msra.mxu0 0
    %982 = vmatprep.subr.bf16.mxu0 0
    %983 = vmatpush1.bf16.msra.mxu0 0
    %984 = vmatprep.subr.bf16.mxu0 0
    %985 = vmatpush1.bf16.msra.mxu0 0
    %986 = vmatprep.subr.bf16.mxu0 0
    %987 = vmatpush1.bf16.msra.mxu0 0
    %988 = vmatprep.subr.bf16.mxu0 0
    %989 = vmatpush1.bf16.msra.mxu0 0
    %990 = vmatprep.subr.bf16.mxu0 0
    %991 = vmatpush1.bf16.msra.mxu0 0
    %992 = vmatprep.subr.bf16.mxu0 0
    %993 = vmatpush1.bf16.msra.mxu0 0
    %994 = vmatprep.subr.bf16.mxu0 0
    %995 = vmatpush1.bf16.msra.mxu0 0
    %996 = vmatprep.subr.bf16.mxu0 0
    %997 = vmatpush1.bf16.msra.mxu0 0
    %998 = vmatprep.mubr.bf16.mxu0 0
    %999 = vmatmul.mubr.bf16.gmra.mrb[0].mxu0 %v964
    %v1000 = vpop.f32.mrb[0].mxu0
    %v1001 = vadd.f32 0.0, %v1000
    %v1002 = vpop.f32.mrb[0].mxu0
    %v1003 = vadd.f32 0.0, %v1002
    %v1004 = vpop.f32.mrb[0].mxu0
    %v1005 = vpop.f32.mrb[0].mxu0
    %1006 = vdwg.mxu0
    %v1008 = vrot.slane %v1001, 4
    %v1010 = vadd.f32 %v666, %v1008
    %v1012 = vrot.slane %v1003, 6
    %v1014 = vadd.f32 %v733, %v1012
    %v1015 = vxor.u32 %v1010, 2147483648
    %v1016 = vmul.f32 %v1015, 1.442695
    %v1017 = vpow.pop %v1016
    %v1018 = vadd.f32 %v1017, 1.0
    %v1019 = vrcp.pop %v1018
    %v1020 = vmul.f32 1.0, %v1019
    %v1021 = vtanh.pop %v1010
    %v1023 = vrot.slane %v916, 6
    %v1025 = vmul.f32 %v1020, %v1023
    %1027 = vrot.lane.b32.xlu0 %v1021, 64
    %v1028 = vpop.permute.xlu0 %1027
    %v1030 = vmul.f32 %v1020, %v1028
    %1032 = vrot.lane.b32.xlu0 %v1030, 32
    %v1033 = vpop.permute.xlu0 %1032
    %v1035 = vadd.f32 %v1025, %v1033
    %v1036 = vtanh.pop %v1035
    %1038 = vrot.lane.b32.xlu0 %v1036, 64
    %v1039 = vpop.permute.xlu0 %1038
    %v1041 = vmul.f32 %v1020, %v1039
    %v1042 = vxor.u32 %v1014, 2147483648
    %v1043 = vmul.f32 %v1042, 1.442695
    %v1044 = vpow.pop %v1043
    %v1045 = vadd.f32 %v1044, 1.0
    %v1046 = vrcp.pop %v1045
    %v1047 = vmul.f32 1.0, %v1046
    %v1048 = vtanh.pop %v1014
    %v1050 = vrot.slane %v943, 2
    %v1052 = vmul.f32 %v1047, %v1050
    %1054 = vrot.lane.b32.xlu0 %v1048, 64
    %v1055 = vpop.permute.xlu0 %1054
    %v1057 = vmul.f32 %v1047, %v1055
    %1059 = vrot.lane.b32.xlu0 %v1057, 32
    %v1060 = vpop.permute.xlu0 %1059
    %v1062 = vadd.f32 %v1052, %v1060
    %v1063 = vtanh.pop %v1062
    %1065 = vrot.lane.b32.xlu0 %v1063, 64
    %v1066 = vpop.permute.xlu0 %1065
    %v1068 = vmul.f32 %v1047, %v1066
    %1070 = vrot.lane.b32.xlu0 %v1041, 32
    %v1071 = vpop.permute.xlu0 %1070
    %v1074 = vrot.slane %v1068, 6
    %1075 = vrot.lane.b32.xlu0 %v1074, 64
    %v1076 = vpop.permute.xlu0 %1075
    %v1078 = vsel %vm627, %v1071, %v1076
    %v1079 = vpack.c.bf16 %v1078, %v1078
    %v1081 = vrot.slane %v1079, 2
    %v1083 = vsel %vm843, %v1081, 0
    %1085 = vmatprep.subr.bf16.mxu0 %v828
    %1086 = vmatpush1.bf16.msra.mxu0 %v827
    %1087 = vmatprep.subr.bf16.mxu0 %v830
    %1088 = vmatpush1.bf16.msra.mxu0 %v829
    %1089 = vmatprep.subr.bf16.mxu0 %v832
    %1090 = vmatpush1.bf16.msra.mxu0 %v831
    %1091 = vmatprep.subr.bf16.mxu0 %v834
    %1092 = vmatpush1.bf16.msra.mxu0 %v833
    %1093 = vmatprep.subr.bf16.mxu0 0
    %1094 = vmatpush1.bf16.msra.mxu0 0
    %1095 = vmatprep.subr.bf16.mxu0 0
    %1096 = vmatpush1.bf16.msra.mxu0 0
    %1097 = vmatprep.subr.bf16.mxu0 0
    %1098 = vmatpush1.bf16.msra.mxu0 0
    %1099 = vmatprep.subr.bf16.mxu0 0
    %1100 = vmatpush1.bf16.msra.mxu0 0
    %1101 = vmatprep.subr.bf16.mxu0 0
    %1102 = vmatpush1.bf16.msra.mxu0 0
    %1103 = vmatprep.subr.bf16.mxu0 0
    %1104 = vmatpush1.bf16.msra.mxu0 0
    %1105 = vmatprep.subr.bf16.mxu0 0
    %1106 = vmatpush1.bf16.msra.mxu0 0
    %1107 = vmatprep.subr.bf16.mxu0 0
    %1108 = vmatpush1.bf16.msra.mxu0 0
    %1109 = vmatprep.subr.bf16.mxu0 0
    %1110 = vmatpush1.bf16.msra.mxu0 0
    %1111 = vmatprep.subr.bf16.mxu0 0
    %1112 = vmatpush1.bf16.msra.mxu0 0
    %1113 = vmatprep.subr.bf16.mxu0 0
    %1114 = vmatpush1.bf16.msra.mxu0 0
    %1115 = vmatprep.subr.bf16.mxu0 0
    %1116 = vmatpush1.bf16.msra.mxu0 0
    %1117 = vmatprep.mubr.bf16.mxu0 0
    %1118 = vmatmul.mubr.bf16.gmra.mrb[0].mxu0 %v1083
    %v1119 = vpop.f32.mrb[0].mxu0
    %v1120 = vadd.f32 0.0, %v1119
    %v1121 = vpop.f32.mrb[0].mxu0
    %v1122 = vadd.f32 0.0, %v1121
    %v1123 = vpop.f32.mrb[0].mxu0
    %v1124 = vpop.f32.mrb[0].mxu0
    %1125 = vdwg.mxu0
    %v1127 = vrot.slane %v1120, 2
    %v1129 = vadd.f32 %v666, %v1127
    %v1130 = vadd.f32 %v733, %v1122
    %v1131 = vxor.u32 %v1129, 2147483648
    %v1132 = vmul.f32 %v1131, 1.442695
    %v1133 = vpow.pop %v1132
    %v1134 = vadd.f32 %v1133, 1.0
    %v1135 = vrcp.pop %v1134
    %v1136 = vmul.f32 1.0, %v1135
    %v1137 = vtanh.pop %v1129
    %v1139 = vrot.slane %v1035, 6
    %v1141 = vmul.f32 %v1136, %v1139
    %1143 = vrot.lane.b32.xlu0 %v1137, 64
    %v1144 = vpop.permute.xlu0 %1143
    %v1146 = vmul.f32 %v1136, %v1144
    %1148 = vrot.lane.b32.xlu0 %v1146, 32
    %v1149 = vpop.permute.xlu0 %1148
    %v1151 = vadd.f32 %v1141, %v1149
    %v1152 = vtanh.pop %v1151
    %1154 = vrot.lane.b32.xlu0 %v1152, 64
    %v1155 = vpop.permute.xlu0 %1154
    %v1157 = vmul.f32 %v1136, %v1155
    %v1158 = vxor.u32 %v1130, 2147483648
    %v1159 = vmul.f32 %v1158, 1.442695
    %v1160 = vpow.pop %v1159
    %v1161 = vadd.f32 %v1160, 1.0
    %v1162 = vrcp.pop %v1161
    %v1163 = vmul.f32 1.0, %v1162
    %v1164 = vtanh.pop %v1130
    %v1166 = vrot.slane %v1062, 2
    %v1168 = vmul.f32 %v1163, %v1166
    %1170 = vrot.lane.b32.xlu0 %v1164, 64
    %v1171 = vpop.permute.xlu0 %1170
    %v1173 = vmul.f32 %v1163, %v1171
    %1175 = vrot.lane.b32.xlu0 %v1173, 32
    %v1176 = vpop.permute.xlu0 %1175
    %v1178 = vadd.f32 %v1168, %v1176
    %v1179 = vtanh.pop %v1178
    %1181 = vrot.lane.b32.xlu0 %v1179, 64
    %v1182 = vpop.permute.xlu0 %1181
    %v1184 = vmul.f32 %v1163, %v1182
    %1186 = vrot.lane.b32.xlu0 %v1157, 32
    %v1187 = vpop.permute.xlu0 %1186
    %v1190 = vrot.slane %v1184, 2
    %1191 = vrot.lane.b32.xlu0 %v1190, 64
    %v1192 = vpop.permute.xlu0 %1191
    %v1194 = vsel %vm627, %v1187, %v1192
    %v1195 = vpack.c.bf16 %v1194, %v1194
    %v1197 = vrot.slane %v1195, 3
    %v1199 = vsel %vm843, %v1197, 0
    %1201 = vmatprep.subr.bf16.mxu0 %v828
    %1202 = vmatpush1.bf16.msra.mxu0 %v827
    %1203 = vmatprep.subr.bf16.mxu0 %v830
    %1204 = vmatpush1.bf16.msra.mxu0 %v829
    %1205 = vmatprep.subr.bf16.mxu0 %v832
    %1206 = vmatpush1.bf16.msra.mxu0 %v831
    %1207 = vmatprep.subr.bf16.mxu0 %v834
    %1208 = vmatpush1.bf16.msra.mxu0 %v833
    %1209 = vmatprep.subr.bf16.mxu0 0
    %1210 = vmatpush1.bf16.msra.mxu0 0
    %1211 = vmatprep.subr.bf16.mxu0 0
    %1212 = vmatpush1.bf16.msra.mxu0 0
    %1213 = vmatprep.subr.bf16.mxu0 0
    %1214 = vmatpush1.bf16.msra.mxu0 0
    %1215 = vmatprep.subr.bf16.mxu0 0
    %1216 = vmatpush1.bf16.msra.mxu0 0
    %1217 = vmatprep.subr.bf16.mxu0 0
    %1218 = vmatpush1.bf16.msra.mxu0 0
    %1219 = vmatprep.subr.bf16.mxu0 0
    %1220 = vmatpush1.bf16.msra.mxu0 0
    %1221 = vmatprep.subr.bf16.mxu0 0
    %1222 = vmatpush1.bf16.msra.mxu0 0
    %1223 = vmatprep.subr.bf16.mxu0 0
    %1224 = vmatpush1.bf16.msra.mxu0 0
    %1225 = vmatprep.subr.bf16.mxu0 0
    %1226 = vmatpush1.bf16.msra.mxu0 0
    %1227 = vmatprep.subr.bf16.mxu0 0
    %1228 = vmatpush1.bf16.msra.mxu0 0
    %1229 = vmatprep.subr.bf16.mxu0 0
    %1230 = vmatpush1.bf16.msra.mxu0 0
    %1231 = vmatprep.subr.bf16.mxu0 0
    %1232 = vmatpush1.bf16.msra.mxu0 0
    %1233 = vmatprep.mubr.bf16.mxu0 0
    %1234 = vmatmul.mubr.bf16.gmra.mrb[0].mxu0 %v1199
    %v1235 = vpop.f32.mrb[0].mxu0
    %v1236 = vadd.f32 0.0, %v1235
    %v1237 = vpop.f32.mrb[0].mxu0
    %v1238 = vadd.f32 0.0, %v1237
    %v1239 = vpop.f32.mrb[0].mxu0
    %v1240 = vpop.f32.mrb[0].mxu0
    %1241 = vdwg.mxu0
    %v1242 = vadd.f32 %v669, %v1236
    %v1244 = vrot.slane %v1238, 2
    %v1246 = vadd.f32 %v730, %v1244
    %v1247 = vxor.u32 %v1242, 2147483648
    %v1248 = vmul.f32 %v1247, 1.442695
    %v1249 = vpow.pop %v1248
    %v1250 = vadd.f32 %v1249, 1.0
    %v1251 = vrcp.pop %v1250
    %v1252 = vmul.f32 1.0, %v1251
    %v1253 = vtanh.pop %v1242
    %v1255 = vrot.slane %v1151, 6
    %v1257 = vmul.f32 %v1252, %v1255
    %1259 = vrot.lane.b32.xlu0 %v1253, 64
    %v1260 = vpop.permute.xlu0 %1259
    %v1262 = vmul.f32 %v1252, %v1260
    %1264 = vrot.lane.b32.xlu0 %v1262, 32
    %v1265 = vpop.permute.xlu0 %1264
    %v1267 = vadd.f32 %v1257, %v1265
    %v1268 = vtanh.pop %v1267
    %1270 = vrot.lane.b32.xlu0 %v1268, 64
    %v1271 = vpop.permute.xlu0 %1270
    %v1273 = vmul.f32 %v1252, %v1271
    %v1274 = vxor.u32 %v1246, 2147483648
    %v1275 = vmul.f32 %v1274, 1.442695
    %v1276 = vpow.pop %v1275
    %v1277 = vadd.f32 %v1276, 1.0
    %v1278 = vrcp.pop %v1277
    %v1279 = vmul.f32 1.0, %v1278
    %v1280 = vtanh.pop %v1246
    %v1282 = vrot.slane %v1178, 2
    %v1284 = vmul.f32 %v1279, %v1282
    %1286 = vrot.lane.b32.xlu0 %v1280, 64
    %v1287 = vpop.permute.xlu0 %1286
    %v1289 = vmul.f32 %v1279, %v1287
    %1291 = vrot.lane.b32.xlu0 %v1289, 32
    %v1292 = vpop.permute.xlu0 %1291
    %v1294 = vadd.f32 %v1284, %v1292
    %v1295 = vtanh.pop %v1294
    %1297 = vrot.lane.b32.xlu0 %v1295, 64
    %v1298 = vpop.permute.xlu0 %1297
    %v1300 = vmul.f32 %v1279, %v1298
    %1302 = vrot.lane.b32.xlu0 %v1273, 32
    %v1303 = vpop.permute.xlu0 %1302
    %v1306 = vrot.slane %v1300, 6
    %1307 = vrot.lane.b32.xlu0 %v1306, 64
    %v1308 = vpop.permute.xlu0 %1307
    %v1310 = vsel %vm627, %v1303, %v1308
    %v1311 = vpack.c.bf16 %v1310, %v1310
    %v1313 = vsel %vm843, %v1311, 0
    %1315 = vmatprep.subr.bf16.mxu0 %v828
    %1316 = vmatpush1.bf16.msra.mxu0 %v827
    %1317 = vmatprep.subr.bf16.mxu0 %v830
    %1318 = vmatpush1.bf16.msra.mxu0 %v829
    %1319 = vmatprep.subr.bf16.mxu0 %v832
    %1320 = vmatpush1.bf16.msra.mxu0 %v831
    %1321 = vmatprep.subr.bf16.mxu0 %v834
    %1322 = vmatpush1.bf16.msra.mxu0 %v833
    %1323 = vmatprep.subr.bf16.mxu0 0
    %1324 = vmatpush1.bf16.msra.mxu0 0
    %1325 = vmatprep.subr.bf16.mxu0 0
    %1326 = vmatpush1.bf16.msra.mxu0 0
    %1327 = vmatprep.subr.bf16.mxu0 0
    %1328 = vmatpush1.bf16.msra.mxu0 0
    %1329 = vmatprep.subr.bf16.mxu0 0
    %1330 = vmatpush1.bf16.msra.mxu0 0
    %1331 = vmatprep.subr.bf16.mxu0 0
    %1332 = vmatpush1.bf16.msra.mxu0 0
    %1333 = vmatprep.subr.bf16.mxu0 0
    %1334 = vmatpush1.bf16.msra.mxu0 0
    %1335 = vmatprep.subr.bf16.mxu0 0
    %1336 = vmatpush1.bf16.msra.mxu0 0
    %1337 = vmatprep.subr.bf16.mxu0 0
    %1338 = vmatpush1.bf16.msra.mxu0 0
    %1339 = vmatprep.subr.bf16.mxu0 0
    %1340 = vmatpush1.bf16.msra.mxu0 0
    %1341 = vmatprep.subr.bf16.mxu0 0
    %1342 = vmatpush1.bf16.msra.mxu0 0
    %1343 = vmatprep.subr.bf16.mxu0 0
    %1344 = vmatpush1.bf16.msra.mxu0 0
    %1345 = vmatprep.subr.bf16.mxu0 0
    %1346 = vmatpush1.bf16.msra.mxu0 0
    %1347 = vmatprep.mubr.bf16.mxu0 0
    %1348 = vmatmul.mubr.bf16.gmra.mrb[0].mxu0 %v1313
    %v1349 = vpop.f32.mrb[0].mxu0
    %v1350 = vadd.f32 0.0, %v1349
    %v1351 = vpop.f32.mrb[0].mxu0
    %v1352 = vadd.f32 0.0, %v1351
    %v1353 = vpop.f32.mrb[0].mxu0
    %v1354 = vpop.f32.mrb[0].mxu0
    %1355 = vdwg.mxu0
    %v1357 = vrot.slane %v1350, 6
    %v1359 = vadd.f32 %v669, %v1357
    %v1361 = vrot.slane %v1352, 4
    %v1363 = vadd.f32 %v730, %v1361
    %v1364 = vxor.u32 %v1359, 2147483648
    %v1365 = vmul.f32 %v1364, 1.442695
    %v1366 = vpow.pop %v1365
    %v1367 = vadd.f32 %v1366, 1.0
    %v1368 = vrcp.pop %v1367
    %v1369 = vmul.f32 1.0, %v1368
    %v1370 = vtanh.pop %v1359
    %v1372 = vrot.slane %v1267, 6
    %v1374 = vmul.f32 %v1369, %v1372
    %1376 = vrot.lane.b32.xlu0 %v1370, 64
    %v1377 = vpop.permute.xlu0 %1376
    %v1379 = vmul.f32 %v1369, %v1377
    %1381 = vrot.lane.b32.xlu0 %v1379, 32
    %v1382 = vpop.permute.xlu0 %1381
    %v1384 = vadd.f32 %v1374, %v1382
    %v1385 = vtanh.pop %v1384
    %1387 = vrot.lane.b32.xlu0 %v1385, 64
    %v1388 = vpop.permute.xlu0 %1387
    %v1390 = vmul.f32 %v1369, %v1388
    %v1391 = vxor.u32 %v1363, 2147483648
    %v1392 = vmul.f32 %v1391, 1.442695
    %v1393 = vpow.pop %v1392
    %v1394 = vadd.f32 %v1393, 1.0
    %v1395 = vrcp.pop %v1394
    %v1396 = vmul.f32 1.0, %v1395
    %v1397 = vtanh.pop %v1363
    %v1399 = vrot.slane %v1294, 2
    %v1401 = vmul.f32 %v1396, %v1399
    %1403 = vrot.lane.b32.xlu0 %v1397, 64
    %v1404 = vpop.permute.xlu0 %1403
    %v1406 = vmul.f32 %v1396, %v1404
    %1408 = vrot.lane.b32.xlu0 %v1406, 32
    %v1409 = vpop.permute.xlu0 %1408
    %v1411 = vadd.f32 %v1401, %v1409
    %v1412 = vtanh.pop %v1411
    %1414 = vrot.lane.b32.xlu0 %v1412, 64
    %v1415 = vpop.permute.xlu0 %1414
    %v1417 = vmul.f32 %v1396, %v1415
    %1419 = vrot.lane.b32.xlu0 %v1390, 32
    %v1420 = vpop.permute.xlu0 %1419
    %v1423 = vrot.slane %v1417, 2
    %1424 = vrot.lane.b32.xlu0 %v1423, 64
    %v1425 = vpop.permute.xlu0 %1424
    %v1427 = vsel %vm627, %v1420, %v1425
    %v1428 = vpack.c.bf16 %v1427, %v1427
    %v1430 = vrot.slane %v1428, 1
    %v1432 = vsel %vm843, %v1430, 0
    %1434 = vmatprep.subr.bf16.mxu0 %v828
    %1435 = vmatpush1.bf16.msra.mxu0 %v827
    %1436 = vmatprep.subr.bf16.mxu0 %v830
    %1437 = vmatpush1.bf16.msra.mxu0 %v829
    %1438 = vmatprep.subr.bf16.mxu0 %v832
    %1439 = vmatpush1.bf16.msra.mxu0 %v831
    %1440 = vmatprep.subr.bf16.mxu0 %v834
    %1441 = vmatpush1.bf16.msra.mxu0 %v833
    %1442 = vmatprep.subr.bf16.mxu0 0
    %1443 = vmatpush1.bf16.msra.mxu0 0
    %1444 = vmatprep.subr.bf16.mxu0 0
    %1445 = vmatpush1.bf16.msra.mxu0 0
    %1446 = vmatprep.subr.bf16.mxu0 0
    %1447 = vmatpush1.bf16.msra.mxu0 0
    %1448 = vmatprep.subr.bf16.mxu0 0
    %1449 = vmatpush1.bf16.msra.mxu0 0
    %1450 = vmatprep.subr.bf16.mxu0 0
    %1451 = vmatpush1.bf16.msra.mxu0 0
    %1452 = vmatprep.subr.bf16.mxu0 0
    %1453 = vmatpush1.bf16.msra.mxu0 0
    %1454 = vmatprep.subr.bf16.mxu0 0
    %1455 = vmatpush1.bf16.msra.mxu0 0
    %1456 = vmatprep.subr.bf16.mxu0 0
    %1457 = vmatpush1.bf16.msra.mxu0 0
    %1458 = vmatprep.subr.bf16.mxu0 0
    %1459 = vmatpush1.bf16.msra.mxu0 0
    %1460 = vmatprep.subr.bf16.mxu0 0
    %1461 = vmatpush1.bf16.msra.mxu0 0
    %1462 = vmatprep.subr.bf16.mxu0 0
    %1463 = vmatpush1.bf16.msra.mxu0 0
    %1464 = vmatprep.subr.bf16.mxu0 0
    %1465 = vmatpush1.bf16.msra.mxu0 0
    %1466 = vmatprep.mubr.bf16.mxu0 0
    %1467 = vmatmul.mubr.bf16.gmra.mrb[0].mxu0 %v1432
    %v1468 = vpop.f32.mrb[0].mxu0
    %v1469 = vadd.f32 0.0, %v1468
    %v1470 = vpop.f32.mrb[0].mxu0
    %v1471 = vadd.f32 0.0, %v1470
    %v1472 = vpop.f32.mrb[0].mxu0
    %v1473 = vpop.f32.mrb[0].mxu0
    %1474 = vdwg.mxu0
    %v1476 = vrot.slane %v1469, 4
    %v1478 = vadd.f32 %v669, %v1476
    %v1480 = vrot.slane %v1471, 6
    %v1482 = vadd.f32 %v730, %v1480
    %v1483 = vxor.u32 %v1478, 2147483648
    %v1484 = vmul.f32 %v1483, 1.442695
    %v1485 = vpow.pop %v1484
    %v1486 = vadd.f32 %v1485, 1.0
    %v1487 = vrcp.pop %v1486
    %v1488 = vmul.f32 1.0, %v1487
    %v1489 = vtanh.pop %v1478
    %v1491 = vrot.slane %v1384, 6
    %v1493 = vmul.f32 %v1488, %v1491
    %1495 = vrot.lane.b32.xlu0 %v1489, 64
    %v1496 = vpop.permute.xlu0 %1495
    %v1498 = vmul.f32 %v1488, %v1496
    %1500 = vrot.lane.b32.xlu0 %v1498, 32
    %v1501 = vpop.permute.xlu0 %1500
    %v1503 = vadd.f32 %v1493, %v1501
    %v1504 = vtanh.pop %v1503
    %1506 = vrot.lane.b32.xlu0 %v1504, 64
    %v1507 = vpop.permute.xlu0 %1506
    %v1509 = vmul.f32 %v1488, %v1507
    %v1510 = vxor.u32 %v1482, 2147483648
    %v1511 = vmul.f32 %v1510, 1.442695
    %v1512 = vpow.pop %v1511
    %v1513 = vadd.f32 %v1512, 1.0
    %v1514 = vrcp.pop %v1513
    %v1515 = vmul.f32 1.0, %v1514
    %v1516 = vtanh.pop %v1482
    %v1518 = vrot.slane %v1411, 2
    %v1520 = vmul.f32 %v1515, %v1518
    %1522 = vrot.lane.b32.xlu0 %v1516, 64
    %v1523 = vpop.permute.xlu0 %1522
    %v1525 = vmul.f32 %v1515, %v1523
    %1527 = vrot.lane.b32.xlu0 %v1525, 32
    %v1528 = vpop.permute.xlu0 %1527
    %v1530 = vadd.f32 %v1520, %v1528
    %v1531 = vtanh.pop %v1530
    %1533 = vrot.lane.b32.xlu0 %v1531, 64
    %v1534 = vpop.permute.xlu0 %1533
    %v1536 = vmul.f32 %v1515, %v1534
    %1538 = vrot.lane.b32.xlu0 %v1509, 32
    %v1539 = vpop.permute.xlu0 %1538
    %v1542 = vrot.slane %v1536, 6
    %1543 = vrot.lane.b32.xlu0 %v1542, 64
    %v1544 = vpop.permute.xlu0 %1543
    %v1546 = vsel %vm627, %v1539, %v1544
    %v1547 = vpack.c.bf16 %v1546, %v1546
    %v1549 = vrot.slane %v1547, 2
    %v1551 = vsel %vm843, %v1549, 0
    %1553 = vmatprep.subr.bf16.mxu0 %v828
    %1554 = vmatpush1.bf16.msra.mxu0 %v827
    %1555 = vmatprep.subr.bf16.mxu0 %v830
    %1556 = vmatpush1.bf16.msra.mxu0 %v829
    %1557 = vmatprep.subr.bf16.mxu0 %v832
    %1558 = vmatpush1.bf16.msra.mxu0 %v831
    %1559 = vmatprep.subr.bf16.mxu0 %v834
    %1560 = vmatpush1.bf16.msra.mxu0 %v833
    %1561 = vmatprep.subr.bf16.mxu0 0
    %1562 = vmatpush1.bf16.msra.mxu0 0
    %1563 = vmatprep.subr.bf16.mxu0 0
    %1564 = vmatpush1.bf16.msra.mxu0 0
    %1565 = vmatprep.subr.bf16.mxu0 0
    %1566 = vmatpush1.bf16.msra.mxu0 0
    %1567 = vmatprep.subr.bf16.mxu0 0
    %1568 = vmatpush1.bf16.msra.mxu0 0
    %1569 = vmatprep.subr.bf16.mxu0 0
    %1570 = vmatpush1.bf16.msra.mxu0 0
    %1571 = vmatprep.subr.bf16.mxu0 0
    %1572 = vmatpush1.bf16.msra.mxu0 0
    %1573 = vmatprep.subr.bf16.mxu0 0
    %1574 = vmatpush1.bf16.msra.mxu0 0
    %1575 = vmatprep.subr.bf16.mxu0 0
    %1576 = vmatpush1.bf16.msra.mxu0 0
    %1577 = vmatprep.subr.bf16.mxu0 0
    %1578 = vmatpush1.bf16.msra.mxu0 0
    %1579 = vmatprep.subr.bf16.mxu0 0
    %1580 = vmatpush1.bf16.msra.mxu0 0
    %1581 = vmatprep.subr.bf16.mxu0 0
    %1582 = vmatpush1.bf16.msra.mxu0 0
    %1583 = vmatprep.subr.bf16.mxu0 0
    %1584 = vmatpush1.bf16.msra.mxu0 0
    %1585 = vmatprep.mubr.bf16.mxu0 0
    %1586 = vmatmul.mubr.bf16.gmra.mrb[0].mxu0 %v1551
    %v1587 = vpop.f32.mrb[0].mxu0
    %v1588 = vadd.f32 0.0, %v1587
    %v1589 = vpop.f32.mrb[0].mxu0
    %v1590 = vadd.f32 0.0, %v1589
    %v1591 = vpop.f32.mrb[0].mxu0
    %v1592 = vpop.f32.mrb[0].mxu0
    %1593 = vdwg.mxu0
    %v1595 = vrot.slane %v1588, 2
    %v1597 = vadd.f32 %v669, %v1595
    %v1598 = vadd.f32 %v730, %v1590
    %v1599 = vxor.u32 %v1597, 2147483648
    %v1600 = vmul.f32 %v1599, 1.442695
    %v1601 = vpow.pop %v1600
    %v1602 = vadd.f32 %v1601, 1.0
    %v1603 = vrcp.pop %v1602
    %v1604 = vmul.f32 1.0, %v1603
    %v1605 = vtanh.pop %v1597
    %v1607 = vrot.slane %v1503, 6
    %v1609 = vmul.f32 %v1604, %v1607
    %1611 = vrot.lane.b32.xlu0 %v1605, 64
    %v1612 = vpop.permute.xlu0 %1611
    %v1614 = vmul.f32 %v1604, %v1612
    %1616 = vrot.lane.b32.xlu0 %v1614, 32
    %v1617 = vpop.permute.xlu0 %1616
    %v1619 = vadd.f32 %v1609, %v1617
    %v1620 = vtanh.pop %v1619
    %1622 = vrot.lane.b32.xlu0 %v1620, 64
    %v1623 = vpop.permute.xlu0 %1622
    %v1625 = vmul.f32 %v1604, %v1623
    %v1626 = vxor.u32 %v1598, 2147483648
    %v1627 = vmul.f32 %v1626, 1.442695
    %v1628 = vpow.pop %v1627
    %v1629 = vadd.f32 %v1628, 1.0
    %v1630 = vrcp.pop %v1629
    %v1631 = vmul.f32 1.0, %v1630
    %v1632 = vtanh.pop %v1598
    %v1634 = vrot.slane %v1530, 2
    %v1636 = vmul.f32 %v1631, %v1634
    %1638 = vrot.lane.b32.xlu0 %v1632, 64
    %v1639 = vpop.permute.xlu0 %1638
    %v1641 = vmul.f32 %v1631, %v1639
    %1643 = vrot.lane.b32.xlu0 %v1641, 32
    %v1644 = vpop.permute.xlu0 %1643
    %v1646 = vadd.f32 %v1636, %v1644
    %v1647 = vtanh.pop %v1646
    %1649 = vrot.lane.b32.xlu0 %v1647, 64
    %v1650 = vpop.permute.xlu0 %1649
    %v1652 = vmul.f32 %v1631, %v1650
    %1654 = vrot.lane.b32.xlu0 %v1652, 64
    %v1655 = vpop.permute.xlu0 %1654
    %v1657 = vsel %vm627, %v794, %v1655
    %1658 = vrot.lane.b32.xlu0 %v1536, 64
    %v1659 = vpop.permute.xlu0 %1658
    %v1661 = vsel %vm627, %v952, %v1659
    %1662 = vrot.lane.b32.xlu0 %v1417, 64
    %v1663 = vpop.permute.xlu0 %1662
    %v1665 = vsel %vm627, %v1071, %v1663
    %1666 = vrot.lane.b32.xlu0 %v1300, 64
    %v1667 = vpop.permute.xlu0 %1666
    %v1669 = vsel %vm627, %v1187, %v1667
    %1670 = vrot.lane.b32.xlu0 %v1184, 64
    %v1671 = vpop.permute.xlu0 %1670
    %v1673 = vsel %vm627, %v1303, %v1671
    %1674 = vrot.lane.b32.xlu0 %v1068, 64
    %v1675 = vpop.permute.xlu0 %1674
    %v1677 = vsel %vm627, %v1420, %v1675
    %1678 = vrot.lane.b32.xlu0 %v949, 64
    %v1679 = vpop.permute.xlu0 %1678
    %v1681 = vsel %vm627, %v1539, %v1679
    %1683 = vrot.lane.b32.xlu0 %v1625, 32
    %v1684 = vpop.permute.xlu0 %1683
    %1686 = vrot.lane.b32.xlu0 %v791, 64
    %v1687 = vpop.permute.xlu0 %1686
    %v1689 = vsel %vm627, %v1684, %v1687
    %vm1690 = vcmask 1041408
    %v1691 = vsel %vm1690, %v1657, %v1661
    %v1692 = vsel %vm524, %v1691, %v1665
    %vm1693 = vcmask 1045504
    %v1694 = vsel %vm1693, %v1692, %v1669
    %v1695 = vsel %vm1690, %v1673, %v1677
    %v1696 = vsel %vm524, %v1695, %v1681
    %v1697 = vsel %vm1693, %v1696, %v1689
    %v1698 = vld [vmem:[%s25] sm:$0xf]
    %v1699 = vld [vmem:[%s25 + $0x4] sm:$0xf]
    %v1700 = vld [vmem:[%s25 + $0x8] sm:$0xf]
    %v1701 = vld [vmem:[%s25 + $0xc] sm:$0xf]
    %v1702 = vld [vmem:[%s25 + $0x10] sm:$0xf]
    %v1703 = vld [vmem:[%s25 + $0x14] sm:$0xf]
    %v1704 = vld [vmem:[%s25 + $0x18] sm:$0xf]
    %v1705 = vld [vmem:[%s25 + $0x1c] sm:$0xf]
    %v1706 = vld [vmem:[%s27] sm:$0x1]
    %v1707 = vpack.c.bf16 %v1697, %v1694
    %v1709 = vlaneseq
    %v1710 = vshrl.u32 %v1709, 7
    %v1711 = vsub.s32 0, %v1710
    %v1712 = vrot.slane %v1706, %v1711
    %v1722 = vunpack.c.l.b16 %v1698
    %v1723 = vunpack.c.l.b16 %v1699
    %v1724 = vunpack.c.l.b16 %v1700
    %v1725 = vunpack.c.l.b16 %v1701
    %v1726 = vunpack.c.l.b16 %v1702
    %v1727 = vunpack.c.l.b16 %v1703
    %v1728 = vunpack.c.l.b16 %v1704
    %v1729 = vunpack.c.l.b16 %v1705
    %v1730 = vpack.c.b16 %v1723, %v1722
    %v1731 = vpack.c.b16 %v1725, %v1724
    %v1732 = vpack.c.b16 %v1727, %v1726
    %v1733 = vpack.c.b16 %v1729, %v1728
    %v1739 = vsel %vm843, %v1707, 0
    %1741 = vmatprep.subr.bf16.mxu0 0
    %1742 = vmatpush1.bf16.msra.mxu0 %v1730
    %1743 = vmatprep.subr.bf16.mxu0 0
    %1744 = vmatpush1.bf16.msra.mxu0 %v1731
    %1745 = vmatprep.subr.bf16.mxu0 0
    %1746 = vmatpush1.bf16.msra.mxu0 %v1732
    %1747 = vmatprep.subr.bf16.mxu0 0
    %1748 = vmatpush1.bf16.msra.mxu0 %v1733
    %1749 = vmatprep.subr.bf16.mxu0 0
    %1750 = vmatpush1.bf16.msra.mxu0 0
    %1751 = vmatprep.subr.bf16.mxu0 0
    %1752 = vmatpush1.bf16.msra.mxu0 0
    %1753 = vmatprep.subr.bf16.mxu0 0
    %1754 = vmatpush1.bf16.msra.mxu0 0
    %1755 = vmatprep.subr.bf16.mxu0 0
    %1756 = vmatpush1.bf16.msra.mxu0 0
    %1757 = vmatprep.subr.bf16.mxu0 0
    %1758 = vmatpush1.bf16.msra.mxu0 0
    %1759 = vmatprep.subr.bf16.mxu0 0
    %1760 = vmatpush1.bf16.msra.mxu0 0
    %1761 = vmatprep.subr.bf16.mxu0 0
    %1762 = vmatpush1.bf16.msra.mxu0 0
    %1763 = vmatprep.subr.bf16.mxu0 0
    %1764 = vmatpush1.bf16.msra.mxu0 0
    %1765 = vmatprep.subr.bf16.mxu0 0
    %1766 = vmatpush1.bf16.msra.mxu0 0
    %1767 = vmatprep.subr.bf16.mxu0 0
    %1768 = vmatpush1.bf16.msra.mxu0 0
    %1769 = vmatprep.subr.bf16.mxu0 0
    %1770 = vmatpush1.bf16.msra.mxu0 0
    %1771 = vmatprep.subr.bf16.mxu0 0
    %1772 = vmatpush1.bf16.msra.mxu0 0
    %1773 = vmatprep.mubr.bf16.mxu0 0
    %1774 = vmatmul.mubr.bf16.gmra.mrb[0].mxu0 %v1739
    %v1775 = vpop.f32.mrb[0].mxu0
    %v1776 = vadd.f32 %v1712, %v1775
    %v1777 = vpop.f32.mrb[0].mxu0
    %v1778 = vpop.f32.mrb[0].mxu0
    %v1779 = vadd.f32 %v1712, %v1778
    %v1780 = vpop.f32.mrb[0].mxu0
    %1781 = vdwg.mxu0
    %v1783 = vrot.slane %v514, 1
    %vm1785 = vcmask 1040384
    %v1786 = vld [vmem:[%s29] sm:$0xf]
    %v1787 = vld [vmem:[%s29 + $0x4] sm:$0xf]
    %v1788 = vld [vmem:[%s29 + $0x8] sm:$0xf]
    %v1789 = vld [vmem:[%s29 + $0xc] sm:$0xf]
    %v1790 = vld [vmem:[%s31] sm:$0x1]
    %v1791 = vpack.c.bf16 %v1783, %v1783
    %v1793 = vlaneseq
    %v1794 = vshrl.u32 %v1793, 7
    %v1795 = vsub.s32 0, %v1794
    %v1796 = vrot.slane %v1790, %v1795
    %v1802 = vunpack.c.l.b16 %v1786
    %v1803 = vunpack.c.l.b16 %v1787
    %v1804 = vunpack.c.l.b16 %v1788
    %v1805 = vunpack.c.l.b16 %v1789
    %v1806 = vpack.c.b16 %v1803, %v1802
    %v1807 = vpack.c.b16 %v1805, %v1804
    %v1811 = vsel %vm627, %v1791, 0
    %1813 = vmatprep.subr.bf16.mxu0 0
    %1814 = vmatpush1.bf16.msra.mxu0 %v1806
    %1815 = vmatprep.subr.bf16.mxu0 0
    %1816 = vmatpush1.bf16.msra.mxu0 %v1807
    %1817 = vmatprep.subr.bf16.mxu0 0
    %1818 = vmatpush1.bf16.msra.mxu0 0
    %1819 = vmatprep.subr.bf16.mxu0 0
    %1820 = vmatpush1.bf16.msra.mxu0 0
    %1821 = vmatprep.subr.bf16.mxu0 0
    %1822 = vmatpush1.bf16.msra.mxu0 0
    %1823 = vmatprep.subr.bf16.mxu0 0
    %1824 = vmatpush1.bf16.msra.mxu0 0
    %1825 = vmatprep.subr.bf16.mxu0 0
    %1826 = vmatpush1.bf16.msra.mxu0 0
    %1827 = vmatprep.subr.bf16.mxu0 0
    %1828 = vmatpush1.bf16.msra.mxu0 0
    %1829 = vmatprep.subr.bf16.mxu0 0
    %1830 = vmatpush1.bf16.msra.mxu0 0
    %1831 = vmatprep.subr.bf16.mxu0 0
    %1832 = vmatpush1.bf16.msra.mxu0 0
    %1833 = vmatprep.subr.bf16.mxu0 0
    %1834 = vmatpush1.bf16.msra.mxu0 0
    %1835 = vmatprep.subr.bf16.mxu0 0
    %1836 = vmatpush1.bf16.msra.mxu0 0
    %1837 = vmatprep.subr.bf16.mxu0 0
    %1838 = vmatpush1.bf16.msra.mxu0 0
    %1839 = vmatprep.subr.bf16.mxu0 0
    %1840 = vmatpush1.bf16.msra.mxu0 0
    %1841 = vmatprep.subr.bf16.mxu0 0
    %1842 = vmatpush1.bf16.msra.mxu0 0
    %1843 = vmatprep.subr.bf16.mxu0 0
    %1844 = vmatpush1.bf16.msra.mxu0 0
    %1845 = vmatprep.mubr.bf16.mxu0 0
    %1846 = vmatmul.mubr.bf16.gmra.mrb[0].mxu0 %v1811
    %v1847 = vpop.f32.mrb[0].mxu0
    %v1848 = vadd.f32 %v1796, %v1847
    %v1849 = vpop.f32.mrb[0].mxu0
    %v1850 = vpop.f32.mrb[0].mxu0
    %v1851 = vpop.f32.mrb[0].mxu0
    %1852 = vdwg.mxu0
    %v1853 = vld [vmem:[%s3] sm:$0xff]
    %v1854 = vld [vmem:[%s3 + $0x8] sm:$0xff]
    %v1855 = vld [vmem:[%s33] sm:$0xf]
    %v1856 = vld [vmem:[%s33 + $0x4] sm:$0xf]
    %v1857 = vld [vmem:[%s33 + $0x8] sm:$0xf]
    %v1858 = vld [vmem:[%s33 + $0xc] sm:$0xf]
    %v1859 = vld [vmem:[%s33 + $0x10] sm:$0xf]
    %v1860 = vld [vmem:[%s33 + $0x14] sm:$0xf]
    %v1861 = vld [vmem:[%s33 + $0x18] sm:$0xf]
    %v1862 = vld [vmem:[%s33 + $0x1c] sm:$0xf]
    %v1863 = vld [vmem:[#allocation2] sm:$0x1]
    %v1864 = vpack.c.bf16 %v1854, %v1853
    %v1866 = vlaneseq
    %v1867 = vshrl.u32 %v1866, 7
    %v1868 = vsub.s32 0, %v1867
    %v1869 = vrot.slane %v1863, %v1868
    %v1879 = vunpack.c.l.b16 %v1855
    %v1880 = vunpack.c.l.b16 %v1856
    %v1881 = vunpack.c.l.b16 %v1857
    %v1882 = vunpack.c.l.b16 %v1858
    %v1883 = vunpack.c.l.b16 %v1859
    %v1884 = vunpack.c.l.b16 %v1860
    %v1885 = vunpack.c.l.b16 %v1861
    %v1886 = vunpack.c.l.b16 %v1862
    %v1887 = vpack.c.b16 %v1880, %v1879
    %v1888 = vpack.c.b16 %v1882, %v1881
    %v1889 = vpack.c.b16 %v1884, %v1883
    %v1890 = vpack.c.b16 %v1886, %v1885
    %v1896 = vsel %vm843, %v1864, 0
    %1898 = vmatprep.subr.bf16.mxu0 0
    %1899 = vmatpush1.bf16.msra.mxu0 %v1887
    %1900 = vmatprep.subr.bf16.mxu0 0
    %1901 = vmatpush1.bf16.msra.mxu0 %v1888
    %1902 = vmatprep.subr.bf16.mxu0 0
    %1903 = vmatpush1.bf16.msra.mxu0 %v1889
    %1904 = vmatprep.subr.bf16.mxu0 0
    %1905 = vmatpush1.bf16.msra.mxu0 %v1890
    %1906 = vmatprep.subr.bf16.mxu0 0
    %1907 = vmatpush1.bf16.msra.mxu0 0
    %1908 = vmatprep.subr.bf16.mxu0 0
    %1909 = vmatpush1.bf16.msra.mxu0 0
    %1910 = vmatprep.subr.bf16.mxu0 0
    %1911 = vmatpush1.bf16.msra.mxu0 0
    %1912 = vmatprep.subr.bf16.mxu0 0
    %1913 = vmatpush1.bf16.msra.mxu0 0
    %1914 = vmatprep.subr.bf16.mxu0 0
    %1915 = vmatpush1.bf16.msra.mxu0 0
    %1916 = vmatprep.subr.bf16.mxu0 0
    %1917 = vmatpush1.bf16.msra.mxu0 0
    %1918 = vmatprep.subr.bf16.mxu0 0
    %1919 = vmatpush1.bf16.msra.mxu0 0
    %1920 = vmatprep.subr.bf16.mxu0 0
    %1921 = vmatpush1.bf16.msra.mxu0 0
    %1922 = vmatprep.subr.bf16.mxu0 0
    %1923 = vmatpush1.bf16.msra.mxu0 0
    %1924 = vmatprep.subr.bf16.mxu0 0
    %1925 = vmatpush1.bf16.msra.mxu0 0
    %1926 = vmatprep.subr.bf16.mxu0 0
    %1927 = vmatpush1.bf16.msra.mxu0 0
    %1928 = vmatprep.subr.bf16.mxu0 0
    %1929 = vmatpush1.bf16.msra.mxu0 0
    %1930 = vmatprep.mubr.bf16.mxu0 0
    %1931 = vmatmul.mubr.bf16.gmra.mrb[0].mxu0 %v1896
    %v1932 = vpop.f32.mrb[0].mxu0
    %v1933 = vadd.f32 %v1869, %v1932
    %v1934 = vpop.f32.mrb[0].mxu0
    %v1935 = vpop.f32.mrb[0].mxu0
    %v1936 = vadd.f32 %v1869, %v1935
    %v1937 = vpop.f32.mrb[0].mxu0
    %1938 = vdwg.mxu0
    %v1939 = vand.u32 2147483647, %v1848
    %vm1940 = vcmask 253952
    %v1941 = vsel %vm1940, %v1939, 0.0
    %1942 = vadd.xlane.f32.xlu0 %v1941
    %v1943 = vpop.xlane.xlu0 %1942
    %vm1944 = vcmp.eq.f32.partialorder %v1943, 0.0
    %v1945 = vsel %vm1944, -1e+09, 0.0
    %vm1946 = vcmask 254977
    %v1947 = vsel %vm1946, %v1939, 0.0
    %1948 = vadd.xlane.f32.xlu0 %v1947
    %v1949 = vpop.xlane.xlu0 %1948
    %vm1950 = vcmp.eq.f32.partialorder %v1949, 0.0
    %v1951 = vsel %vm1950, -1e+09, 0.0
    %v1952 = vld [vmem:[%s5] sm:$0x3]
    %v1953 = vld [vmem:[%s7] sm:$0x3]
    %1955 = vrot.lane.b32.xlu0 %v1952, 1
    %v1956 = vpop.permute.xlu0 %1955
    %vm1958 = vcmask 7168
    %v1959 = vsel %vm1958, %v1945, %v1956
    %v1960 = vrot.slane %v1952, 1
    %1961 = vrot.lane.b32.xlu0 %v1960, 1
    %v1962 = vpop.permute.xlu0 %1961
    %v1964 = vsel %vm1958, %v1945, %v1962
    %v1966 = vrot.slane %v1953, 7
    %1967 = vrot.lane.b32.xlu0 %v1966, 1
    %v1968 = vpop.permute.xlu0 %1967
    %v1970 = vsel %vm1958, %v1951, %v1968
    %1971 = vrot.lane.b32.xlu0 %v1953, 1
    %v1972 = vpop.permute.xlu0 %1971
    %v1974 = vsel %vm1958, %v1951, %v1972
    %v1976 = vrot.slane %v1776, 7
    %v1978 = vrot.slane %v1776, 1
    %v1980 = vrot.slane %v1776, 2
    %v1983 = vrot.slane %v1779, 3
    %v1985 = vrot.slane %v1779, 4
    %v1987 = vrot.slane %v1779, 5
    %v1989 = vrot.slane %v1779, 6
    %v1992 = vrot.slane %v1848, 7
    %v1994 = vsel %vm1785, %v1848, %v1976
    %v1995 = vsel %vm1690, %v1994, %v1776
    %vm1996 = vcmask 1042432
    %v1997 = vsel %vm1996, %v1995, %v1978
    %v1998 = vsel %vm524, %v1997, %v1980
    %vm1999 = vcmask 1044480
    %v2000 = vsel %vm1999, %v1998, %v1983
    %v2001 = vsel %vm1693, %v2000, %v1985
    %vm2002 = vcmask 1046528
    %v2003 = vsel %vm2002, %v2001, %v1987
    %v2004 = vsel %vm1785, %v1989, %v1992
    %v2005 = vsel %vm1690, %v2004, %v1976
    %v2006 = vsel %vm1996, %v2005, %v1776
    %v2007 = vsel %vm524, %v2006, %v1978
    %v2008 = vsel %vm1999, %v2007, %v1980
    %v2009 = vsel %vm1693, %v2008, %v1983
    %v2010 = vsel %vm2002, %v2009, %v1985
    %v2011 = vsel %vm1785, %v1987, %v1989
    %v2012 = vrot.slane %v1848, 1
    %v2015 = vrot.slane %v1933, 7
    %v2018 = vrot.slane %v1936, 6
    %v2020 = vsel %vm1785, %v2012, %v2015
    %v2021 = vsel %vm1785, %v2015, %v1848
    %v2022 = vsel %vm1690, %v2021, %v2018
    %v2023 = vld [vmem:[%s9] sm:$0xff]
    %v2024 = vld [vmem:[%s9 + $0x8] sm:$0xff]
    %v2025 = vld [vmem:[%s9 + $0x10] sm:$0xff]
    %v2026 = vld [vmem:[%s9 + $0x18] sm:$0xff]
    %v2027 = vld [vmem:[%s9 + $0x20] sm:$0xf]
    %2029 = vrot.lane.b32.xlu0 %v1959, 9
    %v2030 = vpop.permute.xlu0 %2029
    %2032 = vrot.lane.b32.xlu0 %v1959, 18
    %v2033 = vpop.permute.xlu0 %2032
    %2035 = vrot.lane.b32.xlu0 %v1959, 27
    %v2036 = vpop.permute.xlu0 %2035
    %vm2038 = vcmask 72704
    %v2039 = vsel %vm2038, %v1959, %v2030
    %vm2040 = vcmask 146432
    %v2041 = vsel %vm2040, %v2039, %v2033
    %vm2042 = vcmask 220160
    %v2043 = vsel %vm2042, %v2041, %v2036
    %2045 = vrot.lane.b32.xlu0 %v1964, 9
    %v2046 = vpop.permute.xlu0 %2045
    %2048 = vrot.lane.b32.xlu0 %v1964, 18
    %v2049 = vpop.permute.xlu0 %2048
    %2051 = vrot.lane.b32.xlu0 %v1964, 27
    %v2052 = vpop.permute.xlu0 %2051
    %v2054 = vsel %vm2038, %v1964, %v2046
    %v2055 = vsel %vm2040, %v2054, %v2049
    %v2056 = vsel %vm2042, %v2055, %v2052
    %v2057 = vld [vmem:[%s37] sm:$0xf]
    %v2058 = vld [vmem:[%s37 + $0x4] sm:$0xf]
    %v2059 = vld [vmem:[%s37 + $0x8] sm:$0xf]
    %v2060 = vld [vmem:[%s37 + $0xc] sm:$0xf]
    %v2061 = vld [vmem:[%s39] sm:$0x1]
    %v2062 = vpack.c.bf16 %v2010, %v2003
    %v2063 = vpack.c.bf16 %v2011, %v2011
    %v2065 = vlaneseq
    %v2066 = vshrl.u32 %v2065, 7
    %v2067 = vsub.s32 0, %v2066
    %v2068 = vrot.slane %v2061, %v2067
    %v2074 = vunpack.c.l.b16 %v2057
    %v2075 = vunpack.c.l.b16 %v2058
    %v2076 = vunpack.c.l.b16 %v2059
    %v2077 = vunpack.c.l.b16 %v2060
    %v2078 = vpack.c.b16 %v2075, %v2074
    %v2079 = vpack.c.b16 %v2077, %v2076
    %v2083 = vsel %vm627, %v2062, 0
    %v2086 = vsel %vm627, %v2063, 0
    %2088 = vmatprep.subr.bf16.mxu0 0
    %2089 = vmatpush1.bf16.msra.mxu0 %v2078
    %2090 = vmatprep.subr.bf16.mxu0 0
    %2091 = vmatpush1.bf16.msra.mxu0 %v2079
    %2092 = vmatprep.subr.bf16.mxu0 0
    %2093 = vmatpush1.bf16.msra.mxu0 0
    %2094 = vmatprep.subr.bf16.mxu0 0
    %2095 = vmatpush1.bf16.msra.mxu0 0
    %2096 = vmatprep.subr.bf16.mxu0 0
    %2097 = vmatpush1.bf16.msra.mxu0 0
    %2098 = vmatprep.subr.bf16.mxu0 0
    %2099 = vmatpush1.bf16.msra.mxu0 0
    %2100 = vmatprep.subr.bf16.mxu0 0
    %2101 = vmatpush1.bf16.msra.mxu0 0
    %2102 = vmatprep.subr.bf16.mxu0 0
    %2103 = vmatpush1.bf16.msra.mxu0 0
    %2104 = vmatprep.subr.bf16.mxu0 0
    %2105 = vmatpush1.bf16.msra.mxu0 0
    %2106 = vmatprep.subr.bf16.mxu0 0
    %2107 = vmatpush1.bf16.msra.mxu0 0
    %2108 = vmatprep.subr.bf16.mxu0 0
    %2109 = vmatpush1.bf16.msra.mxu0 0
    %2110 = vmatprep.subr.bf16.mxu0 0
    %2111 = vmatpush1.bf16.msra.mxu0 0
    %2112 = vmatprep.subr.bf16.mxu0 0
    %2113 = vmatpush1.bf16.msra.mxu0 0
    %2114 = vmatprep.subr.bf16.mxu0 0
    %2115 = vmatpush1.bf16.msra.mxu0 0
    %2116 = vmatprep.subr.bf16.mxu0 0
    %2117 = vmatpush1.bf16.msra.mxu0 0
    %2118 = vmatprep.subr.bf16.mxu0 0
    %2119 = vmatpush1.bf16.msra.mxu0 0
    %2120 = vmatprep.mubr.bf16.mxu0 0
    %2121 = vmatmul.mubr.bf16.gmra.mrb[0].mxu0 %v2083
    %v2122 = vpop.f32.mrb[0].mxu0
    %v2123 = vadd.f32 %v2068, %v2122
    %v2124 = vpop.f32.mrb[0].mxu0
    %v2125 = vpop.f32.mrb[0].mxu0
    %v2126 = vadd.f32 %v2068, %v2125
    %v2127 = vpop.f32.mrb[0].mxu0
    %2128 = vmatprep.mubr.bf16.mxu0 0
    %2129 = vmatmul.mubr.bf16.gmra.mrb[0].mxu0 %v2086
    %v2130 = vpop.f32.mrb[0].mxu0
    %v2131 = vadd.f32 %v2068, %v2130
    %v2132 = vpop.f32.mrb[0].mxu0
    %v2133 = vpop.f32.mrb[0].mxu0
    %v2134 = vpop.f32.mrb[0].mxu0
    %2135 = vdwg.mxu0
    %v2138 = vrot.slane %v2123, 7
    %v2139 = vrot.slane %v2126, 7
    %v2140 = vsel %vm1785, %v2138, %v2139
    %2141 = vrot.lane.b32.xlu0 %v2138, 120
    %v2142 = vpop.permute.xlu0 %2141
    %2143 = vrot.lane.b32.xlu0 %v2140, 120
    %v2144 = vpop.permute.xlu0 %2143
    %v2147 = vrot.slane %v2123, 6
    %v2148 = vrot.slane %v2126, 6
    %v2149 = vsel %vm1690, %v2147, %v2148
    %2150 = vrot.lane.b32.xlu0 %v2147, 112
    %v2151 = vpop.permute.xlu0 %2150
    %2152 = vrot.lane.b32.xlu0 %v2149, 112
    %v2153 = vpop.permute.xlu0 %2152
    %v2156 = vrot.slane %v2123, 5
    %v2157 = vrot.slane %v2126, 5
    %v2158 = vsel %vm1996, %v2156, %v2157
    %2159 = vrot.lane.b32.xlu0 %v2156, 104
    %v2160 = vpop.permute.xlu0 %2159
    %2161 = vrot.lane.b32.xlu0 %v2158, 104
    %v2162 = vpop.permute.xlu0 %2161
    %v2164 = vsel %vm1785, %v2126, %v2142
    %v2165 = vsel %vm1690, %v2144, %v2151
    %v2166 = vsel %vm1996, %v2153, %v2160
    %2170 = vrot.lane.b32.xlu0 %v2123, 96
    %v2171 = vpop.permute.xlu0 %2170
    %2172 = vrot.lane.b32.xlu0 %v2164, 96
    %v2173 = vpop.permute.xlu0 %2172
    %2174 = vrot.lane.b32.xlu0 %v2165, 96
    %v2175 = vpop.permute.xlu0 %2174
    %2176 = vrot.lane.b32.xlu0 %v2166, 96
    %v2177 = vpop.permute.xlu0 %2176
    %2178 = vrot.lane.b32.xlu0 %v2162, 96
    %v2179 = vpop.permute.xlu0 %2178
    %vm2180 = vcmask 64512
    %v2181 = vsel %vm2180, %v2123, 0
    %v2183 = vsel %vm2180, %v2164, 0
    %v2185 = vsel %vm2180, %v2165, 0
    %v2187 = vsel %vm2180, %v2166, 0
    %v2189 = vsel %vm2180, %v2162, 0
    %v2191 = vsel %vm2180, %v2171, 0
    %v2193 = vsel %vm2180, %v2173, 0
    %v2195 = vsel %vm2180, %v2175, 0
    %v2197 = vsel %vm2180, %v2177, 0
    %v2199 = vsel %vm2180, %v2179, 0
    %2201 = vmatprep.subr.mxu0 0.0
    %2202 = vmatpush1.xpose.msra.mxu0 %v2191
    %2203 = vmatprep.subr.mxu0 0.0
    %2204 = vmatpush1.xpose.msra.mxu0 %v2193
    %2205 = vmatprep.subr.mxu0 0.0
    %2206 = vmatpush1.xpose.msra.mxu0 %v2195
    %2207 = vmatprep.subr.mxu0 0.0
    %2208 = vmatpush1.xpose.msra.mxu0 %v2197
    %2209 = vmatprep.subr.mxu0 0.0
    %2210 = vmatpush1.xpose.msra.mxu0 %v2199
    %2211 = vmatprep.subr.mxu0 0.0
    %2212 = vmatpush1.xpose.msra.mxu0 0.0
    %2213 = vmatprep.subr.mxu0 0.0
    %2214 = vmatpush1.xpose.msra.mxu0 0.0
    %2215 = vmatprep.subr.mxu0 0.0
    %2216 = vmatpush1.xpose.msra.mxu0 0.0
    %2217 = vmatprep.subr.mxu0 0.0
    %2218 = vmatpush1.xpose.msra.mxu0 0.0
    %2219 = vmatprep.subr.mxu0 0.0
    %2220 = vmatpush1.xpose.msra.mxu0 0.0
    %2221 = vmatprep.subr.mxu0 0.0
    %2222 = vmatpush1.xpose.msra.mxu0 0.0
    %2223 = vmatprep.subr.mxu0 0.0
    %2224 = vmatpush1.xpose.msra.mxu0 0.0
    %2225 = vmatprep.subr.mxu0 0.0
    %2226 = vmatpush1.xpose.msra.mxu0 0.0
    %2227 = vmatprep.subr.mxu0 0.0
    %2228 = vmatpush1.xpose.msra.mxu0 0.0
    %2229 = vmatprep.subr.mxu0 0.0
    %2230 = vmatpush1.xpose.msra.mxu0 0.0
    %2231 = vmatprep.subr.mxu0 0.0
    %2232 = vmatpush1.xpose.msra.mxu0 0.0
    %2233 = vmatprep.subr.mxu0 0.0
    %2234 = vmatpush1.xpose.msra.mxu0 0.0
    %2235 = vmatprep.subr.mxu0 0.0
    %2236 = vmatpush1.xpose.msra.mxu0 0.0
    %2237 = vmatprep.subr.mxu0 0.0
    %2238 = vmatpush1.xpose.msra.mxu0 0.0
    %2239 = vmatprep.subr.mxu0 0.0
    %2240 = vmatpush1.xpose.msra.mxu0 0.0
    %2241 = vmatprep.subr.mxu0 0.0
    %2242 = vmatpush1.xpose.msra.mxu0 0.0
    %2243 = vmatprep.subr.mxu0 0.0
    %2244 = vmatpush1.xpose.msra.mxu0 0.0
    %2245 = vmatprep.subr.mxu0 0.0
    %2246 = vmatpush1.xpose.msra.mxu0 0.0
    %2247 = vmatprep.subr.mxu0 0.0
    %2248 = vmatpush1.xpose.msra.mxu0 0.0
    %2249 = vmatprep.subr.mxu0 0.0
    %2250 = vmatpush1.xpose.msra.mxu0 0.0
    %2251 = vmatprep.subr.mxu0 0.0
    %2252 = vmatpush1.xpose.msra.mxu0 0.0
    %2253 = vmatprep.subr.mxu0 0.0
    %2254 = vmatpush1.xpose.msra.mxu0 0.0
    %2255 = vmatprep.subr.mxu0 0.0
    %2256 = vmatpush1.xpose.msra.mxu0 0.0
    %2257 = vmatprep.subr.mxu0 0.0
    %2258 = vmatpush1.xpose.msra.mxu0 0.0
    %2259 = vmatprep.subr.mxu0 0.0
    %2260 = vmatpush1.xpose.msra.mxu0 0.0
    %2261 = vmatprep.subr.mxu0 0.0
    %2262 = vmatpush1.xpose.msra.mxu0 0.0
    %2263 = vmatprep.subr.mxu0 0.0
    %2264 = vmatpush1.xpose.msra.mxu0 0.0
    %2265 = vmatprep.mubr.f32.mxu0 0.0
    %2266 = vmatmul.mubr.f32.gmra.mrb[0].mxu0 %v2181
    %v2267 = vpop.f32.mrb[0].mxu0
    %v2268 = vadd.f32 0.0, %v2267
    %v2269 = vpop.f32.mrb[0].mxu0
    %2270 = vmatprep.mubr.f32.mxu0 0.0
    %2271 = vmatmul.mubr.f32.gmra.mrb[0].mxu0 %v2183
    %v2272 = vpop.f32.mrb[0].mxu0
    %v2273 = vadd.f32 0.0, %v2272
    %v2274 = vpop.f32.mrb[0].mxu0
    %2275 = vmatprep.mubr.f32.mxu0 0.0
    %2276 = vmatmul.mubr.f32.gmra.mrb[0].mxu0 %v2185
    %v2277 = vpop.f32.mrb[0].mxu0
    %v2278 = vadd.f32 0.0, %v2277
    %v2279 = vpop.f32.mrb[0].mxu0
    %2280 = vmatprep.mubr.f32.mxu0 0.0
    %2281 = vmatmul.mubr.f32.gmra.mrb[0].mxu0 %v2187
    %v2282 = vpop.f32.mrb[0].mxu0
    %v2283 = vadd.f32 0.0, %v2282
    %v2284 = vpop.f32.mrb[0].mxu0
    %2285 = vmatprep.mubr.f32.mxu0 0.0
    %2286 = vmatmul.mubr.f32.gmra.mrb[0].mxu0 %v2189
    %v2287 = vpop.f32.mrb[0].mxu0
    %v2288 = vadd.f32 0.0, %v2287
    %v2289 = vpop.f32.mrb[0].mxu0
    %2290 = vdwg.mxu0
    %v2291 = vmul.f32 %v2268, 0.35355338
    %v2292 = vmul.f32 %v2273, 0.35355338
    %v2293 = vmul.f32 %v2278, 0.35355338
    %v2294 = vmul.f32 %v2283, 0.35355338
    %v2295 = vmul.f32 %v2288, 0.35355338
    %v2296 = vadd.f32 %v2291, %v2023
    %v2297 = vadd.f32 %v2292, %v2024
    %v2298 = vadd.f32 %v2293, %v2025
    %v2299 = vadd.f32 %v2294, %v2026
    %v2300 = vadd.f32 %v2295, %v2027
    %v2301 = vlaneseq
    %v2302 = vshrl.u32 %v2301, 7
    %v2303 = vsub.s32 0, %v2302
    %v2304 = vrot.slane %v2043, %v2303
    %v2305 = vadd.f32 %v2296, %v2304
    %v2306 = vadd.f32 %v2297, %v2304
    %v2307 = vadd.f32 %v2298, %v2304
    %v2308 = vadd.f32 %v2299, %v2304
    %v2309 = vadd.f32 %v2300, %v2304
    %vm2310 = vcmask 293888
    %v2311 = vsel %vm2310, %v2305, -inf
    %2312 = vmax.xlane.f32.xlu0 %v2311
    %v2313 = vpop.xlane.xlu0 %2312
    %v2314 = vsel %vm2310, %v2306, -inf
    %2315 = vmax.xlane.f32.xlu0 %v2314
    %v2316 = vpop.xlane.xlu0 %2315
    %v2317 = vsel %vm2310, %v2307, -inf
    %2318 = vmax.xlane.f32.xlu0 %v2317
    %v2319 = vpop.xlane.xlu0 %2318
    %v2320 = vsel %vm2310, %v2308, -inf
    %2321 = vmax.xlane.f32.xlu0 %v2320
    %v2322 = vpop.xlane.xlu0 %2321
    %vm2323 = vcmask 289792
    %v2324 = vsel %vm2323, %v2309, -inf
    %2325 = vmax.xlane.f32.xlu0 %v2324
    %v2326 = vpop.xlane.xlu0 %2325
    %v2327 = vsub.f32 %v2305, %v2313
    %v2328 = vsub.f32 %v2306, %v2316
    %v2329 = vsub.f32 %v2307, %v2319
    %v2330 = vsub.f32 %v2308, %v2322
    %v2331 = vsub.f32 %v2309, %v2326
    %v2332 = vmul.f32 %v2327, 1.442695
    %v2333 = vpow.pop %v2332
    %v2334 = vmul.f32 %v2328, 1.442695
    %v2335 = vpow.pop %v2334
    %v2336 = vmul.f32 %v2329, 1.442695
    %v2337 = vpow.pop %v2336
    %v2338 = vmul.f32 %v2330, 1.442695
    %v2339 = vpow.pop %v2338
    %v2340 = vmul.f32 %v2331, 1.442695
    %v2341 = vpow.pop %v2340
    %v2342 = vsel %vm2310, %v2333, 0.0
    %2343 = vadd.xlane.f32.xlu0 %v2342
    %v2344 = vpop.xlane.xlu0 %2343
    %v2345 = vsel %vm2310, %v2335, 0.0
    %2346 = vadd.xlane.f32.xlu0 %v2345
    %v2347 = vpop.xlane.xlu0 %2346
    %v2348 = vsel %vm2310, %v2337, 0.0
    %2349 = vadd.xlane.f32.xlu0 %v2348
    %v2350 = vpop.xlane.xlu0 %2349
    %v2351 = vsel %vm2310, %v2339, 0.0
    %2352 = vadd.xlane.f32.xlu0 %v2351
    %v2353 = vpop.xlane.xlu0 %2352
    %v2354 = vsel %vm2323, %v2341, 0.0
    %2355 = vadd.xlane.f32.xlu0 %v2354
    %v2356 = vpop.xlane.xlu0 %2355
    %v2357 = vrcp.pop %v2344
    %v2358 = vmul.f32 %v2333, %v2357
    %v2359 = vrcp.pop %v2347
    %v2360 = vmul.f32 %v2335, %v2359
    %v2361 = vrcp.pop %v2350
    %v2362 = vmul.f32 %v2337, %v2361
    %v2363 = vrcp.pop %v2353
    %v2364 = vmul.f32 %v2339, %v2363
    %v2365 = vrcp.pop %v2356
    %v2366 = vmul.f32 %v2341, %v2365
    %2368 = vrot.lane.b32.xlu0 %v2360, 119
    %v2369 = vpop.permute.xlu0 %2368
    %2372 = vrot.lane.b32.xlu0 %v2362, 110
    %v2373 = vpop.permute.xlu0 %2372
    %2376 = vrot.lane.b32.xlu0 %v2364, 101
    %v2377 = vpop.permute.xlu0 %2376
    %v2379 = vsel %vm1785, %v2358, %v2369
    %v2380 = vsel %vm1690, %v2379, %v2373
    %v2381 = vsel %vm1996, %v2380, %v2377
    %vm2382 = vcmask 68608
    %2383 = vst.msk [vmem:[#allocation36] sm:$0xf] %vm2382, %v2381
    %2384 = vrot.lane.b32.xlu0 %v2123, 64
    %v2385 = vpop.permute.xlu0 %2384
    %2386 = vrot.lane.b32.xlu0 %v2164, 64
    %v2387 = vpop.permute.xlu0 %2386
    %2388 = vrot.lane.b32.xlu0 %v2165, 64
    %v2389 = vpop.permute.xlu0 %2388
    %2390 = vrot.lane.b32.xlu0 %v2166, 64
    %v2391 = vpop.permute.xlu0 %2390
    %2392 = vrot.lane.b32.xlu0 %v2162, 64
    %v2393 = vpop.permute.xlu0 %2392
    %v2399 = vsel %vm2310, %v2358, 0
    %v2401 = vsel %vm2310, %v2360, 0
    %v2403 = vsel %vm2310, %v2362, 0
    %v2405 = vsel %vm2310, %v2364, 0
    %v2408 = vsel %vm2310, %v2366, 0
    %v2410 = vsel %vm524, %v2393, 0
    %2412 = vmatprep.subr.mxu0 0.0
    %2413 = vmatpush1.msra.mxu0 %v2385
    %2414 = vmatprep.subr.mxu0 0.0
    %2415 = vmatpush1.msra.mxu0 %v2387
    %2416 = vmatprep.subr.mxu0 0.0
    %2417 = vmatpush1.msra.mxu0 %v2389
    %2418 = vmatprep.subr.mxu0 0.0
    %2419 = vmatpush1.msra.mxu0 %v2391
    %2420 = vmatprep.subr.mxu0 0.0
    %2421 = vmatpush1.msra.mxu0 %v2410
    %2422 = vmatprep.subr.mxu0 0.0
    %2423 = vmatpush1.msra.mxu0 0.0
    %2424 = vmatprep.subr.mxu0 0.0
    %2425 = vmatpush1.msra.mxu0 0.0
    %2426 = vmatprep.subr.mxu0 0.0
    %2427 = vmatpush1.msra.mxu0 0.0
    %2428 = vmatprep.subr.mxu0 0.0
    %2429 = vmatpush1.msra.mxu0 0.0
    %2430 = vmatprep.subr.mxu0 0.0
    %2431 = vmatpush1.msra.mxu0 0.0
    %2432 = vmatprep.subr.mxu0 0.0
    %2433 = vmatpush1.msra.mxu0 0.0
    %2434 = vmatprep.subr.mxu0 0.0
    %2435 = vmatpush1.msra.mxu0 0.0
    %2436 = vmatprep.subr.mxu0 0.0
    %2437 = vmatpush1.msra.mxu0 0.0
    %2438 = vmatprep.subr.mxu0 0.0
    %2439 = vmatpush1.msra.mxu0 0.0
    %2440 = vmatprep.subr.mxu0 0.0
    %2441 = vmatpush1.msra.mxu0 0.0
    %2442 = vmatprep.subr.mxu0 0.0
    %2443 = vmatpush1.msra.mxu0 0.0
    %2444 = vmatprep.subr.mxu0 0.0
    %2445 = vmatpush1.msra.mxu0 0.0
    %2446 = vmatprep.subr.mxu0 0.0
    %2447 = vmatpush1.msra.mxu0 0.0
    %2448 = vmatprep.subr.mxu0 0.0
    %2449 = vmatpush1.msra.mxu0 0.0
    %2450 = vmatprep.subr.mxu0 0.0
    %2451 = vmatpush1.msra.mxu0 0.0
    %2452 = vmatprep.subr.mxu0 0.0
    %2453 = vmatpush1.msra.mxu0 0.0
    %2454 = vmatprep.subr.mxu0 0.0
    %2455 = vmatpush1.msra.mxu0 0.0
    %2456 = vmatprep.subr.mxu0 0.0
    %2457 = vmatpush1.msra.mxu0 0.0
    %2458 = vmatprep.subr.mxu0 0.0
    %2459 = vmatpush1.msra.mxu0 0.0
    %2460 = vmatprep.subr.mxu0 0.0
    %2461 = vmatpush1.msra.mxu0 0.0
    %2462 = vmatprep.subr.mxu0 0.0
    %2463 = vmatpush1.msra.mxu0 0.0
    %2464 = vmatprep.subr.mxu0 0.0
    %2465 = vmatpush1.msra.mxu0 0.0
    %2466 = vmatprep.subr.mxu0 0.0
    %2467 = vmatpush1.msra.mxu0 0.0
    %2468 = vmatprep.subr.mxu0 0.0
    %2469 = vmatpush1.msra.mxu0 0.0
    %2470 = vmatprep.subr.mxu0 0.0
    %2471 = vmatpush1.msra.mxu0 0.0
    %2472 = vmatprep.subr.mxu0 0.0
    %2473 = vmatpush1.msra.mxu0 0.0
    %2474 = vmatprep.subr.mxu0 0.0
    %2475 = vmatpush1.msra.mxu0 0.0
    %2476 = vmatprep.mubr.f32.mxu0 0.0
    %2477 = vmatmul.mubr.f32.gmra.mrb[0].mxu0 %v2399
    %v2478 = vpop.f32.mrb[0].mxu0
    %v2479 = vadd.f32 0.0, %v2478
    %v2480 = vpop.f32.mrb[0].mxu0
    %2481 = vmatprep.mubr.f32.mxu0 0.0
    %2482 = vmatmul.mubr.f32.gmra.mrb[0].mxu0 %v2401
    %v2483 = vpop.f32.mrb[0].mxu0
    %v2484 = vadd.f32 0.0, %v2483
    %v2485 = vpop.f32.mrb[0].mxu0
    %2486 = vmatprep.mubr.f32.mxu0 0.0
    %2487 = vmatmul.mubr.f32.gmra.mrb[0].mxu0 %v2403
    %v2488 = vpop.f32.mrb[0].mxu0
    %v2489 = vadd.f32 0.0, %v2488
    %v2490 = vpop.f32.mrb[0].mxu0
    %2491 = vmatprep.mubr.f32.mxu0 0.0
    %2492 = vmatmul.mubr.f32.gmra.mrb[0].mxu0 %v2405
    %v2493 = vpop.f32.mrb[0].mxu0
    %v2494 = vadd.f32 0.0, %v2493
    %v2495 = vpop.f32.mrb[0].mxu0
    %2496 = vmatprep.mubr.f32.mxu0 0.0
    %2497 = vmatmul.mubr.f32.gmra.mrb[0].mxu0 %v2408
    %v2498 = vpop.f32.mrb[0].mxu0
    %v2499 = vadd.f32 0.0, %v2498
    %v2500 = vpop.f32.mrb[0].mxu0
    %2501 = vdwg.mxu0
    %v2504 = vrot.slane %v2484, 1
    %v2505 = vrot.slane %v2489, 1
    %v2506 = vsel %vm2002, %v2504, %v2505
    %2507 = vrot.lane.b32.xlu0 %v2506, 8
    %v2508 = vpop.permute.xlu0 %2507
    %2509 = vrot.lane.b32.xlu0 %v2505, 8
    %v2510 = vpop.permute.xlu0 %2509
    %v2514 = vrot.slane %v2489, 2
    %v2515 = vrot.slane %v2494, 2
    %v2516 = vsel %vm1693, %v2514, %v2515
    %2517 = vrot.lane.b32.xlu0 %v2516, 16
    %v2518 = vpop.permute.xlu0 %2517
    %2519 = vrot.lane.b32.xlu0 %v2515, 16
    %v2520 = vpop.permute.xlu0 %2519
    %v2524 = vrot.slane %v2494, 3
    %v2525 = vrot.slane %v2499, 3
    %v2526 = vsel %vm1999, %v2524, %v2525
    %2527 = vrot.lane.b32.xlu0 %v2526, 24
    %v2528 = vpop.permute.xlu0 %2527
    %2529 = vrot.lane.b32.xlu0 %v2525, 24
    %v2530 = vpop.permute.xlu0 %2529
    %v2533 = vsel %vm2180, %v2479, %v2508
    %v2534 = vsel %vm2180, %v2484, %v2510
    %vm2535 = vcmask 130048
    %v2536 = vsel %vm2535, %v2533, %v2518
    %v2537 = vsel %vm2535, %v2534, %v2520
    %vm2538 = vcmask 195584
    %v2539 = vsel %vm2538, %v2536, %v2528
    %v2540 = vsel %vm2538, %v2537, %v2530
    %v2542 = vrot.slane %v2126, 1
    %v2543 = vrot.slane %v2131, 1
    %v2544 = vsel %vm2002, %v2542, %v2543
    %2546 = vrot.lane.b32.xlu0 %v2126, 120
    %v2547 = vpop.permute.xlu0 %2546
    %2548 = vrot.lane.b32.xlu0 %v2131, 120
    %v2549 = vpop.permute.xlu0 %2548
    %v2552 = vrot.slane %v2131, 7
    %v2553 = vsel %vm1785, %v2139, %v2552
    %2554 = vrot.lane.b32.xlu0 %v2139, 112
    %v2555 = vpop.permute.xlu0 %2554
    %2556 = vrot.lane.b32.xlu0 %v2553, 112
    %v2557 = vpop.permute.xlu0 %2556
    %v2560 = vrot.slane %v2131, 6
    %v2561 = vsel %vm1690, %v2148, %v2560
    %2562 = vrot.lane.b32.xlu0 %v2148, 104
    %v2563 = vpop.permute.xlu0 %2562
    %2564 = vrot.lane.b32.xlu0 %v2561, 104
    %v2565 = vpop.permute.xlu0 %2564
    %v2567 = vsel %vm1785, %v2543, %v2547
    %v2568 = vsel %vm1690, %v2549, %v2555
    %v2569 = vsel %vm1996, %v2557, %v2563
    %2573 = vrot.lane.b32.xlu0 %v2544, 96
    %v2574 = vpop.permute.xlu0 %2573
    %2575 = vrot.lane.b32.xlu0 %v2567, 96
    %v2576 = vpop.permute.xlu0 %2575
    %2577 = vrot.lane.b32.xlu0 %v2568, 96
    %v2578 = vpop.permute.xlu0 %2577
    %2579 = vrot.lane.b32.xlu0 %v2569, 96
    %v2580 = vpop.permute.xlu0 %2579
    %2581 = vrot.lane.b32.xlu0 %v2565, 96
    %v2582 = vpop.permute.xlu0 %2581
    %v2583 = vsel %vm2180, %v2544, 0
    %v2585 = vsel %vm2180, %v2567, 0
    %v2587 = vsel %vm2180, %v2568, 0
    %v2589 = vsel %vm2180, %v2569, 0
    %v2591 = vsel %vm2180, %v2565, 0
    %v2593 = vsel %vm2180, %v2574, 0
    %v2595 = vsel %vm2180, %v2576, 0
    %v2597 = vsel %vm2180, %v2578, 0
    %v2599 = vsel %vm2180, %v2580, 0
    %v2601 = vsel %vm2180, %v2582, 0
    %2603 = vmatprep.subr.mxu0 0.0
    %2604 = vmatpush1.xpose.msra.mxu0 %v2593
    %2605 = vmatprep.subr.mxu0 0.0
    %2606 = vmatpush1.xpose.msra.mxu0 %v2595
    %2607 = vmatprep.subr.mxu0 0.0
    %2608 = vmatpush1.xpose.msra.mxu0 %v2597
    %2609 = vmatprep.subr.mxu0 0.0
    %2610 = vmatpush1.xpose.msra.mxu0 %v2599
    %2611 = vmatprep.subr.mxu0 0.0
    %2612 = vmatpush1.xpose.msra.mxu0 %v2601
    %2613 = vmatprep.subr.mxu0 0.0
    %2614 = vmatpush1.xpose.msra.mxu0 0.0
    %2615 = vmatprep.subr.mxu0 0.0
    %2616 = vmatpush1.xpose.msra.mxu0 0.0
    %2617 = vmatprep.subr.mxu0 0.0
    %2618 = vmatpush1.xpose.msra.mxu0 0.0
    %2619 = vmatprep.subr.mxu0 0.0
    %2620 = vmatpush1.xpose.msra.mxu0 0.0
    %2621 = vmatprep.subr.mxu0 0.0
    %2622 = vmatpush1.xpose.msra.mxu0 0.0
    %2623 = vmatprep.subr.mxu0 0.0
    %2624 = vmatpush1.xpose.msra.mxu0 0.0
    %2625 = vmatprep.subr.mxu0 0.0
    %2626 = vmatpush1.xpose.msra.mxu0 0.0
    %2627 = vmatprep.subr.mxu0 0.0
    %2628 = vmatpush1.xpose.msra.mxu0 0.0
    %2629 = vmatprep.subr.mxu0 0.0
    %2630 = vmatpush1.xpose.msra.mxu0 0.0
    %2631 = vmatprep.subr.mxu0 0.0
    %2632 = vmatpush1.xpose.msra.mxu0 0.0
    %2633 = vmatprep.subr.mxu0 0.0
    %2634 = vmatpush1.xpose.msra.mxu0 0.0
    %2635 = vmatprep.subr.mxu0 0.0
    %2636 = vmatpush1.xpose.msra.mxu0 0.0
    %2637 = vmatprep.subr.mxu0 0.0
    %2638 = vmatpush1.xpose.msra.mxu0 0.0
    %2639 = vmatprep.subr.mxu0 0.0
    %2640 = vmatpush1.xpose.msra.mxu0 0.0
    %2641 = vmatprep.subr.mxu0 0.0
    %2642 = vmatpush1.xpose.msra.mxu0 0.0
    %2643 = vmatprep.subr.mxu0 0.0
    %2644 = vmatpush1.xpose.msra.mxu0 0.0
    %2645 = vmatprep.subr.mxu0 0.0
    %2646 = vmatpush1.xpose.msra.mxu0 0.0
    %2647 = vmatprep.subr.mxu0 0.0
    %2648 = vmatpush1.xpose.msra.mxu0 0.0
    %2649 = vmatprep.subr.mxu0 0.0
    %2650 = vmatpush1.xpose.msra.mxu0 0.0
    %2651 = vmatprep.subr.mxu0 0.0
    %2652 = vmatpush1.xpose.msra.mxu0 0.0
    %2653 = vmatprep.subr.mxu0 0.0
    %2654 = vmatpush1.xpose.msra.mxu0 0.0
    %2655 = vmatprep.subr.mxu0 0.0
    %2656 = vmatpush1.xpose.msra.mxu0 0.0
    %2657 = vmatprep.subr.mxu0 0.0
    %2658 = vmatpush1.xpose.msra.mxu0 0.0
    %2659 = vmatprep.subr.mxu0 0.0
    %2660 = vmatpush1.xpose.msra.mxu0 0.0
    %2661 = vmatprep.subr.mxu0 0.0
    %2662 = vmatpush1.xpose.msra.mxu0 0.0
    %2663 = vmatprep.subr.mxu0 0.0
    %2664 = vmatpush1.xpose.msra.mxu0 0.0
    %2665 = vmatprep.subr.mxu0 0.0
    %2666 = vmatpush1.xpose.msra.mxu0 0.0
    %2667 = vmatprep.mubr.f32.mxu0 0.0
    %2668 = vmatmul.mubr.f32.gmra.mrb[0].mxu0 %v2583
    %v2669 = vpop.f32.mrb[0].mxu0
    %v2670 = vadd.f32 0.0, %v2669
    %v2671 = vpop.f32.mrb[0].mxu0
    %2672 = vmatprep.mubr.f32.mxu0 0.0
    %2673 = vmatmul.mubr.f32.gmra.mrb[0].mxu0 %v2585
    %v2674 = vpop.f32.mrb[0].mxu0
    %v2675 = vadd.f32 0.0, %v2674
    %v2676 = vpop.f32.mrb[0].mxu0
    %2677 = vmatprep.mubr.f32.mxu0 0.0
    %2678 = vmatmul.mubr.f32.gmra.mrb[0].mxu0 %v2587
    %v2679 = vpop.f32.mrb[0].mxu0
    %v2680 = vadd.f32 0.0, %v2679
    %v2681 = vpop.f32.mrb[0].mxu0
    %2682 = vmatprep.mubr.f32.mxu0 0.0
    %2683 = vmatmul.mubr.f32.gmra.mrb[0].mxu0 %v2589
    %v2684 = vpop.f32.mrb[0].mxu0
    %v2685 = vadd.f32 0.0, %v2684
    %v2686 = vpop.f32.mrb[0].mxu0
    %2687 = vmatprep.mubr.f32.mxu0 0.0
    %2688 = vmatmul.mubr.f32.gmra.mrb[0].mxu0 %v2591
    %v2689 = vpop.f32.mrb[0].mxu0
    %v2690 = vadd.f32 0.0, %v2689
    %v2691 = vpop.f32.mrb[0].mxu0
    %2692 = vdwg.mxu0
    %v2693 = vmul.f32 %v2670, 0.35355338
    %v2694 = vmul.f32 %v2675, 0.35355338
    %v2695 = vmul.f32 %v2680, 0.35355338
    %v2696 = vmul.f32 %v2685, 0.35355338
    %v2697 = vmul.f32 %v2690, 0.35355338
    %v2698 = vadd.f32 %v2693, %v2023
    %v2699 = vadd.f32 %v2694, %v2024
    %v2700 = vadd.f32 %v2695, %v2025
    %v2701 = vadd.f32 %v2696, %v2026
    %v2702 = vadd.f32 %v2697, %v2027
    %v2703 = vlaneseq
    %v2704 = vshrl.u32 %v2703, 7
    %v2705 = vsub.s32 0, %v2704
    %v2706 = vrot.slane %v2056, %v2705
    %v2707 = vadd.f32 %v2698, %v2706
    %v2708 = vadd.f32 %v2699, %v2706
    %v2709 = vadd.f32 %v2700, %v2706
    %v2710 = vadd.f32 %v2701, %v2706
    %v2711 = vadd.f32 %v2702, %v2706
    %v2712 = vsel %vm2310, %v2707, -inf
    %2713 = vmax.xlane.f32.xlu0 %v2712
    %v2714 = vpop.xlane.xlu0 %2713
    %v2715 = vsel %vm2310, %v2708, -inf
    %2716 = vmax.xlane.f32.xlu0 %v2715
    %v2717 = vpop.xlane.xlu0 %2716
    %v2718 = vsel %vm2310, %v2709, -inf
    %2719 = vmax.xlane.f32.xlu0 %v2718
    %v2720 = vpop.xlane.xlu0 %2719
    %v2721 = vsel %vm2310, %v2710, -inf
    %2722 = vmax.xlane.f32.xlu0 %v2721
    %v2723 = vpop.xlane.xlu0 %2722
    %v2724 = vsel %vm2323, %v2711, -inf
    %2725 = vmax.xlane.f32.xlu0 %v2724
    %v2726 = vpop.xlane.xlu0 %2725
    %v2727 = vsub.f32 %v2707, %v2714
    %v2728 = vsub.f32 %v2708, %v2717
    %v2729 = vsub.f32 %v2709, %v2720
    %v2730 = vsub.f32 %v2710, %v2723
    %v2731 = vsub.f32 %v2711, %v2726
    %v2732 = vmul.f32 %v2727, 1.442695
    %v2733 = vpow.pop %v2732
    %v2734 = vmul.f32 %v2728, 1.442695
    %v2735 = vpow.pop %v2734
    %v2736 = vmul.f32 %v2729, 1.442695
    %v2737 = vpow.pop %v2736
    %v2738 = vmul.f32 %v2730, 1.442695
    %v2739 = vpow.pop %v2738
    %v2740 = vmul.f32 %v2731, 1.442695
    %v2741 = vpow.pop %v2740
    %v2742 = vsel %vm2310, %v2733, 0.0
    %2743 = vadd.xlane.f32.xlu0 %v2742
    %v2744 = vpop.xlane.xlu0 %2743
    %v2745 = vsel %vm2310, %v2735, 0.0
    %2746 = vadd.xlane.f32.xlu0 %v2745
    %v2747 = vpop.xlane.xlu0 %2746
    %v2748 = vsel %vm2310, %v2737, 0.0
    %2749 = vadd.xlane.f32.xlu0 %v2748
    %v2750 = vpop.xlane.xlu0 %2749
    %v2751 = vsel %vm2310, %v2739, 0.0
    %2752 = vadd.xlane.f32.xlu0 %v2751
    %v2753 = vpop.xlane.xlu0 %2752
    %v2754 = vsel %vm2323, %v2741, 0.0
    %2755 = vadd.xlane.f32.xlu0 %v2754
    %v2756 = vpop.xlane.xlu0 %2755
    %v2757 = vrcp.pop %v2744
    %v2758 = vmul.f32 %v2733, %v2757
    %v2759 = vrcp.pop %v2747
    %v2760 = vmul.f32 %v2735, %v2759
    %v2761 = vrcp.pop %v2750
    %v2762 = vmul.f32 %v2737, %v2761
    %v2763 = vrcp.pop %v2753
    %v2764 = vmul.f32 %v2739, %v2763
    %v2765 = vrcp.pop %v2756
    %v2766 = vmul.f32 %v2741, %v2765
    %2768 = vrot.lane.b32.xlu0 %v2760, 119
    %v2769 = vpop.permute.xlu0 %2768
    %2772 = vrot.lane.b32.xlu0 %v2762, 110
    %v2773 = vpop.permute.xlu0 %2772
    %2776 = vrot.lane.b32.xlu0 %v2764, 101
    %v2777 = vpop.permute.xlu0 %2776
    %v2779 = vsel %vm1785, %v2758, %v2769
    %v2780 = vsel %vm1690, %v2779, %v2773
    %v2781 = vsel %vm1996, %v2780, %v2777
    %s2782 = scalar_lea.vmem [#allocation36], 8
    %2783 = vst.msk [vmem:[%s2782] sm:$0xf] %vm2382, %v2781
    %2784 = vrot.lane.b32.xlu0 %v2544, 64
    %v2785 = vpop.permute.xlu0 %2784
    %2786 = vrot.lane.b32.xlu0 %v2567, 64
    %v2787 = vpop.permute.xlu0 %2786
    %2788 = vrot.lane.b32.xlu0 %v2568, 64
    %v2789 = vpop.permute.xlu0 %2788
    %2790 = vrot.lane.b32.xlu0 %v2569, 64
    %v2791 = vpop.permute.xlu0 %2790
    %2792 = vrot.lane.b32.xlu0 %v2565, 64
    %v2793 = vpop.permute.xlu0 %2792
    %v2799 = vsel %vm2310, %v2758, 0
    %v2801 = vsel %vm2310, %v2760, 0
    %v2803 = vsel %vm2310, %v2762, 0
    %v2805 = vsel %vm2310, %v2764, 0
    %v2808 = vsel %vm2310, %v2766, 0
    %v2810 = vsel %vm524, %v2793, 0
    %2812 = vmatprep.subr.mxu0 0.0
    %2813 = vmatpush1.msra.mxu0 %v2785
    %2814 = vmatprep.subr.mxu0 0.0
    %2815 = vmatpush1.msra.mxu0 %v2787
    %2816 = vmatprep.subr.mxu0 0.0
    %2817 = vmatpush1.msra.mxu0 %v2789
    %2818 = vmatprep.subr.mxu0 0.0
    %2819 = vmatpush1.msra.mxu0 %v2791
    %2820 = vmatprep.subr.mxu0 0.0
    %2821 = vmatpush1.msra.mxu0 %v2810
    %2822 = vmatprep.subr.mxu0 0.0
    %2823 = vmatpush1.msra.mxu0 0.0
    %2824 = vmatprep.subr.mxu0 0.0
    %2825 = vmatpush1.msra.mxu0 0.0
    %2826 = vmatprep.subr.mxu0 0.0
    %2827 = vmatpush1.msra.mxu0 0.0
    %2828 = vmatprep.subr.mxu0 0.0
    %2829 = vmatpush1.msra.mxu0 0.0
    %2830 = vmatprep.subr.mxu0 0.0
    %2831 = vmatpush1.msra.mxu0 0.0
    %2832 = vmatprep.subr.mxu0 0.0
    %2833 = vmatpush1.msra.mxu0 0.0
    %2834 = vmatprep.subr.mxu0 0.0
    %2835 = vmatpush1.msra.mxu0 0.0
    %2836 = vmatprep.subr.mxu0 0.0
    %2837 = vmatpush1.msra.mxu0 0.0
    %2838 = vmatprep.subr.mxu0 0.0
    %2839 = vmatpush1.msra.mxu0 0.0
    %2840 = vmatprep.subr.mxu0 0.0
    %2841 = vmatpush1.msra.mxu0 0.0
    %2842 = vmatprep.subr.mxu0 0.0
    %2843 = vmatpush1.msra.mxu0 0.0
    %2844 = vmatprep.subr.mxu0 0.0
    %2845 = vmatpush1.msra.mxu0 0.0
    %2846 = vmatprep.subr.mxu0 0.0
    %2847 = vmatpush1.msra.mxu0 0.0
    %2848 = vmatprep.subr.mxu0 0.0
    %2849 = vmatpush1.msra.mxu0 0.0
    %2850 = vmatprep.subr.mxu0 0.0
    %2851 = vmatpush1.msra.mxu0 0.0
    %2852 = vmatprep.subr.mxu0 0.0
    %2853 = vmatpush1.msra.mxu0 0.0
    %2854 = vmatprep.subr.mxu0 0.0
    %2855 = vmatpush1.msra.mxu0 0.0
    %2856 = vmatprep.subr.mxu0 0.0
    %2857 = vmatpush1.msra.mxu0 0.0
    %2858 = vmatprep.subr.mxu0 0.0
    %2859 = vmatpush1.msra.mxu0 0.0
    %2860 = vmatprep.subr.mxu0 0.0
    %2861 = vmatpush1.msra.mxu0 0.0
    %2862 = vmatprep.subr.mxu0 0.0
    %2863 = vmatpush1.msra.mxu0 0.0
    %2864 = vmatprep.subr.mxu0 0.0
    %2865 = vmatpush1.msra.mxu0 0.0
    %2866 = vmatprep.subr.mxu0 0.0
    %2867 = vmatpush1.msra.mxu0 0.0
    %2868 = vmatprep.subr.mxu0 0.0
    %2869 = vmatpush1.msra.mxu0 0.0
    %2870 = vmatprep.subr.mxu0 0.0
    %2871 = vmatpush1.msra.mxu0 0.0
    %2872 = vmatprep.subr.mxu0 0.0
    %2873 = vmatpush1.msra.mxu0 0.0
    %2874 = vmatprep.subr.mxu0 0.0
    %2875 = vmatpush1.msra.mxu0 0.0
    %2876 = vmatprep.mubr.f32.mxu0 0.0
    %2877 = vmatmul.mubr.f32.gmra.mrb[0].mxu0 %v2799
    %v2878 = vpop.f32.mrb[0].mxu0
    %v2879 = vadd.f32 0.0, %v2878
    %v2880 = vpop.f32.mrb[0].mxu0
    %2881 = vmatprep.mubr.f32.mxu0 0.0
    %2882 = vmatmul.mubr.f32.gmra.mrb[0].mxu0 %v2801
    %v2883 = vpop.f32.mrb[0].mxu0
    %v2884 = vadd.f32 0.0, %v2883
    %v2885 = vpop.f32.mrb[0].mxu0
    %2886 = vmatprep.mubr.f32.mxu0 0.0
    %2887 = vmatmul.mubr.f32.gmra.mrb[0].mxu0 %v2803
    %v2888 = vpop.f32.mrb[0].mxu0
    %v2889 = vadd.f32 0.0, %v2888
    %v2890 = vpop.f32.mrb[0].mxu0
    %2891 = vmatprep.mubr.f32.mxu0 0.0
    %2892 = vmatmul.mubr.f32.gmra.mrb[0].mxu0 %v2805
    %v2893 = vpop.f32.mrb[0].mxu0
    %v2894 = vadd.f32 0.0, %v2893
    %v2895 = vpop.f32.mrb[0].mxu0
    %2896 = vmatprep.mubr.f32.mxu0 0.0
    %2897 = vmatmul.mubr.f32.gmra.mrb[0].mxu0 %v2808
    %v2898 = vpop.f32.mrb[0].mxu0
    %v2899 = vadd.f32 0.0, %v2898
    %v2900 = vpop.f32.mrb[0].mxu0
    %2901 = vdwg.mxu0
    %v2904 = vrot.slane %v2884, 1
    %v2905 = vrot.slane %v2889, 1
    %v2906 = vsel %vm2002, %v2904, %v2905
    %2907 = vrot.lane.b32.xlu0 %v2906, 8
    %v2908 = vpop.permute.xlu0 %2907
    %2909 = vrot.lane.b32.xlu0 %v2905, 8
    %v2910 = vpop.permute.xlu0 %2909
    %v2914 = vrot.slane %v2889, 2
    %v2915 = vrot.slane %v2894, 2
    %v2916 = vsel %vm1693, %v2914, %v2915
    %2917 = vrot.lane.b32.xlu0 %v2916, 16
    %v2918 = vpop.permute.xlu0 %2917
    %2919 = vrot.lane.b32.xlu0 %v2915, 16
    %v2920 = vpop.permute.xlu0 %2919
    %v2924 = vrot.slane %v2894, 3
    %v2925 = vrot.slane %v2899, 3
    %v2926 = vsel %vm1999, %v2924, %v2925
    %2927 = vrot.lane.b32.xlu0 %v2926, 24
    %v2928 = vpop.permute.xlu0 %2927
    %2929 = vrot.lane.b32.xlu0 %v2925, 24
    %v2930 = vpop.permute.xlu0 %2929
    %v2933 = vsel %vm2180, %v2879, %v2908
    %v2934 = vsel %vm2180, %v2884, %v2910
    %v2935 = vsel %vm2535, %v2933, %v2918
    %v2936 = vsel %vm2535, %v2934, %v2920
    %v2937 = vsel %vm2538, %v2935, %v2928
    %v2938 = vsel %vm2538, %v2936, %v2930
    %v2941 = vrot.slane %v2937, 7
    %v2942 = vrot.slane %v2938, 7
    %v2943 = vsel %vm1785, %v2941, %v2942
    %v2946 = vsel %vm1785, %v2540, %v2941
    %v2947 = vld [vmem:[%s41] sm:$0xf]
    %v2948 = vld [vmem:[%s41 + $0x4] sm:$0xf]
    %v2949 = vld [vmem:[%s41 + $0x8] sm:$0xf]
    %v2950 = vld [vmem:[%s41 + $0xc] sm:$0xf]
    %v2951 = vld [vmem:[#allocation5] sm:$0x1]
    %v2952 = vpack.c.bf16 %v2946, %v2539
    %v2953 = vpack.c.bf16 %v2943, %v2943
    %v2955 = vlaneseq
    %v2956 = vshrl.u32 %v2955, 7
    %v2957 = vsub.s32 0, %v2956
    %v2958 = vrot.slane %v2951, %v2957
    %v2964 = vunpack.c.l.b16 %v2947
    %v2965 = vunpack.c.l.b16 %v2948
    %v2966 = vunpack.c.l.b16 %v2949
    %v2967 = vunpack.c.l.b16 %v2950
    %v2968 = vpack.c.b16 %v2965, %v2964
    %v2969 = vpack.c.b16 %v2967, %v2966
    %v2973 = vsel %vm627, %v2952, 0
    %v2976 = vsel %vm627, %v2953, 0
    %2978 = vmatprep.subr.bf16.mxu0 0
    %2979 = vmatpush1.bf16.msra.mxu0 %v2968
    %2980 = vmatprep.subr.bf16.mxu0 0
    %2981 = vmatpush1.bf16.msra.mxu0 %v2969
    %2982 = vmatprep.subr.bf16.mxu0 0
    %2983 = vmatpush1.bf16.msra.mxu0 0
    %2984 = vmatprep.subr.bf16.mxu0 0
    %2985 = vmatpush1.bf16.msra.mxu0 0
    %2986 = vmatprep.subr.bf16.mxu0 0
    %2987 = vmatpush1.bf16.msra.mxu0 0
    %2988 = vmatprep.subr.bf16.mxu0 0
    %2989 = vmatpush1.bf16.msra.mxu0 0
    %2990 = vmatprep.subr.bf16.mxu0 0
    %2991 = vmatpush1.bf16.msra.mxu0 0
    %2992 = vmatprep.subr.bf16.mxu0 0
    %2993 = vmatpush1.bf16.msra.mxu0 0
    %2994 = vmatprep.subr.bf16.mxu0 0
    %2995 = vmatpush1.bf16.msra.mxu0 0
    %2996 = vmatprep.subr.bf16.mxu0 0
    %2997 = vmatpush1.bf16.msra.mxu0 0
    %2998 = vmatprep.subr.bf16.mxu0 0
    %2999 = vmatpush1.bf16.msra.mxu0 0
    %3000 = vmatprep.subr.bf16.mxu0 0
    %3001 = vmatpush1.bf16.msra.mxu0 0
    %3002 = vmatprep.subr.bf16.mxu0 0
    %3003 = vmatpush1.bf16.msra.mxu0 0
    %3004 = vmatprep.subr.bf16.mxu0 0
    %3005 = vmatpush1.bf16.msra.mxu0 0
    %3006 = vmatprep.subr.bf16.mxu0 0
    %3007 = vmatpush1.bf16.msra.mxu0 0
    %3008 = vmatprep.subr.bf16.mxu0 0
    %3009 = vmatpush1.bf16.msra.mxu0 0
    %3010 = vmatprep.mubr.bf16.mxu0 0
    %3011 = vmatmul.mubr.bf16.gmra.mrb[0].mxu0 %v2973
    %v3012 = vpop.f32.mrb[0].mxu0
    %v3013 = vadd.f32 %v2958, %v3012
    %v3014 = vpop.f32.mrb[0].mxu0
    %v3015 = vpop.f32.mrb[0].mxu0
    %v3016 = vadd.f32 %v2958, %v3015
    %v3017 = vpop.f32.mrb[0].mxu0
    %3018 = vmatprep.mubr.bf16.mxu0 0
    %3019 = vmatmul.mubr.bf16.gmra.mrb[0].mxu0 %v2976
    %v3020 = vpop.f32.mrb[0].mxu0
    %v3021 = vadd.f32 %v2958, %v3020
    %v3022 = vpop.f32.mrb[0].mxu0
    %v3023 = vpop.f32.mrb[0].mxu0
    %v3024 = vpop.f32.mrb[0].mxu0
    %3025 = vdwg.mxu0
    %v3026 = vadd.f32 %v2003, %v3013
    %v3027 = vadd.f32 %v2010, %v3016
    %v3028 = vadd.f32 %v2011, %v3021
    %v3029 = vld [vmem:[#allocation7] sm:$0x1]
    %v3030 = vld [vmem:[#allocation8] sm:$0x1]
    %v3031 = vsel %vm627, %v3026, 0.0
    %3032 = vadd.xlane.f32.xlu0 %v3031
    %v3033 = vpop.xlane.xlu0 %3032
    %v3034 = vsel %vm627, %v3027, 0.0
    %3035 = vadd.xlane.f32.xlu0 %v3034
    %v3036 = vpop.xlane.xlu0 %3035
    %vm3037 = vcmask 254976
    %v3038 = vsel %vm3037, %v3028, 0.0
    %3039 = vadd.xlane.f32.xlu0 %v3038
    %v3040 = vpop.xlane.xlu0 %3039
    %v3041 = vrcp.pop 32.0
    %v3042 = vmul.f32 %v3033, %v3041
    %v3043 = vmul.f32 %v3036, %v3041
    %v3044 = vmul.f32 %v3040, %v3041
    %v3045 = vsub.f32 %v3026, %v3042
    %v3046 = vsub.f32 %v3027, %v3043
    %v3047 = vsub.f32 %v3028, %v3044
    %v3048 = vmul.f32 %v3045, %v3045
    %v3049 = vmul.f32 %v3046, %v3046
    %v3050 = vmul.f32 %v3047, %v3047
    %v3051 = vsel %vm627, %v3048, 0.0
    %3052 = vadd.xlane.f32.xlu0 %v3051
    %v3053 = vpop.xlane.xlu0 %3052
    %v3054 = vsel %vm627, %v3049, 0.0
    %3055 = vadd.xlane.f32.xlu0 %v3054
    %v3056 = vpop.xlane.xlu0 %3055
    %v3057 = vsel %vm3037, %v3050, 0.0
    %3058 = vadd.xlane.f32.xlu0 %v3057
    %v3059 = vpop.xlane.xlu0 %3058
    %v3060 = vrcp.pop 31.0
    %v3061 = vmul.f32 %v3053, %v3060
    %v3062 = vmul.f32 %v3056, %v3060
    %v3063 = vmul.f32 %v3059, %v3060
    %v3065 = vlaneseq
    %v3066 = vshrl.u32 %v3065, 7
    %v3067 = vsub.s32 0, %v3066
    %v3068 = vrot.slane %v3029, %v3067
    %v3070 = vmul.f32 %v3068, %v3045
    %v3071 = vmul.f32 %v3068, %v3046
    %v3072 = vmul.f32 %v3068, %v3047
    %v3073 = vrsqrt.pop %v3061
    %v3074 = vmul.f32 %v3061, %v3073
    %vm3075 = vcmp.eq.f32.partialorder %v3061, inf
    %v3076 = vsel %vm3075, %v3061, %v3074
    %vm3077 = vcmp.eq.f32.partialorder %v3061, 0.0
    %v3078 = vand.u32 %v3061, 2147483648
    %v3079 = vsel %vm3077, %v3078, %v3076
    %v3080 = vrsqrt.pop %v3062
    %v3081 = vmul.f32 %v3062, %v3080
    %vm3082 = vcmp.eq.f32.partialorder %v3062, inf
    %v3083 = vsel %vm3082, %v3062, %v3081
    %vm3084 = vcmp.eq.f32.partialorder %v3062, 0.0
    %v3085 = vand.u32 %v3062, 2147483648
    %v3086 = vsel %vm3084, %v3085, %v3083
    %v3087 = vrsqrt.pop %v3063
    %v3088 = vmul.f32 %v3063, %v3087
    %vm3089 = vcmp.eq.f32.partialorder %v3063, inf
    %v3090 = vsel %vm3089, %v3063, %v3088
    %vm3091 = vcmp.eq.f32.partialorder %v3063, 0.0
    %v3092 = vand.u32 %v3063, 2147483648
    %v3093 = vsel %vm3091, %v3092, %v3090
    %v3094 = vadd.f32 %v3079, 1e-06
    %v3095 = vadd.f32 %v3086, 1e-06
    %v3096 = vadd.f32 %v3093, 1e-06
    %v3097 = vrcp.pop %v3094
    %v3098 = vmul.f32 %v3070, %v3097
    %v3099 = vrcp.pop %v3095
    %v3100 = vmul.f32 %v3071, %v3099
    %v3101 = vrcp.pop %v3096
    %v3102 = vmul.f32 %v3072, %v3101
    %v3104 = vlaneseq
    %v3105 = vshrl.u32 %v3104, 7
    %v3106 = vsub.s32 0, %v3105
    %v3107 = vrot.slane %v3030, %v3106
    %v3109 = vadd.f32 %v3098, %v3107
    %v3110 = vadd.f32 %v3100, %v3107
    %v3111 = vadd.f32 %v3102, %v3107
    %v3112 = vld [vmem:[%s49] sm:$0xf]
    %v3113 = vld [vmem:[%s49 + $0x4] sm:$0xf]
    %v3114 = vld [vmem:[%s49 + $0x8] sm:$0xf]
    %v3115 = vld [vmem:[%s49 + $0xc] sm:$0xf]
    %v3116 = vld [vmem:[#allocation10] sm:$0x1]
    %v3117 = vpack.c.bf16 %v3110, %v3109
    %v3118 = vpack.c.bf16 %v3111, %v3111
    %v3120 = vlaneseq
    %v3121 = vshrl.u32 %v3120, 7
    %v3122 = vsub.s32 0, %v3121
    %v3123 = vrot.slane %v3116, %v3122
    %v3129 = vunpack.c.l.b16 %v3112
    %v3130 = vunpack.c.l.b16 %v3113
    %v3131 = vunpack.c.l.b16 %v3114
    %v3132 = vunpack.c.l.b16 %v3115
    %v3133 = vpack.c.b16 %v3130, %v3129
    %v3134 = vpack.c.b16 %v3132, %v3131
    %v3138 = vsel %vm627, %v3117, 0
    %v3141 = vsel %vm627, %v3118, 0
    %3143 = vmatprep.subr.bf16.mxu0 0
    %3144 = vmatpush1.bf16.msra.mxu0 %v3133
    %3145 = vmatprep.subr.bf16.mxu0 0
    %3146 = vmatpush1.bf16.msra.mxu0 %v3134
    %3147 = vmatprep.subr.bf16.mxu0 0
    %3148 = vmatpush1.bf16.msra.mxu0 0
    %3149 = vmatprep.subr.bf16.mxu0 0
    %3150 = vmatpush1.bf16.msra.mxu0 0
    %3151 = vmatprep.subr.bf16.mxu0 0
    %3152 = vmatpush1.bf16.msra.mxu0 0
    %3153 = vmatprep.subr.bf16.mxu0 0
    %3154 = vmatpush1.bf16.msra.mxu0 0
    %3155 = vmatprep.subr.bf16.mxu0 0
    %3156 = vmatpush1.bf16.msra.mxu0 0
    %3157 = vmatprep.subr.bf16.mxu0 0
    %3158 = vmatpush1.bf16.msra.mxu0 0
    %3159 = vmatprep.subr.bf16.mxu0 0
    %3160 = vmatpush1.bf16.msra.mxu0 0
    %3161 = vmatprep.subr.bf16.mxu0 0
    %3162 = vmatpush1.bf16.msra.mxu0 0
    %3163 = vmatprep.subr.bf16.mxu0 0
    %3164 = vmatpush1.bf16.msra.mxu0 0
    %3165 = vmatprep.subr.bf16.mxu0 0
    %3166 = vmatpush1.bf16.msra.mxu0 0
    %3167 = vmatprep.subr.bf16.mxu0 0
    %3168 = vmatpush1.bf16.msra.mxu0 0
    %3169 = vmatprep.subr.bf16.mxu0 0
    %3170 = vmatpush1.bf16.msra.mxu0 0
    %3171 = vmatprep.subr.bf16.mxu0 0
    %3172 = vmatpush1.bf16.msra.mxu0 0
    %3173 = vmatprep.subr.bf16.mxu0 0
    %3174 = vmatpush1.bf16.msra.mxu0 0
    %3175 = vmatprep.mubr.bf16.mxu0 0
    %3176 = vmatmul.mubr.bf16.gmra.mrb[0].mxu0 %v3138
    %v3177 = vpop.f32.mrb[0].mxu0
    %v3178 = vadd.f32 %v3123, %v3177
    %v3179 = vpop.f32.mrb[0].mxu0
    %v3180 = vpop.f32.mrb[0].mxu0
    %v3181 = vadd.f32 %v3123, %v3180
    %v3182 = vpop.f32.mrb[0].mxu0
    %3183 = vmatprep.mubr.bf16.mxu0 0
    %3184 = vmatmul.mubr.bf16.gmra.mrb[0].mxu0 %v3141
    %v3185 = vpop.f32.mrb[0].mxu0
    %v3186 = vadd.f32 %v3123, %v3185
    %v3187 = vpop.f32.mrb[0].mxu0
    %v3188 = vpop.f32.mrb[0].mxu0
    %v3189 = vpop.f32.mrb[0].mxu0
    %3190 = vdwg.mxu0
    %v3191 = vmax.f32 %v3178, 0.0
    %v3192 = vmax.f32 %v3181, 0.0
    %v3193 = vmax.f32 %v3186, 0.0
    %v3194 = vld [vmem:[%s53] sm:$0xf]
    %v3195 = vld [vmem:[%s53 + $0x4] sm:$0xf]
    %v3196 = vld [vmem:[%s53 + $0x8] sm:$0xf]
    %v3197 = vld [vmem:[%s53 + $0xc] sm:$0xf]
    %v3198 = vld [vmem:[%s53 + $0x10] sm:$0xf]
    %v3199 = vld [vmem:[%s53 + $0x14] sm:$0xf]
    %v3200 = vld [vmem:[%s53 + $0x18] sm:$0xf]
    %v3201 = vld [vmem:[%s53 + $0x1c] sm:$0xf]
    %v3202 = vld [vmem:[#allocation11] sm:$0x1]
    %v3203 = vpack.c.bf16 %v3192, %v3191
    %v3204 = vpack.c.bf16 %v3193, %v3193
    %v3206 = vlaneseq
    %v3207 = vshrl.u32 %v3206, 7
    %v3208 = vsub.s32 0, %v3207
    %v3209 = vrot.slane %v3202, %v3208
    %v3219 = vunpack.c.l.b16 %v3194
    %v3220 = vunpack.c.l.b16 %v3195
    %v3221 = vunpack.c.l.b16 %v3196
    %v3222 = vunpack.c.l.b16 %v3197
    %v3223 = vunpack.c.l.b16 %v3198
    %v3224 = vunpack.c.l.b16 %v3199
    %v3225 = vunpack.c.l.b16 %v3200
    %v3226 = vunpack.c.l.b16 %v3201
    %v3227 = vpack.c.b16 %v3220, %v3219
    %v3228 = vpack.c.b16 %v3222, %v3221
    %v3229 = vpack.c.b16 %v3224, %v3223
    %v3230 = vpack.c.b16 %v3226, %v3225
    %v3236 = vsel %vm843, %v3203, 0
    %v3239 = vsel %vm843, %v3204, 0
    %3241 = vmatprep.subr.bf16.mxu0 0
    %3242 = vmatpush1.bf16.msra.mxu0 %v3227
    %3243 = vmatprep.subr.bf16.mxu0 0
    %3244 = vmatpush1.bf16.msra.mxu0 %v3228
    %3245 = vmatprep.subr.bf16.mxu0 0
    %3246 = vmatpush1.bf16.msra.mxu0 %v3229
    %3247 = vmatprep.subr.bf16.mxu0 0
    %3248 = vmatpush1.bf16.msra.mxu0 %v3230
    %3249 = vmatprep.subr.bf16.mxu0 0
    %3250 = vmatpush1.bf16.msra.mxu0 0
    %3251 = vmatprep.subr.bf16.mxu0 0
    %3252 = vmatpush1.bf16.msra.mxu0 0
    %3253 = vmatprep.subr.bf16.mxu0 0
    %3254 = vmatpush1.bf16.msra.mxu0 0
    %3255 = vmatprep.subr.bf16.mxu0 0
    %3256 = vmatpush1.bf16.msra.mxu0 0
    %3257 = vmatprep.subr.bf16.mxu0 0
    %3258 = vmatpush1.bf16.msra.mxu0 0
    %3259 = vmatprep.subr.bf16.mxu0 0
    %3260 = vmatpush1.bf16.msra.mxu0 0
    %3261 = vmatprep.subr.bf16.mxu0 0
    %3262 = vmatpush1.bf16.msra.mxu0 0
    %3263 = vmatprep.subr.bf16.mxu0 0
    %3264 = vmatpush1.bf16.msra.mxu0 0
    %3265 = vmatprep.subr.bf16.mxu0 0
    %3266 = vmatpush1.bf16.msra.mxu0 0
    %3267 = vmatprep.subr.bf16.mxu0 0
    %3268 = vmatpush1.bf16.msra.mxu0 0
    %3269 = vmatprep.subr.bf16.mxu0 0
    %3270 = vmatpush1.bf16.msra.mxu0 0
    %3271 = vmatprep.subr.bf16.mxu0 0
    %3272 = vmatpush1.bf16.msra.mxu0 0
    %3273 = vmatprep.mubr.bf16.mxu0 0
    %3274 = vmatmul.mubr.bf16.gmra.mrb[0].mxu0 %v3236
    %v3275 = vpop.f32.mrb[0].mxu0
    %v3276 = vadd.f32 %v3209, %v3275
    %v3277 = vpop.f32.mrb[0].mxu0
    %v3278 = vpop.f32.mrb[0].mxu0
    %v3279 = vadd.f32 %v3209, %v3278
    %v3280 = vpop.f32.mrb[0].mxu0
    %3281 = vmatprep.mubr.bf16.mxu0 0
    %3282 = vmatmul.mubr.bf16.gmra.mrb[0].mxu0 %v3239
    %v3283 = vpop.f32.mrb[0].mxu0
    %v3284 = vadd.f32 %v3209, %v3283
    %v3285 = vpop.f32.mrb[0].mxu0
    %v3286 = vpop.f32.mrb[0].mxu0
    %v3287 = vpop.f32.mrb[0].mxu0
    %3288 = vdwg.mxu0
    %v3289 = vadd.f32 %v3109, %v3276
    %v3290 = vadd.f32 %v3110, %v3279
    %v3291 = vadd.f32 %v3111, %v3284
    %v3292 = vld [vmem:[#allocation13] sm:$0x1]
    %v3293 = vld [vmem:[#allocation14] sm:$0x1]
    %v3294 = vsel %vm627, %v3289, 0.0
    %3295 = vadd.xlane.f32.xlu0 %v3294
    %v3296 = vpop.xlane.xlu0 %3295
    %v3297 = vsel %vm627, %v3290, 0.0
    %3298 = vadd.xlane.f32.xlu0 %v3297
    %v3299 = vpop.xlane.xlu0 %3298
    %v3300 = vsel %vm3037, %v3291, 0.0
    %3301 = vadd.xlane.f32.xlu0 %v3300
    %v3302 = vpop.xlane.xlu0 %3301
    %v3303 = vmul.f32 %v3296, %v3041
    %v3304 = vmul.f32 %v3299, %v3041
    %v3305 = vmul.f32 %v3302, %v3041
    %v3306 = vsub.f32 %v3289, %v3303
    %v3307 = vsub.f32 %v3290, %v3304
    %v3308 = vsub.f32 %v3291, %v3305
    %v3309 = vmul.f32 %v3306, %v3306
    %v3310 = vmul.f32 %v3307, %v3307
    %v3311 = vmul.f32 %v3308, %v3308
    %v3312 = vsel %vm627, %v3309, 0.0
    %3313 = vadd.xlane.f32.xlu0 %v3312
    %v3314 = vpop.xlane.xlu0 %3313
    %v3315 = vsel %vm627, %v3310, 0.0
    %3316 = vadd.xlane.f32.xlu0 %v3315
    %v3317 = vpop.xlane.xlu0 %3316
    %v3318 = vsel %vm3037, %v3311, 0.0
    %3319 = vadd.xlane.f32.xlu0 %v3318
    %v3320 = vpop.xlane.xlu0 %3319
    %v3321 = vmul.f32 %v3314, %v3060
    %v3322 = vmul.f32 %v3317, %v3060
    %v3323 = vmul.f32 %v3320, %v3060
    %v3325 = vlaneseq
    %v3326 = vshrl.u32 %v3325, 7
    %v3327 = vsub.s32 0, %v3326
    %v3328 = vrot.slane %v3292, %v3327
    %v3330 = vmul.f32 %v3328, %v3306
    %v3331 = vmul.f32 %v3328, %v3307
    %v3332 = vmul.f32 %v3328, %v3308
    %v3333 = vrsqrt.pop %v3321
    %v3334 = vmul.f32 %v3321, %v3333
    %vm3335 = vcmp.eq.f32.partialorder %v3321, inf
    %v3336 = vsel %vm3335, %v3321, %v3334
    %vm3337 = vcmp.eq.f32.partialorder %v3321, 0.0
    %v3338 = vand.u32 %v3321, 2147483648
    %v3339 = vsel %vm3337, %v3338, %v3336
    %v3340 = vrsqrt.pop %v3322
    %v3341 = vmul.f32 %v3322, %v3340
    %vm3342 = vcmp.eq.f32.partialorder %v3322, inf
    %v3343 = vsel %vm3342, %v3322, %v3341
    %vm3344 = vcmp.eq.f32.partialorder %v3322, 0.0
    %v3345 = vand.u32 %v3322, 2147483648
    %v3346 = vsel %vm3344, %v3345, %v3343
    %v3347 = vrsqrt.pop %v3323
    %v3348 = vmul.f32 %v3323, %v3347
    %vm3349 = vcmp.eq.f32.partialorder %v3323, inf
    %v3350 = vsel %vm3349, %v3323, %v3348
    %vm3351 = vcmp.eq.f32.partialorder %v3323, 0.0
    %v3352 = vand.u32 %v3323, 2147483648
    %v3353 = vsel %vm3351, %v3352, %v3350
    %v3354 = vadd.f32 %v3339, 1e-06
    %v3355 = vadd.f32 %v3346, 1e-06
    %v3356 = vadd.f32 %v3353, 1e-06
    %v3357 = vrcp.pop %v3354
    %v3358 = vmul.f32 %v3330, %v3357
    %v3359 = vrcp.pop %v3355
    %v3360 = vmul.f32 %v3331, %v3359
    %v3361 = vrcp.pop %v3356
    %v3362 = vmul.f32 %v3332, %v3361
    %v3364 = vlaneseq
    %v3365 = vshrl.u32 %v3364, 7
    %v3366 = vsub.s32 0, %v3365
    %v3367 = vrot.slane %v3293, %v3366
    %v3369 = vadd.f32 %v3358, %v3367
    %v3370 = vadd.f32 %v3360, %v3367
    %v3371 = vadd.f32 %v3362, %v3367
    %s3372 = scalar_lea.vmem %s37, 16
    %v3373 = vld [vmem:[%s3372] sm:$0xf]
    %v3374 = vld [vmem:[%s3372 + $0x4] sm:$0xf]
    %v3375 = vld [vmem:[%s3372 + $0x8] sm:$0xf]
    %v3376 = vld [vmem:[%s3372 + $0xc] sm:$0xf]
    %s3377 = scalar_lea.vmem %s39, 1
    %v3378 = vld [vmem:[%s3377] sm:$0x1]
    %v3379 = vpack.c.bf16 %v3370, %v3369
    %v3380 = vpack.c.bf16 %v3371, %v3371
    %v3382 = vlaneseq
    %v3383 = vshrl.u32 %v3382, 7
    %v3384 = vsub.s32 0, %v3383
    %v3385 = vrot.slane %v3378, %v3384
    %v3391 = vunpack.c.l.b16 %v3373
    %v3392 = vunpack.c.l.b16 %v3374
    %v3393 = vunpack.c.l.b16 %v3375
    %v3394 = vunpack.c.l.b16 %v3376
    %v3395 = vpack.c.b16 %v3392, %v3391
    %v3396 = vpack.c.b16 %v3394, %v3393
    %v3400 = vsel %vm627, %v3379, 0
    %v3403 = vsel %vm627, %v3380, 0
    %3405 = vmatprep.subr.bf16.mxu0 0
    %3406 = vmatpush1.bf16.msra.mxu0 %v3395
    %3407 = vmatprep.subr.bf16.mxu0 0
    %3408 = vmatpush1.bf16.msra.mxu0 %v3396
    %3409 = vmatprep.subr.bf16.mxu0 0
    %3410 = vmatpush1.bf16.msra.mxu0 0
    %3411 = vmatprep.subr.bf16.mxu0 0
    %3412 = vmatpush1.bf16.msra.mxu0 0
    %3413 = vmatprep.subr.bf16.mxu0 0
    %3414 = vmatpush1.bf16.msra.mxu0 0
    %3415 = vmatprep.subr.bf16.mxu0 0
    %3416 = vmatpush1.bf16.msra.mxu0 0
    %3417 = vmatprep.subr.bf16.mxu0 0
    %3418 = vmatpush1.bf16.msra.mxu0 0
    %3419 = vmatprep.subr.bf16.mxu0 0
    %3420 = vmatpush1.bf16.msra.mxu0 0
    %3421 = vmatprep.subr.bf16.mxu0 0
    %3422 = vmatpush1.bf16.msra.mxu0 0
    %3423 = vmatprep.subr.bf16.mxu0 0
    %3424 = vmatpush1.bf16.msra.mxu0 0
    %3425 = vmatprep.subr.bf16.mxu0 0
    %3426 = vmatpush1.bf16.msra.mxu0 0
    %3427 = vmatprep.subr.bf16.mxu0 0
    %3428 = vmatpush1.bf16.msra.mxu0 0
    %3429 = vmatprep.subr.bf16.mxu0 0
    %3430 = vmatpush1.bf16.msra.mxu0 0
    %3431 = vmatprep.subr.bf16.mxu0 0
    %3432 = vmatpush1.bf16.msra.mxu0 0
    %3433 = vmatprep.subr.bf16.mxu0 0
    %3434 = vmatpush1.bf16.msra.mxu0 0
    %3435 = vmatprep.subr.bf16.mxu0 0
    %3436 = vmatpush1.bf16.msra.mxu0 0
    %3437 = vmatprep.mubr.bf16.mxu0 0
    %3438 = vmatmul.mubr.bf16.gmra.mrb[0].mxu0 %v3400
    %v3439 = vpop.f32.mrb[0].mxu0
    %v3440 = vadd.f32 %v3385, %v3439
    %v3441 = vpop.f32.mrb[0].mxu0
    %v3442 = vpop.f32.mrb[0].mxu0
    %v3443 = vadd.f32 %v3385, %v3442
    %v3444 = vpop.f32.mrb[0].mxu0
    %3445 = vmatprep.mubr.bf16.mxu0 0
    %3446 = vmatmul.mubr.bf16.gmra.mrb[0].mxu0 %v3403
    %v3447 = vpop.f32.mrb[0].mxu0
    %v3448 = vadd.f32 %v3385, %v3447
    %v3449 = vpop.f32.mrb[0].mxu0
    %v3450 = vpop.f32.mrb[0].mxu0
    %v3451 = vpop.f32.mrb[0].mxu0
    %3452 = vdwg.mxu0
    %v3455 = vrot.slane %v3440, 7
    %v3456 = vrot.slane %v3443, 7
    %v3457 = vsel %vm1785, %v3455, %v3456
    %3458 = vrot.lane.b32.xlu0 %v3455, 120
    %v3459 = vpop.permute.xlu0 %3458
    %3460 = vrot.lane.b32.xlu0 %v3457, 120
    %v3461 = vpop.permute.xlu0 %3460
    %v3464 = vrot.slane %v3440, 6
    %v3465 = vrot.slane %v3443, 6
    %v3466 = vsel %vm1690, %v3464, %v3465
    %3467 = vrot.lane.b32.xlu0 %v3464, 112
    %v3468 = vpop.permute.xlu0 %3467
    %3469 = vrot.lane.b32.xlu0 %v3466, 112
    %v3470 = vpop.permute.xlu0 %3469
    %v3473 = vrot.slane %v3440, 5
    %v3474 = vrot.slane %v3443, 5
    %v3475 = vsel %vm1996, %v3473, %v3474
    %3476 = vrot.lane.b32.xlu0 %v3473, 104
    %v3477 = vpop.permute.xlu0 %3476
    %3478 = vrot.lane.b32.xlu0 %v3475, 104
    %v3479 = vpop.permute.xlu0 %3478
    %v3481 = vsel %vm1785, %v3443, %v3459
    %v3482 = vsel %vm1690, %v3461, %v3468
    %v3483 = vsel %vm1996, %v3470, %v3477
    %3487 = vrot.lane.b32.xlu0 %v3440, 96
    %v3488 = vpop.permute.xlu0 %3487
    %3489 = vrot.lane.b32.xlu0 %v3481, 96
    %v3490 = vpop.permute.xlu0 %3489
    %3491 = vrot.lane.b32.xlu0 %v3482, 96
    %v3492 = vpop.permute.xlu0 %3491
    %3493 = vrot.lane.b32.xlu0 %v3483, 96
    %v3494 = vpop.permute.xlu0 %3493
    %3495 = vrot.lane.b32.xlu0 %v3479, 96
    %v3496 = vpop.permute.xlu0 %3495
    %v3497 = vsel %vm2180, %v3440, 0
    %v3499 = vsel %vm2180, %v3481, 0
    %v3501 = vsel %vm2180, %v3482, 0
    %v3503 = vsel %vm2180, %v3483, 0
    %v3505 = vsel %vm2180, %v3479, 0
    %v3507 = vsel %vm2180, %v3488, 0
    %v3509 = vsel %vm2180, %v3490, 0
    %v3511 = vsel %vm2180, %v3492, 0
    %v3513 = vsel %vm2180, %v3494, 0
    %v3515 = vsel %vm2180, %v3496, 0
    %3517 = vmatprep.subr.mxu0 0.0
    %3518 = vmatpush1.xpose.msra.mxu0 %v3507
    %3519 = vmatprep.subr.mxu0 0.0
    %3520 = vmatpush1.xpose.msra.mxu0 %v3509
    %3521 = vmatprep.subr.mxu0 0.0
    %3522 = vmatpush1.xpose.msra.mxu0 %v3511
    %3523 = vmatprep.subr.mxu0 0.0
    %3524 = vmatpush1.xpose.msra.mxu0 %v3513
    %3525 = vmatprep.subr.mxu0 0.0
    %3526 = vmatpush1.xpose.msra.mxu0 %v3515
    %3527 = vmatprep.subr.mxu0 0.0
    %3528 = vmatpush1.xpose.msra.mxu0 0.0
    %3529 = vmatprep.subr.mxu0 0.0
    %3530 = vmatpush1.xpose.msra.mxu0 0.0
    %3531 = vmatprep.subr.mxu0 0.0
    %3532 = vmatpush1.xpose.msra.mxu0 0.0
    %3533 = vmatprep.subr.mxu0 0.0
    %3534 = vmatpush1.xpose.msra.mxu0 0.0
    %3535 = vmatprep.subr.mxu0 0.0
    %3536 = vmatpush1.xpose.msra.mxu0 0.0
    %3537 = vmatprep.subr.mxu0 0.0
    %3538 = vmatpush1.xpose.msra.mxu0 0.0
    %3539 = vmatprep.subr.mxu0 0.0
    %3540 = vmatpush1.xpose.msra.mxu0 0.0
    %3541 = vmatprep.subr.mxu0 0.0
    %3542 = vmatpush1.xpose.msra.mxu0 0.0
    %3543 = vmatprep.subr.mxu0 0.0
    %3544 = vmatpush1.xpose.msra.mxu0 0.0
    %3545 = vmatprep.subr.mxu0 0.0
    %3546 = vmatpush1.xpose.msra.mxu0 0.0
    %3547 = vmatprep.subr.mxu0 0.0
    %3548 = vmatpush1.xpose.msra.mxu0 0.0
    %3549 = vmatprep.subr.mxu0 0.0
    %3550 = vmatpush1.xpose.msra.mxu0 0.0
    %3551 = vmatprep.subr.mxu0 0.0
    %3552 = vmatpush1.xpose.msra.mxu0 0.0
    %3553 = vmatprep.subr.mxu0 0.0
    %3554 = vmatpush1.xpose.msra.mxu0 0.0
    %3555 = vmatprep.subr.mxu0 0.0
    %3556 = vmatpush1.xpose.msra.mxu0 0.0
    %3557 = vmatprep.subr.mxu0 0.0
    %3558 = vmatpush1.xpose.msra.mxu0 0.0
    %3559 = vmatprep.subr.mxu0 0.0
    %3560 = vmatpush1.xpose.msra.mxu0 0.0
    %3561 = vmatprep.subr.mxu0 0.0
    %3562 = vmatpush1.xpose.msra.mxu0 0.0
    %3563 = vmatprep.subr.mxu0 0.0
    %3564 = vmatpush1.xpose.msra.mxu0 0.0
    %3565 = vmatprep.subr.mxu0 0.0
    %3566 = vmatpush1.xpose.msra.mxu0 0.0
    %3567 = vmatprep.subr.mxu0 0.0
    %3568 = vmatpush1.xpose.msra.mxu0 0.0
    %3569 = vmatprep.subr.mxu0 0.0
    %3570 = vmatpush1.xpose.msra.mxu0 0.0
    %3571 = vmatprep.subr.mxu0 0.0
    %3572 = vmatpush1.xpose.msra.mxu0 0.0
    %3573 = vmatprep.subr.mxu0 0.0
    %3574 = vmatpush1.xpose.msra.mxu0 0.0
    %3575 = vmatprep.subr.mxu0 0.0
    %3576 = vmatpush1.xpose.msra.mxu0 0.0
    %3577 = vmatprep.subr.mxu0 0.0
    %3578 = vmatpush1.xpose.msra.mxu0 0.0
    %3579 = vmatprep.subr.mxu0 0.0
    %3580 = vmatpush1.xpose.msra.mxu0 0.0
    %3581 = vmatprep.mubr.f32.mxu0 0.0
    %3582 = vmatmul.mubr.f32.gmra.mrb[0].mxu0 %v3497
    %v3583 = vpop.f32.mrb[0].mxu0
    %v3584 = vadd.f32 0.0, %v3583
    %v3585 = vpop.f32.mrb[0].mxu0
    %3586 = vmatprep.mubr.f32.mxu0 0.0
    %3587 = vmatmul.mubr.f32.gmra.mrb[0].mxu0 %v3499
    %v3588 = vpop.f32.mrb[0].mxu0
    %v3589 = vadd.f32 0.0, %v3588
    %v3590 = vpop.f32.mrb[0].mxu0
    %3591 = vmatprep.mubr.f32.mxu0 0.0
    %3592 = vmatmul.mubr.f32.gmra.mrb[0].mxu0 %v3501
    %v3593 = vpop.f32.mrb[0].mxu0
    %v3594 = vadd.f32 0.0, %v3593
    %v3595 = vpop.f32.mrb[0].mxu0
    %3596 = vmatprep.mubr.f32.mxu0 0.0
    %3597 = vmatmul.mubr.f32.gmra.mrb[0].mxu0 %v3503
    %v3598 = vpop.f32.mrb[0].mxu0
    %v3599 = vadd.f32 0.0, %v3598
    %v3600 = vpop.f32.mrb[0].mxu0
    %3601 = vmatprep.mubr.f32.mxu0 0.0
    %3602 = vmatmul.mubr.f32.gmra.mrb[0].mxu0 %v3505
    %v3603 = vpop.f32.mrb[0].mxu0
    %v3604 = vadd.f32 0.0, %v3603
    %v3605 = vpop.f32.mrb[0].mxu0
    %3606 = vdwg.mxu0
    %v3607 = vmul.f32 %v3584, 0.35355338
    %v3608 = vmul.f32 %v3589, 0.35355338
    %v3609 = vmul.f32 %v3594, 0.35355338
    %v3610 = vmul.f32 %v3599, 0.35355338
    %v3611 = vmul.f32 %v3604, 0.35355338
    %v3612 = vadd.f32 %v3607, %v2023
    %v3613 = vadd.f32 %v3608, %v2024
    %v3614 = vadd.f32 %v3609, %v2025
    %v3615 = vadd.f32 %v3610, %v2026
    %v3616 = vadd.f32 %v3611, %v2027
    %v3617 = vadd.f32 %v3612, %v2304
    %v3618 = vadd.f32 %v3613, %v2304
    %v3619 = vadd.f32 %v3614, %v2304
    %v3620 = vadd.f32 %v3615, %v2304
    %v3621 = vadd.f32 %v3616, %v2304
    %v3622 = vsel %vm2310, %v3617, -inf
    %3623 = vmax.xlane.f32.xlu0 %v3622
    %v3624 = vpop.xlane.xlu0 %3623
    %v3625 = vsel %vm2310, %v3618, -inf
    %3626 = vmax.xlane.f32.xlu0 %v3625
    %v3627 = vpop.xlane.xlu0 %3626
    %v3628 = vsel %vm2310, %v3619, -inf
    %3629 = vmax.xlane.f32.xlu0 %v3628
    %v3630 = vpop.xlane.xlu0 %3629
    %v3631 = vsel %vm2310, %v3620, -inf
    %3632 = vmax.xlane.f32.xlu0 %v3631
    %v3633 = vpop.xlane.xlu0 %3632
    %v3634 = vsel %vm2323, %v3621, -inf
    %3635 = vmax.xlane.f32.xlu0 %v3634
    %v3636 = vpop.xlane.xlu0 %3635
    %v3637 = vsub.f32 %v3617, %v3624
    %v3638 = vsub.f32 %v3618, %v3627
    %v3639 = vsub.f32 %v3619, %v3630
    %v3640 = vsub.f32 %v3620, %v3633
    %v3641 = vsub.f32 %v3621, %v3636
    %v3642 = vmul.f32 %v3637, 1.442695
    %v3643 = vpow.pop %v3642
    %v3644 = vmul.f32 %v3638, 1.442695
    %v3645 = vpow.pop %v3644
    %v3646 = vmul.f32 %v3639, 1.442695
    %v3647 = vpow.pop %v3646
    %v3648 = vmul.f32 %v3640, 1.442695
    %v3649 = vpow.pop %v3648
    %v3650 = vmul.f32 %v3641, 1.442695
    %v3651 = vpow.pop %v3650
    %v3652 = vsel %vm2310, %v3643, 0.0
    %3653 = vadd.xlane.f32.xlu0 %v3652
    %v3654 = vpop.xlane.xlu0 %3653
    %v3655 = vsel %vm2310, %v3645, 0.0
    %3656 = vadd.xlane.f32.xlu0 %v3655
    %v3657 = vpop.xlane.xlu0 %3656
    %v3658 = vsel %vm2310, %v3647, 0.0
    %3659 = vadd.xlane.f32.xlu0 %v3658
    %v3660 = vpop.xlane.xlu0 %3659
    %v3661 = vsel %vm2310, %v3649, 0.0
    %3662 = vadd.xlane.f32.xlu0 %v3661
    %v3663 = vpop.xlane.xlu0 %3662
    %v3664 = vsel %vm2323, %v3651, 0.0
    %3665 = vadd.xlane.f32.xlu0 %v3664
    %v3666 = vpop.xlane.xlu0 %3665
    %v3667 = vrcp.pop %v3654
    %v3668 = vmul.f32 %v3643, %v3667
    %v3669 = vrcp.pop %v3657
    %v3670 = vmul.f32 %v3645, %v3669
    %v3671 = vrcp.pop %v3660
    %v3672 = vmul.f32 %v3647, %v3671
    %v3673 = vrcp.pop %v3663
    %v3674 = vmul.f32 %v3649, %v3673
    %v3675 = vrcp.pop %v3666
    %v3676 = vmul.f32 %v3651, %v3675
    %3678 = vrot.lane.b32.xlu0 %v3670, 119
    %v3679 = vpop.permute.xlu0 %3678
    %3682 = vrot.lane.b32.xlu0 %v3672, 110
    %v3683 = vpop.permute.xlu0 %3682
    %3686 = vrot.lane.b32.xlu0 %v3674, 101
    %v3687 = vpop.permute.xlu0 %3686
    %v3689 = vsel %vm1785, %v3668, %v3679
    %v3690 = vsel %vm1690, %v3689, %v3683
    %v3691 = vsel %vm1996, %v3690, %v3687
    %s3692 = scalar_lea.vmem [#allocation36], 4
    %3693 = vst.msk [vmem:[%s3692] sm:$0xf] %vm2382, %v3691
    %3694 = vrot.lane.b32.xlu0 %v3440, 64
    %v3695 = vpop.permute.xlu0 %3694
    %3696 = vrot.lane.b32.xlu0 %v3481, 64
    %v3697 = vpop.permute.xlu0 %3696
    %3698 = vrot.lane.b32.xlu0 %v3482, 64
    %v3699 = vpop.permute.xlu0 %3698
    %3700 = vrot.lane.b32.xlu0 %v3483, 64
    %v3701 = vpop.permute.xlu0 %3700
    %3702 = vrot.lane.b32.xlu0 %v3479, 64
    %v3703 = vpop.permute.xlu0 %3702
    %v3709 = vsel %vm2310, %v3668, 0
    %v3711 = vsel %vm2310, %v3670, 0
    %v3713 = vsel %vm2310, %v3672, 0
    %v3715 = vsel %vm2310, %v3674, 0
    %v3718 = vsel %vm2310, %v3676, 0
    %v3720 = vsel %vm524, %v3703, 0
    %3722 = vmatprep.subr.mxu0 0.0
    %3723 = vmatpush1.msra.mxu0 %v3695
    %3724 = vmatprep.subr.mxu0 0.0
    %3725 = vmatpush1.msra.mxu0 %v3697
    %3726 = vmatprep.subr.mxu0 0.0
    %3727 = vmatpush1.msra.mxu0 %v3699
    %3728 = vmatprep.subr.mxu0 0.0
    %3729 = vmatpush1.msra.mxu0 %v3701
    %3730 = vmatprep.subr.mxu0 0.0
    %3731 = vmatpush1.msra.mxu0 %v3720
    %3732 = vmatprep.subr.mxu0 0.0
    %3733 = vmatpush1.msra.mxu0 0.0
    %3734 = vmatprep.subr.mxu0 0.0
    %3735 = vmatpush1.msra.mxu0 0.0
    %3736 = vmatprep.subr.mxu0 0.0
    %3737 = vmatpush1.msra.mxu0 0.0
    %3738 = vmatprep.subr.mxu0 0.0
    %3739 = vmatpush1.msra.mxu0 0.0
    %3740 = vmatprep.subr.mxu0 0.0
    %3741 = vmatpush1.msra.mxu0 0.0
    %3742 = vmatprep.subr.mxu0 0.0
    %3743 = vmatpush1.msra.mxu0 0.0
    %3744 = vmatprep.subr.mxu0 0.0
    %3745 = vmatpush1.msra.mxu0 0.0
    %3746 = vmatprep.subr.mxu0 0.0
    %3747 = vmatpush1.msra.mxu0 0.0
    %3748 = vmatprep.subr.mxu0 0.0
    %3749 = vmatpush1.msra.mxu0 0.0
    %3750 = vmatprep.subr.mxu0 0.0
    %3751 = vmatpush1.msra.mxu0 0.0
    %3752 = vmatprep.subr.mxu0 0.0
    %3753 = vmatpush1.msra.mxu0 0.0
    %3754 = vmatprep.subr.mxu0 0.0
    %3755 = vmatpush1.msra.mxu0 0.0
    %3756 = vmatprep.subr.mxu0 0.0
    %3757 = vmatpush1.msra.mxu0 0.0
    %3758 = vmatprep.subr.mxu0 0.0
    %3759 = vmatpush1.msra.mxu0 0.0
    %3760 = vmatprep.subr.mxu0 0.0
    %3761 = vmatpush1.msra.mxu0 0.0
    %3762 = vmatprep.subr.mxu0 0.0
    %3763 = vmatpush1.msra.mxu0 0.0
    %3764 = vmatprep.subr.mxu0 0.0
    %3765 = vmatpush1.msra.mxu0 0.0
    %3766 = vmatprep.subr.mxu0 0.0
    %3767 = vmatpush1.msra.mxu0 0.0
    %3768 = vmatprep.subr.mxu0 0.0
    %3769 = vmatpush1.msra.mxu0 0.0
    %3770 = vmatprep.subr.mxu0 0.0
    %3771 = vmatpush1.msra.mxu0 0.0
    %3772 = vmatprep.subr.mxu0 0.0
    %3773 = vmatpush1.msra.mxu0 0.0
    %3774 = vmatprep.subr.mxu0 0.0
    %3775 = vmatpush1.msra.mxu0 0.0
    %3776 = vmatprep.subr.mxu0 0.0
    %3777 = vmatpush1.msra.mxu0 0.0
    %3778 = vmatprep.subr.mxu0 0.0
    %3779 = vmatpush1.msra.mxu0 0.0
    %3780 = vmatprep.subr.mxu0 0.0
    %3781 = vmatpush1.msra.mxu0 0.0
    %3782 = vmatprep.subr.mxu0 0.0
    %3783 = vmatpush1.msra.mxu0 0.0
    %3784 = vmatprep.subr.mxu0 0.0
    %3785 = vmatpush1.msra.mxu0 0.0
    %3786 = vmatprep.mubr.f32.mxu0 0.0
    %3787 = vmatmul.mubr.f32.gmra.mrb[0].mxu0 %v3709
    %v3788 = vpop.f32.mrb[0].mxu0
    %v3789 = vadd.f32 0.0, %v3788
    %v3790 = vpop.f32.mrb[0].mxu0
    %3791 = vmatprep.mubr.f32.mxu0 0.0
    %3792 = vmatmul.mubr.f32.gmra.mrb[0].mxu0 %v3711
    %v3793 = vpop.f32.mrb[0].mxu0
    %v3794 = vadd.f32 0.0, %v3793
    %v3795 = vpop.f32.mrb[0].mxu0
    %3796 = vmatprep.mubr.f32.mxu0 0.0
    %3797 = vmatmul.mubr.f32.gmra.mrb[0].mxu0 %v3713
    %v3798 = vpop.f32.mrb[0].mxu0
    %v3799 = vadd.f32 0.0, %v3798
    %v3800 = vpop.f32.mrb[0].mxu0
    %3801 = vmatprep.mubr.f32.mxu0 0.0
    %3802 = vmatmul.mubr.f32.gmra.mrb[0].mxu0 %v3715
    %v3803 = vpop.f32.mrb[0].mxu0
    %v3804 = vadd.f32 0.0, %v3803
    %v3805 = vpop.f32.mrb[0].mxu0
    %3806 = vmatprep.mubr.f32.mxu0 0.0
    %3807 = vmatmul.mubr.f32.gmra.mrb[0].mxu0 %v3718
    %v3808 = vpop.f32.mrb[0].mxu0
    %v3809 = vadd.f32 0.0, %v3808
    %v3810 = vpop.f32.mrb[0].mxu0
    %3811 = vdwg.mxu0
    %v3814 = vrot.slane %v3794, 1
    %v3815 = vrot.slane %v3799, 1
    %v3816 = vsel %vm2002, %v3814, %v3815
    %3817 = vrot.lane.b32.xlu0 %v3816, 8
    %v3818 = vpop.permute.xlu0 %3817
    %3819 = vrot.lane.b32.xlu0 %v3815, 8
    %v3820 = vpop.permute.xlu0 %3819
    %v3824 = vrot.slane %v3799, 2
    %v3825 = vrot.slane %v3804, 2
    %v3826 = vsel %vm1693, %v3824, %v3825
    %3827 = vrot.lane.b32.xlu0 %v3826, 16
    %v3828 = vpop.permute.xlu0 %3827
    %3829 = vrot.lane.b32.xlu0 %v3825, 16
    %v3830 = vpop.permute.xlu0 %3829
    %v3834 = vrot.slane %v3804, 3
    %v3835 = vrot.slane %v3809, 3
    %v3836 = vsel %vm1999, %v3834, %v3835
    %3837 = vrot.lane.b32.xlu0 %v3836, 24
    %v3838 = vpop.permute.xlu0 %3837
    %3839 = vrot.lane.b32.xlu0 %v3835, 24
    %v3840 = vpop.permute.xlu0 %3839
    %v3843 = vsel %vm2180, %v3789, %v3818
    %v3844 = vsel %vm2180, %v3794, %v3820
    %v3845 = vsel %vm2535, %v3843, %v3828
    %v3846 = vsel %vm2535, %v3844, %v3830
    %v3847 = vsel %vm2538, %v3845, %v3838
    %v3848 = vsel %vm2538, %v3846, %v3840
    %v3850 = vrot.slane %v3443, 1
    %v3851 = vrot.slane %v3448, 1
    %v3852 = vsel %vm2002, %v3850, %v3851
    %3854 = vrot.lane.b32.xlu0 %v3443, 120
    %v3855 = vpop.permute.xlu0 %3854
    %3856 = vrot.lane.b32.xlu0 %v3448, 120
    %v3857 = vpop.permute.xlu0 %3856
    %v3860 = vrot.slane %v3448, 7
    %v3861 = vsel %vm1785, %v3456, %v3860
    %3862 = vrot.lane.b32.xlu0 %v3456, 112
    %v3863 = vpop.permute.xlu0 %3862
    %3864 = vrot.lane.b32.xlu0 %v3861, 112
    %v3865 = vpop.permute.xlu0 %3864
    %v3868 = vrot.slane %v3448, 6
    %v3869 = vsel %vm1690, %v3465, %v3868
    %3870 = vrot.lane.b32.xlu0 %v3465, 104
    %v3871 = vpop.permute.xlu0 %3870
    %3872 = vrot.lane.b32.xlu0 %v3869, 104
    %v3873 = vpop.permute.xlu0 %3872
    %v3875 = vsel %vm1785, %v3851, %v3855
    %v3876 = vsel %vm1690, %v3857, %v3863
    %v3877 = vsel %vm1996, %v3865, %v3871
    %3881 = vrot.lane.b32.xlu0 %v3852, 96
    %v3882 = vpop.permute.xlu0 %3881
    %3883 = vrot.lane.b32.xlu0 %v3875, 96
    %v3884 = vpop.permute.xlu0 %3883
    %3885 = vrot.lane.b32.xlu0 %v3876, 96
    %v3886 = vpop.permute.xlu0 %3885
    %3887 = vrot.lane.b32.xlu0 %v3877, 96
    %v3888 = vpop.permute.xlu0 %3887
    %3889 = vrot.lane.b32.xlu0 %v3873, 96
    %v3890 = vpop.permute.xlu0 %3889
    %v3891 = vsel %vm2180, %v3852, 0
    %v3893 = vsel %vm2180, %v3875, 0
    %v3895 = vsel %vm2180, %v3876, 0
    %v3897 = vsel %vm2180, %v3877, 0
    %v3899 = vsel %vm2180, %v3873, 0
    %v3901 = vsel %vm2180, %v3882, 0
    %v3903 = vsel %vm2180, %v3884, 0
    %v3905 = vsel %vm2180, %v3886, 0
    %v3907 = vsel %vm2180, %v3888, 0
    %v3909 = vsel %vm2180, %v3890, 0
    %3911 = vmatprep.subr.mxu0 0.0
    %3912 = vmatpush1.xpose.msra.mxu0 %v3901
    %3913 = vmatprep.subr.mxu0 0.0
    %3914 = vmatpush1.xpose.msra.mxu0 %v3903
    %3915 = vmatprep.subr.mxu0 0.0
    %3916 = vmatpush1.xpose.msra.mxu0 %v3905
    %3917 = vmatprep.subr.mxu0 0.0
    %3918 = vmatpush1.xpose.msra.mxu0 %v3907
    %3919 = vmatprep.subr.mxu0 0.0
    %3920 = vmatpush1.xpose.msra.mxu0 %v3909
    %3921 = vmatprep.subr.mxu0 0.0
    %3922 = vmatpush1.xpose.msra.mxu0 0.0
    %3923 = vmatprep.subr.mxu0 0.0
    %3924 = vmatpush1.xpose.msra.mxu0 0.0
    %3925 = vmatprep.subr.mxu0 0.0
    %3926 = vmatpush1.xpose.msra.mxu0 0.0
    %3927 = vmatprep.subr.mxu0 0.0
    %3928 = vmatpush1.xpose.msra.mxu0 0.0
    %3929 = vmatprep.subr.mxu0 0.0
    %3930 = vmatpush1.xpose.msra.mxu0 0.0
    %3931 = vmatprep.subr.mxu0 0.0
    %3932 = vmatpush1.xpose.msra.mxu0 0.0
    %3933 = vmatprep.subr.mxu0 0.0
    %3934 = vmatpush1.xpose.msra.mxu0 0.0
    %3935 = vmatprep.subr.mxu0 0.0
    %3936 = vmatpush1.xpose.msra.mxu0 0.0
    %3937 = vmatprep.subr.mxu0 0.0
    %3938 = vmatpush1.xpose.msra.mxu0 0.0
    %3939 = vmatprep.subr.mxu0 0.0
    %3940 = vmatpush1.xpose.msra.mxu0 0.0
    %3941 = vmatprep.subr.mxu0 0.0
    %3942 = vmatpush1.xpose.msra.mxu0 0.0
    %3943 = vmatprep.subr.mxu0 0.0
    %3944 = vmatpush1.xpose.msra.mxu0 0.0
    %3945 = vmatprep.subr.mxu0 0.0
    %3946 = vmatpush1.xpose.msra.mxu0 0.0
    %3947 = vmatprep.subr.mxu0 0.0
    %3948 = vmatpush1.xpose.msra.mxu0 0.0
    %3949 = vmatprep.subr.mxu0 0.0
    %3950 = vmatpush1.xpose.msra.mxu0 0.0
    %3951 = vmatprep.subr.mxu0 0.0
    %3952 = vmatpush1.xpose.msra.mxu0 0.0
    %3953 = vmatprep.subr.mxu0 0.0
    %3954 = vmatpush1.xpose.msra.mxu0 0.0
    %3955 = vmatprep.subr.mxu0 0.0
    %3956 = vmatpush1.xpose.msra.mxu0 0.0
    %3957 = vmatprep.subr.mxu0 0.0
    %3958 = vmatpush1.xpose.msra.mxu0 0.0
    %3959 = vmatprep.subr.mxu0 0.0
    %3960 = vmatpush1.xpose.msra.mxu0 0.0
    %3961 = vmatprep.subr.mxu0 0.0
    %3962 = vmatpush1.xpose.msra.mxu0 0.0
    %3963 = vmatprep.subr.mxu0 0.0
    %3964 = vmatpush1.xpose.msra.mxu0 0.0
    %3965 = vmatprep.subr.mxu0 0.0
    %3966 = vmatpush1.xpose.msra.mxu0 0.0
    %3967 = vmatprep.subr.mxu0 0.0
    %3968 = vmatpush1.xpose.msra.mxu0 0.0
    %3969 = vmatprep.subr.mxu0 0.0
    %3970 = vmatpush1.xpose.msra.mxu0 0.0
    %3971 = vmatprep.subr.mxu0 0.0
    %3972 = vmatpush1.xpose.msra.mxu0 0.0
    %3973 = vmatprep.subr.mxu0 0.0
    %3974 = vmatpush1.xpose.msra.mxu0 0.0
    %3975 = vmatprep.mubr.f32.mxu0 0.0
    %3976 = vmatmul.mubr.f32.gmra.mrb[0].mxu0 %v3891
    %v3977 = vpop.f32.mrb[0].mxu0
    %v3978 = vadd.f32 0.0, %v3977
    %v3979 = vpop.f32.mrb[0].mxu0
    %3980 = vmatprep.mubr.f32.mxu0 0.0
    %3981 = vmatmul.mubr.f32.gmra.mrb[0].mxu0 %v3893
    %v3982 = vpop.f32.mrb[0].mxu0
    %v3983 = vadd.f32 0.0, %v3982
    %v3984 = vpop.f32.mrb[0].mxu0
    %3985 = vmatprep.mubr.f32.mxu0 0.0
    %3986 = vmatmul.mubr.f32.gmra.mrb[0].mxu0 %v3895
    %v3987 = vpop.f32.mrb[0].mxu0
    %v3988 = vadd.f32 0.0, %v3987
    %v3989 = vpop.f32.mrb[0].mxu0
    %3990 = vmatprep.mubr.f32.mxu0 0.0
    %3991 = vmatmul.mubr.f32.gmra.mrb[0].mxu0 %v3897
    %v3992 = vpop.f32.mrb[0].mxu0
    %v3993 = vadd.f32 0.0, %v3992
    %v3994 = vpop.f32.mrb[0].mxu0
    %3995 = vmatprep.mubr.f32.mxu0 0.0
    %3996 = vmatmul.mubr.f32.gmra.mrb[0].mxu0 %v3899
    %v3997 = vpop.f32.mrb[0].mxu0
    %v3998 = vadd.f32 0.0, %v3997
    %v3999 = vpop.f32.mrb[0].mxu0
    %4000 = vdwg.mxu0
    %v4001 = vmul.f32 %v3978, 0.35355338
    %v4002 = vmul.f32 %v3983, 0.35355338
    %v4003 = vmul.f32 %v3988, 0.35355338
    %v4004 = vmul.f32 %v3993, 0.35355338
    %v4005 = vmul.f32 %v3998, 0.35355338
    %v4006 = vadd.f32 %v4001, %v2023
    %v4007 = vadd.f32 %v4002, %v2024
    %v4008 = vadd.f32 %v4003, %v2025
    %v4009 = vadd.f32 %v4004, %v2026
    %v4010 = vadd.f32 %v4005, %v2027
    %v4011 = vadd.f32 %v4006, %v2706
    %v4012 = vadd.f32 %v4007, %v2706
    %v4013 = vadd.f32 %v4008, %v2706
    %v4014 = vadd.f32 %v4009, %v2706
    %v4015 = vadd.f32 %v4010, %v2706
    %v4016 = vsel %vm2310, %v4011, -inf
    %4017 = vmax.xlane.f32.xlu0 %v4016
    %v4018 = vpop.xlane.xlu0 %4017
    %v4019 = vsel %vm2310, %v4012, -inf
    %4020 = vmax.xlane.f32.xlu0 %v4019
    %v4021 = vpop.xlane.xlu0 %4020
    %v4022 = vsel %vm2310, %v4013, -inf
    %4023 = vmax.xlane.f32.xlu0 %v4022
    %v4024 = vpop.xlane.xlu0 %4023
    %v4025 = vsel %vm2310, %v4014, -inf
    %4026 = vmax.xlane.f32.xlu0 %v4025
    %v4027 = vpop.xlane.xlu0 %4026
    %v4028 = vsel %vm2323, %v4015, -inf
    %4029 = vmax.xlane.f32.xlu0 %v4028
    %v4030 = vpop.xlane.xlu0 %4029
    %v4031 = vsub.f32 %v4011, %v4018
    %v4032 = vsub.f32 %v4012, %v4021
    %v4033 = vsub.f32 %v4013, %v4024
    %v4034 = vsub.f32 %v4014, %v4027
    %v4035 = vsub.f32 %v4015, %v4030
    %v4036 = vmul.f32 %v4031, 1.442695
    %v4037 = vpow.pop %v4036
    %v4038 = vmul.f32 %v4032, 1.442695
    %v4039 = vpow.pop %v4038
    %v4040 = vmul.f32 %v4033, 1.442695
    %v4041 = vpow.pop %v4040
    %v4042 = vmul.f32 %v4034, 1.442695
    %v4043 = vpow.pop %v4042
    %v4044 = vmul.f32 %v4035, 1.442695
    %v4045 = vpow.pop %v4044
    %v4046 = vsel %vm2310, %v4037, 0.0
    %4047 = vadd.xlane.f32.xlu0 %v4046
    %v4048 = vpop.xlane.xlu0 %4047
    %v4049 = vsel %vm2310, %v4039, 0.0
    %4050 = vadd.xlane.f32.xlu0 %v4049
    %v4051 = vpop.xlane.xlu0 %4050
    %v4052 = vsel %vm2310, %v4041, 0.0
    %4053 = vadd.xlane.f32.xlu0 %v4052
    %v4054 = vpop.xlane.xlu0 %4053
    %v4055 = vsel %vm2310, %v4043, 0.0
    %4056 = vadd.xlane.f32.xlu0 %v4055
    %v4057 = vpop.xlane.xlu0 %4056
    %v4058 = vsel %vm2323, %v4045, 0.0
    %4059 = vadd.xlane.f32.xlu0 %v4058
    %v4060 = vpop.xlane.xlu0 %4059
    %v4061 = vrcp.pop %v4048
    %v4062 = vmul.f32 %v4037, %v4061
    %v4063 = vrcp.pop %v4051
    %v4064 = vmul.f32 %v4039, %v4063
    %v4065 = vrcp.pop %v4054
    %v4066 = vmul.f32 %v4041, %v4065
    %v4067 = vrcp.pop %v4057
    %v4068 = vmul.f32 %v4043, %v4067
    %v4069 = vrcp.pop %v4060
    %v4070 = vmul.f32 %v4045, %v4069
    %4072 = vrot.lane.b32.xlu0 %v4064, 119
    %v4073 = vpop.permute.xlu0 %4072
    %4076 = vrot.lane.b32.xlu0 %v4066, 110
    %v4077 = vpop.permute.xlu0 %4076
    %4080 = vrot.lane.b32.xlu0 %v4068, 101
    %v4081 = vpop.permute.xlu0 %4080
    %v4083 = vsel %vm1785, %v4062, %v4073
    %v4084 = vsel %vm1690, %v4083, %v4077
    %v4085 = vsel %vm1996, %v4084, %v4081
    %s4086 = scalar_lea.vmem [#allocation36], 12
    %4087 = vst.msk [vmem:[%s4086] sm:$0xf] %vm2382, %v4085
    %4088 = vrot.lane.b32.xlu0 %v3852, 64
    %v4089 = vpop.permute.xlu0 %4088
    %4090 = vrot.lane.b32.xlu0 %v3875, 64
    %v4091 = vpop.permute.xlu0 %4090
    %4092 = vrot.lane.b32.xlu0 %v3876, 64
    %v4093 = vpop.permute.xlu0 %4092
    %4094 = vrot.lane.b32.xlu0 %v3877, 64
    %v4095 = vpop.permute.xlu0 %4094
    %4096 = vrot.lane.b32.xlu0 %v3873, 64
    %v4097 = vpop.permute.xlu0 %4096
    %v4103 = vsel %vm2310, %v4062, 0
    %v4105 = vsel %vm2310, %v4064, 0
    %v4107 = vsel %vm2310, %v4066, 0
    %v4109 = vsel %vm2310, %v4068, 0
    %v4112 = vsel %vm2310, %v4070, 0
    %v4114 = vsel %vm524, %v4097, 0
    %4116 = vmatprep.subr.mxu0 0.0
    %4117 = vmatpush1.msra.mxu0 %v4089
    %4118 = vmatprep.subr.mxu0 0.0
    %4119 = vmatpush1.msra.mxu0 %v4091
    %4120 = vmatprep.subr.mxu0 0.0
    %4121 = vmatpush1.msra.mxu0 %v4093
    %4122 = vmatprep.subr.mxu0 0.0
    %4123 = vmatpush1.msra.mxu0 %v4095
    %4124 = vmatprep.subr.mxu0 0.0
    %4125 = vmatpush1.msra.mxu0 %v4114
    %4126 = vmatprep.subr.mxu0 0.0
    %4127 = vmatpush1.msra.mxu0 0.0
    %4128 = vmatprep.subr.mxu0 0.0
    %4129 = vmatpush1.msra.mxu0 0.0
    %4130 = vmatprep.subr.mxu0 0.0
    %4131 = vmatpush1.msra.mxu0 0.0
    %4132 = vmatprep.subr.mxu0 0.0
    %4133 = vmatpush1.msra.mxu0 0.0
    %4134 = vmatprep.subr.mxu0 0.0
    %4135 = vmatpush1.msra.mxu0 0.0
    %4136 = vmatprep.subr.mxu0 0.0
    %4137 = vmatpush1.msra.mxu0 0.0
    %4138 = vmatprep.subr.mxu0 0.0
    %4139 = vmatpush1.msra.mxu0 0.0
    %4140 = vmatprep.subr.mxu0 0.0
    %4141 = vmatpush1.msra.mxu0 0.0
    %4142 = vmatprep.subr.mxu0 0.0
    %4143 = vmatpush1.msra.mxu0 0.0
    %4144 = vmatprep.subr.mxu0 0.0
    %4145 = vmatpush1.msra.mxu0 0.0
    %4146 = vmatprep.subr.mxu0 0.0
    %4147 = vmatpush1.msra.mxu0 0.0
    %4148 = vmatprep.subr.mxu0 0.0
    %4149 = vmatpush1.msra.mxu0 0.0
    %4150 = vmatprep.subr.mxu0 0.0
    %4151 = vmatpush1.msra.mxu0 0.0
    %4152 = vmatprep.subr.mxu0 0.0
    %4153 = vmatpush1.msra.mxu0 0.0
    %4154 = vmatprep.subr.mxu0 0.0
    %4155 = vmatpush1.msra.mxu0 0.0
    %4156 = vmatprep.subr.mxu0 0.0
    %4157 = vmatpush1.msra.mxu0 0.0
    %4158 = vmatprep.subr.mxu0 0.0
    %4159 = vmatpush1.msra.mxu0 0.0
    %4160 = vmatprep.subr.mxu0 0.0
    %4161 = vmatpush1.msra.mxu0 0.0
    %4162 = vmatprep.subr.mxu0 0.0
    %4163 = vmatpush1.msra.mxu0 0.0
    %4164 = vmatprep.subr.mxu0 0.0
    %4165 = vmatpush1.msra.mxu0 0.0
    %4166 = vmatprep.subr.mxu0 0.0
    %4167 = vmatpush1.msra.mxu0 0.0
    %4168 = vmatprep.subr.mxu0 0.0
    %4169 = vmatpush1.msra.mxu0 0.0
    %4170 = vmatprep.subr.mxu0 0.0
    %4171 = vmatpush1.msra.mxu0 0.0
    %4172 = vmatprep.subr.mxu0 0.0
    %4173 = vmatpush1.msra.mxu0 0.0
    %4174 = vmatprep.subr.mxu0 0.0
    %4175 = vmatpush1.msra.mxu0 0.0
    %4176 = vmatprep.subr.mxu0 0.0
    %4177 = vmatpush1.msra.mxu0 0.0
    %4178 = vmatprep.subr.mxu0 0.0
    %4179 = vmatpush1.msra.mxu0 0.0
    %4180 = vmatprep.mubr.f32.mxu0 0.0
    %4181 = vmatmul.mubr.f32.gmra.mrb[0].mxu0 %v4103
    %v4182 = vpop.f32.mrb[0].mxu0
    %v4183 = vadd.f32 0.0, %v4182
    %v4184 = vpop.f32.mrb[0].mxu0
    %4185 = vmatprep.mubr.f32.mxu0 0.0
    %4186 = vmatmul.mubr.f32.gmra.mrb[0].mxu0 %v4105
    %v4187 = vpop.f32.mrb[0].mxu0
    %v4188 = vadd.f32 0.0, %v4187
    %v4189 = vpop.f32.mrb[0].mxu0
    %4190 = vmatprep.mubr.f32.mxu0 0.0
    %4191 = vmatmul.mubr.f32.gmra.mrb[0].mxu0 %v4107
    %v4192 = vpop.f32.mrb[0].mxu0
    %v4193 = vadd.f32 0.0, %v4192
    %v4194 = vpop.f32.mrb[0].mxu0
    %4195 = vmatprep.mubr.f32.mxu0 0.0
    %4196 = vmatmul.mubr.f32.gmra.mrb[0].mxu0 %v4109
    %v4197 = vpop.f32.mrb[0].mxu0
    %v4198 = vadd.f32 0.0, %v4197
    %v4199 = vpop.f32.mrb[0].mxu0
    %4200 = vmatprep.mubr.f32.mxu0 0.0
    %4201 = vmatmul.mubr.f32.gmra.mrb[0].mxu0 %v4112
    %v4202 = vpop.f32.mrb[0].mxu0
    %v4203 = vadd.f32 0.0, %v4202
    %v4204 = vpop.f32.mrb[0].mxu0
    %4205 = vdwg.mxu0
    %v4208 = vrot.slane %v4188, 1
    %v4209 = vrot.slane %v4193, 1
    %v4210 = vsel %vm2002, %v4208, %v4209
    %4211 = vrot.lane.b32.xlu0 %v4210, 8
    %v4212 = vpop.permute.xlu0 %4211
    %4213 = vrot.lane.b32.xlu0 %v4209, 8
    %v4214 = vpop.permute.xlu0 %4213
    %v4218 = vrot.slane %v4193, 2
    %v4219 = vrot.slane %v4198, 2
    %v4220 = vsel %vm1693, %v4218, %v4219
    %4221 = vrot.lane.b32.xlu0 %v4220, 16
    %v4222 = vpop.permute.xlu0 %4221
    %4223 = vrot.lane.b32.xlu0 %v4219, 16
    %v4224 = vpop.permute.xlu0 %4223
    %v4228 = vrot.slane %v4198, 3
    %v4229 = vrot.slane %v4203, 3
    %v4230 = vsel %vm1999, %v4228, %v4229
    %4231 = vrot.lane.b32.xlu0 %v4230, 24
    %v4232 = vpop.permute.xlu0 %4231
    %4233 = vrot.lane.b32.xlu0 %v4229, 24
    %v4234 = vpop.permute.xlu0 %4233
    %v4237 = vsel %vm2180, %v4183, %v4212
    %v4238 = vsel %vm2180, %v4188, %v4214
    %v4239 = vsel %vm2535, %v4237, %v4222
    %v4240 = vsel %vm2535, %v4238, %v4224
    %v4241 = vsel %vm2538, %v4239, %v4232
    %v4242 = vsel %vm2538, %v4240, %v4234
    %v4245 = vrot.slane %v4241, 7
    %v4246 = vrot.slane %v4242, 7
    %v4247 = vsel %vm1785, %v4245, %v4246
    %v4250 = vsel %vm1785, %v3848, %v4245
    %s4251 = scalar_lea.vmem %s41, 16
    %v4252 = vld [vmem:[%s4251] sm:$0xf]
    %v4253 = vld [vmem:[%s4251 + $0x4] sm:$0xf]
    %v4254 = vld [vmem:[%s4251 + $0x8] sm:$0xf]
    %v4255 = vld [vmem:[%s4251 + $0xc] sm:$0xf]
    %s4256 = scalar_lea.vmem [#allocation5], 1
    %v4257 = vld [vmem:[%s4256] sm:$0x1]
    %v4258 = vpack.c.bf16 %v4250, %v3847
    %v4259 = vpack.c.bf16 %v4247, %v4247
    %v4261 = vlaneseq
    %v4262 = vshrl.u32 %v4261, 7
    %v4263 = vsub.s32 0, %v4262
    %v4264 = vrot.slane %v4257, %v4263
    %v4270 = vunpack.c.l.b16 %v4252
    %v4271 = vunpack.c.l.b16 %v4253
    %v4272 = vunpack.c.l.b16 %v4254
    %v4273 = vunpack.c.l.b16 %v4255
    %v4274 = vpack.c.b16 %v4271, %v4270
    %v4275 = vpack.c.b16 %v4273, %v4272
    %v4279 = vsel %vm627, %v4258, 0
    %v4282 = vsel %vm627, %v4259, 0
    %4284 = vmatprep.subr.bf16.mxu0 0
    %4285 = vmatpush1.bf16.msra.mxu0 %v4274
    %4286 = vmatprep.subr.bf16.mxu0 0
    %4287 = vmatpush1.bf16.msra.mxu0 %v4275
    %4288 = vmatprep.subr.bf16.mxu0 0
    %4289 = vmatpush1.bf16.msra.mxu0 0
    %4290 = vmatprep.subr.bf16.mxu0 0
    %4291 = vmatpush1.bf16.msra.mxu0 0
    %4292 = vmatprep.subr.bf16.mxu0 0
    %4293 = vmatpush1.bf16.msra.mxu0 0
    %4294 = vmatprep.subr.bf16.mxu0 0
    %4295 = vmatpush1.bf16.msra.mxu0 0
    %4296 = vmatprep.subr.bf16.mxu0 0
    %4297 = vmatpush1.bf16.msra.mxu0 0
    %4298 = vmatprep.subr.bf16.mxu0 0
    %4299 = vmatpush1.bf16.msra.mxu0 0
    %4300 = vmatprep.subr.bf16.mxu0 0
    %4301 = vmatpush1.bf16.msra.mxu0 0
    %4302 = vmatprep.subr.bf16.mxu0 0
    %4303 = vmatpush1.bf16.msra.mxu0 0
    %4304 = vmatprep.subr.bf16.mxu0 0
    %4305 = vmatpush1.bf16.msra.mxu0 0
    %4306 = vmatprep.subr.bf16.mxu0 0
    %4307 = vmatpush1.bf16.msra.mxu0 0
    %4308 = vmatprep.subr.bf16.mxu0 0
    %4309 = vmatpush1.bf16.msra.mxu0 0
    %4310 = vmatprep.subr.bf16.mxu0 0
    %4311 = vmatpush1.bf16.msra.mxu0 0
    %4312 = vmatprep.subr.bf16.mxu0 0
    %4313 = vmatpush1.bf16.msra.mxu0 0
    %4314 = vmatprep.subr.bf16.mxu0 0
    %4315 = vmatpush1.bf16.msra.mxu0 0
    %4316 = vmatprep.mubr.bf16.mxu0 0
    %4317 = vmatmul.mubr.bf16.gmra.mrb[0].mxu0 %v4279
    %v4318 = vpop.f32.mrb[0].mxu0
    %v4319 = vadd.f32 %v4264, %v4318
    %v4320 = vpop.f32.mrb[0].mxu0
    %v4321 = vpop.f32.mrb[0].mxu0
    %v4322 = vadd.f32 %v4264, %v4321
    %v4323 = vpop.f32.mrb[0].mxu0
    %4324 = vmatprep.mubr.bf16.mxu0 0
    %4325 = vmatmul.mubr.bf16.gmra.mrb[0].mxu0 %v4282
    %v4326 = vpop.f32.mrb[0].mxu0
    %v4327 = vadd.f32 %v4264, %v4326
    %v4328 = vpop.f32.mrb[0].mxu0
    %v4329 = vpop.f32.mrb[0].mxu0
    %v4330 = vpop.f32.mrb[0].mxu0
    %4331 = vdwg.mxu0
    %v4332 = vadd.f32 %v3369, %v4319
    %v4333 = vadd.f32 %v3370, %v4322
    %v4334 = vadd.f32 %v3371, %v4327
    %s4335 = scalar_lea.vmem [#allocation7], 1
    %v4336 = vld [vmem:[%s4335] sm:$0x1]
    %s4337 = scalar_lea.vmem [#allocation8], 1
    %v4338 = vld [vmem:[%s4337] sm:$0x1]
    %v4339 = vsel %vm627, %v4332, 0.0
    %4340 = vadd.xlane.f32.xlu0 %v4339
    %v4341 = vpop.xlane.xlu0 %4340
    %v4342 = vsel %vm627, %v4333, 0.0
    %4343 = vadd.xlane.f32.xlu0 %v4342
    %v4344 = vpop.xlane.xlu0 %4343
    %v4345 = vsel %vm3037, %v4334, 0.0
    %4346 = vadd.xlane.f32.xlu0 %v4345
    %v4347 = vpop.xlane.xlu0 %4346
    %v4348 = vmul.f32 %v4341, %v3041
    %v4349 = vmul.f32 %v4344, %v3041
    %v4350 = vmul.f32 %v4347, %v3041
    %v4351 = vsub.f32 %v4332, %v4348
    %v4352 = vsub.f32 %v4333, %v4349
    %v4353 = vsub.f32 %v4334, %v4350
    %v4354 = vmul.f32 %v4351, %v4351
    %v4355 = vmul.f32 %v4352, %v4352
    %v4356 = vmul.f32 %v4353, %v4353
    %v4357 = vsel %vm627, %v4354, 0.0
    %4358 = vadd.xlane.f32.xlu0 %v4357
    %v4359 = vpop.xlane.xlu0 %4358
    %v4360 = vsel %vm627, %v4355, 0.0
    %4361 = vadd.xlane.f32.xlu0 %v4360
    %v4362 = vpop.xlane.xlu0 %4361
    %v4363 = vsel %vm3037, %v4356, 0.0
    %4364 = vadd.xlane.f32.xlu0 %v4363
    %v4365 = vpop.xlane.xlu0 %4364
    %v4366 = vmul.f32 %v4359, %v3060
    %v4367 = vmul.f32 %v4362, %v3060
    %v4368 = vmul.f32 %v4365, %v3060
    %v4370 = vlaneseq
    %v4371 = vshrl.u32 %v4370, 7
    %v4372 = vsub.s32 0, %v4371
    %v4373 = vrot.slane %v4336, %v4372
    %v4375 = vmul.f32 %v4373, %v4351
    %v4376 = vmul.f32 %v4373, %v4352
    %v4377 = vmul.f32 %v4373, %v4353
    %v4378 = vrsqrt.pop %v4366
    %v4379 = vmul.f32 %v4366, %v4378
    %vm4380 = vcmp.eq.f32.partialorder %v4366, inf
    %v4381 = vsel %vm4380, %v4366, %v4379
    %vm4382 = vcmp.eq.f32.partialorder %v4366, 0.0
    %v4383 = vand.u32 %v4366, 2147483648
    %v4384 = vsel %vm4382, %v4383, %v4381
    %v4385 = vrsqrt.pop %v4367
    %v4386 = vmul.f32 %v4367, %v4385
    %vm4387 = vcmp.eq.f32.partialorder %v4367, inf
    %v4388 = vsel %vm4387, %v4367, %v4386
    %vm4389 = vcmp.eq.f32.partialorder %v4367, 0.0
    %v4390 = vand.u32 %v4367, 2147483648
    %v4391 = vsel %vm4389, %v4390, %v4388
    %v4392 = vrsqrt.pop %v4368
    %v4393 = vmul.f32 %v4368, %v4392
    %vm4394 = vcmp.eq.f32.partialorder %v4368, inf
    %v4395 = vsel %vm4394, %v4368, %v4393
    %vm4396 = vcmp.eq.f32.partialorder %v4368, 0.0
    %v4397 = vand.u32 %v4368, 2147483648
    %v4398 = vsel %vm4396, %v4397, %v4395
    %v4399 = vadd.f32 %v4384, 1e-06
    %v4400 = vadd.f32 %v4391, 1e-06
    %v4401 = vadd.f32 %v4398, 1e-06
    %v4402 = vrcp.pop %v4399
    %v4403 = vmul.f32 %v4375, %v4402
    %v4404 = vrcp.pop %v4400
    %v4405 = vmul.f32 %v4376, %v4404
    %v4406 = vrcp.pop %v4401
    %v4407 = vmul.f32 %v4377, %v4406
    %v4409 = vlaneseq
    %v4410 = vshrl.u32 %v4409, 7
    %v4411 = vsub.s32 0, %v4410
    %v4412 = vrot.slane %v4338, %v4411
    %v4414 = vadd.f32 %v4403, %v4412
    %v4415 = vadd.f32 %v4405, %v4412
    %v4416 = vadd.f32 %v4407, %v4412
    %s4417 = scalar_lea.vmem %s49, 16
    %v4418 = vld [vmem:[%s4417] sm:$0xf]
    %v4419 = vld [vmem:[%s4417 + $0x4] sm:$0xf]
    %v4420 = vld [vmem:[%s4417 + $0x8] sm:$0xf]
    %v4421 = vld [vmem:[%s4417 + $0xc] sm:$0xf]
    %s4422 = scalar_lea.vmem [#allocation10], 1
    %v4423 = vld [vmem:[%s4422] sm:$0x1]
    %v4424 = vpack.c.bf16 %v4415, %v4414
    %v4425 = vpack.c.bf16 %v4416, %v4416
    %v4427 = vlaneseq
    %v4428 = vshrl.u32 %v4427, 7
    %v4429 = vsub.s32 0, %v4428
    %v4430 = vrot.slane %v4423, %v4429
    %v4436 = vunpack.c.l.b16 %v4418
    %v4437 = vunpack.c.l.b16 %v4419
    %v4438 = vunpack.c.l.b16 %v4420
    %v4439 = vunpack.c.l.b16 %v4421
    %v4440 = vpack.c.b16 %v4437, %v4436
    %v4441 = vpack.c.b16 %v4439, %v4438
    %v4445 = vsel %vm627, %v4424, 0
    %v4448 = vsel %vm627, %v4425, 0
    %4450 = vmatprep.subr.bf16.mxu0 0
    %4451 = vmatpush1.bf16.msra.mxu0 %v4440
    %4452 = vmatprep.subr.bf16.mxu0 0
    %4453 = vmatpush1.bf16.msra.mxu0 %v4441
    %4454 = vmatprep.subr.bf16.mxu0 0
    %4455 = vmatpush1.bf16.msra.mxu0 0
    %4456 = vmatprep.subr.bf16.mxu0 0
    %4457 = vmatpush1.bf16.msra.mxu0 0
    %4458 = vmatprep.subr.bf16.mxu0 0
    %4459 = vmatpush1.bf16.msra.mxu0 0
    %4460 = vmatprep.subr.bf16.mxu0 0
    %4461 = vmatpush1.bf16.msra.mxu0 0
    %4462 = vmatprep.subr.bf16.mxu0 0
    %4463 = vmatpush1.bf16.msra.mxu0 0
    %4464 = vmatprep.subr.bf16.mxu0 0
    %4465 = vmatpush1.bf16.msra.mxu0 0
    %4466 = vmatprep.subr.bf16.mxu0 0
    %4467 = vmatpush1.bf16.msra.mxu0 0
    %4468 = vmatprep.subr.bf16.mxu0 0
    %4469 = vmatpush1.bf16.msra.mxu0 0
    %4470 = vmatprep.subr.bf16.mxu0 0
    %4471 = vmatpush1.bf16.msra.mxu0 0
    %4472 = vmatprep.subr.bf16.mxu0 0
    %4473 = vmatpush1.bf16.msra.mxu0 0
    %4474 = vmatprep.subr.bf16.mxu0 0
    %4475 = vmatpush1.bf16.msra.mxu0 0
    %4476 = vmatprep.subr.bf16.mxu0 0
    %4477 = vmatpush1.bf16.msra.mxu0 0
    %4478 = vmatprep.subr.bf16.mxu0 0
    %4479 = vmatpush1.bf16.msra.mxu0 0
    %4480 = vmatprep.subr.bf16.mxu0 0
    %4481 = vmatpush1.bf16.msra.mxu0 0
    %4482 = vmatprep.mubr.bf16.mxu0 0
    %4483 = vmatmul.mubr.bf16.gmra.mrb[0].mxu0 %v4445
    %v4484 = vpop.f32.mrb[0].mxu0
    %v4485 = vadd.f32 %v4430, %v4484
    %v4486 = vpop.f32.mrb[0].mxu0
    %v4487 = vpop.f32.mrb[0].mxu0
    %v4488 = vadd.f32 %v4430, %v4487
    %v4489 = vpop.f32.mrb[0].mxu0
    %4490 = vmatprep.mubr.bf16.mxu0 0
    %4491 = vmatmul.mubr.bf16.gmra.mrb[0].mxu0 %v4448
    %v4492 = vpop.f32.mrb[0].mxu0
    %v4493 = vadd.f32 %v4430, %v4492
    %v4494 = vpop.f32.mrb[0].mxu0
    %v4495 = vpop.f32.mrb[0].mxu0
    %v4496 = vpop.f32.mrb[0].mxu0
    %4497 = vdwg.mxu0
    %v4498 = vmax.f32 %v4485, 0.0
    %v4499 = vmax.f32 %v4488, 0.0
    %v4500 = vmax.f32 %v4493, 0.0
    %s4501 = scalar_lea.vmem %s53, 32
    %v4502 = vld [vmem:[%s4501] sm:$0xf]
    %v4503 = vld [vmem:[%s4501 + $0x4] sm:$0xf]
    %v4504 = vld [vmem:[%s4501 + $0x8] sm:$0xf]
    %v4505 = vld [vmem:[%s4501 + $0xc] sm:$0xf]
    %v4506 = vld [vmem:[%s4501 + $0x10] sm:$0xf]
    %v4507 = vld [vmem:[%s4501 + $0x14] sm:$0xf]
    %v4508 = vld [vmem:[%s4501 + $0x18] sm:$0xf]
    %v4509 = vld [vmem:[%s4501 + $0x1c] sm:$0xf]
    %s4510 = scalar_lea.vmem [#allocation11], 1
    %v4511 = vld [vmem:[%s4510] sm:$0x1]
    %v4512 = vpack.c.bf16 %v4499, %v4498
    %v4513 = vpack.c.bf16 %v4500, %v4500
    %v4515 = vlaneseq
    %v4516 = vshrl.u32 %v4515, 7
    %v4517 = vsub.s32 0, %v4516
    %v4518 = vrot.slane %v4511, %v4517
    %v4528 = vunpack.c.l.b16 %v4502
    %v4529 = vunpack.c.l.b16 %v4503
    %v4530 = vunpack.c.l.b16 %v4504
    %v4531 = vunpack.c.l.b16 %v4505
    %v4532 = vunpack.c.l.b16 %v4506
    %v4533 = vunpack.c.l.b16 %v4507
    %v4534 = vunpack.c.l.b16 %v4508
    %v4535 = vunpack.c.l.b16 %v4509
    %v4536 = vpack.c.b16 %v4529, %v4528
    %v4537 = vpack.c.b16 %v4531, %v4530
    %v4538 = vpack.c.b16 %v4533, %v4532
    %v4539 = vpack.c.b16 %v4535, %v4534
    %v4545 = vsel %vm843, %v4512, 0
    %v4548 = vsel %vm843, %v4513, 0
    %4550 = vmatprep.subr.bf16.mxu0 0
    %4551 = vmatpush1.bf16.msra.mxu0 %v4536
    %4552 = vmatprep.subr.bf16.mxu0 0
    %4553 = vmatpush1.bf16.msra.mxu0 %v4537
    %4554 = vmatprep.subr.bf16.mxu0 0
    %4555 = vmatpush1.bf16.msra.mxu0 %v4538
    %4556 = vmatprep.subr.bf16.mxu0 0
    %4557 = vmatpush1.bf16.msra.mxu0 %v4539
    %4558 = vmatprep.subr.bf16.mxu0 0
    %4559 = vmatpush1.bf16.msra.mxu0 0
    %4560 = vmatprep.subr.bf16.mxu0 0
    %4561 = vmatpush1.bf16.msra.mxu0 0
    %4562 = vmatprep.subr.bf16.mxu0 0
    %4563 = vmatpush1.bf16.msra.mxu0 0
    %4564 = vmatprep.subr.bf16.mxu0 0
    %4565 = vmatpush1.bf16.msra.mxu0 0
    %4566 = vmatprep.subr.bf16.mxu0 0
    %4567 = vmatpush1.bf16.msra.mxu0 0
    %4568 = vmatprep.subr.bf16.mxu0 0
    %4569 = vmatpush1.bf16.msra.mxu0 0
    %4570 = vmatprep.subr.bf16.mxu0 0
    %4571 = vmatpush1.bf16.msra.mxu0 0
    %4572 = vmatprep.subr.bf16.mxu0 0
    %4573 = vmatpush1.bf16.msra.mxu0 0
    %4574 = vmatprep.subr.bf16.mxu0 0
    %4575 = vmatpush1.bf16.msra.mxu0 0
    %4576 = vmatprep.subr.bf16.mxu0 0
    %4577 = vmatpush1.bf16.msra.mxu0 0
    %4578 = vmatprep.subr.bf16.mxu0 0
    %4579 = vmatpush1.bf16.msra.mxu0 0
    %4580 = vmatprep.subr.bf16.mxu0 0
    %4581 = vmatpush1.bf16.msra.mxu0 0
    %4582 = vmatprep.mubr.bf16.mxu0 0
    %4583 = vmatmul.mubr.bf16.gmra.mrb[0].mxu0 %v4545
    %v4584 = vpop.f32.mrb[0].mxu0
    %v4585 = vadd.f32 %v4518, %v4584
    %v4586 = vpop.f32.mrb[0].mxu0
    %v4587 = vpop.f32.mrb[0].mxu0
    %v4588 = vadd.f32 %v4518, %v4587
    %v4589 = vpop.f32.mrb[0].mxu0
    %4590 = vmatprep.mubr.bf16.mxu0 0
    %4591 = vmatmul.mubr.bf16.gmra.mrb[0].mxu0 %v4548
    %v4592 = vpop.f32.mrb[0].mxu0
    %v4593 = vpop.f32.mrb[0].mxu0
    %v4594 = vpop.f32.mrb[0].mxu0
    %v4595 = vpop.f32.mrb[0].mxu0
    %4596 = vdwg.mxu0
    %v4597 = vadd.f32 %v4414, %v4585
    %v4598 = vadd.f32 %v4415, %v4588
    %s4599 = scalar_lea.vmem [#allocation13], 1
    %v4600 = vld [vmem:[%s4599] sm:$0x1]
    %s4601 = scalar_lea.vmem [#allocation14], 1
    %v4602 = vld [vmem:[%s4601] sm:$0x1]
    %v4603 = vsel %vm627, %v4597, 0.0
    %4604 = vadd.xlane.f32.xlu0 %v4603
    %v4605 = vpop.xlane.xlu0 %4604
    %v4606 = vsel %vm627, %v4598, 0.0
    %4607 = vadd.xlane.f32.xlu0 %v4606
    %v4608 = vpop.xlane.xlu0 %4607
    %v4609 = vmul.f32 %v4605, %v3041
    %v4610 = vmul.f32 %v4608, %v3041
    %v4611 = vsub.f32 %v4597, %v4609
    %v4612 = vsub.f32 %v4598, %v4610
    %v4613 = vmul.f32 %v4611, %v4611
    %v4614 = vmul.f32 %v4612, %v4612
    %v4615 = vsel %vm627, %v4613, 0.0
    %4616 = vadd.xlane.f32.xlu0 %v4615
    %v4617 = vpop.xlane.xlu0 %4616
    %v4618 = vsel %vm627, %v4614, 0.0
    %4619 = vadd.xlane.f32.xlu0 %v4618
    %v4620 = vpop.xlane.xlu0 %4619
    %v4621 = vmul.f32 %v4617, %v3060
    %v4622 = vmul.f32 %v4620, %v3060
    %v4624 = vlaneseq
    %v4625 = vshrl.u32 %v4624, 7
    %v4626 = vsub.s32 0, %v4625
    %v4627 = vrot.slane %v4600, %v4626
    %v4629 = vmul.f32 %v4627, %v4611
    %v4630 = vmul.f32 %v4627, %v4612
    %v4631 = vrsqrt.pop %v4621
    %v4632 = vmul.f32 %v4621, %v4631
    %vm4633 = vcmp.eq.f32.partialorder %v4621, inf
    %v4634 = vsel %vm4633, %v4621, %v4632
    %vm4635 = vcmp.eq.f32.partialorder %v4621, 0.0
    %v4636 = vand.u32 %v4621, 2147483648
    %v4637 = vsel %vm4635, %v4636, %v4634
    %v4638 = vrsqrt.pop %v4622
    %v4639 = vmul.f32 %v4622, %v4638
    %vm4640 = vcmp.eq.f32.partialorder %v4622, inf
    %v4641 = vsel %vm4640, %v4622, %v4639
    %vm4642 = vcmp.eq.f32.partialorder %v4622, 0.0
    %v4643 = vand.u32 %v4622, 2147483648
    %v4644 = vsel %vm4642, %v4643, %v4641
    %v4645 = vadd.f32 %v4637, 1e-06
    %v4646 = vadd.f32 %v4644, 1e-06
    %v4647 = vrcp.pop %v4645
    %v4648 = vmul.f32 %v4629, %v4647
    %v4649 = vrcp.pop %v4646
    %v4650 = vmul.f32 %v4630, %v4649
    %v4652 = vlaneseq
    %v4653 = vshrl.u32 %v4652, 7
    %v4654 = vsub.s32 0, %v4653
    %v4655 = vrot.slane %v4602, %v4654
    %v4657 = vadd.f32 %v4648, %v4655
    %v4658 = vadd.f32 %v4650, %v4655
    %v4659 = vld [vmem:[%s11] sm:$0xff]
    %v4660 = vld [vmem:[%s11 + $0x8] sm:$0xff]
    %v4661 = vld [vmem:[%s11 + $0x10] sm:$0xff]
    %v4662 = vld [vmem:[%s11 + $0x18] sm:$0xff]
    %v4663 = vld [vmem:[%s11 + $0x20] sm:$0xf]
    %4665 = vrot.lane.b32.xlu0 %v1970, 9
    %v4666 = vpop.permute.xlu0 %4665
    %4668 = vrot.lane.b32.xlu0 %v1970, 18
    %v4669 = vpop.permute.xlu0 %4668
    %4671 = vrot.lane.b32.xlu0 %v1970, 27
    %v4672 = vpop.permute.xlu0 %4671
    %v4674 = vsel %vm2038, %v1970, %v4666
    %v4675 = vsel %vm2040, %v4674, %v4669
    %v4676 = vsel %vm2042, %v4675, %v4672
    %4678 = vrot.lane.b32.xlu0 %v1974, 9
    %v4679 = vpop.permute.xlu0 %4678
    %4681 = vrot.lane.b32.xlu0 %v1974, 18
    %v4682 = vpop.permute.xlu0 %4681
    %4684 = vrot.lane.b32.xlu0 %v1974, 27
    %v4685 = vpop.permute.xlu0 %4684
    %v4687 = vsel %vm2038, %v1974, %v4679
    %v4688 = vsel %vm2040, %v4687, %v4682
    %v4689 = vsel %vm2042, %v4688, %v4685
    %v4690 = vld [vmem:[%s61] sm:$0xf]
    %v4691 = vld [vmem:[%s61 + $0x4] sm:$0xf]
    %v4692 = vld [vmem:[%s61 + $0x8] sm:$0xf]
    %v4693 = vld [vmem:[%s61 + $0xc] sm:$0xf]
    %v4694 = vld [vmem:[#allocation16] sm:$0x1]
    %v4695 = vpack.c.bf16 %v2022, %v2020
    %v4696 = vpack.c.bf16 %v2018, %v2018
    %v4698 = vlaneseq
    %v4699 = vshrl.u32 %v4698, 7
    %v4700 = vsub.s32 0, %v4699
    %v4701 = vrot.slane %v4694, %v4700
    %v4707 = vunpack.c.l.b16 %v4690
    %v4708 = vunpack.c.l.b16 %v4691
    %v4709 = vunpack.c.l.b16 %v4692
    %v4710 = vunpack.c.l.b16 %v4693
    %v4711 = vpack.c.b16 %v4708, %v4707
    %v4712 = vpack.c.b16 %v4710, %v4709
    %v4716 = vsel %vm627, %v4695, 0
    %v4719 = vsel %vm627, %v4696, 0
    %4721 = vmatprep.subr.bf16.mxu0 0
    %4722 = vmatpush1.bf16.msra.mxu0 %v4711
    %4723 = vmatprep.subr.bf16.mxu0 0
    %4724 = vmatpush1.bf16.msra.mxu0 %v4712
    %4725 = vmatprep.subr.bf16.mxu0 0
    %4726 = vmatpush1.bf16.msra.mxu0 0
    %4727 = vmatprep.subr.bf16.mxu0 0
    %4728 = vmatpush1.bf16.msra.mxu0 0
    %4729 = vmatprep.subr.bf16.mxu0 0
    %4730 = vmatpush1.bf16.msra.mxu0 0
    %4731 = vmatprep.subr.bf16.mxu0 0
    %4732 = vmatpush1.bf16.msra.mxu0 0
    %4733 = vmatprep.subr.bf16.mxu0 0
    %4734 = vmatpush1.bf16.msra.mxu0 0
    %4735 = vmatprep.subr.bf16.mxu0 0
    %4736 = vmatpush1.bf16.msra.mxu0 0
    %4737 = vmatprep.subr.bf16.mxu0 0
    %4738 = vmatpush1.bf16.msra.mxu0 0
    %4739 = vmatprep.subr.bf16.mxu0 0
    %4740 = vmatpush1.bf16.msra.mxu0 0
    %4741 = vmatprep.subr.bf16.mxu0 0
    %4742 = vmatpush1.bf16.msra.mxu0 0
    %4743 = vmatprep.subr.bf16.mxu0 0
    %4744 = vmatpush1.bf16.msra.mxu0 0
    %4745 = vmatprep.subr.bf16.mxu0 0
    %4746 = vmatpush1.bf16.msra.mxu0 0
    %4747 = vmatprep.subr.bf16.mxu0 0
    %4748 = vmatpush1.bf16.msra.mxu0 0
    %4749 = vmatprep.subr.bf16.mxu0 0
    %4750 = vmatpush1.bf16.msra.mxu0 0
    %4751 = vmatprep.subr.bf16.mxu0 0
    %4752 = vmatpush1.bf16.msra.mxu0 0
    %4753 = vmatprep.mubr.bf16.mxu0 0
    %4754 = vmatmul.mubr.bf16.gmra.mrb[0].mxu0 %v4716
    %v4755 = vpop.f32.mrb[0].mxu0
    %v4756 = vadd.f32 %v4701, %v4755
    %v4757 = vpop.f32.mrb[0].mxu0
    %v4758 = vpop.f32.mrb[0].mxu0
    %v4759 = vadd.f32 %v4701, %v4758
    %v4760 = vpop.f32.mrb[0].mxu0
    %4761 = vmatprep.mubr.bf16.mxu0 0
    %4762 = vmatmul.mubr.bf16.gmra.mrb[0].mxu0 %v4719
    %v4763 = vpop.f32.mrb[0].mxu0
    %v4764 = vadd.f32 %v4701, %v4763
    %v4765 = vpop.f32.mrb[0].mxu0
    %v4766 = vpop.f32.mrb[0].mxu0
    %v4767 = vpop.f32.mrb[0].mxu0
    %4768 = vdwg.mxu0
    %v4771 = vrot.slane %v4756, 7
    %v4772 = vrot.slane %v4759, 7
    %v4773 = vsel %vm1785, %v4771, %v4772
    %4774 = vrot.lane.b32.xlu0 %v4771, 120
    %v4775 = vpop.permute.xlu0 %4774
    %4776 = vrot.lane.b32.xlu0 %v4773, 120
    %v4777 = vpop.permute.xlu0 %4776
    %v4780 = vrot.slane %v4756, 6
    %v4781 = vrot.slane %v4759, 6
    %v4782 = vsel %vm1690, %v4780, %v4781
    %4783 = vrot.lane.b32.xlu0 %v4780, 112
    %v4784 = vpop.permute.xlu0 %4783
    %4785 = vrot.lane.b32.xlu0 %v4782, 112
    %v4786 = vpop.permute.xlu0 %4785
    %v4789 = vrot.slane %v4756, 5
    %v4790 = vrot.slane %v4759, 5
    %v4791 = vsel %vm1996, %v4789, %v4790
    %4792 = vrot.lane.b32.xlu0 %v4789, 104
    %v4793 = vpop.permute.xlu0 %4792
    %4794 = vrot.lane.b32.xlu0 %v4791, 104
    %v4795 = vpop.permute.xlu0 %4794
    %v4797 = vsel %vm1785, %v4759, %v4775
    %v4798 = vsel %vm1690, %v4777, %v4784
    %v4799 = vsel %vm1996, %v4786, %v4793
    %4803 = vrot.lane.b32.xlu0 %v4756, 96
    %v4804 = vpop.permute.xlu0 %4803
    %4805 = vrot.lane.b32.xlu0 %v4797, 96
    %v4806 = vpop.permute.xlu0 %4805
    %4807 = vrot.lane.b32.xlu0 %v4798, 96
    %v4808 = vpop.permute.xlu0 %4807
    %4809 = vrot.lane.b32.xlu0 %v4799, 96
    %v4810 = vpop.permute.xlu0 %4809
    %4811 = vrot.lane.b32.xlu0 %v4795, 96
    %v4812 = vpop.permute.xlu0 %4811
    %v4813 = vsel %vm2180, %v4756, 0
    %v4815 = vsel %vm2180, %v4797, 0
    %v4817 = vsel %vm2180, %v4798, 0
    %v4819 = vsel %vm2180, %v4799, 0
    %v4821 = vsel %vm2180, %v4795, 0
    %v4823 = vsel %vm2180, %v4804, 0
    %v4825 = vsel %vm2180, %v4806, 0
    %v4827 = vsel %vm2180, %v4808, 0
    %v4829 = vsel %vm2180, %v4810, 0
    %v4831 = vsel %vm2180, %v4812, 0
    %4833 = vmatprep.subr.mxu0 0.0
    %4834 = vmatpush1.xpose.msra.mxu0 %v4823
    %4835 = vmatprep.subr.mxu0 0.0
    %4836 = vmatpush1.xpose.msra.mxu0 %v4825
    %4837 = vmatprep.subr.mxu0 0.0
    %4838 = vmatpush1.xpose.msra.mxu0 %v4827
    %4839 = vmatprep.subr.mxu0 0.0
    %4840 = vmatpush1.xpose.msra.mxu0 %v4829
    %4841 = vmatprep.subr.mxu0 0.0
    %4842 = vmatpush1.xpose.msra.mxu0 %v4831
    %4843 = vmatprep.subr.mxu0 0.0
    %4844 = vmatpush1.xpose.msra.mxu0 0.0
    %4845 = vmatprep.subr.mxu0 0.0
    %4846 = vmatpush1.xpose.msra.mxu0 0.0
    %4847 = vmatprep.subr.mxu0 0.0
    %4848 = vmatpush1.xpose.msra.mxu0 0.0
    %4849 = vmatprep.subr.mxu0 0.0
    %4850 = vmatpush1.xpose.msra.mxu0 0.0
    %4851 = vmatprep.subr.mxu0 0.0
    %4852 = vmatpush1.xpose.msra.mxu0 0.0
    %4853 = vmatprep.subr.mxu0 0.0
    %4854 = vmatpush1.xpose.msra.mxu0 0.0
    %4855 = vmatprep.subr.mxu0 0.0
    %4856 = vmatpush1.xpose.msra.mxu0 0.0
    %4857 = vmatprep.subr.mxu0 0.0
    %4858 = vmatpush1.xpose.msra.mxu0 0.0
    %4859 = vmatprep.subr.mxu0 0.0
    %4860 = vmatpush1.xpose.msra.mxu0 0.0
    %4861 = vmatprep.subr.mxu0 0.0
    %4862 = vmatpush1.xpose.msra.mxu0 0.0
    %4863 = vmatprep.subr.mxu0 0.0
    %4864 = vmatpush1.xpose.msra.mxu0 0.0
    %4865 = vmatprep.subr.mxu0 0.0
    %4866 = vmatpush1.xpose.msra.mxu0 0.0
    %4867 = vmatprep.subr.mxu0 0.0
    %4868 = vmatpush1.xpose.msra.mxu0 0.0
    %4869 = vmatprep.subr.mxu0 0.0
    %4870 = vmatpush1.xpose.msra.mxu0 0.0
    %4871 = vmatprep.subr.mxu0 0.0
    %4872 = vmatpush1.xpose.msra.mxu0 0.0
    %4873 = vmatprep.subr.mxu0 0.0
    %4874 = vmatpush1.xpose.msra.mxu0 0.0
    %4875 = vmatprep.subr.mxu0 0.0
    %4876 = vmatpush1.xpose.msra.mxu0 0.0
    %4877 = vmatprep.subr.mxu0 0.0
    %4878 = vmatpush1.xpose.msra.mxu0 0.0
    %4879 = vmatprep.subr.mxu0 0.0
    %4880 = vmatpush1.xpose.msra.mxu0 0.0
    %4881 = vmatprep.subr.mxu0 0.0
    %4882 = vmatpush1.xpose.msra.mxu0 0.0
    %4883 = vmatprep.subr.mxu0 0.0
    %4884 = vmatpush1.xpose.msra.mxu0 0.0
    %4885 = vmatprep.subr.mxu0 0.0
    %4886 = vmatpush1.xpose.msra.mxu0 0.0
    %4887 = vmatprep.subr.mxu0 0.0
    %4888 = vmatpush1.xpose.msra.mxu0 0.0
    %4889 = vmatprep.subr.mxu0 0.0
    %4890 = vmatpush1.xpose.msra.mxu0 0.0
    %4891 = vmatprep.subr.mxu0 0.0
    %4892 = vmatpush1.xpose.msra.mxu0 0.0
    %4893 = vmatprep.subr.mxu0 0.0
    %4894 = vmatpush1.xpose.msra.mxu0 0.0
    %4895 = vmatprep.subr.mxu0 0.0
    %4896 = vmatpush1.xpose.msra.mxu0 0.0
    %4897 = vmatprep.mubr.f32.mxu0 0.0
    %4898 = vmatmul.mubr.f32.gmra.mrb[0].mxu0 %v4813
    %v4899 = vpop.f32.mrb[0].mxu0
    %v4900 = vadd.f32 0.0, %v4899
    %v4901 = vpop.f32.mrb[0].mxu0
    %4902 = vmatprep.mubr.f32.mxu0 0.0
    %4903 = vmatmul.mubr.f32.gmra.mrb[0].mxu0 %v4815
    %v4904 = vpop.f32.mrb[0].mxu0
    %v4905 = vadd.f32 0.0, %v4904
    %v4906 = vpop.f32.mrb[0].mxu0
    %4907 = vmatprep.mubr.f32.mxu0 0.0
    %4908 = vmatmul.mubr.f32.gmra.mrb[0].mxu0 %v4817
    %v4909 = vpop.f32.mrb[0].mxu0
    %v4910 = vadd.f32 0.0, %v4909
    %v4911 = vpop.f32.mrb[0].mxu0
    %4912 = vmatprep.mubr.f32.mxu0 0.0
    %4913 = vmatmul.mubr.f32.gmra.mrb[0].mxu0 %v4819
    %v4914 = vpop.f32.mrb[0].mxu0
    %v4915 = vadd.f32 0.0, %v4914
    %v4916 = vpop.f32.mrb[0].mxu0
    %4917 = vmatprep.mubr.f32.mxu0 0.0
    %4918 = vmatmul.mubr.f32.gmra.mrb[0].mxu0 %v4821
    %v4919 = vpop.f32.mrb[0].mxu0
    %v4920 = vadd.f32 0.0, %v4919
    %v4921 = vpop.f32.mrb[0].mxu0
    %4922 = vdwg.mxu0
    %v4923 = vmul.f32 %v4900, 0.35355338
    %v4924 = vmul.f32 %v4905, 0.35355338
    %v4925 = vmul.f32 %v4910, 0.35355338
    %v4926 = vmul.f32 %v4915, 0.35355338
    %v4927 = vmul.f32 %v4920, 0.35355338
    %v4928 = vadd.f32 %v4923, %v4659
    %v4929 = vadd.f32 %v4924, %v4660
    %v4930 = vadd.f32 %v4925, %v4661
    %v4931 = vadd.f32 %v4926, %v4662
    %v4932 = vadd.f32 %v4927, %v4663
    %v4933 = vlaneseq
    %v4934 = vshrl.u32 %v4933, 7
    %v4935 = vsub.s32 1, %v4934
    %v4936 = vrot.slane %v4676, %v4935
    %v4937 = vadd.f32 %v4928, %v4936
    %v4938 = vadd.f32 %v4929, %v4936
    %v4939 = vadd.f32 %v4930, %v4936
    %v4940 = vadd.f32 %v4931, %v4936
    %v4941 = vadd.f32 %v4932, %v4936
    %v4942 = vsel %vm2310, %v4937, -inf
    %4943 = vmax.xlane.f32.xlu0 %v4942
    %v4944 = vpop.xlane.xlu0 %4943
    %v4945 = vsel %vm2310, %v4938, -inf
    %4946 = vmax.xlane.f32.xlu0 %v4945
    %v4947 = vpop.xlane.xlu0 %4946
    %v4948 = vsel %vm2310, %v4939, -inf
    %4949 = vmax.xlane.f32.xlu0 %v4948
    %v4950 = vpop.xlane.xlu0 %4949
    %v4951 = vsel %vm2310, %v4940, -inf
    %4952 = vmax.xlane.f32.xlu0 %v4951
    %v4953 = vpop.xlane.xlu0 %4952
    %v4954 = vsel %vm2323, %v4941, -inf
    %4955 = vmax.xlane.f32.xlu0 %v4954
    %v4956 = vpop.xlane.xlu0 %4955
    %v4957 = vsub.f32 %v4937, %v4944
    %v4958 = vsub.f32 %v4938, %v4947
    %v4959 = vsub.f32 %v4939, %v4950
    %v4960 = vsub.f32 %v4940, %v4953
    %v4961 = vsub.f32 %v4941, %v4956
    %v4962 = vmul.f32 %v4957, 1.442695
    %v4963 = vpow.pop %v4962
    %v4964 = vmul.f32 %v4958, 1.442695
    %v4965 = vpow.pop %v4964
    %v4966 = vmul.f32 %v4959, 1.442695
    %v4967 = vpow.pop %v4966
    %v4968 = vmul.f32 %v4960, 1.442695
    %v4969 = vpow.pop %v4968
    %v4970 = vmul.f32 %v4961, 1.442695
    %v4971 = vpow.pop %v4970
    %v4972 = vsel %vm2310, %v4963, 0.0
    %4973 = vadd.xlane.f32.xlu0 %v4972
    %v4974 = vpop.xlane.xlu0 %4973
    %v4975 = vsel %vm2310, %v4965, 0.0
    %4976 = vadd.xlane.f32.xlu0 %v4975
    %v4977 = vpop.xlane.xlu0 %4976
    %v4978 = vsel %vm2310, %v4967, 0.0
    %4979 = vadd.xlane.f32.xlu0 %v4978
    %v4980 = vpop.xlane.xlu0 %4979
    %v4981 = vsel %vm2310, %v4969, 0.0
    %4982 = vadd.xlane.f32.xlu0 %v4981
    %v4983 = vpop.xlane.xlu0 %4982
    %v4984 = vsel %vm2323, %v4971, 0.0
    %4985 = vadd.xlane.f32.xlu0 %v4984
    %v4986 = vpop.xlane.xlu0 %4985
    %v4987 = vrcp.pop %v4974
    %v4988 = vmul.f32 %v4963, %v4987
    %v4989 = vrcp.pop %v4977
    %v4990 = vmul.f32 %v4965, %v4989
    %v4991 = vrcp.pop %v4980
    %v4992 = vmul.f32 %v4967, %v4991
    %v4993 = vrcp.pop %v4983
    %v4994 = vmul.f32 %v4969, %v4993
    %v4995 = vrcp.pop %v4986
    %v4996 = vmul.f32 %v4971, %v4995
    %4998 = vrot.lane.b32.xlu0 %v4990, 119
    %v4999 = vpop.permute.xlu0 %4998
    %5002 = vrot.lane.b32.xlu0 %v4992, 110
    %v5003 = vpop.permute.xlu0 %5002
    %5006 = vrot.lane.b32.xlu0 %v4994, 101
    %v5007 = vpop.permute.xlu0 %5006
    %v5009 = vsel %vm1785, %v4988, %v4999
    %v5010 = vsel %vm1690, %v5009, %v5003
    %v5011 = vsel %vm1996, %v5010, %v5007
    %5012 = vst.msk [vmem:[#allocation38] sm:$0xf] %vm2382, %v5011
    %5013 = vrot.lane.b32.xlu0 %v4756, 64
    %v5014 = vpop.permute.xlu0 %5013
    %5015 = vrot.lane.b32.xlu0 %v4797, 64
    %v5016 = vpop.permute.xlu0 %5015
    %5017 = vrot.lane.b32.xlu0 %v4798, 64
    %v5018 = vpop.permute.xlu0 %5017
    %5019 = vrot.lane.b32.xlu0 %v4799, 64
    %v5020 = vpop.permute.xlu0 %5019
    %5021 = vrot.lane.b32.xlu0 %v4795, 64
    %v5022 = vpop.permute.xlu0 %5021
    %v5028 = vsel %vm2310, %v4988, 0
    %v5030 = vsel %vm2310, %v4990, 0
    %v5032 = vsel %vm2310, %v4992, 0
    %v5034 = vsel %vm2310, %v4994, 0
    %v5037 = vsel %vm2310, %v4996, 0
    %v5039 = vsel %vm524, %v5022, 0
    %5041 = vmatprep.subr.mxu0 0.0
    %5042 = vmatpush1.msra.mxu0 %v5014
    %5043 = vmatprep.subr.mxu0 0.0
    %5044 = vmatpush1.msra.mxu0 %v5016
    %5045 = vmatprep.subr.mxu0 0.0
    %5046 = vmatpush1.msra.mxu0 %v5018
    %5047 = vmatprep.subr.mxu0 0.0
    %5048 = vmatpush1.msra.mxu0 %v5020
    %5049 = vmatprep.subr.mxu0 0.0
    %5050 = vmatpush1.msra.mxu0 %v5039
    %5051 = vmatprep.subr.mxu0 0.0
    %5052 = vmatpush1.msra.mxu0 0.0
    %5053 = vmatprep.subr.mxu0 0.0
    %5054 = vmatpush1.msra.mxu0 0.0
    %5055 = vmatprep.subr.mxu0 0.0
    %5056 = vmatpush1.msra.mxu0 0.0
    %5057 = vmatprep.subr.mxu0 0.0
    %5058 = vmatpush1.msra.mxu0 0.0
    %5059 = vmatprep.subr.mxu0 0.0
    %5060 = vmatpush1.msra.mxu0 0.0
    %5061 = vmatprep.subr.mxu0 0.0
    %5062 = vmatpush1.msra.mxu0 0.0
    %5063 = vmatprep.subr.mxu0 0.0
    %5064 = vmatpush1.msra.mxu0 0.0
    %5065 = vmatprep.subr.mxu0 0.0
    %5066 = vmatpush1.msra.mxu0 0.0
    %5067 = vmatprep.subr.mxu0 0.0
    %5068 = vmatpush1.msra.mxu0 0.0
    %5069 = vmatprep.subr.mxu0 0.0
    %5070 = vmatpush1.msra.mxu0 0.0
    %5071 = vmatprep.subr.mxu0 0.0
    %5072 = vmatpush1.msra.mxu0 0.0
    %5073 = vmatprep.subr.mxu0 0.0
    %5074 = vmatpush1.msra.mxu0 0.0
    %5075 = vmatprep.subr.mxu0 0.0
    %5076 = vmatpush1.msra.mxu0 0.0
    %5077 = vmatprep.subr.mxu0 0.0
    %5078 = vmatpush1.msra.mxu0 0.0
    %5079 = vmatprep.subr.mxu0 0.0
    %5080 = vmatpush1.msra.mxu0 0.0
    %5081 = vmatprep.subr.mxu0 0.0
    %5082 = vmatpush1.msra.mxu0 0.0
    %5083 = vmatprep.subr.mxu0 0.0
    %5084 = vmatpush1.msra.mxu0 0.0
    %5085 = vmatprep.subr.mxu0 0.0
    %5086 = vmatpush1.msra.mxu0 0.0
    %5087 = vmatprep.subr.mxu0 0.0
    %5088 = vmatpush1.msra.mxu0 0.0
    %5089 = vmatprep.subr.mxu0 0.0
    %5090 = vmatpush1.msra.mxu0 0.0
    %5091 = vmatprep.subr.mxu0 0.0
    %5092 = vmatpush1.msra.mxu0 0.0
    %5093 = vmatprep.subr.mxu0 0.0
    %5094 = vmatpush1.msra.mxu0 0.0
    %5095 = vmatprep.subr.mxu0 0.0
    %5096 = vmatpush1.msra.mxu0 0.0
    %5097 = vmatprep.subr.mxu0 0.0
    %5098 = vmatpush1.msra.mxu0 0.0
    %5099 = vmatprep.subr.mxu0 0.0
    %5100 = vmatpush1.msra.mxu0 0.0
    %5101 = vmatprep.subr.mxu0 0.0
    %5102 = vmatpush1.msra.mxu0 0.0
    %5103 = vmatprep.subr.mxu0 0.0
    %5104 = vmatpush1.msra.mxu0 0.0
    %5105 = vmatprep.mubr.f32.mxu0 0.0
    %5106 = vmatmul.mubr.f32.gmra.mrb[0].mxu0 %v5028
    %v5107 = vpop.f32.mrb[0].mxu0
    %v5108 = vadd.f32 0.0, %v5107
    %v5109 = vpop.f32.mrb[0].mxu0
    %5110 = vmatprep.mubr.f32.mxu0 0.0
    %5111 = vmatmul.mubr.f32.gmra.mrb[0].mxu0 %v5030
    %v5112 = vpop.f32.mrb[0].mxu0
    %v5113 = vadd.f32 0.0, %v5112
    %v5114 = vpop.f32.mrb[0].mxu0
    %5115 = vmatprep.mubr.f32.mxu0 0.0
    %5116 = vmatmul.mubr.f32.gmra.mrb[0].mxu0 %v5032
    %v5117 = vpop.f32.mrb[0].mxu0
    %v5118 = vadd.f32 0.0, %v5117
    %v5119 = vpop.f32.mrb[0].mxu0
    %5120 = vmatprep.mubr.f32.mxu0 0.0
    %5121 = vmatmul.mubr.f32.gmra.mrb[0].mxu0 %v5034
    %v5122 = vpop.f32.mrb[0].mxu0
    %v5123 = vadd.f32 0.0, %v5122
    %v5124 = vpop.f32.mrb[0].mxu0
    %5125 = vmatprep.mubr.f32.mxu0 0.0
    %5126 = vmatmul.mubr.f32.gmra.mrb[0].mxu0 %v5037
    %v5127 = vpop.f32.mrb[0].mxu0
    %v5128 = vadd.f32 0.0, %v5127
    %v5129 = vpop.f32.mrb[0].mxu0
    %5130 = vdwg.mxu0
    %v5133 = vrot.slane %v5113, 1
    %v5134 = vrot.slane %v5118, 1
    %v5135 = vsel %vm2002, %v5133, %v5134
    %5136 = vrot.lane.b32.xlu0 %v5135, 8
    %v5137 = vpop.permute.xlu0 %5136
    %5138 = vrot.lane.b32.xlu0 %v5134, 8
    %v5139 = vpop.permute.xlu0 %5138
    %v5143 = vrot.slane %v5118, 2
    %v5144 = vrot.slane %v5123, 2
    %v5145 = vsel %vm1693, %v5143, %v5144
    %5146 = vrot.lane.b32.xlu0 %v5145, 16
    %v5147 = vpop.permute.xlu0 %5146
    %5148 = vrot.lane.b32.xlu0 %v5144, 16
    %v5149 = vpop.permute.xlu0 %5148
    %v5153 = vrot.slane %v5123, 3
    %v5154 = vrot.slane %v5128, 3
    %v5155 = vsel %vm1999, %v5153, %v5154
    %5156 = vrot.lane.b32.xlu0 %v5155, 24
    %v5157 = vpop.permute.xlu0 %5156
    %5158 = vrot.lane.b32.xlu0 %v5154, 24
    %v5159 = vpop.permute.xlu0 %5158
    %v5162 = vsel %vm2180, %v5108, %v5137
    %v5163 = vsel %vm2180, %v5113, %v5139
    %v5164 = vsel %vm2535, %v5162, %v5147
    %v5165 = vsel %vm2535, %v5163, %v5149
    %v5166 = vsel %vm2538, %v5164, %v5157
    %v5167 = vsel %vm2538, %v5165, %v5159
    %v5169 = vrot.slane %v4759, 1
    %v5170 = vrot.slane %v4764, 1
    %v5171 = vsel %vm2002, %v5169, %v5170
    %5173 = vrot.lane.b32.xlu0 %v4759, 120
    %v5174 = vpop.permute.xlu0 %5173
    %5175 = vrot.lane.b32.xlu0 %v4764, 120
    %v5176 = vpop.permute.xlu0 %5175
    %v5179 = vrot.slane %v4764, 7
    %v5180 = vsel %vm1785, %v4772, %v5179
    %5181 = vrot.lane.b32.xlu0 %v4772, 112
    %v5182 = vpop.permute.xlu0 %5181
    %5183 = vrot.lane.b32.xlu0 %v5180, 112
    %v5184 = vpop.permute.xlu0 %5183
    %v5187 = vrot.slane %v4764, 6
    %v5188 = vsel %vm1690, %v4781, %v5187
    %5189 = vrot.lane.b32.xlu0 %v4781, 104
    %v5190 = vpop.permute.xlu0 %5189
    %5191 = vrot.lane.b32.xlu0 %v5188, 104
    %v5192 = vpop.permute.xlu0 %5191
    %v5194 = vsel %vm1785, %v5170, %v5174
    %v5195 = vsel %vm1690, %v5176, %v5182
    %v5196 = vsel %vm1996, %v5184, %v5190
    %5200 = vrot.lane.b32.xlu0 %v5171, 96
    %v5201 = vpop.permute.xlu0 %5200
    %5202 = vrot.lane.b32.xlu0 %v5194, 96
    %v5203 = vpop.permute.xlu0 %5202
    %5204 = vrot.lane.b32.xlu0 %v5195, 96
    %v5205 = vpop.permute.xlu0 %5204
    %5206 = vrot.lane.b32.xlu0 %v5196, 96
    %v5207 = vpop.permute.xlu0 %5206
    %5208 = vrot.lane.b32.xlu0 %v5192, 96
    %v5209 = vpop.permute.xlu0 %5208
    %v5210 = vsel %vm2180, %v5171, 0
    %v5212 = vsel %vm2180, %v5194, 0
    %v5214 = vsel %vm2180, %v5195, 0
    %v5216 = vsel %vm2180, %v5196, 0
    %v5218 = vsel %vm2180, %v5192, 0
    %v5220 = vsel %vm2180, %v5201, 0
    %v5222 = vsel %vm2180, %v5203, 0
    %v5224 = vsel %vm2180, %v5205, 0
    %v5226 = vsel %vm2180, %v5207, 0
    %v5228 = vsel %vm2180, %v5209, 0
    %5230 = vmatprep.subr.mxu0 0.0
    %5231 = vmatpush1.xpose.msra.mxu0 %v5220
    %5232 = vmatprep.subr.mxu0 0.0
    %5233 = vmatpush1.xpose.msra.mxu0 %v5222
    %5234 = vmatprep.subr.mxu0 0.0
    %5235 = vmatpush1.xpose.msra.mxu0 %v5224
    %5236 = vmatprep.subr.mxu0 0.0
    %5237 = vmatpush1.xpose.msra.mxu0 %v5226
    %5238 = vmatprep.subr.mxu0 0.0
    %5239 = vmatpush1.xpose.msra.mxu0 %v5228
    %5240 = vmatprep.subr.mxu0 0.0
    %5241 = vmatpush1.xpose.msra.mxu0 0.0
    %5242 = vmatprep.subr.mxu0 0.0
    %5243 = vmatpush1.xpose.msra.mxu0 0.0
    %5244 = vmatprep.subr.mxu0 0.0
    %5245 = vmatpush1.xpose.msra.mxu0 0.0
    %5246 = vmatprep.subr.mxu0 0.0
    %5247 = vmatpush1.xpose.msra.mxu0 0.0
    %5248 = vmatprep.subr.mxu0 0.0
    %5249 = vmatpush1.xpose.msra.mxu0 0.0
    %5250 = vmatprep.subr.mxu0 0.0
    %5251 = vmatpush1.xpose.msra.mxu0 0.0
    %5252 = vmatprep.subr.mxu0 0.0
    %5253 = vmatpush1.xpose.msra.mxu0 0.0
    %5254 = vmatprep.subr.mxu0 0.0
    %5255 = vmatpush1.xpose.msra.mxu0 0.0
    %5256 = vmatprep.subr.mxu0 0.0
    %5257 = vmatpush1.xpose.msra.mxu0 0.0
    %5258 = vmatprep.subr.mxu0 0.0
    %5259 = vmatpush1.xpose.msra.mxu0 0.0
    %5260 = vmatprep.subr.mxu0 0.0
    %5261 = vmatpush1.xpose.msra.mxu0 0.0
    %5262 = vmatprep.subr.mxu0 0.0
    %5263 = vmatpush1.xpose.msra.mxu0 0.0
    %5264 = vmatprep.subr.mxu0 0.0
    %5265 = vmatpush1.xpose.msra.mxu0 0.0
    %5266 = vmatprep.subr.mxu0 0.0
    %5267 = vmatpush1.xpose.msra.mxu0 0.0
    %5268 = vmatprep.subr.mxu0 0.0
    %5269 = vmatpush1.xpose.msra.mxu0 0.0
    %5270 = vmatprep.subr.mxu0 0.0
    %5271 = vmatpush1.xpose.msra.mxu0 0.0
    %5272 = vmatprep.subr.mxu0 0.0
    %5273 = vmatpush1.xpose.msra.mxu0 0.0
    %5274 = vmatprep.subr.mxu0 0.0
    %5275 = vmatpush1.xpose.msra.mxu0 0.0
    %5276 = vmatprep.subr.mxu0 0.0
    %5277 = vmatpush1.xpose.msra.mxu0 0.0
    %5278 = vmatprep.subr.mxu0 0.0
    %5279 = vmatpush1.xpose.msra.mxu0 0.0
    %5280 = vmatprep.subr.mxu0 0.0
    %5281 = vmatpush1.xpose.msra.mxu0 0.0
    %5282 = vmatprep.subr.mxu0 0.0
    %5283 = vmatpush1.xpose.msra.mxu0 0.0
    %5284 = vmatprep.subr.mxu0 0.0
    %5285 = vmatpush1.xpose.msra.mxu0 0.0
    %5286 = vmatprep.subr.mxu0 0.0
    %5287 = vmatpush1.xpose.msra.mxu0 0.0
    %5288 = vmatprep.subr.mxu0 0.0
    %5289 = vmatpush1.xpose.msra.mxu0 0.0
    %5290 = vmatprep.subr.mxu0 0.0
    %5291 = vmatpush1.xpose.msra.mxu0 0.0
    %5292 = vmatprep.subr.mxu0 0.0
    %5293 = vmatpush1.xpose.msra.mxu0 0.0
    %5294 = vmatprep.mubr.f32.mxu0 0.0
    %5295 = vmatmul.mubr.f32.gmra.mrb[0].mxu0 %v5210
    %v5296 = vpop.f32.mrb[0].mxu0
    %v5297 = vadd.f32 0.0, %v5296
    %v5298 = vpop.f32.mrb[0].mxu0
    %5299 = vmatprep.mubr.f32.mxu0 0.0
    %5300 = vmatmul.mubr.f32.gmra.mrb[0].mxu0 %v5212
    %v5301 = vpop.f32.mrb[0].mxu0
    %v5302 = vadd.f32 0.0, %v5301
    %v5303 = vpop.f32.mrb[0].mxu0
    %5304 = vmatprep.mubr.f32.mxu0 0.0
    %5305 = vmatmul.mubr.f32.gmra.mrb[0].mxu0 %v5214
    %v5306 = vpop.f32.mrb[0].mxu0
    %v5307 = vadd.f32 0.0, %v5306
    %v5308 = vpop.f32.mrb[0].mxu0
    %5309 = vmatprep.mubr.f32.mxu0 0.0
    %5310 = vmatmul.mubr.f32.gmra.mrb[0].mxu0 %v5216
    %v5311 = vpop.f32.mrb[0].mxu0
    %v5312 = vadd.f32 0.0, %v5311
    %v5313 = vpop.f32.mrb[0].mxu0
    %5314 = vmatprep.mubr.f32.mxu0 0.0
    %5315 = vmatmul.mubr.f32.gmra.mrb[0].mxu0 %v5218
    %v5316 = vpop.f32.mrb[0].mxu0
    %v5317 = vadd.f32 0.0, %v5316
    %v5318 = vpop.f32.mrb[0].mxu0
    %5319 = vdwg.mxu0
    %v5320 = vmul.f32 %v5297, 0.35355338
    %v5321 = vmul.f32 %v5302, 0.35355338
    %v5322 = vmul.f32 %v5307, 0.35355338
    %v5323 = vmul.f32 %v5312, 0.35355338
    %v5324 = vmul.f32 %v5317, 0.35355338
    %v5325 = vadd.f32 %v5320, %v4659
    %v5326 = vadd.f32 %v5321, %v4660
    %v5327 = vadd.f32 %v5322, %v4661
    %v5328 = vadd.f32 %v5323, %v4662
    %v5329 = vadd.f32 %v5324, %v4663
    %v5330 = vlaneseq
    %v5331 = vshrl.u32 %v5330, 7
    %v5332 = vsub.s32 1, %v5331
    %v5333 = vrot.slane %v4689, %v5332
    %v5334 = vadd.f32 %v5325, %v5333
    %v5335 = vadd.f32 %v5326, %v5333
    %v5336 = vadd.f32 %v5327, %v5333
    %v5337 = vadd.f32 %v5328, %v5333
    %v5338 = vadd.f32 %v5329, %v5333
    %v5339 = vsel %vm2310, %v5334, -inf
    %5340 = vmax.xlane.f32.xlu0 %v5339
    %v5341 = vpop.xlane.xlu0 %5340
    %v5342 = vsel %vm2310, %v5335, -inf
    %5343 = vmax.xlane.f32.xlu0 %v5342
    %v5344 = vpop.xlane.xlu0 %5343
    %v5345 = vsel %vm2310, %v5336, -inf
    %5346 = vmax.xlane.f32.xlu0 %v5345
    %v5347 = vpop.xlane.xlu0 %5346
    %v5348 = vsel %vm2310, %v5337, -inf
    %5349 = vmax.xlane.f32.xlu0 %v5348
    %v5350 = vpop.xlane.xlu0 %5349
    %v5351 = vsel %vm2323, %v5338, -inf
    %5352 = vmax.xlane.f32.xlu0 %v5351
    %v5353 = vpop.xlane.xlu0 %5352
    %v5354 = vsub.f32 %v5334, %v5341
    %v5355 = vsub.f32 %v5335, %v5344
    %v5356 = vsub.f32 %v5336, %v5347
    %v5357 = vsub.f32 %v5337, %v5350
    %v5358 = vsub.f32 %v5338, %v5353
    %v5359 = vmul.f32 %v5354, 1.442695
    %v5360 = vpow.pop %v5359
    %v5361 = vmul.f32 %v5355, 1.442695
    %v5362 = vpow.pop %v5361
    %v5363 = vmul.f32 %v5356, 1.442695
    %v5364 = vpow.pop %v5363
    %v5365 = vmul.f32 %v5357, 1.442695
    %v5366 = vpow.pop %v5365
    %v5367 = vmul.f32 %v5358, 1.442695
    %v5368 = vpow.pop %v5367
    %v5369 = vsel %vm2310, %v5360, 0.0
    %5370 = vadd.xlane.f32.xlu0 %v5369
    %v5371 = vpop.xlane.xlu0 %5370
    %v5372 = vsel %vm2310, %v5362, 0.0
    %5373 = vadd.xlane.f32.xlu0 %v5372
    %v5374 = vpop.xlane.xlu0 %5373
    %v5375 = vsel %vm2310, %v5364, 0.0
    %5376 = vadd.xlane.f32.xlu0 %v5375
    %v5377 = vpop.xlane.xlu0 %5376
    %v5378 = vsel %vm2310, %v5366, 0.0
    %5379 = vadd.xlane.f32.xlu0 %v5378
    %v5380 = vpop.xlane.xlu0 %5379
    %v5381 = vsel %vm2323, %v5368, 0.0
    %5382 = vadd.xlane.f32.xlu0 %v5381
    %v5383 = vpop.xlane.xlu0 %5382
    %v5384 = vrcp.pop %v5371
    %v5385 = vmul.f32 %v5360, %v5384
    %v5386 = vrcp.pop %v5374
    %v5387 = vmul.f32 %v5362, %v5386
    %v5388 = vrcp.pop %v5377
    %v5389 = vmul.f32 %v5364, %v5388
    %v5390 = vrcp.pop %v5380
    %v5391 = vmul.f32 %v5366, %v5390
    %v5392 = vrcp.pop %v5383
    %v5393 = vmul.f32 %v5368, %v5392
    %5395 = vrot.lane.b32.xlu0 %v5387, 119
    %v5396 = vpop.permute.xlu0 %5395
    %5399 = vrot.lane.b32.xlu0 %v5389, 110
    %v5400 = vpop.permute.xlu0 %5399
    %5403 = vrot.lane.b32.xlu0 %v5391, 101
    %v5404 = vpop.permute.xlu0 %5403
    %v5406 = vsel %vm1785, %v5385, %v5396
    %v5407 = vsel %vm1690, %v5406, %v5400
    %v5408 = vsel %vm1996, %v5407, %v5404
    %s5409 = scalar_lea.vmem [#allocation38], 8
    %5410 = vst.msk [vmem:[%s5409] sm:$0xf] %vm2382, %v5408
    %5411 = vrot.lane.b32.xlu0 %v5171, 64
    %v5412 = vpop.permute.xlu0 %5411
    %5413 = vrot.lane.b32.xlu0 %v5194, 64
    %v5414 = vpop.permute.xlu0 %5413
    %5415 = vrot.lane.b32.xlu0 %v5195, 64
    %v5416 = vpop.permute.xlu0 %5415
    %5417 = vrot.lane.b32.xlu0 %v5196, 64
    %v5418 = vpop.permute.xlu0 %5417
    %5419 = vrot.lane.b32.xlu0 %v5192, 64
    %v5420 = vpop.permute.xlu0 %5419
    %v5426 = vsel %vm2310, %v5385, 0
    %v5428 = vsel %vm2310, %v5387, 0
    %v5430 = vsel %vm2310, %v5389, 0
    %v5432 = vsel %vm2310, %v5391, 0
    %v5435 = vsel %vm2310, %v5393, 0
    %v5437 = vsel %vm524, %v5420, 0
    %5439 = vmatprep.subr.mxu0 0.0
    %5440 = vmatpush1.msra.mxu0 %v5412
    %5441 = vmatprep.subr.mxu0 0.0
    %5442 = vmatpush1.msra.mxu0 %v5414
    %5443 = vmatprep.subr.mxu0 0.0
    %5444 = vmatpush1.msra.mxu0 %v5416
    %5445 = vmatprep.subr.mxu0 0.0
    %5446 = vmatpush1.msra.mxu0 %v5418
    %5447 = vmatprep.subr.mxu0 0.0
    %5448 = vmatpush1.msra.mxu0 %v5437
    %5449 = vmatprep.subr.mxu0 0.0
    %5450 = vmatpush1.msra.mxu0 0.0
    %5451 = vmatprep.subr.mxu0 0.0
    %5452 = vmatpush1.msra.mxu0 0.0
    %5453 = vmatprep.subr.mxu0 0.0
    %5454 = vmatpush1.msra.mxu0 0.0
    %5455 = vmatprep.subr.mxu0 0.0
    %5456 = vmatpush1.msra.mxu0 0.0
    %5457 = vmatprep.subr.mxu0 0.0
    %5458 = vmatpush1.msra.mxu0 0.0
    %5459 = vmatprep.subr.mxu0 0.0
    %5460 = vmatpush1.msra.mxu0 0.0
    %5461 = vmatprep.subr.mxu0 0.0
    %5462 = vmatpush1.msra.mxu0 0.0
    %5463 = vmatprep.subr.mxu0 0.0
    %5464 = vmatpush1.msra.mxu0 0.0
    %5465 = vmatprep.subr.mxu0 0.0
    %5466 = vmatpush1.msra.mxu0 0.0
    %5467 = vmatprep.subr.mxu0 0.0
    %5468 = vmatpush1.msra.mxu0 0.0
    %5469 = vmatprep.subr.mxu0 0.0
    %5470 = vmatpush1.msra.mxu0 0.0
    %5471 = vmatprep.subr.mxu0 0.0
    %5472 = vmatpush1.msra.mxu0 0.0
    %5473 = vmatprep.subr.mxu0 0.0
    %5474 = vmatpush1.msra.mxu0 0.0
    %5475 = vmatprep.subr.mxu0 0.0
    %5476 = vmatpush1.msra.mxu0 0.0
    %5477 = vmatprep.subr.mxu0 0.0
    %5478 = vmatpush1.msra.mxu0 0.0
    %5479 = vmatprep.subr.mxu0 0.0
    %5480 = vmatpush1.msra.mxu0 0.0
    %5481 = vmatprep.subr.mxu0 0.0
    %5482 = vmatpush1.msra.mxu0 0.0
    %5483 = vmatprep.subr.mxu0 0.0
    %5484 = vmatpush1.msra.mxu0 0.0
    %5485 = vmatprep.subr.mxu0 0.0
    %5486 = vmatpush1.msra.mxu0 0.0
    %5487 = vmatprep.subr.mxu0 0.0
    %5488 = vmatpush1.msra.mxu0 0.0
    %5489 = vmatprep.subr.mxu0 0.0
    %5490 = vmatpush1.msra.mxu0 0.0
    %5491 = vmatprep.subr.mxu0 0.0
    %5492 = vmatpush1.msra.mxu0 0.0
    %5493 = vmatprep.subr.mxu0 0.0
    %5494 = vmatpush1.msra.mxu0 0.0
    %5495 = vmatprep.subr.mxu0 0.0
    %5496 = vmatpush1.msra.mxu0 0.0
    %5497 = vmatprep.subr.mxu0 0.0
    %5498 = vmatpush1.msra.mxu0 0.0
    %5499 = vmatprep.subr.mxu0 0.0
    %5500 = vmatpush1.msra.mxu0 0.0
    %5501 = vmatprep.subr.mxu0 0.0
    %5502 = vmatpush1.msra.mxu0 0.0
    %5503 = vmatprep.mubr.f32.mxu0 0.0
    %5504 = vmatmul.mubr.f32.gmra.mrb[0].mxu0 %v5426
    %v5505 = vpop.f32.mrb[0].mxu0
    %v5506 = vadd.f32 0.0, %v5505
    %v5507 = vpop.f32.mrb[0].mxu0
    %5508 = vmatprep.mubr.f32.mxu0 0.0
    %5509 = vmatmul.mubr.f32.gmra.mrb[0].mxu0 %v5428
    %v5510 = vpop.f32.mrb[0].mxu0
    %v5511 = vadd.f32 0.0, %v5510
    %v5512 = vpop.f32.mrb[0].mxu0
    %5513 = vmatprep.mubr.f32.mxu0 0.0
    %5514 = vmatmul.mubr.f32.gmra.mrb[0].mxu0 %v5430
    %v5515 = vpop.f32.mrb[0].mxu0
    %v5516 = vadd.f32 0.0, %v5515
    %v5517 = vpop.f32.mrb[0].mxu0
    %5518 = vmatprep.mubr.f32.mxu0 0.0
    %5519 = vmatmul.mubr.f32.gmra.mrb[0].mxu0 %v5432
    %v5520 = vpop.f32.mrb[0].mxu0
    %v5521 = vadd.f32 0.0, %v5520
    %v5522 = vpop.f32.mrb[0].mxu0
    %5523 = vmatprep.mubr.f32.mxu0 0.0
    %5524 = vmatmul.mubr.f32.gmra.mrb[0].mxu0 %v5435
    %v5525 = vpop.f32.mrb[0].mxu0
    %v5526 = vadd.f32 0.0, %v5525
    %v5527 = vpop.f32.mrb[0].mxu0
    %5528 = vdwg.mxu0
    %v5531 = vrot.slane %v5511, 1
    %v5532 = vrot.slane %v5516, 1
    %v5533 = vsel %vm2002, %v5531, %v5532
    %5534 = vrot.lane.b32.xlu0 %v5533, 8
    %v5535 = vpop.permute.xlu0 %5534
    %5536 = vrot.lane.b32.xlu0 %v5532, 8
    %v5537 = vpop.permute.xlu0 %5536
    %v5541 = vrot.slane %v5516, 2
    %v5542 = vrot.slane %v5521, 2
    %v5543 = vsel %vm1693, %v5541, %v5542
    %5544 = vrot.lane.b32.xlu0 %v5543, 16
    %v5545 = vpop.permute.xlu0 %5544
    %5546 = vrot.lane.b32.xlu0 %v5542, 16
    %v5547 = vpop.permute.xlu0 %5546
    %v5551 = vrot.slane %v5521, 3
    %v5552 = vrot.slane %v5526, 3
    %v5553 = vsel %vm1999, %v5551, %v5552
    %5554 = vrot.lane.b32.xlu0 %v5553, 24
    %v5555 = vpop.permute.xlu0 %5554
    %5556 = vrot.lane.b32.xlu0 %v5552, 24
    %v5557 = vpop.permute.xlu0 %5556
    %v5560 = vsel %vm2180, %v5506, %v5535
    %v5561 = vsel %vm2180, %v5511, %v5537
    %v5562 = vsel %vm2535, %v5560, %v5545
    %v5563 = vsel %vm2535, %v5561, %v5547
    %v5564 = vsel %vm2538, %v5562, %v5555
    %v5565 = vsel %vm2538, %v5563, %v5557
    %v5568 = vrot.slane %v5564, 7
    %v5569 = vrot.slane %v5565, 7
    %v5570 = vsel %vm1785, %v5568, %v5569
    %v5573 = vsel %vm1785, %v5167, %v5568
    %v5574 = vld [vmem:[%s65] sm:$0xf]
    %v5575 = vld [vmem:[%s65 + $0x4] sm:$0xf]
    %v5576 = vld [vmem:[%s65 + $0x8] sm:$0xf]
    %v5577 = vld [vmem:[%s65 + $0xc] sm:$0xf]
    %v5578 = vld [vmem:[#allocation17] sm:$0x1]
    %v5579 = vpack.c.bf16 %v5573, %v5166
    %v5580 = vpack.c.bf16 %v5570, %v5570
    %v5582 = vlaneseq
    %v5583 = vshrl.u32 %v5582, 7
    %v5584 = vsub.s32 0, %v5583
    %v5585 = vrot.slane %v5578, %v5584
    %v5591 = vunpack.c.l.b16 %v5574
    %v5592 = vunpack.c.l.b16 %v5575
    %v5593 = vunpack.c.l.b16 %v5576
    %v5594 = vunpack.c.l.b16 %v5577
    %v5595 = vpack.c.b16 %v5592, %v5591
    %v5596 = vpack.c.b16 %v5594, %v5593
    %v5600 = vsel %vm627, %v5579, 0
    %v5603 = vsel %vm627, %v5580, 0
    %5605 = vmatprep.subr.bf16.mxu0 0
    %5606 = vmatpush1.bf16.msra.mxu0 %v5595
    %5607 = vmatprep.subr.bf16.mxu0 0
    %5608 = vmatpush1.bf16.msra.mxu0 %v5596
    %5609 = vmatprep.subr.bf16.mxu0 0
    %5610 = vmatpush1.bf16.msra.mxu0 0
    %5611 = vmatprep.subr.bf16.mxu0 0
    %5612 = vmatpush1.bf16.msra.mxu0 0
    %5613 = vmatprep.subr.bf16.mxu0 0
    %5614 = vmatpush1.bf16.msra.mxu0 0
    %5615 = vmatprep.subr.bf16.mxu0 0
    %5616 = vmatpush1.bf16.msra.mxu0 0
    %5617 = vmatprep.subr.bf16.mxu0 0
    %5618 = vmatpush1.bf16.msra.mxu0 0
    %5619 = vmatprep.subr.bf16.mxu0 0
    %5620 = vmatpush1.bf16.msra.mxu0 0
    %5621 = vmatprep.subr.bf16.mxu0 0
    %5622 = vmatpush1.bf16.msra.mxu0 0
    %5623 = vmatprep.subr.bf16.mxu0 0
    %5624 = vmatpush1.bf16.msra.mxu0 0
    %5625 = vmatprep.subr.bf16.mxu0 0
    %5626 = vmatpush1.bf16.msra.mxu0 0
    %5627 = vmatprep.subr.bf16.mxu0 0
    %5628 = vmatpush1.bf16.msra.mxu0 0
    %5629 = vmatprep.subr.bf16.mxu0 0
    %5630 = vmatpush1.bf16.msra.mxu0 0
    %5631 = vmatprep.subr.bf16.mxu0 0
    %5632 = vmatpush1.bf16.msra.mxu0 0
    %5633 = vmatprep.subr.bf16.mxu0 0
    %5634 = vmatpush1.bf16.msra.mxu0 0
    %5635 = vmatprep.subr.bf16.mxu0 0
    %5636 = vmatpush1.bf16.msra.mxu0 0
    %5637 = vmatprep.mubr.bf16.mxu0 0
    %5638 = vmatmul.mubr.bf16.gmra.mrb[0].mxu0 %v5600
    %v5639 = vpop.f32.mrb[0].mxu0
    %v5640 = vadd.f32 %v5585, %v5639
    %v5641 = vpop.f32.mrb[0].mxu0
    %v5642 = vpop.f32.mrb[0].mxu0
    %v5643 = vadd.f32 %v5585, %v5642
    %v5644 = vpop.f32.mrb[0].mxu0
    %5645 = vmatprep.mubr.bf16.mxu0 0
    %5646 = vmatmul.mubr.bf16.gmra.mrb[0].mxu0 %v5603
    %v5647 = vpop.f32.mrb[0].mxu0
    %v5648 = vadd.f32 %v5585, %v5647
    %v5649 = vpop.f32.mrb[0].mxu0
    %v5650 = vpop.f32.mrb[0].mxu0
    %v5651 = vpop.f32.mrb[0].mxu0
    %5652 = vdwg.mxu0
    %v5653 = vadd.f32 %v2020, %v5640
    %v5654 = vadd.f32 %v2022, %v5643
    %v5655 = vadd.f32 %v2018, %v5648
    %v5656 = vld [vmem:[#allocation19] sm:$0x1]
    %v5657 = vld [vmem:[#allocation20] sm:$0x1]
    %v5658 = vsel %vm627, %v5653, 0.0
    %5659 = vadd.xlane.f32.xlu0 %v5658
    %v5660 = vpop.xlane.xlu0 %5659
    %v5661 = vsel %vm627, %v5654, 0.0
    %5662 = vadd.xlane.f32.xlu0 %v5661
    %v5663 = vpop.xlane.xlu0 %5662
    %v5664 = vsel %vm3037, %v5655, 0.0
    %5665 = vadd.xlane.f32.xlu0 %v5664
    %v5666 = vpop.xlane.xlu0 %5665
    %v5667 = vmul.f32 %v5660, %v3041
    %v5668 = vmul.f32 %v5663, %v3041
    %v5669 = vmul.f32 %v5666, %v3041
    %v5670 = vsub.f32 %v5653, %v5667
    %v5671 = vsub.f32 %v5654, %v5668
    %v5672 = vsub.f32 %v5655, %v5669
    %v5673 = vmul.f32 %v5670, %v5670
    %v5674 = vmul.f32 %v5671, %v5671
    %v5675 = vmul.f32 %v5672, %v5672
    %v5676 = vsel %vm627, %v5673, 0.0
    %5677 = vadd.xlane.f32.xlu0 %v5676
    %v5678 = vpop.xlane.xlu0 %5677
    %v5679 = vsel %vm627, %v5674, 0.0
    %5680 = vadd.xlane.f32.xlu0 %v5679
    %v5681 = vpop.xlane.xlu0 %5680
    %v5682 = vsel %vm3037, %v5675, 0.0
    %5683 = vadd.xlane.f32.xlu0 %v5682
    %v5684 = vpop.xlane.xlu0 %5683
    %v5685 = vmul.f32 %v5678, %v3060
    %v5686 = vmul.f32 %v5681, %v3060
    %v5687 = vmul.f32 %v5684, %v3060
    %v5689 = vlaneseq
    %v5690 = vshrl.u32 %v5689, 7
    %v5691 = vsub.s32 0, %v5690
    %v5692 = vrot.slane %v5656, %v5691
    %v5694 = vmul.f32 %v5692, %v5670
    %v5695 = vmul.f32 %v5692, %v5671
    %v5696 = vmul.f32 %v5692, %v5672
    %v5697 = vrsqrt.pop %v5685
    %v5698 = vmul.f32 %v5685, %v5697
    %vm5699 = vcmp.eq.f32.partialorder %v5685, inf
    %v5700 = vsel %vm5699, %v5685, %v5698
    %vm5701 = vcmp.eq.f32.partialorder %v5685, 0.0
    %v5702 = vand.u32 %v5685, 2147483648
    %v5703 = vsel %vm5701, %v5702, %v5700
    %v5704 = vrsqrt.pop %v5686
    %v5705 = vmul.f32 %v5686, %v5704
    %vm5706 = vcmp.eq.f32.partialorder %v5686, inf
    %v5707 = vsel %vm5706, %v5686, %v5705
    %vm5708 = vcmp.eq.f32.partialorder %v5686, 0.0
    %v5709 = vand.u32 %v5686, 2147483648
    %v5710 = vsel %vm5708, %v5709, %v5707
    %v5711 = vrsqrt.pop %v5687
    %v5712 = vmul.f32 %v5687, %v5711
    %vm5713 = vcmp.eq.f32.partialorder %v5687, inf
    %v5714 = vsel %vm5713, %v5687, %v5712
    %vm5715 = vcmp.eq.f32.partialorder %v5687, 0.0
    %v5716 = vand.u32 %v5687, 2147483648
    %v5717 = vsel %vm5715, %v5716, %v5714
    %v5718 = vadd.f32 %v5703, 1e-06
    %v5719 = vadd.f32 %v5710, 1e-06
    %v5720 = vadd.f32 %v5717, 1e-06
    %v5721 = vrcp.pop %v5718
    %v5722 = vmul.f32 %v5694, %v5721
    %v5723 = vrcp.pop %v5719
    %v5724 = vmul.f32 %v5695, %v5723
    %v5725 = vrcp.pop %v5720
    %v5726 = vmul.f32 %v5696, %v5725
    %v5728 = vlaneseq
    %v5729 = vshrl.u32 %v5728, 7
    %v5730 = vsub.s32 0, %v5729
    %v5731 = vrot.slane %v5657, %v5730
    %v5733 = vadd.f32 %v5722, %v5731
    %v5734 = vadd.f32 %v5724, %v5731
    %v5735 = vadd.f32 %v5726, %v5731
    %v5736 = vld [vmem:[%s73] sm:$0xf]
    %v5737 = vld [vmem:[%s73 + $0x4] sm:$0xf]
    %v5738 = vld [vmem:[%s73 + $0x8] sm:$0xf]
    %v5739 = vld [vmem:[%s73 + $0xc] sm:$0xf]
    %v5740 = vld [vmem:[#allocation22] sm:$0x1]
    %v5741 = vpack.c.bf16 %v5734, %v5733
    %v5742 = vpack.c.bf16 %v5735, %v5735
    %v5744 = vlaneseq
    %v5745 = vshrl.u32 %v5744, 7
    %v5746 = vsub.s32 0, %v5745
    %v5747 = vrot.slane %v5740, %v5746
    %v5753 = vunpack.c.l.b16 %v5736
    %v5754 = vunpack.c.l.b16 %v5737
    %v5755 = vunpack.c.l.b16 %v5738
    %v5756 = vunpack.c.l.b16 %v5739
    %v5757 = vpack.c.b16 %v5754, %v5753
    %v5758 = vpack.c.b16 %v5756, %v5755
    %v5762 = vsel %vm627, %v5741, 0
    %v5765 = vsel %vm627, %v5742, 0
    %5767 = vmatprep.subr.bf16.mxu0 0
    %5768 = vmatpush1.bf16.msra.mxu0 %v5757
    %5769 = vmatprep.subr.bf16.mxu0 0
    %5770 = vmatpush1.bf16.msra.mxu0 %v5758
    %5771 = vmatprep.subr.bf16.mxu0 0
    %5772 = vmatpush1.bf16.msra.mxu0 0
    %5773 = vmatprep.subr.bf16.mxu0 0
    %5774 = vmatpush1.bf16.msra.mxu0 0
    %5775 = vmatprep.subr.bf16.mxu0 0
    %5776 = vmatpush1.bf16.msra.mxu0 0
    %5777 = vmatprep.subr.bf16.mxu0 0
    %5778 = vmatpush1.bf16.msra.mxu0 0
    %5779 = vmatprep.subr.bf16.mxu0 0
    %5780 = vmatpush1.bf16.msra.mxu0 0
    %5781 = vmatprep.subr.bf16.mxu0 0
    %5782 = vmatpush1.bf16.msra.mxu0 0
    %5783 = vmatprep.subr.bf16.mxu0 0
    %5784 = vmatpush1.bf16.msra.mxu0 0
    %5785 = vmatprep.subr.bf16.mxu0 0
    %5786 = vmatpush1.bf16.msra.mxu0 0
    %5787 = vmatprep.subr.bf16.mxu0 0
    %5788 = vmatpush1.bf16.msra.mxu0 0
    %5789 = vmatprep.subr.bf16.mxu0 0
    %5790 = vmatpush1.bf16.msra.mxu0 0
    %5791 = vmatprep.subr.bf16.mxu0 0
    %5792 = vmatpush1.bf16.msra.mxu0 0
    %5793 = vmatprep.subr.bf16.mxu0 0
    %5794 = vmatpush1.bf16.msra.mxu0 0
    %5795 = vmatprep.subr.bf16.mxu0 0
    %5796 = vmatpush1.bf16.msra.mxu0 0
    %5797 = vmatprep.subr.bf16.mxu0 0
    %5798 = vmatpush1.bf16.msra.mxu0 0
    %5799 = vmatprep.mubr.bf16.mxu0 0
    %5800 = vmatmul.mubr.bf16.gmra.mrb[0].mxu0 %v5762
    %v5801 = vpop.f32.mrb[0].mxu0
    %v5802 = vadd.f32 %v5747, %v5801
    %v5803 = vpop.f32.mrb[0].mxu0
    %v5804 = vpop.f32.mrb[0].mxu0
    %v5805 = vadd.f32 %v5747, %v5804
    %v5806 = vpop.f32.mrb[0].mxu0
    %5807 = vmatprep.mubr.bf16.mxu0 0
    %5808 = vmatmul.mubr.bf16.gmra.mrb[0].mxu0 %v5765
    %v5809 = vpop.f32.mrb[0].mxu0
    %v5810 = vadd.f32 %v5747, %v5809
    %v5811 = vpop.f32.mrb[0].mxu0
    %v5812 = vpop.f32.mrb[0].mxu0
    %v5813 = vpop.f32.mrb[0].mxu0
    %5814 = vdwg.mxu0
    %v5815 = vmax.f32 %v5802, 0.0
    %v5816 = vmax.f32 %v5805, 0.0
    %v5817 = vmax.f32 %v5810, 0.0
    %v5818 = vld [vmem:[%s77] sm:$0xf]
    %v5819 = vld [vmem:[%s77 + $0x4] sm:$0xf]
    %v5820 = vld [vmem:[%s77 + $0x8] sm:$0xf]
    %v5821 = vld [vmem:[%s77 + $0xc] sm:$0xf]
    %v5822 = vld [vmem:[%s77 + $0x10] sm:$0xf]
    %v5823 = vld [vmem:[%s77 + $0x14] sm:$0xf]
    %v5824 = vld [vmem:[%s77 + $0x18] sm:$0xf]
    %v5825 = vld [vmem:[%s77 + $0x1c] sm:$0xf]
    %v5826 = vld [vmem:[#allocation23] sm:$0x1]
    %v5827 = vpack.c.bf16 %v5816, %v5815
    %v5828 = vpack.c.bf16 %v5817, %v5817
    %v5830 = vlaneseq
    %v5831 = vshrl.u32 %v5830, 7
    %v5832 = vsub.s32 0, %v5831
    %v5833 = vrot.slane %v5826, %v5832
    %v5843 = vunpack.c.l.b16 %v5818
    %v5844 = vunpack.c.l.b16 %v5819
    %v5845 = vunpack.c.l.b16 %v5820
    %v5846 = vunpack.c.l.b16 %v5821
    %v5847 = vunpack.c.l.b16 %v5822
    %v5848 = vunpack.c.l.b16 %v5823
    %v5849 = vunpack.c.l.b16 %v5824
    %v5850 = vunpack.c.l.b16 %v5825
    %v5851 = vpack.c.b16 %v5844, %v5843
    %v5852 = vpack.c.b16 %v5846, %v5845
    %v5853 = vpack.c.b16 %v5848, %v5847
    %v5854 = vpack.c.b16 %v5850, %v5849
    %v5860 = vsel %vm843, %v5827, 0
    %v5863 = vsel %vm843, %v5828, 0
    %5865 = vmatprep.subr.bf16.mxu0 0
    %5866 = vmatpush1.bf16.msra.mxu0 %v5851
    %5867 = vmatprep.subr.bf16.mxu0 0
    %5868 = vmatpush1.bf16.msra.mxu0 %v5852
    %5869 = vmatprep.subr.bf16.mxu0 0
    %5870 = vmatpush1.bf16.msra.mxu0 %v5853
    %5871 = vmatprep.subr.bf16.mxu0 0
    %5872 = vmatpush1.bf16.msra.mxu0 %v5854
    %5873 = vmatprep.subr.bf16.mxu0 0
    %5874 = vmatpush1.bf16.msra.mxu0 0
    %5875 = vmatprep.subr.bf16.mxu0 0
    %5876 = vmatpush1.bf16.msra.mxu0 0
    %5877 = vmatprep.subr.bf16.mxu0 0
    %5878 = vmatpush1.bf16.msra.mxu0 0
    %5879 = vmatprep.subr.bf16.mxu0 0
    %5880 = vmatpush1.bf16.msra.mxu0 0
    %5881 = vmatprep.subr.bf16.mxu0 0
    %5882 = vmatpush1.bf16.msra.mxu0 0
    %5883 = vmatprep.subr.bf16.mxu0 0
    %5884 = vmatpush1.bf16.msra.mxu0 0
    %5885 = vmatprep.subr.bf16.mxu0 0
    %5886 = vmatpush1.bf16.msra.mxu0 0
    %5887 = vmatprep.subr.bf16.mxu0 0
    %5888 = vmatpush1.bf16.msra.mxu0 0
    %5889 = vmatprep.subr.bf16.mxu0 0
    %5890 = vmatpush1.bf16.msra.mxu0 0
    %5891 = vmatprep.subr.bf16.mxu0 0
    %5892 = vmatpush1.bf16.msra.mxu0 0
    %5893 = vmatprep.subr.bf16.mxu0 0
    %5894 = vmatpush1.bf16.msra.mxu0 0
    %5895 = vmatprep.subr.bf16.mxu0 0
    %5896 = vmatpush1.bf16.msra.mxu0 0
    %5897 = vmatprep.mubr.bf16.mxu0 0
    %5898 = vmatmul.mubr.bf16.gmra.mrb[0].mxu0 %v5860
    %v5899 = vpop.f32.mrb[0].mxu0
    %v5900 = vadd.f32 %v5833, %v5899
    %v5901 = vpop.f32.mrb[0].mxu0
    %v5902 = vpop.f32.mrb[0].mxu0
    %v5903 = vadd.f32 %v5833, %v5902
    %v5904 = vpop.f32.mrb[0].mxu0
    %5905 = vmatprep.mubr.bf16.mxu0 0
    %5906 = vmatmul.mubr.bf16.gmra.mrb[0].mxu0 %v5863
    %v5907 = vpop.f32.mrb[0].mxu0
    %v5908 = vadd.f32 %v5833, %v5907
    %v5909 = vpop.f32.mrb[0].mxu0
    %v5910 = vpop.f32.mrb[0].mxu0
    %v5911 = vpop.f32.mrb[0].mxu0
    %5912 = vdwg.mxu0
    %v5913 = vadd.f32 %v5733, %v5900
    %v5914 = vadd.f32 %v5734, %v5903
    %v5915 = vadd.f32 %v5735, %v5908
    %v5916 = vld [vmem:[#allocation25] sm:$0x1]
    %v5917 = vld [vmem:[#allocation26] sm:$0x1]
    %v5918 = vsel %vm627, %v5913, 0.0
    %5919 = vadd.xlane.f32.xlu0 %v5918
    %v5920 = vpop.xlane.xlu0 %5919
    %v5921 = vsel %vm627, %v5914, 0.0
    %5922 = vadd.xlane.f32.xlu0 %v5921
    %v5923 = vpop.xlane.xlu0 %5922
    %v5924 = vsel %vm3037, %v5915, 0.0
    %5925 = vadd.xlane.f32.xlu0 %v5924
    %v5926 = vpop.xlane.xlu0 %5925
    %v5927 = vmul.f32 %v5920, %v3041
    %v5928 = vmul.f32 %v5923, %v3041
    %v5929 = vmul.f32 %v5926, %v3041
    %v5930 = vsub.f32 %v5913, %v5927
    %v5931 = vsub.f32 %v5914, %v5928
    %v5932 = vsub.f32 %v5915, %v5929
    %v5933 = vmul.f32 %v5930, %v5930
    %v5934 = vmul.f32 %v5931, %v5931
    %v5935 = vmul.f32 %v5932, %v5932
    %v5936 = vsel %vm627, %v5933, 0.0
    %5937 = vadd.xlane.f32.xlu0 %v5936
    %v5938 = vpop.xlane.xlu0 %5937
    %v5939 = vsel %vm627, %v5934, 0.0
    %5940 = vadd.xlane.f32.xlu0 %v5939
    %v5941 = vpop.xlane.xlu0 %5940
    %v5942 = vsel %vm3037, %v5935, 0.0
    %5943 = vadd.xlane.f32.xlu0 %v5942
    %v5944 = vpop.xlane.xlu0 %5943
    %v5945 = vmul.f32 %v5938, %v3060
    %v5946 = vmul.f32 %v5941, %v3060
    %v5947 = vmul.f32 %v5944, %v3060
    %v5949 = vlaneseq
    %v5950 = vshrl.u32 %v5949, 7
    %v5951 = vsub.s32 0, %v5950
    %v5952 = vrot.slane %v5916, %v5951
    %v5954 = vmul.f32 %v5952, %v5930
    %v5955 = vmul.f32 %v5952, %v5931
    %v5956 = vmul.f32 %v5952, %v5932
    %v5957 = vrsqrt.pop %v5945
    %v5958 = vmul.f32 %v5945, %v5957
    %vm5959 = vcmp.eq.f32.partialorder %v5945, inf
    %v5960 = vsel %vm5959, %v5945, %v5958
    %vm5961 = vcmp.eq.f32.partialorder %v5945, 0.0
    %v5962 = vand.u32 %v5945, 2147483648
    %v5963 = vsel %vm5961, %v5962, %v5960
    %v5964 = vrsqrt.pop %v5946
    %v5965 = vmul.f32 %v5946, %v5964
    %vm5966 = vcmp.eq.f32.partialorder %v5946, inf
    %v5967 = vsel %vm5966, %v5946, %v5965
    %vm5968 = vcmp.eq.f32.partialorder %v5946, 0.0
    %v5969 = vand.u32 %v5946, 2147483648
    %v5970 = vsel %vm5968, %v5969, %v5967
    %v5971 = vrsqrt.pop %v5947
    %v5972 = vmul.f32 %v5947, %v5971
    %vm5973 = vcmp.eq.f32.partialorder %v5947, inf
    %v5974 = vsel %vm5973, %v5947, %v5972
    %vm5975 = vcmp.eq.f32.partialorder %v5947, 0.0
    %v5976 = vand.u32 %v5947, 2147483648
    %v5977 = vsel %vm5975, %v5976, %v5974
    %v5978 = vadd.f32 %v5963, 1e-06
    %v5979 = vadd.f32 %v5970, 1e-06
    %v5980 = vadd.f32 %v5977, 1e-06
    %v5981 = vrcp.pop %v5978
    %v5982 = vmul.f32 %v5954, %v5981
    %v5983 = vrcp.pop %v5979
    %v5984 = vmul.f32 %v5955, %v5983
    %v5985 = vrcp.pop %v5980
    %v5986 = vmul.f32 %v5956, %v5985
    %v5988 = vlaneseq
    %v5989 = vshrl.u32 %v5988, 7
    %v5990 = vsub.s32 0, %v5989
    %v5991 = vrot.slane %v5917, %v5990
    %v5993 = vadd.f32 %v5982, %v5991
    %v5994 = vadd.f32 %v5984, %v5991
    %v5995 = vadd.f32 %v5986, %v5991
    %s5996 = scalar_lea.vmem %s61, 16
    %v5997 = vld [vmem:[%s5996] sm:$0xf]
    %v5998 = vld [vmem:[%s5996 + $0x4] sm:$0xf]
    %v5999 = vld [vmem:[%s5996 + $0x8] sm:$0xf]
    %v6000 = vld [vmem:[%s5996 + $0xc] sm:$0xf]
    %s6001 = scalar_lea.vmem [#allocation16], 1
    %v6002 = vld [vmem:[%s6001] sm:$0x1]
    %v6003 = vpack.c.bf16 %v5994, %v5993
    %v6004 = vpack.c.bf16 %v5995, %v5995
    %v6006 = vlaneseq
    %v6007 = vshrl.u32 %v6006, 7
    %v6008 = vsub.s32 0, %v6007
    %v6009 = vrot.slane %v6002, %v6008
    %v6015 = vunpack.c.l.b16 %v5997
    %v6016 = vunpack.c.l.b16 %v5998
    %v6017 = vunpack.c.l.b16 %v5999
    %v6018 = vunpack.c.l.b16 %v6000
    %v6019 = vpack.c.b16 %v6016, %v6015
    %v6020 = vpack.c.b16 %v6018, %v6017
    %v6024 = vsel %vm627, %v6003, 0
    %v6027 = vsel %vm627, %v6004, 0
    %6029 = vmatprep.subr.bf16.mxu0 0
    %6030 = vmatpush1.bf16.msra.mxu0 %v6019
    %6031 = vmatprep.subr.bf16.mxu0 0
    %6032 = vmatpush1.bf16.msra.mxu0 %v6020
    %6033 = vmatprep.subr.bf16.mxu0 0
    %6034 = vmatpush1.bf16.msra.mxu0 0
    %6035 = vmatprep.subr.bf16.mxu0 0
    %6036 = vmatpush1.bf16.msra.mxu0 0
    %6037 = vmatprep.subr.bf16.mxu0 0
    %6038 = vmatpush1.bf16.msra.mxu0 0
    %6039 = vmatprep.subr.bf16.mxu0 0
    %6040 = vmatpush1.bf16.msra.mxu0 0
    %6041 = vmatprep.subr.bf16.mxu0 0
    %6042 = vmatpush1.bf16.msra.mxu0 0
    %6043 = vmatprep.subr.bf16.mxu0 0
    %6044 = vmatpush1.bf16.msra.mxu0 0
    %6045 = vmatprep.subr.bf16.mxu0 0
    %6046 = vmatpush1.bf16.msra.mxu0 0
    %6047 = vmatprep.subr.bf16.mxu0 0
    %6048 = vmatpush1.bf16.msra.mxu0 0
    %6049 = vmatprep.subr.bf16.mxu0 0
    %6050 = vmatpush1.bf16.msra.mxu0 0
    %6051 = vmatprep.subr.bf16.mxu0 0
    %6052 = vmatpush1.bf16.msra.mxu0 0
    %6053 = vmatprep.subr.bf16.mxu0 0
    %6054 = vmatpush1.bf16.msra.mxu0 0
    %6055 = vmatprep.subr.bf16.mxu0 0
    %6056 = vmatpush1.bf16.msra.mxu0 0
    %6057 = vmatprep.subr.bf16.mxu0 0
    %6058 = vmatpush1.bf16.msra.mxu0 0
    %6059 = vmatprep.subr.bf16.mxu0 0
    %6060 = vmatpush1.bf16.msra.mxu0 0
    %6061 = vmatprep.mubr.bf16.mxu0 0
    %6062 = vmatmul.mubr.bf16.gmra.mrb[0].mxu0 %v6024
    %v6063 = vpop.f32.mrb[0].mxu0
    %v6064 = vadd.f32 %v6009, %v6063
    %v6065 = vpop.f32.mrb[0].mxu0
    %v6066 = vpop.f32.mrb[0].mxu0
    %v6067 = vadd.f32 %v6009, %v6066
    %v6068 = vpop.f32.mrb[0].mxu0
    %6069 = vmatprep.mubr.bf16.mxu0 0
    %6070 = vmatmul.mubr.bf16.gmra.mrb[0].mxu0 %v6027
    %v6071 = vpop.f32.mrb[0].mxu0
    %v6072 = vadd.f32 %v6009, %v6071
    %v6073 = vpop.f32.mrb[0].mxu0
    %v6074 = vpop.f32.mrb[0].mxu0
    %v6075 = vpop.f32.mrb[0].mxu0
    %6076 = vdwg.mxu0
    %v6079 = vrot.slane %v6064, 7
    %v6080 = vrot.slane %v6067, 7
    %v6081 = vsel %vm1785, %v6079, %v6080
    %6082 = vrot.lane.b32.xlu0 %v6079, 120
    %v6083 = vpop.permute.xlu0 %6082
    %6084 = vrot.lane.b32.xlu0 %v6081, 120
    %v6085 = vpop.permute.xlu0 %6084
    %v6088 = vrot.slane %v6064, 6
    %v6089 = vrot.slane %v6067, 6
    %v6090 = vsel %vm1690, %v6088, %v6089
    %6091 = vrot.lane.b32.xlu0 %v6088, 112
    %v6092 = vpop.permute.xlu0 %6091
    %6093 = vrot.lane.b32.xlu0 %v6090, 112
    %v6094 = vpop.permute.xlu0 %6093
    %v6097 = vrot.slane %v6064, 5
    %v6098 = vrot.slane %v6067, 5
    %v6099 = vsel %vm1996, %v6097, %v6098
    %6100 = vrot.lane.b32.xlu0 %v6097, 104
    %v6101 = vpop.permute.xlu0 %6100
    %6102 = vrot.lane.b32.xlu0 %v6099, 104
    %v6103 = vpop.permute.xlu0 %6102
    %v6105 = vsel %vm1785, %v6067, %v6083
    %v6106 = vsel %vm1690, %v6085, %v6092
    %v6107 = vsel %vm1996, %v6094, %v6101
    %6111 = vrot.lane.b32.xlu0 %v6064, 96
    %v6112 = vpop.permute.xlu0 %6111
    %6113 = vrot.lane.b32.xlu0 %v6105, 96
    %v6114 = vpop.permute.xlu0 %6113
    %6115 = vrot.lane.b32.xlu0 %v6106, 96
    %v6116 = vpop.permute.xlu0 %6115
    %6117 = vrot.lane.b32.xlu0 %v6107, 96
    %v6118 = vpop.permute.xlu0 %6117
    %6119 = vrot.lane.b32.xlu0 %v6103, 96
    %v6120 = vpop.permute.xlu0 %6119
    %v6121 = vsel %vm2180, %v6064, 0
    %v6123 = vsel %vm2180, %v6105, 0
    %v6125 = vsel %vm2180, %v6106, 0
    %v6127 = vsel %vm2180, %v6107, 0
    %v6129 = vsel %vm2180, %v6103, 0
    %v6131 = vsel %vm2180, %v6112, 0
    %v6133 = vsel %vm2180, %v6114, 0
    %v6135 = vsel %vm2180, %v6116, 0
    %v6137 = vsel %vm2180, %v6118, 0
    %v6139 = vsel %vm2180, %v6120, 0
    %6141 = vmatprep.subr.mxu0 0.0
    %6142 = vmatpush1.xpose.msra.mxu0 %v6131
    %6143 = vmatprep.subr.mxu0 0.0
    %6144 = vmatpush1.xpose.msra.mxu0 %v6133
    %6145 = vmatprep.subr.mxu0 0.0
    %6146 = vmatpush1.xpose.msra.mxu0 %v6135
    %6147 = vmatprep.subr.mxu0 0.0
    %6148 = vmatpush1.xpose.msra.mxu0 %v6137
    %6149 = vmatprep.subr.mxu0 0.0
    %6150 = vmatpush1.xpose.msra.mxu0 %v6139
    %6151 = vmatprep.subr.mxu0 0.0
    %6152 = vmatpush1.xpose.msra.mxu0 0.0
    %6153 = vmatprep.subr.mxu0 0.0
    %6154 = vmatpush1.xpose.msra.mxu0 0.0
    %6155 = vmatprep.subr.mxu0 0.0
    %6156 = vmatpush1.xpose.msra.mxu0 0.0
    %6157 = vmatprep.subr.mxu0 0.0
    %6158 = vmatpush1.xpose.msra.mxu0 0.0
    %6159 = vmatprep.subr.mxu0 0.0
    %6160 = vmatpush1.xpose.msra.mxu0 0.0
    %6161 = vmatprep.subr.mxu0 0.0
    %6162 = vmatpush1.xpose.msra.mxu0 0.0
    %6163 = vmatprep.subr.mxu0 0.0
    %6164 = vmatpush1.xpose.msra.mxu0 0.0
    %6165 = vmatprep.subr.mxu0 0.0
    %6166 = vmatpush1.xpose.msra.mxu0 0.0
    %6167 = vmatprep.subr.mxu0 0.0
    %6168 = vmatpush1.xpose.msra.mxu0 0.0
    %6169 = vmatprep.subr.mxu0 0.0
    %6170 = vmatpush1.xpose.msra.mxu0 0.0
    %6171 = vmatprep.subr.mxu0 0.0
    %6172 = vmatpush1.xpose.msra.mxu0 0.0
    %6173 = vmatprep.subr.mxu0 0.0
    %6174 = vmatpush1.xpose.msra.mxu0 0.0
    %6175 = vmatprep.subr.mxu0 0.0
    %6176 = vmatpush1.xpose.msra.mxu0 0.0
    %6177 = vmatprep.subr.mxu0 0.0
    %6178 = vmatpush1.xpose.msra.mxu0 0.0
    %6179 = vmatprep.subr.mxu0 0.0
    %6180 = vmatpush1.xpose.msra.mxu0 0.0
    %6181 = vmatprep.subr.mxu0 0.0
    %6182 = vmatpush1.xpose.msra.mxu0 0.0
    %6183 = vmatprep.subr.mxu0 0.0
    %6184 = vmatpush1.xpose.msra.mxu0 0.0
    %6185 = vmatprep.subr.mxu0 0.0
    %6186 = vmatpush1.xpose.msra.mxu0 0.0
    %6187 = vmatprep.subr.mxu0 0.0
    %6188 = vmatpush1.xpose.msra.mxu0 0.0
    %6189 = vmatprep.subr.mxu0 0.0
    %6190 = vmatpush1.xpose.msra.mxu0 0.0
    %6191 = vmatprep.subr.mxu0 0.0
    %6192 = vmatpush1.xpose.msra.mxu0 0.0
    %6193 = vmatprep.subr.mxu0 0.0
    %6194 = vmatpush1.xpose.msra.mxu0 0.0
    %6195 = vmatprep.subr.mxu0 0.0
    %6196 = vmatpush1.xpose.msra.mxu0 0.0
    %6197 = vmatprep.subr.mxu0 0.0
    %6198 = vmatpush1.xpose.msra.mxu0 0.0
    %6199 = vmatprep.subr.mxu0 0.0
    %6200 = vmatpush1.xpose.msra.mxu0 0.0
    %6201 = vmatprep.subr.mxu0 0.0
    %6202 = vmatpush1.xpose.msra.mxu0 0.0
    %6203 = vmatprep.subr.mxu0 0.0
    %6204 = vmatpush1.xpose.msra.mxu0 0.0
    %6205 = vmatprep.mubr.f32.mxu0 0.0
    %6206 = vmatmul.mubr.f32.gmra.mrb[0].mxu0 %v6121
    %v6207 = vpop.f32.mrb[0].mxu0
    %v6208 = vadd.f32 0.0, %v6207
    %v6209 = vpop.f32.mrb[0].mxu0
    %6210 = vmatprep.mubr.f32.mxu0 0.0
    %6211 = vmatmul.mubr.f32.gmra.mrb[0].mxu0 %v6123
    %v6212 = vpop.f32.mrb[0].mxu0
    %v6213 = vadd.f32 0.0, %v6212
    %v6214 = vpop.f32.mrb[0].mxu0
    %6215 = vmatprep.mubr.f32.mxu0 0.0
    %6216 = vmatmul.mubr.f32.gmra.mrb[0].mxu0 %v6125
    %v6217 = vpop.f32.mrb[0].mxu0
    %v6218 = vadd.f32 0.0, %v6217
    %v6219 = vpop.f32.mrb[0].mxu0
    %6220 = vmatprep.mubr.f32.mxu0 0.0
    %6221 = vmatmul.mubr.f32.gmra.mrb[0].mxu0 %v6127
    %v6222 = vpop.f32.mrb[0].mxu0
    %v6223 = vadd.f32 0.0, %v6222
    %v6224 = vpop.f32.mrb[0].mxu0
    %6225 = vmatprep.mubr.f32.mxu0 0.0
    %6226 = vmatmul.mubr.f32.gmra.mrb[0].mxu0 %v6129
    %v6227 = vpop.f32.mrb[0].mxu0
    %v6228 = vadd.f32 0.0, %v6227
    %v6229 = vpop.f32.mrb[0].mxu0
    %6230 = vdwg.mxu0
    %v6231 = vmul.f32 %v6208, 0.35355338
    %v6232 = vmul.f32 %v6213, 0.35355338
    %v6233 = vmul.f32 %v6218, 0.35355338
    %v6234 = vmul.f32 %v6223, 0.35355338
    %v6235 = vmul.f32 %v6228, 0.35355338
    %v6236 = vadd.f32 %v6231, %v4659
    %v6237 = vadd.f32 %v6232, %v4660
    %v6238 = vadd.f32 %v6233, %v4661
    %v6239 = vadd.f32 %v6234, %v4662
    %v6240 = vadd.f32 %v6235, %v4663
    %v6241 = vadd.f32 %v6236, %v4936
    %v6242 = vadd.f32 %v6237, %v4936
    %v6243 = vadd.f32 %v6238, %v4936
    %v6244 = vadd.f32 %v6239, %v4936
    %v6245 = vadd.f32 %v6240, %v4936
    %v6246 = vsel %vm2310, %v6241, -inf
    %6247 = vmax.xlane.f32.xlu0 %v6246
    %v6248 = vpop.xlane.xlu0 %6247
    %v6249 = vsel %vm2310, %v6242, -inf
    %6250 = vmax.xlane.f32.xlu0 %v6249
    %v6251 = vpop.xlane.xlu0 %6250
    %v6252 = vsel %vm2310, %v6243, -inf
    %6253 = vmax.xlane.f32.xlu0 %v6252
    %v6254 = vpop.xlane.xlu0 %6253
    %v6255 = vsel %vm2310, %v6244, -inf
    %6256 = vmax.xlane.f32.xlu0 %v6255
    %v6257 = vpop.xlane.xlu0 %6256
    %v6258 = vsel %vm2323, %v6245, -inf
    %6259 = vmax.xlane.f32.xlu0 %v6258
    %v6260 = vpop.xlane.xlu0 %6259
    %v6261 = vsub.f32 %v6241, %v6248
    %v6262 = vsub.f32 %v6242, %v6251
    %v6263 = vsub.f32 %v6243, %v6254
    %v6264 = vsub.f32 %v6244, %v6257
    %v6265 = vsub.f32 %v6245, %v6260
    %v6266 = vmul.f32 %v6261, 1.442695
    %v6267 = vpow.pop %v6266
    %v6268 = vmul.f32 %v6262, 1.442695
    %v6269 = vpow.pop %v6268
    %v6270 = vmul.f32 %v6263, 1.442695
    %v6271 = vpow.pop %v6270
    %v6272 = vmul.f32 %v6264, 1.442695
    %v6273 = vpow.pop %v6272
    %v6274 = vmul.f32 %v6265, 1.442695
    %v6275 = vpow.pop %v6274
    %v6276 = vsel %vm2310, %v6267, 0.0
    %6277 = vadd.xlane.f32.xlu0 %v6276
    %v6278 = vpop.xlane.xlu0 %6277
    %v6279 = vsel %vm2310, %v6269, 0.0
    %6280 = vadd.xlane.f32.xlu0 %v6279
    %v6281 = vpop.xlane.xlu0 %6280
    %v6282 = vsel %vm2310, %v6271, 0.0
    %6283 = vadd.xlane.f32.xlu0 %v6282
    %v6284 = vpop.xlane.xlu0 %6283
    %v6285 = vsel %vm2310, %v6273, 0.0
    %6286 = vadd.xlane.f32.xlu0 %v6285
    %v6287 = vpop.xlane.xlu0 %6286
    %v6288 = vsel %vm2323, %v6275, 0.0
    %6289 = vadd.xlane.f32.xlu0 %v6288
    %v6290 = vpop.xlane.xlu0 %6289
    %v6291 = vrcp.pop %v6278
    %v6292 = vmul.f32 %v6267, %v6291
    %v6293 = vrcp.pop %v6281
    %v6294 = vmul.f32 %v6269, %v6293
    %v6295 = vrcp.pop %v6284
    %v6296 = vmul.f32 %v6271, %v6295
    %v6297 = vrcp.pop %v6287
    %v6298 = vmul.f32 %v6273, %v6297
    %v6299 = vrcp.pop %v6290
    %v6300 = vmul.f32 %v6275, %v6299
    %6302 = vrot.lane.b32.xlu0 %v6294, 119
    %v6303 = vpop.permute.xlu0 %6302
    %6306 = vrot.lane.b32.xlu0 %v6296, 110
    %v6307 = vpop.permute.xlu0 %6306
    %6310 = vrot.lane.b32.xlu0 %v6298, 101
    %v6311 = vpop.permute.xlu0 %6310
    %v6313 = vsel %vm1785, %v6292, %v6303
    %v6314 = vsel %vm1690, %v6313, %v6307
    %v6315 = vsel %vm1996, %v6314, %v6311
    %s6316 = scalar_lea.vmem [#allocation38], 4
    %6317 = vst.msk [vmem:[%s6316] sm:$0xf] %vm2382, %v6315
    %6318 = vrot.lane.b32.xlu0 %v6064, 64
    %v6319 = vpop.permute.xlu0 %6318
    %6320 = vrot.lane.b32.xlu0 %v6105, 64
    %v6321 = vpop.permute.xlu0 %6320
    %6322 = vrot.lane.b32.xlu0 %v6106, 64
    %v6323 = vpop.permute.xlu0 %6322
    %6324 = vrot.lane.b32.xlu0 %v6107, 64
    %v6325 = vpop.permute.xlu0 %6324
    %6326 = vrot.lane.b32.xlu0 %v6103, 64
    %v6327 = vpop.permute.xlu0 %6326
    %v6333 = vsel %vm2310, %v6292, 0
    %v6335 = vsel %vm2310, %v6294, 0
    %v6337 = vsel %vm2310, %v6296, 0
    %v6339 = vsel %vm2310, %v6298, 0
    %v6342 = vsel %vm2310, %v6300, 0
    %v6344 = vsel %vm524, %v6327, 0
    %6346 = vmatprep.subr.mxu0 0.0
    %6347 = vmatpush1.msra.mxu0 %v6319
    %6348 = vmatprep.subr.mxu0 0.0
    %6349 = vmatpush1.msra.mxu0 %v6321
    %6350 = vmatprep.subr.mxu0 0.0
    %6351 = vmatpush1.msra.mxu0 %v6323
    %6352 = vmatprep.subr.mxu0 0.0
    %6353 = vmatpush1.msra.mxu0 %v6325
    %6354 = vmatprep.subr.mxu0 0.0
    %6355 = vmatpush1.msra.mxu0 %v6344
    %6356 = vmatprep.subr.mxu0 0.0
    %6357 = vmatpush1.msra.mxu0 0.0
    %6358 = vmatprep.subr.mxu0 0.0
    %6359 = vmatpush1.msra.mxu0 0.0
    %6360 = vmatprep.subr.mxu0 0.0
    %6361 = vmatpush1.msra.mxu0 0.0
    %6362 = vmatprep.subr.mxu0 0.0
    %6363 = vmatpush1.msra.mxu0 0.0
    %6364 = vmatprep.subr.mxu0 0.0
    %6365 = vmatpush1.msra.mxu0 0.0
    %6366 = vmatprep.subr.mxu0 0.0
    %6367 = vmatpush1.msra.mxu0 0.0
    %6368 = vmatprep.subr.mxu0 0.0
    %6369 = vmatpush1.msra.mxu0 0.0
    %6370 = vmatprep.subr.mxu0 0.0
    %6371 = vmatpush1.msra.mxu0 0.0
    %6372 = vmatprep.subr.mxu0 0.0
    %6373 = vmatpush1.msra.mxu0 0.0
    %6374 = vmatprep.subr.mxu0 0.0
    %6375 = vmatpush1.msra.mxu0 0.0
    %6376 = vmatprep.subr.mxu0 0.0
    %6377 = vmatpush1.msra.mxu0 0.0
    %6378 = vmatprep.subr.mxu0 0.0
    %6379 = vmatpush1.msra.mxu0 0.0
    %6380 = vmatprep.subr.mxu0 0.0
    %6381 = vmatpush1.msra.mxu0 0.0
    %6382 = vmatprep.subr.mxu0 0.0
    %6383 = vmatpush1.msra.mxu0 0.0
    %6384 = vmatprep.subr.mxu0 0.0
    %6385 = vmatpush1.msra.mxu0 0.0
    %6386 = vmatprep.subr.mxu0 0.0
    %6387 = vmatpush1.msra.mxu0 0.0
    %6388 = vmatprep.subr.mxu0 0.0
    %6389 = vmatpush1.msra.mxu0 0.0
    %6390 = vmatprep.subr.mxu0 0.0
    %6391 = vmatpush1.msra.mxu0 0.0
    %6392 = vmatprep.subr.mxu0 0.0
    %6393 = vmatpush1.msra.mxu0 0.0
    %6394 = vmatprep.subr.mxu0 0.0
    %6395 = vmatpush1.msra.mxu0 0.0
    %6396 = vmatprep.subr.mxu0 0.0
    %6397 = vmatpush1.msra.mxu0 0.0
    %6398 = vmatprep.subr.mxu0 0.0
    %6399 = vmatpush1.msra.mxu0 0.0
    %6400 = vmatprep.subr.mxu0 0.0
    %6401 = vmatpush1.msra.mxu0 0.0
    %6402 = vmatprep.subr.mxu0 0.0
    %6403 = vmatpush1.msra.mxu0 0.0
    %6404 = vmatprep.subr.mxu0 0.0
    %6405 = vmatpush1.msra.mxu0 0.0
    %6406 = vmatprep.subr.mxu0 0.0
    %6407 = vmatpush1.msra.mxu0 0.0
    %6408 = vmatprep.subr.mxu0 0.0
    %6409 = vmatpush1.msra.mxu0 0.0
    %6410 = vmatprep.mubr.f32.mxu0 0.0
    %6411 = vmatmul.mubr.f32.gmra.mrb[0].mxu0 %v6333
    %v6412 = vpop.f32.mrb[0].mxu0
    %v6413 = vadd.f32 0.0, %v6412
    %v6414 = vpop.f32.mrb[0].mxu0
    %6415 = vmatprep.mubr.f32.mxu0 0.0
    %6416 = vmatmul.mubr.f32.gmra.mrb[0].mxu0 %v6335
    %v6417 = vpop.f32.mrb[0].mxu0
    %v6418 = vadd.f32 0.0, %v6417
    %v6419 = vpop.f32.mrb[0].mxu0
    %6420 = vmatprep.mubr.f32.mxu0 0.0
    %6421 = vmatmul.mubr.f32.gmra.mrb[0].mxu0 %v6337
    %v6422 = vpop.f32.mrb[0].mxu0
    %v6423 = vadd.f32 0.0, %v6422
    %v6424 = vpop.f32.mrb[0].mxu0
    %6425 = vmatprep.mubr.f32.mxu0 0.0
    %6426 = vmatmul.mubr.f32.gmra.mrb[0].mxu0 %v6339
    %v6427 = vpop.f32.mrb[0].mxu0
    %v6428 = vadd.f32 0.0, %v6427
    %v6429 = vpop.f32.mrb[0].mxu0
    %6430 = vmatprep.mubr.f32.mxu0 0.0
    %6431 = vmatmul.mubr.f32.gmra.mrb[0].mxu0 %v6342
    %v6432 = vpop.f32.mrb[0].mxu0
    %v6433 = vadd.f32 0.0, %v6432
    %v6434 = vpop.f32.mrb[0].mxu0
    %6435 = vdwg.mxu0
    %v6438 = vrot.slane %v6418, 1
    %v6439 = vrot.slane %v6423, 1
    %v6440 = vsel %vm2002, %v6438, %v6439
    %6441 = vrot.lane.b32.xlu0 %v6440, 8
    %v6442 = vpop.permute.xlu0 %6441
    %6443 = vrot.lane.b32.xlu0 %v6439, 8
    %v6444 = vpop.permute.xlu0 %6443
    %v6448 = vrot.slane %v6423, 2
    %v6449 = vrot.slane %v6428, 2
    %v6450 = vsel %vm1693, %v6448, %v6449
    %6451 = vrot.lane.b32.xlu0 %v6450, 16
    %v6452 = vpop.permute.xlu0 %6451
    %6453 = vrot.lane.b32.xlu0 %v6449, 16
    %v6454 = vpop.permute.xlu0 %6453
    %v6458 = vrot.slane %v6428, 3
    %v6459 = vrot.slane %v6433, 3
    %v6460 = vsel %vm1999, %v6458, %v6459
    %6461 = vrot.lane.b32.xlu0 %v6460, 24
    %v6462 = vpop.permute.xlu0 %6461
    %6463 = vrot.lane.b32.xlu0 %v6459, 24
    %v6464 = vpop.permute.xlu0 %6463
    %v6467 = vsel %vm2180, %v6413, %v6442
    %v6468 = vsel %vm2180, %v6418, %v6444
    %v6469 = vsel %vm2535, %v6467, %v6452
    %v6470 = vsel %vm2535, %v6468, %v6454
    %v6471 = vsel %vm2538, %v6469, %v6462
    %v6472 = vsel %vm2538, %v6470, %v6464
    %v6474 = vrot.slane %v6067, 1
    %v6475 = vrot.slane %v6072, 1
    %v6476 = vsel %vm2002, %v6474, %v6475
    %6478 = vrot.lane.b32.xlu0 %v6067, 120
    %v6479 = vpop.permute.xlu0 %6478
    %6480 = vrot.lane.b32.xlu0 %v6072, 120
    %v6481 = vpop.permute.xlu0 %6480
    %v6484 = vrot.slane %v6072, 7
    %v6485 = vsel %vm1785, %v6080, %v6484
    %6486 = vrot.lane.b32.xlu0 %v6080, 112
    %v6487 = vpop.permute.xlu0 %6486
    %6488 = vrot.lane.b32.xlu0 %v6485, 112
    %v6489 = vpop.permute.xlu0 %6488
    %v6492 = vrot.slane %v6072, 6
    %v6493 = vsel %vm1690, %v6089, %v6492
    %6494 = vrot.lane.b32.xlu0 %v6089, 104
    %v6495 = vpop.permute.xlu0 %6494
    %6496 = vrot.lane.b32.xlu0 %v6493, 104
    %v6497 = vpop.permute.xlu0 %6496
    %v6499 = vsel %vm1785, %v6475, %v6479
    %v6500 = vsel %vm1690, %v6481, %v6487
    %v6501 = vsel %vm1996, %v6489, %v6495
    %6505 = vrot.lane.b32.xlu0 %v6476, 96
    %v6506 = vpop.permute.xlu0 %6505
    %6507 = vrot.lane.b32.xlu0 %v6499, 96
    %v6508 = vpop.permute.xlu0 %6507
    %6509 = vrot.lane.b32.xlu0 %v6500, 96
    %v6510 = vpop.permute.xlu0 %6509
    %6511 = vrot.lane.b32.xlu0 %v6501, 96
    %v6512 = vpop.permute.xlu0 %6511
    %6513 = vrot.lane.b32.xlu0 %v6497, 96
    %v6514 = vpop.permute.xlu0 %6513
    %v6515 = vsel %vm2180, %v6476, 0
    %v6517 = vsel %vm2180, %v6499, 0
    %v6519 = vsel %vm2180, %v6500, 0
    %v6521 = vsel %vm2180, %v6501, 0
    %v6523 = vsel %vm2180, %v6497, 0
    %v6525 = vsel %vm2180, %v6506, 0
    %v6527 = vsel %vm2180, %v6508, 0
    %v6529 = vsel %vm2180, %v6510, 0
    %v6531 = vsel %vm2180, %v6512, 0
    %v6533 = vsel %vm2180, %v6514, 0
    %6535 = vmatprep.subr.mxu0 0.0
    %6536 = vmatpush1.xpose.msra.mxu0 %v6525
    %6537 = vmatprep.subr.mxu0 0.0
    %6538 = vmatpush1.xpose.msra.mxu0 %v6527
    %6539 = vmatprep.subr.mxu0 0.0
    %6540 = vmatpush1.xpose.msra.mxu0 %v6529
    %6541 = vmatprep.subr.mxu0 0.0
    %6542 = vmatpush1.xpose.msra.mxu0 %v6531
    %6543 = vmatprep.subr.mxu0 0.0
    %6544 = vmatpush1.xpose.msra.mxu0 %v6533
    %6545 = vmatprep.subr.mxu0 0.0
    %6546 = vmatpush1.xpose.msra.mxu0 0.0
    %6547 = vmatprep.subr.mxu0 0.0
    %6548 = vmatpush1.xpose.msra.mxu0 0.0
    %6549 = vmatprep.subr.mxu0 0.0
    %6550 = vmatpush1.xpose.msra.mxu0 0.0
    %6551 = vmatprep.subr.mxu0 0.0
    %6552 = vmatpush1.xpose.msra.mxu0 0.0
    %6553 = vmatprep.subr.mxu0 0.0
    %6554 = vmatpush1.xpose.msra.mxu0 0.0
    %6555 = vmatprep.subr.mxu0 0.0
    %6556 = vmatpush1.xpose.msra.mxu0 0.0
    %6557 = vmatprep.subr.mxu0 0.0
    %6558 = vmatpush1.xpose.msra.mxu0 0.0
    %6559 = vmatprep.subr.mxu0 0.0
    %6560 = vmatpush1.xpose.msra.mxu0 0.0
    %6561 = vmatprep.subr.mxu0 0.0
    %6562 = vmatpush1.xpose.msra.mxu0 0.0
    %6563 = vmatprep.subr.mxu0 0.0
    %6564 = vmatpush1.xpose.msra.mxu0 0.0
    %6565 = vmatprep.subr.mxu0 0.0
    %6566 = vmatpush1.xpose.msra.mxu0 0.0
    %6567 = vmatprep.subr.mxu0 0.0
    %6568 = vmatpush1.xpose.msra.mxu0 0.0
    %6569 = vmatprep.subr.mxu0 0.0
    %6570 = vmatpush1.xpose.msra.mxu0 0.0
    %6571 = vmatprep.subr.mxu0 0.0
    %6572 = vmatpush1.xpose.msra.mxu0 0.0
    %6573 = vmatprep.subr.mxu0 0.0
    %6574 = vmatpush1.xpose.msra.mxu0 0.0
    %6575 = vmatprep.subr.mxu0 0.0
    %6576 = vmatpush1.xpose.msra.mxu0 0.0
    %6577 = vmatprep.subr.mxu0 0.0
    %6578 = vmatpush1.xpose.msra.mxu0 0.0
    %6579 = vmatprep.subr.mxu0 0.0
    %6580 = vmatpush1.xpose.msra.mxu0 0.0
    %6581 = vmatprep.subr.mxu0 0.0
    %6582 = vmatpush1.xpose.msra.mxu0 0.0
    %6583 = vmatprep.subr.mxu0 0.0
    %6584 = vmatpush1.xpose.msra.mxu0 0.0
    %6585 = vmatprep.subr.mxu0 0.0
    %6586 = vmatpush1.xpose.msra.mxu0 0.0
    %6587 = vmatprep.subr.mxu0 0.0
    %6588 = vmatpush1.xpose.msra.mxu0 0.0
    %6589 = vmatprep.subr.mxu0 0.0
    %6590 = vmatpush1.xpose.msra.mxu0 0.0
    %6591 = vmatprep.subr.mxu0 0.0
    %6592 = vmatpush1.xpose.msra.mxu0 0.0
    %6593 = vmatprep.subr.mxu0 0.0
    %6594 = vmatpush1.xpose.msra.mxu0 0.0
    %6595 = vmatprep.subr.mxu0 0.0
    %6596 = vmatpush1.xpose.msra.mxu0 0.0
    %6597 = vmatprep.subr.mxu0 0.0
    %6598 = vmatpush1.xpose.msra.mxu0 0.0
    %6599 = vmatprep.mubr.f32.mxu0 0.0
    %6600 = vmatmul.mubr.f32.gmra.mrb[0].mxu0 %v6515
    %v6601 = vpop.f32.mrb[0].mxu0
    %v6602 = vadd.f32 0.0, %v6601
    %v6603 = vpop.f32.mrb[0].mxu0
    %6604 = vmatprep.mubr.f32.mxu0 0.0
    %6605 = vmatmul.mubr.f32.gmra.mrb[0].mxu0 %v6517
    %v6606 = vpop.f32.mrb[0].mxu0
    %v6607 = vadd.f32 0.0, %v6606
    %v6608 = vpop.f32.mrb[0].mxu0
    %6609 = vmatprep.mubr.f32.mxu0 0.0
    %6610 = vmatmul.mubr.f32.gmra.mrb[0].mxu0 %v6519
    %v6611 = vpop.f32.mrb[0].mxu0
    %v6612 = vadd.f32 0.0, %v6611
    %v6613 = vpop.f32.mrb[0].mxu0
    %6614 = vmatprep.mubr.f32.mxu0 0.0
    %6615 = vmatmul.mubr.f32.gmra.mrb[0].mxu0 %v6521
    %v6616 = vpop.f32.mrb[0].mxu0
    %v6617 = vadd.f32 0.0, %v6616
    %v6618 = vpop.f32.mrb[0].mxu0
    %6619 = vmatprep.mubr.f32.mxu0 0.0
    %6620 = vmatmul.mubr.f32.gmra.mrb[0].mxu0 %v6523
    %v6621 = vpop.f32.mrb[0].mxu0
    %v6622 = vadd.f32 0.0, %v6621
    %v6623 = vpop.f32.mrb[0].mxu0
    %6624 = vdwg.mxu0
    %v6625 = vmul.f32 %v6602, 0.35355338
    %v6626 = vmul.f32 %v6607, 0.35355338
    %v6627 = vmul.f32 %v6612, 0.35355338
    %v6628 = vmul.f32 %v6617, 0.35355338
    %v6629 = vmul.f32 %v6622, 0.35355338
    %v6630 = vadd.f32 %v6625, %v4659
    %v6631 = vadd.f32 %v6626, %v4660
    %v6632 = vadd.f32 %v6627, %v4661
    %v6633 = vadd.f32 %v6628, %v4662
    %v6634 = vadd.f32 %v6629, %v4663
    %v6635 = vadd.f32 %v6630, %v5333
    %v6636 = vadd.f32 %v6631, %v5333
    %v6637 = vadd.f32 %v6632, %v5333
    %v6638 = vadd.f32 %v6633, %v5333
    %v6639 = vadd.f32 %v6634, %v5333
    %v6640 = vsel %vm2310, %v6635, -inf
    %6641 = vmax.xlane.f32.xlu0 %v6640
    %v6642 = vpop.xlane.xlu0 %6641
    %v6643 = vsel %vm2310, %v6636, -inf
    %6644 = vmax.xlane.f32.xlu0 %v6643
    %v6645 = vpop.xlane.xlu0 %6644
    %v6646 = vsel %vm2310, %v6637, -inf
    %6647 = vmax.xlane.f32.xlu0 %v6646
    %v6648 = vpop.xlane.xlu0 %6647
    %v6649 = vsel %vm2310, %v6638, -inf
    %6650 = vmax.xlane.f32.xlu0 %v6649
    %v6651 = vpop.xlane.xlu0 %6650
    %v6652 = vsel %vm2323, %v6639, -inf
    %6653 = vmax.xlane.f32.xlu0 %v6652
    %v6654 = vpop.xlane.xlu0 %6653
    %v6655 = vsub.f32 %v6635, %v6642
    %v6656 = vsub.f32 %v6636, %v6645
    %v6657 = vsub.f32 %v6637, %v6648
    %v6658 = vsub.f32 %v6638, %v6651
    %v6659 = vsub.f32 %v6639, %v6654
    %v6660 = vmul.f32 %v6655, 1.442695
    %v6661 = vpow.pop %v6660
    %v6662 = vmul.f32 %v6656, 1.442695
    %v6663 = vpow.pop %v6662
    %v6664 = vmul.f32 %v6657, 1.442695
    %v6665 = vpow.pop %v6664
    %v6666 = vmul.f32 %v6658, 1.442695
    %v6667 = vpow.pop %v6666
    %v6668 = vmul.f32 %v6659, 1.442695
    %v6669 = vpow.pop %v6668
    %v6670 = vsel %vm2310, %v6661, 0.0
    %6671 = vadd.xlane.f32.xlu0 %v6670
    %v6672 = vpop.xlane.xlu0 %6671
    %v6673 = vsel %vm2310, %v6663, 0.0
    %6674 = vadd.xlane.f32.xlu0 %v6673
    %v6675 = vpop.xlane.xlu0 %6674
    %v6676 = vsel %vm2310, %v6665, 0.0
    %6677 = vadd.xlane.f32.xlu0 %v6676
    %v6678 = vpop.xlane.xlu0 %6677
    %v6679 = vsel %vm2310, %v6667, 0.0
    %6680 = vadd.xlane.f32.xlu0 %v6679
    %v6681 = vpop.xlane.xlu0 %6680
    %v6682 = vsel %vm2323, %v6669, 0.0
    %6683 = vadd.xlane.f32.xlu0 %v6682
    %v6684 = vpop.xlane.xlu0 %6683
    %v6685 = vrcp.pop %v6672
    %v6686 = vmul.f32 %v6661, %v6685
    %v6687 = vrcp.pop %v6675
    %v6688 = vmul.f32 %v6663, %v6687
    %v6689 = vrcp.pop %v6678
    %v6690 = vmul.f32 %v6665, %v6689
    %v6691 = vrcp.pop %v6681
    %v6692 = vmul.f32 %v6667, %v6691
    %v6693 = vrcp.pop %v6684
    %v6694 = vmul.f32 %v6669, %v6693
    %6696 = vrot.lane.b32.xlu0 %v6688, 119
    %v6697 = vpop.permute.xlu0 %6696
    %6700 = vrot.lane.b32.xlu0 %v6690, 110
    %v6701 = vpop.permute.xlu0 %6700
    %6704 = vrot.lane.b32.xlu0 %v6692, 101
    %v6705 = vpop.permute.xlu0 %6704
    %v6707 = vsel %vm1785, %v6686, %v6697
    %v6708 = vsel %vm1690, %v6707, %v6701
    %v6709 = vsel %vm1996, %v6708, %v6705
    %s6710 = scalar_lea.vmem [#allocation38], 12
    %6711 = vst.msk [vmem:[%s6710] sm:$0xf] %vm2382, %v6709
    %6712 = vrot.lane.b32.xlu0 %v6476, 64
    %v6713 = vpop.permute.xlu0 %6712
    %6714 = vrot.lane.b32.xlu0 %v6499, 64
    %v6715 = vpop.permute.xlu0 %6714
    %6716 = vrot.lane.b32.xlu0 %v6500, 64
    %v6717 = vpop.permute.xlu0 %6716
    %6718 = vrot.lane.b32.xlu0 %v6501, 64
    %v6719 = vpop.permute.xlu0 %6718
    %6720 = vrot.lane.b32.xlu0 %v6497, 64
    %v6721 = vpop.permute.xlu0 %6720
    %v6727 = vsel %vm2310, %v6686, 0
    %v6729 = vsel %vm2310, %v6688, 0
    %v6731 = vsel %vm2310, %v6690, 0
    %v6733 = vsel %vm2310, %v6692, 0
    %v6736 = vsel %vm2310, %v6694, 0
    %v6738 = vsel %vm524, %v6721, 0
    %6740 = vmatprep.subr.mxu0 0.0
    %6741 = vmatpush1.msra.mxu0 %v6713
    %6742 = vmatprep.subr.mxu0 0.0
    %6743 = vmatpush1.msra.mxu0 %v6715
    %6744 = vmatprep.subr.mxu0 0.0
    %6745 = vmatpush1.msra.mxu0 %v6717
    %6746 = vmatprep.subr.mxu0 0.0
    %6747 = vmatpush1.msra.mxu0 %v6719
    %6748 = vmatprep.subr.mxu0 0.0
    %6749 = vmatpush1.msra.mxu0 %v6738
    %6750 = vmatprep.subr.mxu0 0.0
    %6751 = vmatpush1.msra.mxu0 0.0
    %6752 = vmatprep.subr.mxu0 0.0
    %6753 = vmatpush1.msra.mxu0 0.0
    %6754 = vmatprep.subr.mxu0 0.0
    %6755 = vmatpush1.msra.mxu0 0.0
    %6756 = vmatprep.subr.mxu0 0.0
    %6757 = vmatpush1.msra.mxu0 0.0
    %6758 = vmatprep.subr.mxu0 0.0
    %6759 = vmatpush1.msra.mxu0 0.0
    %6760 = vmatprep.subr.mxu0 0.0
    %6761 = vmatpush1.msra.mxu0 0.0
    %6762 = vmatprep.subr.mxu0 0.0
    %6763 = vmatpush1.msra.mxu0 0.0
    %6764 = vmatprep.subr.mxu0 0.0
    %6765 = vmatpush1.msra.mxu0 0.0
    %6766 = vmatprep.subr.mxu0 0.0
    %6767 = vmatpush1.msra.mxu0 0.0
    %6768 = vmatprep.subr.mxu0 0.0
    %6769 = vmatpush1.msra.mxu0 0.0
    %6770 = vmatprep.subr.mxu0 0.0
    %6771 = vmatpush1.msra.mxu0 0.0
    %6772 = vmatprep.subr.mxu0 0.0
    %6773 = vmatpush1.msra.mxu0 0.0
    %6774 = vmatprep.subr.mxu0 0.0
    %6775 = vmatpush1.msra.mxu0 0.0
    %6776 = vmatprep.subr.mxu0 0.0
    %6777 = vmatpush1.msra.mxu0 0.0
    %6778 = vmatprep.subr.mxu0 0.0
    %6779 = vmatpush1.msra.mxu0 0.0
    %6780 = vmatprep.subr.mxu0 0.0
    %6781 = vmatpush1.msra.mxu0 0.0
    %6782 = vmatprep.subr.mxu0 0.0
    %6783 = vmatpush1.msra.mxu0 0.0
    %6784 = vmatprep.subr.mxu0 0.0
    %6785 = vmatpush1.msra.mxu0 0.0
    %6786 = vmatprep.subr.mxu0 0.0
    %6787 = vmatpush1.msra.mxu0 0.0
    %6788 = vmatprep.subr.mxu0 0.0
    %6789 = vmatpush1.msra.mxu0 0.0
    %6790 = vmatprep.subr.mxu0 0.0
    %6791 = vmatpush1.msra.mxu0 0.0
    %6792 = vmatprep.subr.mxu0 0.0
    %6793 = vmatpush1.msra.mxu0 0.0
    %6794 = vmatprep.subr.mxu0 0.0
    %6795 = vmatpush1.msra.mxu0 0.0
    %6796 = vmatprep.subr.mxu0 0.0
    %6797 = vmatpush1.msra.mxu0 0.0
    %6798 = vmatprep.subr.mxu0 0.0
    %6799 = vmatpush1.msra.mxu0 0.0
    %6800 = vmatprep.subr.mxu0 0.0
    %6801 = vmatpush1.msra.mxu0 0.0
    %6802 = vmatprep.subr.mxu0 0.0
    %6803 = vmatpush1.msra.mxu0 0.0
    %6804 = vmatprep.mubr.f32.mxu0 0.0
    %6805 = vmatmul.mubr.f32.gmra.mrb[0].mxu0 %v6727
    %v6806 = vpop.f32.mrb[0].mxu0
    %v6807 = vadd.f32 0.0, %v6806
    %v6808 = vpop.f32.mrb[0].mxu0
    %6809 = vmatprep.mubr.f32.mxu0 0.0
    %6810 = vmatmul.mubr.f32.gmra.mrb[0].mxu0 %v6729
    %v6811 = vpop.f32.mrb[0].mxu0
    %v6812 = vadd.f32 0.0, %v6811
    %v6813 = vpop.f32.mrb[0].mxu0
    %6814 = vmatprep.mubr.f32.mxu0 0.0
    %6815 = vmatmul.mubr.f32.gmra.mrb[0].mxu0 %v6731
    %v6816 = vpop.f32.mrb[0].mxu0
    %v6817 = vadd.f32 0.0, %v6816
    %v6818 = vpop.f32.mrb[0].mxu0
    %6819 = vmatprep.mubr.f32.mxu0 0.0
    %6820 = vmatmul.mubr.f32.gmra.mrb[0].mxu0 %v6733
    %v6821 = vpop.f32.mrb[0].mxu0
    %v6822 = vadd.f32 0.0, %v6821
    %v6823 = vpop.f32.mrb[0].mxu0
    %6824 = vmatprep.mubr.f32.mxu0 0.0
    %6825 = vmatmul.mubr.f32.gmra.mrb[0].mxu0 %v6736
    %v6826 = vpop.f32.mrb[0].mxu0
    %v6827 = vadd.f32 0.0, %v6826
    %v6828 = vpop.f32.mrb[0].mxu0
    %6829 = vdwg.mxu0
    %v6832 = vrot.slane %v6812, 1
    %v6833 = vrot.slane %v6817, 1
    %v6834 = vsel %vm2002, %v6832, %v6833
    %6835 = vrot.lane.b32.xlu0 %v6834, 8
    %v6836 = vpop.permute.xlu0 %6835
    %6837 = vrot.lane.b32.xlu0 %v6833, 8
    %v6838 = vpop.permute.xlu0 %6837
    %v6842 = vrot.slane %v6817, 2
    %v6843 = vrot.slane %v6822, 2
    %v6844 = vsel %vm1693, %v6842, %v6843
    %6845 = vrot.lane.b32.xlu0 %v6844, 16
    %v6846 = vpop.permute.xlu0 %6845
    %6847 = vrot.lane.b32.xlu0 %v6843, 16
    %v6848 = vpop.permute.xlu0 %6847
    %v6852 = vrot.slane %v6822, 3
    %v6853 = vrot.slane %v6827, 3
    %v6854 = vsel %vm1999, %v6852, %v6853
    %6855 = vrot.lane.b32.xlu0 %v6854, 24
    %v6856 = vpop.permute.xlu0 %6855
    %6857 = vrot.lane.b32.xlu0 %v6853, 24
    %v6858 = vpop.permute.xlu0 %6857
    %v6861 = vsel %vm2180, %v6807, %v6836
    %v6862 = vsel %vm2180, %v6812, %v6838
    %v6863 = vsel %vm2535, %v6861, %v6846
    %v6864 = vsel %vm2535, %v6862, %v6848
    %v6865 = vsel %vm2538, %v6863, %v6856
    %v6866 = vsel %vm2538, %v6864, %v6858
    %v6869 = vrot.slane %v6865, 7
    %v6870 = vrot.slane %v6866, 7
    %v6871 = vsel %vm1785, %v6869, %v6870
    %v6874 = vsel %vm1785, %v6472, %v6869
    %s6875 = scalar_lea.vmem %s65, 16
    %v6876 = vld [vmem:[%s6875] sm:$0xf]
    %v6877 = vld [vmem:[%s6875 + $0x4] sm:$0xf]
    %v6878 = vld [vmem:[%s6875 + $0x8] sm:$0xf]
    %v6879 = vld [vmem:[%s6875 + $0xc] sm:$0xf]
    %s6880 = scalar_lea.vmem [#allocation17], 1
    %v6881 = vld [vmem:[%s6880] sm:$0x1]
    %v6882 = vpack.c.bf16 %v6874, %v6471
    %v6883 = vpack.c.bf16 %v6871, %v6871
    %v6885 = vlaneseq
    %v6886 = vshrl.u32 %v6885, 7
    %v6887 = vsub.s32 0, %v6886
    %v6888 = vrot.slane %v6881, %v6887
    %v6894 = vunpack.c.l.b16 %v6876
    %v6895 = vunpack.c.l.b16 %v6877
    %v6896 = vunpack.c.l.b16 %v6878
    %v6897 = vunpack.c.l.b16 %v6879
    %v6898 = vpack.c.b16 %v6895, %v6894
    %v6899 = vpack.c.b16 %v6897, %v6896
    %v6903 = vsel %vm627, %v6882, 0
    %v6906 = vsel %vm627, %v6883, 0
    %6908 = vmatprep.subr.bf16.mxu0 0
    %6909 = vmatpush1.bf16.msra.mxu0 %v6898
    %6910 = vmatprep.subr.bf16.mxu0 0
    %6911 = vmatpush1.bf16.msra.mxu0 %v6899
    %6912 = vmatprep.subr.bf16.mxu0 0
    %6913 = vmatpush1.bf16.msra.mxu0 0
    %6914 = vmatprep.subr.bf16.mxu0 0
    %6915 = vmatpush1.bf16.msra.mxu0 0
    %6916 = vmatprep.subr.bf16.mxu0 0
    %6917 = vmatpush1.bf16.msra.mxu0 0
    %6918 = vmatprep.subr.bf16.mxu0 0
    %6919 = vmatpush1.bf16.msra.mxu0 0
    %6920 = vmatprep.subr.bf16.mxu0 0
    %6921 = vmatpush1.bf16.msra.mxu0 0
    %6922 = vmatprep.subr.bf16.mxu0 0
    %6923 = vmatpush1.bf16.msra.mxu0 0
    %6924 = vmatprep.subr.bf16.mxu0 0
    %6925 = vmatpush1.bf16.msra.mxu0 0
    %6926 = vmatprep.subr.bf16.mxu0 0
    %6927 = vmatpush1.bf16.msra.mxu0 0
    %6928 = vmatprep.subr.bf16.mxu0 0
    %6929 = vmatpush1.bf16.msra.mxu0 0
    %6930 = vmatprep.subr.bf16.mxu0 0
    %6931 = vmatpush1.bf16.msra.mxu0 0
    %6932 = vmatprep.subr.bf16.mxu0 0
    %6933 = vmatpush1.bf16.msra.mxu0 0
    %6934 = vmatprep.subr.bf16.mxu0 0
    %6935 = vmatpush1.bf16.msra.mxu0 0
    %6936 = vmatprep.subr.bf16.mxu0 0
    %6937 = vmatpush1.bf16.msra.mxu0 0
    %6938 = vmatprep.subr.bf16.mxu0 0
    %6939 = vmatpush1.bf16.msra.mxu0 0
    %6940 = vmatprep.mubr.bf16.mxu0 0
    %6941 = vmatmul.mubr.bf16.gmra.mrb[0].mxu0 %v6903
    %v6942 = vpop.f32.mrb[0].mxu0
    %v6943 = vadd.f32 %v6888, %v6942
    %v6944 = vpop.f32.mrb[0].mxu0
    %v6945 = vpop.f32.mrb[0].mxu0
    %v6946 = vadd.f32 %v6888, %v6945
    %v6947 = vpop.f32.mrb[0].mxu0
    %6948 = vmatprep.mubr.bf16.mxu0 0
    %6949 = vmatmul.mubr.bf16.gmra.mrb[0].mxu0 %v6906
    %v6950 = vpop.f32.mrb[0].mxu0
    %v6951 = vadd.f32 %v6888, %v6950
    %v6952 = vpop.f32.mrb[0].mxu0
    %v6953 = vpop.f32.mrb[0].mxu0
    %v6954 = vpop.f32.mrb[0].mxu0
    %6955 = vdwg.mxu0
    %v6956 = vadd.f32 %v5993, %v6943
    %v6957 = vadd.f32 %v5994, %v6946
    %v6958 = vadd.f32 %v5995, %v6951
    %s6959 = scalar_lea.vmem [#allocation19], 1
    %v6960 = vld [vmem:[%s6959] sm:$0x1]
    %s6961 = scalar_lea.vmem [#allocation20], 1
    %v6962 = vld [vmem:[%s6961] sm:$0x1]
    %v6963 = vsel %vm627, %v6956, 0.0
    %6964 = vadd.xlane.f32.xlu0 %v6963
    %v6965 = vpop.xlane.xlu0 %6964
    %v6966 = vsel %vm627, %v6957, 0.0
    %6967 = vadd.xlane.f32.xlu0 %v6966
    %v6968 = vpop.xlane.xlu0 %6967
    %v6969 = vsel %vm3037, %v6958, 0.0
    %6970 = vadd.xlane.f32.xlu0 %v6969
    %v6971 = vpop.xlane.xlu0 %6970
    %v6972 = vmul.f32 %v6965, %v3041
    %v6973 = vmul.f32 %v6968, %v3041
    %v6974 = vmul.f32 %v6971, %v3041
    %v6975 = vsub.f32 %v6956, %v6972
    %v6976 = vsub.f32 %v6957, %v6973
    %v6977 = vsub.f32 %v6958, %v6974
    %v6978 = vmul.f32 %v6975, %v6975
    %v6979 = vmul.f32 %v6976, %v6976
    %v6980 = vmul.f32 %v6977, %v6977
    %v6981 = vsel %vm627, %v6978, 0.0
    %6982 = vadd.xlane.f32.xlu0 %v6981
    %v6983 = vpop.xlane.xlu0 %6982
    %v6984 = vsel %vm627, %v6979, 0.0
    %6985 = vadd.xlane.f32.xlu0 %v6984
    %v6986 = vpop.xlane.xlu0 %6985
    %v6987 = vsel %vm3037, %v6980, 0.0
    %6988 = vadd.xlane.f32.xlu0 %v6987
    %v6989 = vpop.xlane.xlu0 %6988
    %v6990 = vmul.f32 %v6983, %v3060
    %v6991 = vmul.f32 %v6986, %v3060
    %v6992 = vmul.f32 %v6989, %v3060
    %v6994 = vlaneseq
    %v6995 = vshrl.u32 %v6994, 7
    %v6996 = vsub.s32 0, %v6995
    %v6997 = vrot.slane %v6960, %v6996
    %v6999 = vmul.f32 %v6997, %v6975
    %v7000 = vmul.f32 %v6997, %v6976
    %v7001 = vmul.f32 %v6997, %v6977
    %v7002 = vrsqrt.pop %v6990
    %v7003 = vmul.f32 %v6990, %v7002
    %vm7004 = vcmp.eq.f32.partialorder %v6990, inf
    %v7005 = vsel %vm7004, %v6990, %v7003
    %vm7006 = vcmp.eq.f32.partialorder %v6990, 0.0
    %v7007 = vand.u32 %v6990, 2147483648
    %v7008 = vsel %vm7006, %v7007, %v7005
    %v7009 = vrsqrt.pop %v6991
    %v7010 = vmul.f32 %v6991, %v7009
    %vm7011 = vcmp.eq.f32.partialorder %v6991, inf
    %v7012 = vsel %vm7011, %v6991, %v7010
    %vm7013 = vcmp.eq.f32.partialorder %v6991, 0.0
    %v7014 = vand.u32 %v6991, 2147483648
    %v7015 = vsel %vm7013, %v7014, %v7012
    %v7016 = vrsqrt.pop %v6992
    %v7017 = vmul.f32 %v6992, %v7016
    %vm7018 = vcmp.eq.f32.partialorder %v6992, inf
    %v7019 = vsel %vm7018, %v6992, %v7017
    %vm7020 = vcmp.eq.f32.partialorder %v6992, 0.0
    %v7021 = vand.u32 %v6992, 2147483648
    %v7022 = vsel %vm7020, %v7021, %v7019
    %v7023 = vadd.f32 %v7008, 1e-06
    %v7024 = vadd.f32 %v7015, 1e-06
    %v7025 = vadd.f32 %v7022, 1e-06
    %v7026 = vrcp.pop %v7023
    %v7027 = vmul.f32 %v6999, %v7026
    %v7028 = vrcp.pop %v7024
    %v7029 = vmul.f32 %v7000, %v7028
    %v7030 = vrcp.pop %v7025
    %v7031 = vmul.f32 %v7001, %v7030
    %v7033 = vlaneseq
    %v7034 = vshrl.u32 %v7033, 7
    %v7035 = vsub.s32 0, %v7034
    %v7036 = vrot.slane %v6962, %v7035
    %v7038 = vadd.f32 %v7027, %v7036
    %v7039 = vadd.f32 %v7029, %v7036
    %v7040 = vadd.f32 %v7031, %v7036
    %s7041 = scalar_lea.vmem %s73, 16
    %v7042 = vld [vmem:[%s7041] sm:$0xf]
    %v7043 = vld [vmem:[%s7041 + $0x4] sm:$0xf]
    %v7044 = vld [vmem:[%s7041 + $0x8] sm:$0xf]
    %v7045 = vld [vmem:[%s7041 + $0xc] sm:$0xf]
    %s7046 = scalar_lea.vmem [#allocation22], 1
    %v7047 = vld [vmem:[%s7046] sm:$0x1]
    %v7048 = vpack.c.bf16 %v7039, %v7038
    %v7049 = vpack.c.bf16 %v7040, %v7040
    %v7051 = vlaneseq
    %v7052 = vshrl.u32 %v7051, 7
    %v7053 = vsub.s32 0, %v7052
    %v7054 = vrot.slane %v7047, %v7053
    %v7060 = vunpack.c.l.b16 %v7042
    %v7061 = vunpack.c.l.b16 %v7043
    %v7062 = vunpack.c.l.b16 %v7044
    %v7063 = vunpack.c.l.b16 %v7045
    %v7064 = vpack.c.b16 %v7061, %v7060
    %v7065 = vpack.c.b16 %v7063, %v7062
    %v7069 = vsel %vm627, %v7048, 0
    %v7072 = vsel %vm627, %v7049, 0
    %7074 = vmatprep.subr.bf16.mxu0 0
    %7075 = vmatpush1.bf16.msra.mxu0 %v7064
    %7076 = vmatprep.subr.bf16.mxu0 0
    %7077 = vmatpush1.bf16.msra.mxu0 %v7065
    %7078 = vmatprep.subr.bf16.mxu0 0
    %7079 = vmatpush1.bf16.msra.mxu0 0
    %7080 = vmatprep.subr.bf16.mxu0 0
    %7081 = vmatpush1.bf16.msra.mxu0 0
    %7082 = vmatprep.subr.bf16.mxu0 0
    %7083 = vmatpush1.bf16.msra.mxu0 0
    %7084 = vmatprep.subr.bf16.mxu0 0
    %7085 = vmatpush1.bf16.msra.mxu0 0
    %7086 = vmatprep.subr.bf16.mxu0 0
    %7087 = vmatpush1.bf16.msra.mxu0 0
    %7088 = vmatprep.subr.bf16.mxu0 0
    %7089 = vmatpush1.bf16.msra.mxu0 0
    %7090 = vmatprep.subr.bf16.mxu0 0
    %7091 = vmatpush1.bf16.msra.mxu0 0
    %7092 = vmatprep.subr.bf16.mxu0 0
    %7093 = vmatpush1.bf16.msra.mxu0 0
    %7094 = vmatprep.subr.bf16.mxu0 0
    %7095 = vmatpush1.bf16.msra.mxu0 0
    %7096 = vmatprep.subr.bf16.mxu0 0
    %7097 = vmatpush1.bf16.msra.mxu0 0
    %7098 = vmatprep.subr.bf16.mxu0 0
    %7099 = vmatpush1.bf16.msra.mxu0 0
    %7100 = vmatprep.subr.bf16.mxu0 0
    %7101 = vmatpush1.bf16.msra.mxu0 0
    %7102 = vmatprep.subr.bf16.mxu0 0
    %7103 = vmatpush1.bf16.msra.mxu0 0
    %7104 = vmatprep.subr.bf16.mxu0 0
    %7105 = vmatpush1.bf16.msra.mxu0 0
    %7106 = vmatprep.mubr.bf16.mxu0 0
    %7107 = vmatmul.mubr.bf16.gmra.mrb[0].mxu0 %v7069
    %v7108 = vpop.f32.mrb[0].mxu0
    %v7109 = vadd.f32 %v7054, %v7108
    %v7110 = vpop.f32.mrb[0].mxu0
    %v7111 = vpop.f32.mrb[0].mxu0
    %v7112 = vadd.f32 %v7054, %v7111
    %v7113 = vpop.f32.mrb[0].mxu0
    %7114 = vmatprep.mubr.bf16.mxu0 0
    %7115 = vmatmul.mubr.bf16.gmra.mrb[0].mxu0 %v7072
    %v7116 = vpop.f32.mrb[0].mxu0
    %v7117 = vadd.f32 %v7054, %v7116
    %v7118 = vpop.f32.mrb[0].mxu0
    %v7119 = vpop.f32.mrb[0].mxu0
    %v7120 = vpop.f32.mrb[0].mxu0
    %7121 = vdwg.mxu0
    %v7122 = vmax.f32 %v7109, 0.0
    %v7123 = vmax.f32 %v7112, 0.0
    %v7124 = vmax.f32 %v7117, 0.0
    %s7125 = scalar_lea.vmem %s77, 32
    %v7126 = vld [vmem:[%s7125] sm:$0xf]
    %v7127 = vld [vmem:[%s7125 + $0x4] sm:$0xf]
    %v7128 = vld [vmem:[%s7125 + $0x8] sm:$0xf]
    %v7129 = vld [vmem:[%s7125 + $0xc] sm:$0xf]
    %v7130 = vld [vmem:[%s7125 + $0x10] sm:$0xf]
    %v7131 = vld [vmem:[%s7125 + $0x14] sm:$0xf]
    %v7132 = vld [vmem:[%s7125 + $0x18] sm:$0xf]
    %v7133 = vld [vmem:[%s7125 + $0x1c] sm:$0xf]
    %s7134 = scalar_lea.vmem [#allocation23], 1
    %v7135 = vld [vmem:[%s7134] sm:$0x1]
    %v7136 = vpack.c.bf16 %v7123, %v7122
    %v7137 = vpack.c.bf16 %v7124, %v7124
    %v7139 = vlaneseq
    %v7140 = vshrl.u32 %v7139, 7
    %v7141 = vsub.s32 0, %v7140
    %v7142 = vrot.slane %v7135, %v7141
    %v7152 = vunpack.c.l.b16 %v7126
    %v7153 = vunpack.c.l.b16 %v7127
    %v7154 = vunpack.c.l.b16 %v7128
    %v7155 = vunpack.c.l.b16 %v7129
    %v7156 = vunpack.c.l.b16 %v7130
    %v7157 = vunpack.c.l.b16 %v7131
    %v7158 = vunpack.c.l.b16 %v7132
    %v7159 = vunpack.c.l.b16 %v7133
    %v7160 = vpack.c.b16 %v7153, %v7152
    %v7161 = vpack.c.b16 %v7155, %v7154
    %v7162 = vpack.c.b16 %v7157, %v7156
    %v7163 = vpack.c.b16 %v7159, %v7158
    %v7169 = vsel %vm843, %v7136, 0
    %v7172 = vsel %vm843, %v7137, 0
    %7174 = vmatprep.subr.bf16.mxu0 0
    %7175 = vmatpush1.bf16.msra.mxu0 %v7160
    %7176 = vmatprep.subr.bf16.mxu0 0
    %7177 = vmatpush1.bf16.msra.mxu0 %v7161
    %7178 = vmatprep.subr.bf16.mxu0 0
    %7179 = vmatpush1.bf16.msra.mxu0 %v7162
    %7180 = vmatprep.subr.bf16.mxu0 0
    %7181 = vmatpush1.bf16.msra.mxu0 %v7163
    %7182 = vmatprep.subr.bf16.mxu0 0
    %7183 = vmatpush1.bf16.msra.mxu0 0
    %7184 = vmatprep.subr.bf16.mxu0 0
    %7185 = vmatpush1.bf16.msra.mxu0 0
    %7186 = vmatprep.subr.bf16.mxu0 0
    %7187 = vmatpush1.bf16.msra.mxu0 0
    %7188 = vmatprep.subr.bf16.mxu0 0
    %7189 = vmatpush1.bf16.msra.mxu0 0
    %7190 = vmatprep.subr.bf16.mxu0 0
    %7191 = vmatpush1.bf16.msra.mxu0 0
    %7192 = vmatprep.subr.bf16.mxu0 0
    %7193 = vmatpush1.bf16.msra.mxu0 0
    %7194 = vmatprep.subr.bf16.mxu0 0
    %7195 = vmatpush1.bf16.msra.mxu0 0
    %7196 = vmatprep.subr.bf16.mxu0 0
    %7197 = vmatpush1.bf16.msra.mxu0 0
    %7198 = vmatprep.subr.bf16.mxu0 0
    %7199 = vmatpush1.bf16.msra.mxu0 0
    %7200 = vmatprep.subr.bf16.mxu0 0
    %7201 = vmatpush1.bf16.msra.mxu0 0
    %7202 = vmatprep.subr.bf16.mxu0 0
    %7203 = vmatpush1.bf16.msra.mxu0 0
    %7204 = vmatprep.subr.bf16.mxu0 0
    %7205 = vmatpush1.bf16.msra.mxu0 0
    %7206 = vmatprep.mubr.bf16.mxu0 0
    %7207 = vmatmul.mubr.bf16.gmra.mrb[0].mxu0 %v7169
    %v7208 = vpop.f32.mrb[0].mxu0
    %v7209 = vadd.f32 %v7142, %v7208
    %v7210 = vpop.f32.mrb[0].mxu0
    %v7211 = vpop.f32.mrb[0].mxu0
    %v7212 = vadd.f32 %v7142, %v7211
    %v7213 = vpop.f32.mrb[0].mxu0
    %7214 = vmatprep.mubr.bf16.mxu0 0
    %7215 = vmatmul.mubr.bf16.gmra.mrb[0].mxu0 %v7172
    %v7216 = vpop.f32.mrb[0].mxu0
    %v7217 = vpop.f32.mrb[0].mxu0
    %v7218 = vpop.f32.mrb[0].mxu0
    %v7219 = vpop.f32.mrb[0].mxu0
    %7220 = vdwg.mxu0
    %v7221 = vadd.f32 %v7038, %v7209
    %v7222 = vadd.f32 %v7039, %v7212
    %s7223 = scalar_lea.vmem [#allocation25], 1
    %v7224 = vld [vmem:[%s7223] sm:$0x1]
    %s7225 = scalar_lea.vmem [#allocation26], 1
    %v7226 = vld [vmem:[%s7225] sm:$0x1]
    %v7227 = vsel %vm627, %v7221, 0.0
    %7228 = vadd.xlane.f32.xlu0 %v7227
    %v7229 = vpop.xlane.xlu0 %7228
    %v7230 = vsel %vm627, %v7222, 0.0
    %7231 = vadd.xlane.f32.xlu0 %v7230
    %v7232 = vpop.xlane.xlu0 %7231
    %v7233 = vmul.f32 %v7229, %v3041
    %v7234 = vmul.f32 %v7232, %v3041
    %v7235 = vsub.f32 %v7221, %v7233
    %v7236 = vsub.f32 %v7222, %v7234
    %v7237 = vmul.f32 %v7235, %v7235
    %v7238 = vmul.f32 %v7236, %v7236
    %v7239 = vsel %vm627, %v7237, 0.0
    %7240 = vadd.xlane.f32.xlu0 %v7239
    %v7241 = vpop.xlane.xlu0 %7240
    %v7242 = vsel %vm627, %v7238, 0.0
    %7243 = vadd.xlane.f32.xlu0 %v7242
    %v7244 = vpop.xlane.xlu0 %7243
    %v7245 = vmul.f32 %v7241, %v3060
    %v7246 = vmul.f32 %v7244, %v3060
    %v7248 = vlaneseq
    %v7249 = vshrl.u32 %v7248, 7
    %v7250 = vsub.s32 0, %v7249
    %v7251 = vrot.slane %v7224, %v7250
    %v7253 = vmul.f32 %v7251, %v7235
    %v7254 = vmul.f32 %v7251, %v7236
    %v7255 = vrsqrt.pop %v7245
    %v7256 = vmul.f32 %v7245, %v7255
    %vm7257 = vcmp.eq.f32.partialorder %v7245, inf
    %v7258 = vsel %vm7257, %v7245, %v7256
    %vm7259 = vcmp.eq.f32.partialorder %v7245, 0.0
    %v7260 = vand.u32 %v7245, 2147483648
    %v7261 = vsel %vm7259, %v7260, %v7258
    %v7262 = vrsqrt.pop %v7246
    %v7263 = vmul.f32 %v7246, %v7262
    %vm7264 = vcmp.eq.f32.partialorder %v7246, inf
    %v7265 = vsel %vm7264, %v7246, %v7263
    %vm7266 = vcmp.eq.f32.partialorder %v7246, 0.0
    %v7267 = vand.u32 %v7246, 2147483648
    %v7268 = vsel %vm7266, %v7267, %v7265
    %v7269 = vadd.f32 %v7261, 1e-06
    %v7270 = vadd.f32 %v7268, 1e-06
    %v7271 = vrcp.pop %v7269
    %v7272 = vmul.f32 %v7253, %v7271
    %v7273 = vrcp.pop %v7270
    %v7274 = vmul.f32 %v7254, %v7273
    %v7276 = vlaneseq
    %v7277 = vshrl.u32 %v7276, 7
    %v7278 = vsub.s32 0, %v7277
    %v7279 = vrot.slane %v7226, %v7278
    %v7281 = vadd.f32 %v7272, %v7279
    %v7282 = vadd.f32 %v7274, %v7279
    %v7283 = vsel %vm1785, %v4657, %v4658
    %v7284 = vsel %vm1785, %v7281, %v7282
    %v7285 = vld [vmem:[%s85] sm:$0xf]
    %v7286 = vld [vmem:[%s85 + $0x4] sm:$0xf]
    %v7287 = vld [vmem:[%s85 + $0x8] sm:$0xf]
    %v7288 = vld [vmem:[%s85 + $0xc] sm:$0xf]
    %v7289 = vld [vmem:[%s87] sm:$0x1]
    %v7290 = vpack.c.bf16 %v7283, %v7283
    %v7292 = vlaneseq
    %v7293 = vshrl.u32 %v7292, 7
    %v7294 = vsub.s32 0, %v7293
    %v7295 = vrot.slane %v7289, %v7294
    %v7301 = vunpack.c.l.b16 %v7285
    %v7302 = vunpack.c.l.b16 %v7286
    %v7303 = vunpack.c.l.b16 %v7287
    %v7304 = vunpack.c.l.b16 %v7288
    %v7305 = vpack.c.b16 %v7302, %v7301
    %v7306 = vpack.c.b16 %v7304, %v7303
    %v7310 = vsel %vm627, %v7290, 0
    %7312 = vmatprep.subr.bf16.mxu0 0
    %7313 = vmatpush1.bf16.msra.mxu0 %v7305
    %7314 = vmatprep.subr.bf16.mxu0 0
    %7315 = vmatpush1.bf16.msra.mxu0 %v7306
    %7316 = vmatprep.subr.bf16.mxu0 0
    %7317 = vmatpush1.bf16.msra.mxu0 0
    %7318 = vmatprep.subr.bf16.mxu0 0
    %7319 = vmatpush1.bf16.msra.mxu0 0
    %7320 = vmatprep.subr.bf16.mxu0 0
    %7321 = vmatpush1.bf16.msra.mxu0 0
    %7322 = vmatprep.subr.bf16.mxu0 0
    %7323 = vmatpush1.bf16.msra.mxu0 0
    %7324 = vmatprep.subr.bf16.mxu0 0
    %7325 = vmatpush1.bf16.msra.mxu0 0
    %7326 = vmatprep.subr.bf16.mxu0 0
    %7327 = vmatpush1.bf16.msra.mxu0 0
    %7328 = vmatprep.subr.bf16.mxu0 0
    %7329 = vmatpush1.bf16.msra.mxu0 0
    %7330 = vmatprep.subr.bf16.mxu0 0
    %7331 = vmatpush1.bf16.msra.mxu0 0
    %7332 = vmatprep.subr.bf16.mxu0 0
    %7333 = vmatpush1.bf16.msra.mxu0 0
    %7334 = vmatprep.subr.bf16.mxu0 0
    %7335 = vmatpush1.bf16.msra.mxu0 0
    %7336 = vmatprep.subr.bf16.mxu0 0
    %7337 = vmatpush1.bf16.msra.mxu0 0
    %7338 = vmatprep.subr.bf16.mxu0 0
    %7339 = vmatpush1.bf16.msra.mxu0 0
    %7340 = vmatprep.subr.bf16.mxu0 0
    %7341 = vmatpush1.bf16.msra.mxu0 0
    %7342 = vmatprep.subr.bf16.mxu0 0
    %7343 = vmatpush1.bf16.msra.mxu0 0
    %7344 = vmatprep.mubr.bf16.mxu0 0
    %7345 = vmatmul.mubr.bf16.gmra.mrb[0].mxu0 %v7310
    %v7346 = vpop.f32.mrb[0].mxu0
    %v7347 = vadd.f32 %v7295, %v7346
    %v7348 = vpop.f32.mrb[0].mxu0
    %v7349 = vpop.f32.mrb[0].mxu0
    %v7350 = vpop.f32.mrb[0].mxu0
    %7351 = vdwg.mxu0
    %v7352 = vtanh.pop %v7347
    %v7353 = vld [vmem:[#allocation28] sm:$0xf]
    %v7354 = vld [vmem:[#allocation28 + $0x4] sm:$0xf]
    %v7355 = vld [vmem:[#allocation28 + $0x8] sm:$0xf]
    %v7356 = vld [vmem:[#allocation28 + $0xc] sm:$0xf]
    %v7357 = vld [vmem:[#allocation29] sm:$0x1]
    %v7358 = vpack.c.bf16 %v7284, %v7284
    %v7360 = vlaneseq
    %v7361 = vshrl.u32 %v7360, 7
    %v7362 = vsub.s32 0, %v7361
    %v7363 = vrot.slane %v7357, %v7362
    %v7369 = vunpack.c.l.b16 %v7353
    %v7370 = vunpack.c.l.b16 %v7354
    %v7371 = vunpack.c.l.b16 %v7355
    %v7372 = vunpack.c.l.b16 %v7356
    %v7373 = vpack.c.b16 %v7370, %v7369
    %v7374 = vpack.c.b16 %v7372, %v7371
    %v7378 = vsel %vm627, %v7358, 0
    %7380 = vmatprep.subr.bf16.mxu0 0
    %7381 = vmatpush1.bf16.msra.mxu0 %v7373
    %7382 = vmatprep.subr.bf16.mxu0 0
    %7383 = vmatpush1.bf16.msra.mxu0 %v7374
    %7384 = vmatprep.subr.bf16.mxu0 0
    %7385 = vmatpush1.bf16.msra.mxu0 0
    %7386 = vmatprep.subr.bf16.mxu0 0
    %7387 = vmatpush1.bf16.msra.mxu0 0
    %7388 = vmatprep.subr.bf16.mxu0 0
    %7389 = vmatpush1.bf16.msra.mxu0 0
    %7390 = vmatprep.subr.bf16.mxu0 0
    %7391 = vmatpush1.bf16.msra.mxu0 0
    %7392 = vmatprep.subr.bf16.mxu0 0
    %7393 = vmatpush1.bf16.msra.mxu0 0
    %7394 = vmatprep.subr.bf16.mxu0 0
    %7395 = vmatpush1.bf16.msra.mxu0 0
    %7396 = vmatprep.subr.bf16.mxu0 0
    %7397 = vmatpush1.bf16.msra.mxu0 0
    %7398 = vmatprep.subr.bf16.mxu0 0
    %7399 = vmatpush1.bf16.msra.mxu0 0
    %7400 = vmatprep.subr.bf16.mxu0 0
    %7401 = vmatpush1.bf16.msra.mxu0 0
    %7402 = vmatprep.subr.bf16.mxu0 0
    %7403 = vmatpush1.bf16.msra.mxu0 0
    %7404 = vmatprep.subr.bf16.mxu0 0
    %7405 = vmatpush1.bf16.msra.mxu0 0
    %7406 = vmatprep.subr.bf16.mxu0 0
    %7407 = vmatpush1.bf16.msra.mxu0 0
    %7408 = vmatprep.subr.bf16.mxu0 0
    %7409 = vmatpush1.bf16.msra.mxu0 0
    %7410 = vmatprep.subr.bf16.mxu0 0
    %7411 = vmatpush1.bf16.msra.mxu0 0
    %7412 = vmatprep.mubr.bf16.mxu0 0
    %7413 = vmatmul.mubr.bf16.gmra.mrb[0].mxu0 %v7378
    %v7414 = vpop.f32.mrb[0].mxu0
    %v7415 = vadd.f32 %v7363, %v7414
    %v7416 = vpop.f32.mrb[0].mxu0
    %v7417 = vpop.f32.mrb[0].mxu0
    %v7418 = vpop.f32.mrb[0].mxu0
    %7419 = vdwg.mxu0
    %v7420 = vtanh.pop %v7415
    %v7421 = vmul.f32 %v7352, %v7420
    %v7422 = vld [vmem:[#allocation31] sm:$0xf]
    %v7423 = vld [vmem:[#allocation31 + $0x4] sm:$0xf]
    %v7424 = vld [vmem:[#allocation31 + $0x8] sm:$0xf]
    %v7425 = vld [vmem:[#allocation31 + $0xc] sm:$0xf]
    %v7426 = vld [vmem:[#allocation32] sm:$0x1]
    %v7427 = vpack.c.bf16 %v7421, %v7421
    %v7429 = vlaneseq
    %v7430 = vshrl.u32 %v7429, 7
    %v7431 = vsub.s32 0, %v7430
    %v7432 = vrot.slane %v7426, %v7431
    %v7438 = vunpack.c.l.b16 %v7422
    %v7439 = vunpack.c.l.b16 %v7423
    %v7440 = vunpack.c.l.b16 %v7424
    %v7441 = vunpack.c.l.b16 %v7425
    %v7442 = vpack.c.b16 %v7439, %v7438
    %v7443 = vpack.c.b16 %v7441, %v7440
    %v7447 = vsel %vm627, %v7427, 0
    %7449 = vmatprep.subr.bf16.mxu0 0
    %7450 = vmatpush1.bf16.msra.mxu0 %v7442
    %7451 = vmatprep.subr.bf16.mxu0 0
    %7452 = vmatpush1.bf16.msra.mxu0 %v7443
    %7453 = vmatprep.subr.bf16.mxu0 0
    %7454 = vmatpush1.bf16.msra.mxu0 0
    %7455 = vmatprep.subr.bf16.mxu0 0
    %7456 = vmatpush1.bf16.msra.mxu0 0
    %7457 = vmatprep.subr.bf16.mxu0 0
    %7458 = vmatpush1.bf16.msra.mxu0 0
    %7459 = vmatprep.subr.bf16.mxu0 0
    %7460 = vmatpush1.bf16.msra.mxu0 0
    %7461 = vmatprep.subr.bf16.mxu0 0
    %7462 = vmatpush1.bf16.msra.mxu0 0
    %7463 = vmatprep.subr.bf16.mxu0 0
    %7464 = vmatpush1.bf16.msra.mxu0 0
    %7465 = vmatprep.subr.bf16.mxu0 0
    %7466 = vmatpush1.bf16.msra.mxu0 0
    %7467 = vmatprep.subr.bf16.mxu0 0
    %7468 = vmatpush1.bf16.msra.mxu0 0
    %7469 = vmatprep.subr.bf16.mxu0 0
    %7470 = vmatpush1.bf16.msra.mxu0 0
    %7471 = vmatprep.subr.bf16.mxu0 0
    %7472 = vmatpush1.bf16.msra.mxu0 0
    %7473 = vmatprep.subr.bf16.mxu0 0
    %7474 = vmatpush1.bf16.msra.mxu0 0
    %7475 = vmatprep.subr.bf16.mxu0 0
    %7476 = vmatpush1.bf16.msra.mxu0 0
    %7477 = vmatprep.subr.bf16.mxu0 0
    %7478 = vmatpush1.bf16.msra.mxu0 0
    %7479 = vmatprep.subr.bf16.mxu0 0
    %7480 = vmatpush1.bf16.msra.mxu0 0
    %7481 = vmatprep.mubr.bf16.mxu0 0
    %7482 = vmatmul.mubr.bf16.gmra.mrb[0].mxu0 %v7447
    %v7483 = vpop.f32.mrb[0].mxu0
    %v7484 = vadd.f32 %v7432, %v7483
    %v7485 = vpop.f32.mrb[0].mxu0
    %v7486 = vpop.f32.mrb[0].mxu0
    %v7487 = vpop.f32.mrb[0].mxu0
    %7488 = vdwg.mxu0
    %v7489 = vtanh.pop %v7484
    %v7490 = vld [vmem:[%s97] sm:$0x1]
    %v7491 = vld [vmem:[%s99] sm:$0x1]
    %v7492 = vsel %vm3037, %v7489, 0.0
    %7493 = vadd.xlane.f32.xlu0 %v7492
    %v7494 = vpop.xlane.xlu0 %7493
    %v7495 = vmul.f32 %v7494, %v3041
    %v7496 = vsub.f32 %v7489, %v7495
    %v7497 = vmul.f32 %v7496, %v7496
    %v7498 = vsel %vm3037, %v7497, 0.0
    %7499 = vadd.xlane.f32.xlu0 %v7498
    %v7500 = vpop.xlane.xlu0 %7499
    %v7501 = vmul.f32 %v7500, %v3060
    %v7503 = vlaneseq
    %v7504 = vshrl.u32 %v7503, 7
    %v7505 = vsub.s32 0, %v7504
    %v7506 = vrot.slane %v7490, %v7505
    %v7508 = vmul.f32 %v7506, %v7496
    %v7509 = vrsqrt.pop %v7501
    %v7510 = vmul.f32 %v7501, %v7509
    %vm7511 = vcmp.eq.f32.partialorder %v7501, inf
    %v7512 = vsel %vm7511, %v7501, %v7510
    %vm7513 = vcmp.eq.f32.partialorder %v7501, 0.0
    %v7514 = vand.u32 %v7501, 2147483648
    %v7515 = vsel %vm7513, %v7514, %v7512
    %v7516 = vadd.f32 %v7515, 1e-06
    %v7517 = vrcp.pop %v7516
    %v7518 = vmul.f32 %v7508, %v7517
    %v7520 = vlaneseq
    %v7521 = vshrl.u32 %v7520, 7
    %v7522 = vsub.s32 0, %v7521
    %v7523 = vrot.slane %v7491, %v7522
    %v7525 = vadd.f32 %v7518, %v7523
    %v7526 = vld [vmem:[%s101] sm:$0xf]
    %v7527 = vld [vmem:[%s101 + $0x4] sm:$0xf]
    %v7528 = vld [vmem:[%s101 + $0x8] sm:$0xf]
    %v7529 = vld [vmem:[%s101 + $0xc] sm:$0xf]
    %v7530 = vld [vmem:[#allocation34] sm:$0x1]
    %v7531 = vpack.c.bf16 %v7525, %v7525
    %v7533 = vlaneseq
    %v7534 = vshrl.u32 %v7533, 7
    %v7535 = vsub.s32 0, %v7534
    %v7536 = vrot.slane %v7530, %v7535
    %v7542 = vunpack.c.l.b16 %v7526
    %v7543 = vunpack.c.l.b16 %v7527
    %v7544 = vunpack.c.l.b16 %v7528
    %v7545 = vunpack.c.l.b16 %v7529
    %v7546 = vpack.c.b16 %v7543, %v7542
    %v7547 = vpack.c.b16 %v7545, %v7544
    %v7551 = vsel %vm627, %v7531, 0
    %7553 = vmatprep.subr.bf16.mxu0 0
    %7554 = vmatpush1.bf16.msra.mxu0 %v7546
    %7555 = vmatprep.subr.bf16.mxu0 0
    %7556 = vmatpush1.bf16.msra.mxu0 %v7547
    %7557 = vmatprep.subr.bf16.mxu0 0
    %7558 = vmatpush1.bf16.msra.mxu0 0
    %7559 = vmatprep.subr.bf16.mxu0 0
    %7560 = vmatpush1.bf16.msra.mxu0 0
    %7561 = vmatprep.subr.bf16.mxu0 0
    %7562 = vmatpush1.bf16.msra.mxu0 0
    %7563 = vmatprep.subr.bf16.mxu0 0
    %7564 = vmatpush1.bf16.msra.mxu0 0
    %7565 = vmatprep.subr.bf16.mxu0 0
    %7566 = vmatpush1.bf16.msra.mxu0 0
    %7567 = vmatprep.subr.bf16.mxu0 0
    %7568 = vmatpush1.bf16.msra.mxu0 0
    %7569 = vmatprep.subr.bf16.mxu0 0
    %7570 = vmatpush1.bf16.msra.mxu0 0
    %7571 = vmatprep.subr.bf16.mxu0 0
    %7572 = vmatpush1.bf16.msra.mxu0 0
    %7573 = vmatprep.subr.bf16.mxu0 0
    %7574 = vmatpush1.bf16.msra.mxu0 0
    %7575 = vmatprep.subr.bf16.mxu0 0
    %7576 = vmatpush1.bf16.msra.mxu0 0
    %7577 = vmatprep.subr.bf16.mxu0 0
    %7578 = vmatpush1.bf16.msra.mxu0 0
    %7579 = vmatprep.subr.bf16.mxu0 0
    %7580 = vmatpush1.bf16.msra.mxu0 0
    %7581 = vmatprep.subr.bf16.mxu0 0
    %7582 = vmatpush1.bf16.msra.mxu0 0
    %7583 = vmatprep.subr.bf16.mxu0 0
    %7584 = vmatpush1.bf16.msra.mxu0 0
    %7585 = vmatprep.mubr.bf16.mxu0 0
    %7586 = vmatmul.mubr.bf16.gmra.mrb[0].mxu0 %v7551
    %v7587 = vpop.f32.mrb[0].mxu0
    %v7588 = vadd.f32 %v7536, %v7587
    %v7589 = vpop.f32.mrb[0].mxu0
    %v7590 = vpop.f32.mrb[0].mxu0
    %v7591 = vpop.f32.mrb[0].mxu0
    %7592 = vdwg.mxu0
    %vm7593 = vcmask 74752
    %7594 = vst.msk [vmem:[#allocation35] sm:$0x3] %vm7593, %v7588
    // Predicated region
    $region294: #{net_forward.1} parent=1 // pred_check
      _
    $region295: #{net_forward.1} parent=1 // pred_check_branch
      %7596 = sbr.rel (0) target = $region297
    $region296: #{net_forward.1} parent=1 // pred_region
      %s7598 = ssub.s32 32, 32
      %7599 = vsyncadd [#allocation4], %s7598
      %s7601 = sshll.u32 [#allocation35], 4
      %s7602 = int_to_ptr.vmem [resolvable:$true] %s7601
      %7604 = dma.vmem_to_hbm [thread:$0]  %s7602, 32, %s105, [#allocation4]
    $region297: #{net_forward.1} parent=1 // pred_fallthru
      _
    // Predicated region
    $region298: #{net_forward.1} parent=1 // pred_check
      _
    $region299: #{net_forward.1} parent=1 // pred_check_branch
      %7606 = sbr.rel (0) target = $region301
    $region300: #{net_forward.1} parent=1 // pred_region
      %s7608 = ssub.s32 256, 256
      %7609 = vsyncadd [#allocation37], %s7608
      %s7610 = sshll.u32 [#allocation36], 4
      %s7611 = int_to_ptr.vmem [resolvable:$true] %s7610
      %7616 = dma.vmem_to_hbm [thread:$0]  %s7611, 256, %s107, [#allocation37], 64, 64, 4
    $region301: #{net_forward.1} parent=1 // pred_fallthru
      _
    // Predicated region
    $region302: #{net_forward.1} parent=1 // pred_check
      _
    $region303: #{net_forward.1} parent=1 // pred_check_branch
      %7618 = sbr.rel (0) target = $region305
    $region304: #{net_forward.1} parent=1 // pred_region
      %s7620 = ssub.s32 256, 256
      %7621 = vsyncadd [#allocation37], %s7620
      %s7622 = sshll.u32 [#allocation38], 4
      %s7623 = int_to_ptr.vmem [resolvable:$true] %s7622
      %7628 = dma.vmem_to_hbm [thread:$0]  %s7623, 256, %s109, [#allocation37], 64, 64, 4
    $region305: #{net_forward.1} parent=1 // pred_fallthru
      _
    // Predicated region
    $region306: #{net_forward.1} parent=1 // pred_check
      _
    $region307: #{net_forward.1} parent=1 // pred_check_branch
      %7630 = sbr.rel (0) target = $region309
    $region308: #{net_forward.1} parent=1 // pred_region
      %7631 = dma.done [#allocation4], 32
    $region309: #{net_forward.1} parent=1 // pred_fallthru
      _
    // Predicated region
    $region310: #{net_forward.1} parent=1 // pred_check
      _
    $region311: #{net_forward.1} parent=1 // pred_check_branch
      %7633 = sbr.rel (0) target = $region313
    $region312: #{net_forward.1} parent=1 // pred_region
      %7634 = dma.done [#allocation37], 256
    $region313: #{net_forward.1} parent=1 // pred_fallthru
      _
    // Predicated region
    $region314: #{net_forward.1} parent=1 // pred_check
      _
    $region315: #{net_forward.1} parent=1 // pred_check_branch
      %7636 = sbr.rel (0) target = $region317
    $region316: #{net_forward.1} parent=1 // pred_region
      %7637 = dma.done [#allocation37], 256
    $region317: #{net_forward.1} parent=1 // pred_fallthru
      _
    %7638 = vsyncpa [#allocation3], 1
    %7639 = vsyncpa [#allocation6], 1
    %7640 = vsyncpa [#allocation9], 1
    %7641 = vsyncpa [#allocation12], 1
    %7642 = vsyncpa [#allocation15], 1
    %7643 = vsyncpa [#allocation18], 1
    %7644 = vsyncpa [#allocation21], 1
    %7645 = vsyncpa [#allocation24], 1
    %7646 = vsyncpa [#allocation27], 1
    %7647 = vsyncpa [#allocation30], 1
    %7648 = vsyncpa [#allocation33], 1
    %7649 = vsyncpa [#allocation4], 1
    %7650 = vsyncpa [#allocation37], 1

</llo_original>
